<compile_context>
chip_gen: v7x
topology: tpu7x:2x2x1
jax: 0.10.0
libtpu: 0.0.40
codegen_flags: <defaults>
</compile_context>

<pallas_src>
import functools

import jax
import jax.numpy as jnp
from jax.experimental import pallas as pl
from jax.experimental.pallas import tpu as pltpu

_TM = 128   # node-row tile for the loss kernel (sublane/lane friendly)


def _round_up(x, m):
    return ((x + m - 1) // m) * m


def _vmem_limit_bytes():
    """Per-generation scoped-VMEM budget (v7x: 64 MiB physical, v5e/v6e: 128)."""
    try:
        kind = jax.devices()[0].device_kind.lower()
    except Exception:  # pragma: no cover
        kind = ""
    if "v7" in kind:
        return 48 * 1024 * 1024
    if "v5" in kind or "v6" in kind:
        return 96 * 1024 * 1024
    return 32 * 1024 * 1024


# ----------------------------------------------------------------------------
# Kernel 1: fused GIN encoder (all layers) + SumPooling
#   grid = (n_layer,).  adj and pool_mat are resident bf16; node activations
#   live in a VMEM scratch across layers; each layer writes its slice of
#   local_emb and of the pooled global sums directly (lane-dense 128 stores).
# ----------------------------------------------------------------------------
def _encoder_kernel(adj_ref, feat_hbm, pool_ref, w1_ref, b1_ref, w2_ref, b2_ref,
                    gamma_ref, beta_ref, le_ref, gs_ref, x_sc,
                    *, n_nodes, hid, dmax):
    l = pl.program_id(0)

    @pl.when(l == 0)
    def _():
        # single DMA of the zero-padded input features into the resident
        # activation scratch; feat never occupies a pipelined VMEM block.
        pltpu.sync_copy(feat_hbm, x_sc)

    x = x_sc[...]
    # GINE aggregation ('sum', zero edge feats): agg_i = sum_j adj[i,j]*relu(x_j)
    # adj is resident bf16 (0/1 exact); messages cast to bf16 at the MXU input,
    # f32 accumulation.
    msg = jnp.maximum(x, 0.0).astype(jnp.bfloat16)
    agg = jnp.dot(adj_ref[...], msg, preferred_element_type=jnp.float32)
    h = x + agg                                   # (1 + eps) * x_i, eps = 0

    # apply_func: Linear -> ReLU -> Linear  (bf16 MXU inputs, f32 accumulate)
    h = jnp.maximum(
        jnp.dot(h.astype(jnp.bfloat16), w1_ref[...],
                preferred_element_type=jnp.float32) + b1_ref[...], 0.0)
    h = jnp.dot(h.astype(jnp.bfloat16), w2_ref[...],
                preferred_element_type=jnp.float32) + b2_ref[...]
    h = jnp.maximum(h, 0.0)                       # outer F.relu

    # BatchNorm1d, training-mode batch statistics, eps = 1e-5.
    # Two-pass (mean, then centered sum-of-squares) to avoid E[x^2]-E[x]^2
    # cancellation; full node axis is resident so the stats are exact.
    inv_n = 1.0 / float(n_nodes)
    mean = jnp.sum(h, axis=0, keepdims=True) * inv_n
    d = h - mean
    var = jnp.sum(d * d, axis=0, keepdims=True) * inv_n
    h = d * jax.lax.rsqrt(var + 1e-5) * gamma_ref[...] + beta_ref[...]

    le_ref[...] = h                               # this layer's slice of local_emb
    # fused SumPooling: this layer's slice of global_emb = pool_mat @ h
    gs_ref[...] = jnp.dot(pool_ref[...], h.astype(jnp.bfloat16),
                          preferred_element_type=jnp.float32)

    # feed the next layer (slice write, no concatenate / repack)
    x_sc[:, :hid] = h
    if dmax > hid:
        @pl.when(l == 0)
        def _():
            # columns [hid, dmax) may still hold input-feature values; zero
            # them once — they stay zero for all later layers.
            x_sc[:, hid:] = jnp.zeros((n_nodes, dmax - hid), jnp.float32)
    # TODO(synk): BatchNorm running_mean/running_var bookkeeping is not
    # materialized; it does not affect the training-mode forward output.
    # TODO(synk): for large / sparse graphs the dense resident adj matmul
    # should become a scalar-prefetch segment-sum gather, and the node axis
    # should be row-tiled with a two-phase grid-level BatchNorm reduction.


def gin_encoder(adj, nfeat, pool_mat, enc):
    n = nfeat.shape[0]
    g = pool_mat.shape[0]
    n_layer, dmax, hid = enc["w1"].shape
    assert n % 8 == 0 and hid % 128 == 0
    feat_p = jnp.pad(nfeat.astype(jnp.float32),
                     ((0, 0), (0, dmax - nfeat.shape[1])))
    kernel = functools.partial(_encoder_kernel, n_nodes=n, hid=hid, dmax=dmax)
    return pl.pallas_call(
        kernel,
        out_shape=(jax.ShapeDtypeStruct((n, n_layer * hid), jnp.float32),
                   jax.ShapeDtypeStruct((g, n_layer * hid), jnp.float32)),
        grid_spec=pltpu.PrefetchScalarGridSpec(
            num_scalar_prefetch=0,
            grid=(n_layer,),
            in_specs=[
                pl.BlockSpec((n, n), lambda l: (0, 0)),      # adj (bf16), resident
                pl.BlockSpec(memory_space=pl.ANY),           # padded feat, stays in HBM
                pl.BlockSpec((g, n), lambda l: (0, 0)),      # pool_mat (bf16), resident
                pl.BlockSpec((None, dmax, hid), lambda l: (l, 0, 0)),  # w1 (bf16)
                pl.BlockSpec((None, 1, hid), lambda l: (l, 0, 0)),     # b1
                pl.BlockSpec((None, hid, hid), lambda l: (l, 0, 0)),   # w2 (bf16)
                pl.BlockSpec((None, 1, hid), lambda l: (l, 0, 0)),     # b2
                pl.BlockSpec((None, 1, hid), lambda l: (l, 0, 0)),     # gamma
                pl.BlockSpec((None, 1, hid), lambda l: (l, 0, 0)),     # beta
            ],
            out_specs=(pl.BlockSpec((n, hid), lambda l: (0, l)),       # local_emb
                       pl.BlockSpec((g, hid), lambda l: (0, l))),      # global sums
            scratch_shapes=[pltpu.VMEM((n, dmax), jnp.float32)],       # resident x
        ),
        compiler_params=pltpu.CompilerParams(
            dimension_semantics=("arbitrary",),
            vmem_limit_bytes=_vmem_limit_bytes()),
    )(adj, feat_p, pool_mat, enc["w1"], enc["b1"], enc["w2"], enc["b2"],
      enc["gamma"], enc["beta"])


# ----------------------------------------------------------------------------
# Kernel 2: global FFN (on pooled sums) + local FFN + local_global_loss_ (JSD)
#   grid = (2, N // (2*TM)): leading axis is the per-TensorCore split (parallel
#   on v7x, plain serial on single-core chips); inner axis walks row tiles.
# ----------------------------------------------------------------------------
def _local_loss_kernel(gid_ref, le_ref, gsum_ref,
                       gw1j_ref, gb1j_ref, gw2_ref, gb2_ref, gw3_ref, gb3_ref,
                       lw1j_ref, lb1j_ref, lw2_ref, lb2_ref, lw3_ref, lb3_ref,
                       o_ref, gh_sc, epos_sc, eneg_sc, *, emb):
    i = pl.program_id(1)

    def ffn(x, w1j, b1j, w2, b2, w3, b3):
        # FeedforwardNetwork with the first Linear and jump Linear fused into
        # one (emb, 2*emb) bf16 matmul; f32 accumulation throughout.
        t = jnp.dot(x.astype(jnp.bfloat16), w1j,
                    preferred_element_type=jnp.float32) + b1j
        h = jnp.maximum(t[:, :emb], 0.0)
        jump = t[:, emb:]
        h = jnp.maximum(jnp.dot(h.astype(jnp.bfloat16), w2,
                                preferred_element_type=jnp.float32) + b2, 0.0)
        h = jnp.maximum(jnp.dot(h.astype(jnp.bfloat16), w3,
                                preferred_element_type=jnp.float32) + b3, 0.0)
        return h + jump

    @pl.when(i == 0)
    def _():
        # global_d FFN on the pooled embeddings (tiny: G rows); result stays
        # resident in VMEM (bf16, it is only ever an MXU operand).
        gh_sc[...] = ffn(gsum_ref[...], gw1j_ref[...], gb1j_ref[...],
                         gw2_ref[...], gb2_ref[...], gw3_ref[...],
                         gb3_ref[...]).astype(jnp.bfloat16)
        epos_sc[...] = jnp.zeros_like(epos_sc)
        eneg_sc[...] = jnp.zeros_like(eneg_sc)

    # local_d FFN on this row tile
    lh = ffn(le_ref[...], lw1j_ref[...], lb1j_ref[...], lw2_ref[...],
             lb2_ref[...], lw3_ref[...], lb3_ref[...])            # (TM, emb) f32

    # res[n, g] = <local_h[n], global_h[g]> — contract last dims, no transpose.
    res = jax.lax.dot_general(lh.astype(jnp.bfloat16), gh_sc[...],
                              (((1,), (1,)), ((), ())),
                              preferred_element_type=jnp.float32)  # (TM, G)

    # positive mask rebuilt in-kernel from the per-node graph id (no dense
    # (N, G) mask DMA): pos[n, g] = (g == graph_id[n])
    pos = jax.lax.broadcasted_iota(jnp.int32, res.shape, 1) == gid_ref[...]
    log2 = jnp.float32(0.6931471805599453)
    sp = jnp.maximum(-res, 0.0) + jnp.log(1.0 + jnp.exp(-jnp.abs(res)))  # softplus(-res)
    pos_term = log2 - sp                  # get_positive_expectation (JSD)
    neg_term = sp + res - log2            # get_negative_expectation (JSD)
    # element-wise partial sums; the cross-lane reduce happens once in finalize
    epos_sc[...] += jnp.where(pos, pos_term, 0.0)
    eneg_sc[...] += jnp.where(pos, 0.0, neg_term)

    @pl.when(i == pl.num_programs(1) - 1)
    def _():
        lane = jax.lax.broadcasted_iota(jnp.int32, o_ref.shape, 1)
        o_ref[...] = jnp.where(lane == 0, jnp.sum(epos_sc[...]),
                               jnp.where(lane == 1, jnp.sum(eneg_sc[...]), 0.0))


def local_loss(local_emb, graph_id, global_sum, global_p, local_p):
    n, emb = local_emb.shape
    g = global_sum.shape[0]
    assert g > 1, "local_global_loss_ divides by (num_graphs - 1)"
    assert n % (2 * _TM) == 0, "node count must split across the 2 core slices"
    n_half = n // (2 * _TM)
    kernel = functools.partial(_local_loss_kernel, emb=emb)

    def row_map(c, i):
        return (c * n_half + i, 0)

    const2 = lambda c, i: (0, 0)
    partial = pl.pallas_call(
        kernel,
        out_shape=jax.ShapeDtypeStruct((2, 1, 128), jnp.float32),
        grid_spec=pltpu.PrefetchScalarGridSpec(
            num_scalar_prefetch=0,
            grid=(2, n_half),
            in_specs=[
                pl.BlockSpec((_TM, 1), row_map),          # graph_id (int32)
                pl.BlockSpec((_TM, emb), row_map),        # local_emb row tile
                pl.BlockSpec((g, emb), const2),           # pooled global sums
                pl.BlockSpec((emb, 2 * emb), const2),     # global_d w1|jump (bf16)
                pl.BlockSpec((1, 2 * emb), const2),
                pl.BlockSpec((emb, emb), const2),
                pl.BlockSpec((1, emb), const2),
                pl.BlockSpec((emb, emb), const2),
                pl.BlockSpec((1, emb), const2),
                pl.BlockSpec((emb, 2 * emb), const2),     # local_d w1|jump (bf16)
                pl.BlockSpec((1, 2 * emb), const2),
                pl.BlockSpec((emb, emb), const2),
                pl.BlockSpec((1, emb), const2),
                pl.BlockSpec((emb, emb), const2),
                pl.BlockSpec((1, emb), const2),
            ],
            out_specs=pl.BlockSpec((None, 1, 128), lambda c, i: (c, 0, 0)),
            scratch_shapes=[pltpu.VMEM((g, emb), jnp.bfloat16),   # global_h
                            pltpu.VMEM((_TM, g), jnp.float32),    # E_pos partials
                            pltpu.VMEM((_TM, g), jnp.float32)],   # E_neg partials
        ),
        compiler_params=pltpu.CompilerParams(
            dimension_semantics=("parallel", "arbitrary"),
            vmem_limit_bytes=_vmem_limit_bytes()),
    )(graph_id, local_emb, global_sum,
      global_p["w1j"], global_p["b1j"], global_p["w2"], global_p["b2"],
      global_p["w3"], global_p["b3"],
      local_p["w1j"], local_p["b1j"], local_p["w2"], local_p["b2"],
      local_p["w3"], local_p["b3"])
    e_pos = jnp.sum(partial[:, 0, 0])
    e_neg = jnp.sum(partial[:, 0, 1])
    return e_neg / float(n * (g - 1)) - e_pos / float(n)


# ----------------------------------------------------------------------------
# Full InfoGraph forward
# ----------------------------------------------------------------------------
def infograph_forward(params, adj, nfeat, pool_mat, graph_id):
    local_emb, global_sum = gin_encoder(adj, nfeat, pool_mat, params["encoder"])
    return local_loss(local_emb, graph_id, global_sum,
                      params["global_d"], params["local_d"])


# ----------------------------------------------------------------------------
# Deterministic parameter / input construction
# ----------------------------------------------------------------------------
def _init_linear(key, in_dim, out_dim):
    k1, k2 = jax.random.split(key)
    w = jax.random.normal(k1, (in_dim, out_dim), jnp.float32) * 0.1
    b = jax.random.normal(k2, (1, out_dim), jnp.float32) * 0.1
    return w, b


def init_params(key, in_dim, hid_dim, n_layer):
    assert hid_dim % 128 == 0, "hid_dim padded to the 128-lane width"
    dmax = max(_round_up(in_dim, 128), hid_dim)
    w1s, b1s, w2s, b2s, gs, bs = [], [], [], [], [], []
    for i in range(n_layer):
        n_in = in_dim if i == 0 else hid_dim
        key, k1, k2 = jax.random.split(key, 3)
        w1, b1 = _init_linear(k1, n_in, hid_dim)
        w2, b2 = _init_linear(k2, hid_dim, hid_dim)
        # zero row-padding -> padded activation columns never contribute
        w1s.append(jnp.pad(w1, ((0, dmax - n_in), (0, 0))).astype(jnp.bfloat16))
        b1s.append(b1)
        w2s.append(w2.astype(jnp.bfloat16))
        b2s.append(b2)
        gs.append(jnp.ones((1, hid_dim), jnp.float32))    # BatchNorm1d init
        bs.append(jnp.zeros((1, hid_dim), jnp.float32))
    params = {"encoder": {
        "w1": jnp.stack(w1s), "b1": jnp.stack(b1s),
        "w2": jnp.stack(w2s), "b2": jnp.stack(b2s),
        "gamma": jnp.stack(gs), "beta": jnp.stack(bs)}}
    emb = hid_dim * n_layer
    for name in ("local_d", "global_d"):
        key, k1, k2, k3, k4 = jax.random.split(key, 5)
        w1, b1 = _init_linear(k1, emb, emb)
        w2, b2 = _init_linear(k2, emb, emb)
        w3, b3 = _init_linear(k3, emb, emb)
        wj, bj = _init_linear(k4, emb, emb)
        params[name] = {
            # first Linear and jump Linear fused into one (emb, 2*emb) matmul
            "w1j": jnp.concatenate([w1, wj], axis=1).astype(jnp.bfloat16),
            "b1j": jnp.concatenate([b1, bj], axis=1),
            "w2": w2.astype(jnp.bfloat16), "b2": b2,
            "w3": w3.astype(jnp.bfloat16), "b3": b3,
        }
    return params


def build_graph(n_graphs, nodes_per_graph):
    """Bidirectional ring per graph; returns (adj_bf16, pool_mat_bf16, graph_id)."""
    n = n_graphs * nodes_per_graph
    idx = jnp.arange(n)
    gid = idx // nodes_per_graph
    base = gid * nodes_per_graph
    nxt = base + (idx - base + 1) % nodes_per_graph
    adj = jnp.zeros((n, n), jnp.float32).at[idx, nxt].set(1.0).at[nxt, idx].set(1.0)
    pool_mat = jnp.zeros((n_graphs, n), jnp.float32).at[gid, idx].set(1.0)
    graph_id = gid.astype(jnp.int32).reshape(n, 1)
    # 0/1 values are exact in bf16
    return adj.astype(jnp.bfloat16), pool_mat.astype(jnp.bfloat16), graph_id


if __name__ == "__main__":
    in_dim, hid_dim, n_layer = 32, 128, 2
    n_graphs, nodes_per_graph = 4, 64          # N = 256 -> 2 row tiles of 128

    key = jax.random.PRNGKey(0)
    key, pkey, fkey = jax.random.split(key, 3)

    params = init_params(pkey, in_dim, hid_dim, n_layer)
    adj, pool_mat, graph_id = build_graph(n_graphs, nodes_per_graph)
    nfeat = jax.random.normal(fkey, (n_graphs * nodes_per_graph, in_dim),
                              jnp.float32)

    loss = jax.jit(infograph_forward)(params, adj, nfeat, pool_mat, graph_id)
    jax.block_until_ready(loss)
    assert loss.shape == () and jnp.isfinite(loss)
    print("KERNEL_OK")
</pallas_src>

<mosaic_0001>
module attributes {stable_mosaic.version = 11 : i64} {
  func.func @_encoder_kernel(%arg0: i32, %arg1: memref<256x256xbf16, #tpu.memory_space<vmem>>, %arg2: memref<256x128xf32, #tpu.memory_space<any>>, %arg3: memref<4x256xbf16, #tpu.memory_space<vmem>>, %arg4: memref<1x128x128xbf16, #tpu.memory_space<vmem>>, %arg5: memref<1x1x128xf32, #tpu.memory_space<vmem>>, %arg6: memref<1x128x128xbf16, #tpu.memory_space<vmem>>, %arg7: memref<1x1x128xf32, #tpu.memory_space<vmem>>, %arg8: memref<1x1x128xf32, #tpu.memory_space<vmem>>, %arg9: memref<1x1x128xf32, #tpu.memory_space<vmem>>, %arg10: memref<256x128xf32, #tpu.memory_space<vmem>>, %arg11: memref<4x128xf32, #tpu.memory_space<vmem>>, %arg12: memref<256x128xf32, #tpu.memory_space<vmem>>) attributes {dimension_semantics = [#tpu.dimension_semantics<arbitrary>], iteration_bounds = array<i64: 2>, scalar_prefetch = 0 : i64, scratch_operands = 1 : i64, tpu.core_type = #tpu.core_type<tc>, window_params = [{pipeline_mode = #tpu.pipeline_mode<synchronous>, transform_indices = @transform_0, window_bounds = array<i64: 256, 256>}, {}, {pipeline_mode = #tpu.pipeline_mode<synchronous>, transform_indices = @transform_2, window_bounds = array<i64: 4, 256>}, {transform_indices = @transform_3, window_bounds = array<i64: 1, 128, 128>}, {transform_indices = @transform_4, window_bounds = array<i64: 1, 1, 128>}, {transform_indices = @transform_5, window_bounds = array<i64: 1, 128, 128>}, {transform_indices = @transform_6, window_bounds = array<i64: 1, 1, 128>}, {transform_indices = @transform_7, window_bounds = array<i64: 1, 1, 128>}, {transform_indices = @transform_8, window_bounds = array<i64: 1, 1, 128>}, {transform_indices = @transform_9, window_bounds = array<i64: 256, 128>}, {transform_indices = @transform_10, window_bounds = array<i64: 4, 128>}]} {
    %c0_i32 = arith.constant 0 : i32
    %0 = arith.cmpi eq, %arg0, %c0_i32 : i32
    %1 = arith.extui %0 : i1 to i32
    %c0_i32_0 = arith.constant 0 : i32
    %2 = arith.cmpi ne, %1, %c0_i32_0 : i32
    scf.if %2 {
      "tpu.region"() ({
        %60 = tpu.sem_alloc : memref<!tpu.dma_semaphore, #tpu.memory_space<semaphore_mem>>
        tpu.enqueue_dma source(%arg2 : memref<256x128xf32, #tpu.memory_space<any>>) target(%arg12 : memref<256x128xf32, #tpu.memory_space<vmem>>) target_semaphore(%60 : memref<!tpu.dma_semaphore, #tpu.memory_space<semaphore_mem>>)
        tpu.wait_dma2 semaphore(%60 : memref<!tpu.dma_semaphore, #tpu.memory_space<semaphore_mem>>) src(%arg2 : memref<256x128xf32, #tpu.memory_space<any>>) dst(%arg12 : memref<256x128xf32, #tpu.memory_space<vmem>>)
        tpu.yield
      }) : () -> ()
    } else {
    }
    %c0 = arith.constant 0 : index
    %c0_1 = arith.constant 0 : index
    %3 = vector.load %arg12[%c0, %c0_1] : memref<256x128xf32, #tpu.memory_space<vmem>>, vector<256x128xf32>
    %cst = arith.constant 0.000000e+00 : f32
    %4 = vector.broadcast %cst : f32 to vector<256x128xf32>
    %5 = arith.maximumf %3, %4 : vector<256x128xf32>
    %6 = arith.truncf %5 : vector<256x128xf32> to vector<256x128xbf16>
    %c0_2 = arith.constant 0 : index
    %c0_3 = arith.constant 0 : index
    %7 = vector.load %arg1[%c0_2, %c0_3] : memref<256x256xbf16, #tpu.memory_space<vmem>>, vector<256x256xbf16>
    %cst_4 = arith.constant dense<0.000000e+00> : vector<256x128xf32>
    %8 = tpu.matmul %7, %6, %cst_4 {dimension_numbers = #tpu.dot_dimension_numbers<[1], [0], [0], [1], [0, 0, 1, 1], [], []>} : vector<256x256xbf16>, vector<256x128xbf16>, vector<256x128xf32> -> vector<256x128xf32>
    %9 = arith.addf %3, %8 : vector<256x128xf32>
    %10 = arith.truncf %9 : vector<256x128xf32> to vector<256x128xbf16>
    %c0_5 = arith.constant 0 : index
    %c0_6 = arith.constant 0 : index
    %c0_7 = arith.constant 0 : index
    %11 = vector.load %arg4[%c0_5, %c0_6, %c0_7] : memref<1x128x128xbf16, #tpu.memory_space<vmem>>, vector<1x128x128xbf16>
    %12 = vector.shape_cast %11 : vector<1x128x128xbf16> to vector<128x128xbf16>
    %cst_8 = arith.constant dense<0.000000e+00> : vector<256x128xf32>
    %13 = tpu.matmul %10, %12, %cst_8 {dimension_numbers = #tpu.dot_dimension_numbers<[1], [0], [0], [1], [0, 0, 1, 1], [], []>} : vector<256x128xbf16>, vector<128x128xbf16>, vector<256x128xf32> -> vector<256x128xf32>
    %c0_9 = arith.constant 0 : index
    %c0_10 = arith.constant 0 : index
    %c0_11 = arith.constant 0 : index
    %14 = vector.load %arg5[%c0_9, %c0_10, %c0_11] : memref<1x1x128xf32, #tpu.memory_space<vmem>>, vector<1x1x128xf32>
    %15 = vector.shape_cast %14 : vector<1x1x128xf32> to vector<1x128xf32>
    %16 = vector.broadcast %15 : vector<1x128xf32> to vector<256x128xf32>
    %17 = arith.addf %13, %16 : vector<256x128xf32>
    %cst_12 = arith.constant 0.000000e+00 : f32
    %18 = vector.broadcast %cst_12 : f32 to vector<256x128xf32>
    %19 = arith.maximumf %17, %18 : vector<256x128xf32>
    %20 = arith.truncf %19 : vector<256x128xf32> to vector<256x128xbf16>
    %c0_13 = arith.constant 0 : index
    %c0_14 = arith.constant 0 : index
    %c0_15 = arith.constant 0 : index
    %21 = vector.load %arg6[%c0_13, %c0_14, %c0_15] : memref<1x128x128xbf16, #tpu.memory_space<vmem>>, vector<1x128x128xbf16>
    %22 = vector.shape_cast %21 : vector<1x128x128xbf16> to vector<128x128xbf16>
    %cst_16 = arith.constant dense<0.000000e+00> : vector<256x128xf32>
    %23 = tpu.matmul %20, %22, %cst_16 {dimension_numbers = #tpu.dot_dimension_numbers<[1], [0], [0], [1], [0, 0, 1, 1], [], []>} : vector<256x128xbf16>, vector<128x128xbf16>, vector<256x128xf32> -> vector<256x128xf32>
    %c0_17 = arith.constant 0 : index
    %c0_18 = arith.constant 0 : index
    %c0_19 = arith.constant 0 : index
    %24 = vector.load %arg7[%c0_17, %c0_18, %c0_19] : memref<1x1x128xf32, #tpu.memory_space<vmem>>, vector<1x1x128xf32>
    %25 = vector.shape_cast %24 : vector<1x1x128xf32> to vector<1x128xf32>
    %26 = vector.broadcast %25 : vector<1x128xf32> to vector<256x128xf32>
    %27 = arith.addf %23, %26 : vector<256x128xf32>
    %cst_20 = arith.constant 0.000000e+00 : f32
    %28 = vector.broadcast %cst_20 : f32 to vector<256x128xf32>
    %29 = arith.maximumf %27, %28 : vector<256x128xf32>
    %cst_21 = arith.constant dense<0.000000e+00> : vector<128xf32>
    %30 = vector.multi_reduction <add>, %29, %cst_21 [0] : vector<256x128xf32> to vector<128xf32>
    %31 = vector.shape_cast %30 : vector<128xf32> to vector<1x128xf32>
    %cst_22 = arith.constant 3.906250e-03 : f32
    %32 = vector.broadcast %cst_22 : f32 to vector<1x128xf32>
    %33 = arith.mulf %31, %32 : vector<1x128xf32>
    %34 = vector.broadcast %33 : vector<1x128xf32> to vector<256x128xf32>
    %35 = arith.subf %29, %34 : vector<256x128xf32>
    %36 = arith.mulf %35, %35 : vector<256x128xf32>
    %cst_23 = arith.constant dense<0.000000e+00> : vector<128xf32>
    %37 = vector.multi_reduction <add>, %36, %cst_23 [0] : vector<256x128xf32> to vector<128xf32>
    %38 = vector.shape_cast %37 : vector<128xf32> to vector<1x128xf32>
    %cst_24 = arith.constant 3.906250e-03 : f32
    %39 = vector.broadcast %cst_24 : f32 to vector<1x128xf32>
    %40 = arith.mulf %38, %39 : vector<1x128xf32>
    %cst_25 = arith.constant 9.99999974E-6 : f32
    %41 = vector.broadcast %cst_25 : f32 to vector<1x128xf32>
    %42 = arith.addf %40, %41 : vector<1x128xf32>
    %43 = math.rsqrt %42 : vector<1x128xf32>
    %44 = vector.broadcast %43 : vector<1x128xf32> to vector<256x128xf32>
    %45 = arith.mulf %35, %44 : vector<256x128xf32>
    %c0_26 = arith.constant 0 : index
    %c0_27 = arith.constant 0 : index
    %c0_28 = arith.constant 0 : index
    %46 = vector.load %arg8[%c0_26, %c0_27, %c0_28] : memref<1x1x128xf32, #tpu.memory_space<vmem>>, vector<1x1x128xf32>
    %47 = vector.shape_cast %46 : vector<1x1x128xf32> to vector<1x128xf32>
    %48 = vector.broadcast %47 : vector<1x128xf32> to vector<256x128xf32>
    %49 = arith.mulf %45, %48 : vector<256x128xf32>
    %c0_29 = arith.constant 0 : index
    %c0_30 = arith.constant 0 : index
    %c0_31 = arith.constant 0 : index
    %50 = vector.load %arg9[%c0_29, %c0_30, %c0_31] : memref<1x1x128xf32, #tpu.memory_space<vmem>>, vector<1x1x128xf32>
    %51 = vector.shape_cast %50 : vector<1x1x128xf32> to vector<1x128xf32>
    %52 = vector.broadcast %51 : vector<1x128xf32> to vector<256x128xf32>
    %53 = arith.addf %49, %52 : vector<256x128xf32>
    %c0_32 = arith.constant 0 : index
    %c0_33 = arith.constant 0 : index
    %54 = vector.load %arg10[%c0_32, %c0_33] : memref<256x128xf32, #tpu.memory_space<vmem>>, vector<256x128xf32>
    tpu.vector_store %arg10[%c0_32, %c0_33], %53 {strides = array<i32>} : memref<256x128xf32, #tpu.memory_space<vmem>>, vector<256x128xf32>,
    %c0_34 = arith.constant 0 : index
    %c0_35 = arith.constant 0 : index
    %55 = vector.load %arg3[%c0_34, %c0_35] : memref<4x256xbf16, #tpu.memory_space<vmem>>, vector<4x256xbf16>
    %56 = arith.truncf %53 : vector<256x128xf32> to vector<256x128xbf16>
    %cst_36 = arith.constant dense<0.000000e+00> : vector<4x128xf32>
    %57 = tpu.matmul %55, %56, %cst_36 {dimension_numbers = #tpu.dot_dimension_numbers<[1], [0], [0], [1], [0, 0, 1, 1], [], []>} : vector<4x256xbf16>, vector<256x128xbf16>, vector<4x128xf32> -> vector<4x128xf32>
    %c0_37 = arith.constant 0 : index
    %c0_38 = arith.constant 0 : index
    %58 = vector.load %arg11[%c0_37, %c0_38] : memref<4x128xf32, #tpu.memory_space<vmem>>, vector<4x128xf32>
    tpu.vector_store %arg11[%c0_37, %c0_38], %57 {strides = array<i32>} : memref<4x128xf32, #tpu.memory_space<vmem>>, vector<4x128xf32>,
    %c0_39 = arith.constant 0 : index
    %c0_40 = arith.constant 0 : index
    %59 = vector.load %arg12[%c0_39, %c0_40] : memref<256x128xf32, #tpu.memory_space<vmem>>, vector<256x128xf32>
    tpu.vector_store %arg12[%c0_39, %c0_40], %53 {strides = array<i32>} : memref<256x128xf32, #tpu.memory_space<vmem>>, vector<256x128xf32>,
    return
  }
  func.func @transform_0(%arg0: i32) -> (i32, i32) {
    %c0_i32 = arith.constant 0 : i32
    %c0_i32_0 = arith.constant 0 : i32
    %c0_i32_1 = arith.constant 0 : i32
    return %c0_i32, %c0_i32_0 : i32, i32
  }
  func.func @transform_2(%arg0: i32) -> (i32, i32) {
    %c0_i32 = arith.constant 0 : i32
    %c0_i32_0 = arith.constant 0 : i32
    %c0_i32_1 = arith.constant 0 : i32
    return %c0_i32, %c0_i32_0 : i32, i32
  }
  func.func @transform_3(%arg0: i32) -> (i32, i32, i32) {
    %c0_i32 = arith.constant 0 : i32
    %c0_i32_0 = arith.constant 0 : i32
    %c0_i32_1 = arith.constant 0 : i32
    return %arg0, %c0_i32, %c0_i32_0 : i32, i32, i32
  }
  func.func @transform_4(%arg0: i32) -> (i32, i32, i32) {
    %c0_i32 = arith.constant 0 : i32
    %c0_i32_0 = arith.constant 0 : i32
    %c0_i32_1 = arith.constant 0 : i32
    return %arg0, %c0_i32, %c0_i32_0 : i32, i32, i32
  }
  func.func @transform_5(%arg0: i32) -> (i32, i32, i32) {
    %c0_i32 = arith.constant 0 : i32
    %c0_i32_0 = arith.constant 0 : i32
    %c0_i32_1 = arith.constant 0 : i32
    return %arg0, %c0_i32, %c0_i32_0 : i32, i32, i32
  }
  func.func @transform_6(%arg0: i32) -> (i32, i32, i32) {
    %c0_i32 = arith.constant 0 : i32
    %c0_i32_0 = arith.constant 0 : i32
    %c0_i32_1 = arith.constant 0 : i32
    return %arg0, %c0_i32, %c0_i32_0 : i32, i32, i32
  }
  func.func @transform_7(%arg0: i32) -> (i32, i32, i32) {
    %c0_i32 = arith.constant 0 : i32
    %c0_i32_0 = arith.constant 0 : i32
    %c0_i32_1 = arith.constant 0 : i32
    return %arg0, %c0_i32, %c0_i32_0 : i32, i32, i32
  }
  func.func @transform_8(%arg0: i32) -> (i32, i32, i32) {
    %c0_i32 = arith.constant 0 : i32
    %c0_i32_0 = arith.constant 0 : i32
    %c0_i32_1 = arith.constant 0 : i32
    return %arg0, %c0_i32, %c0_i32_0 : i32, i32, i32
  }
  func.func @transform_9(%arg0: i32) -> (i32, i32) {
    %c0_i32 = arith.constant 0 : i32
    %c0_i32_0 = arith.constant 0 : i32
    return %c0_i32, %arg0 : i32, i32
  }
  func.func @transform_10(%arg0: i32) -> (i32, i32) {
    %c0_i32 = arith.constant 0 : i32
    %c0_i32_0 = arith.constant 0 : i32
    return %c0_i32, %arg0 : i32, i32
  }
}

module attributes {stable_mosaic.version = 11 : i64} {
  func.func @_local_loss_kernel(%arg0: i32, %arg1: i32, %arg2: memref<128x1xi32, #tpu.memory_space<vmem>>, %arg3: memref<128x256xf32, #tpu.memory_space<vmem>>, %arg4: memref<4x256xf32, #tpu.memory_space<vmem>>, %arg5: memref<256x512xbf16, #tpu.memory_space<vmem>>, %arg6: memref<1x512xf32, #tpu.memory_space<vmem>>, %arg7: memref<256x256xbf16, #tpu.memory_space<vmem>>, %arg8: memref<1x256xf32, #tpu.memory_space<vmem>>, %arg9: memref<256x256xbf16, #tpu.memory_space<vmem>>, %arg10: memref<1x256xf32, #tpu.memory_space<vmem>>, %arg11: memref<256x512xbf16, #tpu.memory_space<vmem>>, %arg12: memref<1x512xf32, #tpu.memory_space<vmem>>, %arg13: memref<256x256xbf16, #tpu.memory_space<vmem>>, %arg14: memref<1x256xf32, #tpu.memory_space<vmem>>, %arg15: memref<256x256xbf16, #tpu.memory_space<vmem>>, %arg16: memref<1x256xf32, #tpu.memory_space<vmem>>, %arg17: memref<1x1x128xf32, #tpu.memory_space<vmem>>, %arg18: memref<4x256xbf16, #tpu.memory_space<vmem>>, %arg19: memref<128x4xf32, #tpu.memory_space<vmem>>, %arg20: memref<128x4xf32, #tpu.memory_space<vmem>>) attributes {dimension_semantics = [#tpu.dimension_semantics<parallel>, #tpu.dimension_semantics<arbitrary>], iteration_bounds = array<i64: 2, 1>, scalar_prefetch = 0 : i64, scratch_operands = 3 : i64, tpu.core_type = #tpu.core_type<tc>, window_params = [{transform_indices = @transform_0, window_bounds = array<i64: 128, 1>}, {transform_indices = @transform_1, window_bounds = array<i64: 128, 256>}, {pipeline_mode = #tpu.pipeline_mode<synchronous>, transform_indices = @transform_2, window_bounds = array<i64: 4, 256>}, {pipeline_mode = #tpu.pipeline_mode<synchronous>, transform_indices = @transform_3, window_bounds = array<i64: 256, 512>}, {pipeline_mode = #tpu.pipeline_mode<synchronous>, transform_indices = @transform_4, window_bounds = array<i64: 1, 512>}, {pipeline_mode = #tpu.pipeline_mode<synchronous>, transform_indices = @transform_5, window_bounds = array<i64: 256, 256>}, {pipeline_mode = #tpu.pipeline_mode<synchronous>, transform_indices = @transform_6, window_bounds = array<i64: 1, 256>}, {pipeline_mode = #tpu.pipeline_mode<synchronous>, transform_indices = @transform_7, window_bounds = array<i64: 256, 256>}, {pipeline_mode = #tpu.pipeline_mode<synchronous>, transform_indices = @transform_8, window_bounds = array<i64: 1, 256>}, {pipeline_mode = #tpu.pipeline_mode<synchronous>, transform_indices = @transform_9, window_bounds = array<i64: 256, 512>}, {pipeline_mode = #tpu.pipeline_mode<synchronous>, transform_indices = @transform_10, window_bounds = array<i64: 1, 512>}, {pipeline_mode = #tpu.pipeline_mode<synchronous>, transform_indices = @transform_11, window_bounds = array<i64: 256, 256>}, {pipeline_mode = #tpu.pipeline_mode<synchronous>, transform_indices = @transform_12, window_bounds = array<i64: 1, 256>}, {pipeline_mode = #tpu.pipeline_mode<synchronous>, transform_indices = @transform_13, window_bounds = array<i64: 256, 256>}, {pipeline_mode = #tpu.pipeline_mode<synchronous>, transform_indices = @transform_14, window_bounds = array<i64: 1, 256>}, {transform_indices = @transform_15, window_bounds = array<i64: 1, 1, 128>}]} {
    %c0_i32 = arith.constant 0 : i32
    %0 = arith.cmpi eq, %arg1, %c0_i32 : i32
    %1 = arith.extui %0 : i1 to i32
    %c0_i32_0 = arith.constant 0 : i32
    %2 = arith.cmpi ne, %1, %c0_i32_0 : i32
    scf.if %2 {
      %c0_42 = arith.constant 0 : index
      %c0_43 = arith.constant 0 : index
      %68 = vector.load %arg4[%c0_42, %c0_43] : memref<4x256xf32, #tpu.memory_space<vmem>>, vector<4x256xf32>
      %c0_44 = arith.constant 0 : index
      %c0_45 = arith.constant 0 : index
      %69 = vector.load %arg5[%c0_44, %c0_45] : memref<256x512xbf16, #tpu.memory_space<vmem>>, vector<256x512xbf16>
      %c0_46 = arith.constant 0 : index
      %c0_47 = arith.constant 0 : index
      %70 = vector.load %arg6[%c0_46, %c0_47] : memref<1x512xf32, #tpu.memory_space<vmem>>, vector<1x512xf32>
      %c0_48 = arith.constant 0 : index
      %c0_49 = arith.constant 0 : index
      %71 = vector.load %arg7[%c0_48, %c0_49] : memref<256x256xbf16, #tpu.memory_space<vmem>>, vector<256x256xbf16>
      %c0_50 = arith.constant 0 : index
      %c0_51 = arith.constant 0 : index
      %72 = vector.load %arg8[%c0_50, %c0_51] : memref<1x256xf32, #tpu.memory_space<vmem>>, vector<1x256xf32>
      %c0_52 = arith.constant 0 : index
      %c0_53 = arith.constant 0 : index
      %73 = vector.load %arg9[%c0_52, %c0_53] : memref<256x256xbf16, #tpu.memory_space<vmem>>, vector<256x256xbf16>
      %c0_54 = arith.constant 0 : index
      %c0_55 = arith.constant 0 : index
      %74 = vector.load %arg10[%c0_54, %c0_55] : memref<1x256xf32, #tpu.memory_space<vmem>>, vector<1x256xf32>
      %75 = arith.truncf %68 : vector<4x256xf32> to vector<4x256xbf16>
      %cst_56 = arith.constant dense<0.000000e+00> : vector<4x512xf32>
      %76 = tpu.matmul %75, %69, %cst_56 {dimension_numbers = #tpu.dot_dimension_numbers<[1], [0], [0], [1], [0, 0, 1, 1], [], []>} : vector<4x256xbf16>, vector<256x512xbf16>, vector<4x512xf32> -> vector<4x512xf32>
      %77 = vector.broadcast %70 : vector<1x512xf32> to vector<4x512xf32>
      %78 = arith.addf %76, %77 : vector<4x512xf32>
      %79 = vector.extract_strided_slice %78 {offsets = [0, 0], sizes = [4, 256], strides = [1, 1]} : vector<4x512xf32> to vector<4x256xf32>
      %cst_57 = arith.constant 0.000000e+00 : f32
      %80 = vector.broadcast %cst_57 : f32 to vector<4x256xf32>
      %81 = arith.maximumf %79, %80 : vector<4x256xf32>
      %82 = vector.extract_strided_slice %78 {offsets = [0, 256], sizes = [4, 256], strides = [1, 1]} : vector<4x512xf32> to vector<4x256xf32>
      %83 = arith.truncf %81 : vector<4x256xf32> to vector<4x256xbf16>
      %cst_58 = arith.constant dense<0.000000e+00> : vector<4x256xf32>
      %84 = tpu.matmul %83, %71, %cst_58 {dimension_numbers = #tpu.dot_dimension_numbers<[1], [0], [0], [1], [0, 0, 1, 1], [], []>} : vector<4x256xbf16>, vector<256x256xbf16>, vector<4x256xf32> -> vector<4x256xf32>
      %85 = vector.broadcast %72 : vector<1x256xf32> to vector<4x256xf32>
      %86 = arith.addf %84, %85 : vector<4x256xf32>
      %cst_59 = arith.constant 0.000000e+00 : f32
      %87 = vector.broadcast %cst_59 : f32 to vector<4x256xf32>
      %88 = arith.maximumf %86, %87 : vector<4x256xf32>
      %89 = arith.truncf %88 : vector<4x256xf32> to vector<4x256xbf16>
      %cst_60 = arith.constant dense<0.000000e+00> : vector<4x256xf32>
      %90 = tpu.matmul %89, %73, %cst_60 {dimension_numbers = #tpu.dot_dimension_numbers<[1], [0], [0], [1], [0, 0, 1, 1], [], []>} : vector<4x256xbf16>, vector<256x256xbf16>, vector<4x256xf32> -> vector<4x256xf32>
      %91 = vector.broadcast %74 : vector<1x256xf32> to vector<4x256xf32>
      %92 = arith.addf %90, %91 : vector<4x256xf32>
      %cst_61 = arith.constant 0.000000e+00 : f32
      %93 = vector.broadcast %cst_61 : f32 to vector<4x256xf32>
      %94 = arith.maximumf %92, %93 : vector<4x256xf32>
      %95 = arith.addf %94, %82 : vector<4x256xf32>
      %96 = arith.truncf %95 : vector<4x256xf32> to vector<4x256xbf16>
      %c0_62 = arith.constant 0 : index
      %c0_63 = arith.constant 0 : index
      %97 = vector.load %arg18[%c0_62, %c0_63] : memref<4x256xbf16, #tpu.memory_space<vmem>>, vector<4x256xbf16>
      tpu.vector_store %arg18[%c0_62, %c0_63], %96 {strides = array<i32>} : memref<4x256xbf16, #tpu.memory_space<vmem>>, vector<4x256xbf16>,
      %cst_64 = arith.constant 0.000000e+00 : f32
      %98 = vector.broadcast %cst_64 : f32 to vector<128x4xf32>
      %c0_65 = arith.constant 0 : index
      %c0_66 = arith.constant 0 : index
      %99 = vector.load %arg19[%c0_65, %c0_66] : memref<128x4xf32, #tpu.memory_space<vmem>>, vector<128x4xf32>
      tpu.vector_store %arg19[%c0_65, %c0_66], %98 {strides = array<i32>} : memref<128x4xf32, #tpu.memory_space<vmem>>, vector<128x4xf32>,
      %cst_67 = arith.constant 0.000000e+00 : f32
      %100 = vector.broadcast %cst_67 : f32 to vector<128x4xf32>
      %c0_68 = arith.constant 0 : index
      %c0_69 = arith.constant 0 : index
      %101 = vector.load %arg20[%c0_68, %c0_69] : memref<128x4xf32, #tpu.memory_space<vmem>>, vector<128x4xf32>
      tpu.vector_store %arg20[%c0_68, %c0_69], %100 {strides = array<i32>} : memref<128x4xf32, #tpu.memory_space<vmem>>, vector<128x4xf32>,
    } else {
    }
    %c0 = arith.constant 0 : index
    %c0_1 = arith.constant 0 : index
    %3 = vector.load %arg3[%c0, %c0_1] : memref<128x256xf32, #tpu.memory_space<vmem>>, vector<128x256xf32>
    %c0_2 = arith.constant 0 : index
    %c0_3 = arith.constant 0 : index
    %4 = vector.load %arg11[%c0_2, %c0_3] : memref<256x512xbf16, #tpu.memory_space<vmem>>, vector<256x512xbf16>
    %c0_4 = arith.constant 0 : index
    %c0_5 = arith.constant 0 : index
    %5 = vector.load %arg12[%c0_4, %c0_5] : memref<1x512xf32, #tpu.memory_space<vmem>>, vector<1x512xf32>
    %c0_6 = arith.constant 0 : index
    %c0_7 = arith.constant 0 : index
    %6 = vector.load %arg13[%c0_6, %c0_7] : memref<256x256xbf16, #tpu.memory_space<vmem>>, vector<256x256xbf16>
    %c0_8 = arith.constant 0 : index
    %c0_9 = arith.constant 0 : index
    %7 = vector.load %arg14[%c0_8, %c0_9] : memref<1x256xf32, #tpu.memory_space<vmem>>, vector<1x256xf32>
    %c0_10 = arith.constant 0 : index
    %c0_11 = arith.constant 0 : index
    %8 = vector.load %arg15[%c0_10, %c0_11] : memref<256x256xbf16, #tpu.memory_space<vmem>>, vector<256x256xbf16>
    %c0_12 = arith.constant 0 : index
    %c0_13 = arith.constant 0 : index
    %9 = vector.load %arg16[%c0_12, %c0_13] : memref<1x256xf32, #tpu.memory_space<vmem>>, vector<1x256xf32>
    %10 = arith.truncf %3 : vector<128x256xf32> to vector<128x256xbf16>
    %cst = arith.constant dense<0.000000e+00> : vector<128x512xf32>
    %11 = tpu.matmul %10, %4, %cst {dimension_numbers = #tpu.dot_dimension_numbers<[1], [0], [0], [1], [0, 0, 1, 1], [], []>} : vector<128x256xbf16>, vector<256x512xbf16>, vector<128x512xf32> -> vector<128x512xf32>
    %12 = vector.broadcast %5 : vector<1x512xf32> to vector<128x512xf32>
    %13 = arith.addf %11, %12 : vector<128x512xf32>
    %14 = vector.extract_strided_slice %13 {offsets = [0, 0], sizes = [128, 256], strides = [1, 1]} : vector<128x512xf32> to vector<128x256xf32>
    %cst_14 = arith.constant 0.000000e+00 : f32
    %15 = vector.broadcast %cst_14 : f32 to vector<128x256xf32>
    %16 = arith.maximumf %14, %15 : vector<128x256xf32>
    %17 = vector.extract_strided_slice %13 {offsets = [0, 256], sizes = [128, 256], strides = [1, 1]} : vector<128x512xf32> to vector<128x256xf32>
    %18 = arith.truncf %16 : vector<128x256xf32> to vector<128x256xbf16>
    %cst_15 = arith.constant dense<0.000000e+00> : vector<128x256xf32>
    %19 = tpu.matmul %18, %6, %cst_15 {dimension_numbers = #tpu.dot_dimension_numbers<[1], [0], [0], [1], [0, 0, 1, 1], [], []>} : vector<128x256xbf16>, vector<256x256xbf16>, vector<128x256xf32> -> vector<128x256xf32>
    %20 = vector.broadcast %7 : vector<1x256xf32> to vector<128x256xf32>
    %21 = arith.addf %19, %20 : vector<128x256xf32>
    %cst_16 = arith.constant 0.000000e+00 : f32
    %22 = vector.broadcast %cst_16 : f32 to vector<128x256xf32>
    %23 = arith.maximumf %21, %22 : vector<128x256xf32>
    %24 = arith.truncf %23 : vector<128x256xf32> to vector<128x256xbf16>
    %cst_17 = arith.constant dense<0.000000e+00> : vector<128x256xf32>
    %25 = tpu.matmul %24, %8, %cst_17 {dimension_numbers = #tpu.dot_dimension_numbers<[1], [0], [0], [1], [0, 0, 1, 1], [], []>} : vector<128x256xbf16>, vector<256x256xbf16>, vector<128x256xf32> -> vector<128x256xf32>
    %26 = vector.broadcast %9 : vector<1x256xf32> to vector<128x256xf32>
    %27 = arith.addf %25, %26 : vector<128x256xf32>
    %cst_18 = arith.constant 0.000000e+00 : f32
    %28 = vector.broadcast %cst_18 : f32 to vector<128x256xf32>
    %29 = arith.maximumf %27, %28 : vector<128x256xf32>
    %30 = arith.addf %29, %17 : vector<128x256xf32>
    %31 = arith.truncf %30 : vector<128x256xf32> to vector<128x256xbf16>
    %c0_19 = arith.constant 0 : index
    %c0_20 = arith.constant 0 : index
    %32 = vector.load %arg18[%c0_19, %c0_20] : memref<4x256xbf16, #tpu.memory_space<vmem>>, vector<4x256xbf16>
    %cst_21 = arith.constant dense<0.000000e+00> : vector<128x4xf32>
    %33 = tpu.matmul %31, %32, %cst_21 {dimension_numbers = #tpu.dot_dimension_numbers<[1], [1], [0], [0], [0, 0, 1, 0], [], []>} : vector<128x256xbf16>, vector<4x256xbf16>, vector<128x4xf32> -> vector<128x4xf32>
    %34 = tpu.iota {dimensions = array<i32: 1>} : vector<128x4xi32>
    %c0_22 = arith.constant 0 : index
    %c0_23 = arith.constant 0 : index
    %35 = vector.load %arg2[%c0_22, %c0_23] : memref<128x1xi32, #tpu.memory_space<vmem>>, vector<128x1xi32>
    %36 = vector.broadcast %35 : vector<128x1xi32> to vector<128x4xi32>
    %37 = arith.cmpi eq, %34, %36 : vector<128x4xi32>
    %cst_24 = arith.constant 0.000000e+00 : f32
    %38 = vector.broadcast %cst_24 : f32 to vector<128x4xf32>
    %39 = arith.subf %38, %33 : vector<128x4xf32>
    %cst_25 = arith.constant 0.000000e+00 : f32
    %40 = vector.broadcast %cst_25 : f32 to vector<128x4xf32>
    %41 = arith.maximumf %39, %40 : vector<128x4xf32>
    %42 = math.absf %33 : vector<128x4xf32>
    %cst_26 = arith.constant 0.000000e+00 : f32
    %43 = vector.broadcast %cst_26 : f32 to vector<128x4xf32>
    %44 = arith.subf %43, %42 : vector<128x4xf32>
    %45 = math.exp %44 : vector<128x4xf32>
    %cst_27 = arith.constant 1.000000e+00 : f32
    %46 = vector.broadcast %cst_27 : f32 to vector<128x4xf32>
    %47 = arith.addf %46, %45 : vector<128x4xf32>
    %48 = math.log %47 : vector<128x4xf32>
    %49 = arith.addf %41, %48 : vector<128x4xf32>
    %cst_28 = arith.constant 0.693147182 : f32
    %50 = vector.broadcast %cst_28 : f32 to vector<128x4xf32>
    %51 = arith.subf %50, %49 : vector<128x4xf32>
    %52 = arith.addf %49, %33 : vector<128x4xf32>
    %cst_29 = arith.constant 0.693147182 : f32
    %53 = vector.broadcast %cst_29 : f32 to vector<128x4xf32>
    %54 = arith.subf %52, %53 : vector<128x4xf32>
    %c0_30 = arith.constant 0 : index
    %c0_31 = arith.constant 0 : index
    %55 = vector.load %arg19[%c0_30, %c0_31] : memref<128x4xf32, #tpu.memory_space<vmem>>, vector<128x4xf32>
    %cst_32 = arith.constant 0.000000e+00 : f32
    %56 = vector.broadcast %cst_32 : f32 to vector<128x4xf32>
    %57 = arith.select %37, %51, %56 : vector<128x4xi1>, vector<128x4xf32>
    %58 = arith.addf %55, %57 : vector<128x4xf32>
    %c0_33 = arith.constant 0 : index
    %c0_34 = arith.constant 0 : index
    %59 = vector.load %arg19[%c0_33, %c0_34] : memref<128x4xf32, #tpu.memory_space<vmem>>, vector<128x4xf32>
    tpu.vector_store %arg19[%c0_33, %c0_34], %58 {strides = array<i32>} : memref<128x4xf32, #tpu.memory_space<vmem>>, vector<128x4xf32>,
    %c0_35 = arith.constant 0 : index
    %c0_36 = arith.constant 0 : index
    %60 = vector.load %arg20[%c0_35, %c0_36] : memref<128x4xf32, #tpu.memory_space<vmem>>, vector<128x4xf32>
    %cst_37 = arith.constant 0.000000e+00 : f32
    %61 = vector.broadcast %cst_37 : f32 to vector<128x4xf32>
    %62 = arith.select %37, %61, %54 : vector<128x4xi1>, vector<128x4xf32>
    %63 = arith.addf %60, %62 : vector<128x4xf32>
    %c0_38 = arith.constant 0 : index
    %c0_39 = arith.constant 0 : index
    %64 = vector.load %arg20[%c0_38, %c0_39] : memref<128x4xf32, #tpu.memory_space<vmem>>, vector<128x4xf32>
    tpu.vector_store %arg20[%c0_38, %c0_39], %63 {strides = array<i32>} : memref<128x4xf32, #tpu.memory_space<vmem>>, vector<128x4xf32>,
    %c0_i32_40 = arith.constant 0 : i32
    %65 = arith.cmpi eq, %arg1, %c0_i32_40 : i32
    %66 = arith.extui %65 : i1 to i32
    %c0_i32_41 = arith.constant 0 : i32
    %67 = arith.cmpi ne, %66, %c0_i32_41 : i32
    scf.if %67 {
      %68 = tpu.iota {dimensions = array<i32: 1>} : vector<1x128xi32>
      %c0_i32_42 = arith.constant 0 : i32
      %69 = vector.broadcast %c0_i32_42 : i32 to vector<1x128xi32>
      %70 = arith.cmpi eq, %68, %69 : vector<1x128xi32>
      %c0_43 = arith.constant 0 : index
      %c0_44 = arith.constant 0 : index
      %71 = vector.load %arg19[%c0_43, %c0_44] : memref<128x4xf32, #tpu.memory_space<vmem>>, vector<128x4xf32>
      %72 = vector.shape_cast %71 : vector<128x4xf32> to vector<1x128x4xf32>
      %cst_45 = arith.constant dense<0.000000e+00> : vector<1xf32>
      %73 = vector.multi_reduction <add>, %72, %cst_45 [1, 2] : vector<1x128x4xf32> to vector<1xf32>
      %74 = vector.shape_cast %73 : vector<1xf32> to vector<1x1x1xf32>
      %75 = vector.extract %74[0, 0, 0] : f32 from vector<1x1x1xf32>
      %c1_i32 = arith.constant 1 : i32
      %76 = vector.broadcast %c1_i32 : i32 to vector<1x128xi32>
      %77 = arith.cmpi eq, %68, %76 : vector<1x128xi32>
      %c0_46 = arith.constant 0 : index
      %c0_47 = arith.constant 0 : index
      %78 = vector.load %arg20[%c0_46, %c0_47] : memref<128x4xf32, #tpu.memory_space<vmem>>, vector<128x4xf32>
      %79 = vector.shape_cast %78 : vector<128x4xf32> to vector<1x128x4xf32>
      %cst_48 = arith.constant dense<0.000000e+00> : vector<1xf32>
      %80 = vector.multi_reduction <add>, %79, %cst_48 [1, 2] : vector<1x128x4xf32> to vector<1xf32>
      %81 = vector.shape_cast %80 : vector<1xf32> to vector<1x1x1xf32>
      %82 = vector.extract %81[0, 0, 0] : f32 from vector<1x1x1xf32>
      %cst_49 = arith.constant 0.000000e+00 : f32
      %83 = vector.broadcast %82 : f32 to vector<1x128xf32>
      %84 = vector.broadcast %cst_49 : f32 to vector<1x128xf32>
      %85 = arith.select %77, %83, %84 : vector<1x128xi1>, vector<1x128xf32>
      %86 = vector.broadcast %75 : f32 to vector<1x128xf32>
      %87 = arith.select %70, %86, %85 : vector<1x128xi1>, vector<1x128xf32>
      %c0_50 = arith.constant 0 : index
      %c0_51 = arith.constant 0 : index
      %c0_52 = arith.constant 0 : index
      %88 = vector.load %arg17[%c0_50, %c0_51, %c0_52] : memref<1x1x128xf32, #tpu.memory_space<vmem>>, vector<1x1x128xf32>
      %89 = vector.shape_cast %88 : vector<1x1x128xf32> to vector<1x128xf32>
      %90 = vector.shape_cast %87 : vector<1x128xf32> to vector<1x1x128xf32>
      tpu.vector_store %arg17[%c0_50, %c0_51, %c0_52], %90 {strides = array<i32>} : memref<1x1x128xf32, #tpu.memory_space<vmem>>, vector<1x1x128xf32>,
    } else {
    }
    return
  }
  func.func @transform_0(%arg0: i32, %arg1: i32) -> (i32, i32) {
    %c1_i32 = arith.constant 1 : i32
    %0 = arith.muli %arg0, %c1_i32 : i32
    %1 = arith.addi %0, %arg1 : i32
    %c0_i32 = arith.constant 0 : i32
    %c0_i32_0 = arith.constant 0 : i32
    return %1, %c0_i32 : i32, i32
  }
  func.func @transform_1(%arg0: i32, %arg1: i32) -> (i32, i32) {
    %c1_i32 = arith.constant 1 : i32
    %0 = arith.muli %arg0, %c1_i32 : i32
    %1 = arith.addi %0, %arg1 : i32
    %c0_i32 = arith.constant 0 : i32
    %c0_i32_0 = arith.constant 0 : i32
    return %1, %c0_i32 : i32, i32
  }
  func.func @transform_2(%arg0: i32, %arg1: i32) -> (i32, i32) {
    %c0_i32 = arith.constant 0 : i32
    %c0_i32_0 = arith.constant 0 : i32
    %c0_i32_1 = arith.constant 0 : i32
    return %c0_i32, %c0_i32_0 : i32, i32
  }
  func.func @transform_3(%arg0: i32, %arg1: i32) -> (i32, i32) {
    %c0_i32 = arith.constant 0 : i32
    %c0_i32_0 = arith.constant 0 : i32
    %c0_i32_1 = arith.constant 0 : i32
    return %c0_i32, %c0_i32_0 : i32, i32
  }
  func.func @transform_4(%arg0: i32, %arg1: i32) -> (i32, i32) {
    %c0_i32 = arith.constant 0 : i32
    %c0_i32_0 = arith.constant 0 : i32
    %c0_i32_1 = arith.constant 0 : i32
    return %c0_i32, %c0_i32_0 : i32, i32
  }
  func.func @transform_5(%arg0: i32, %arg1: i32) -> (i32, i32) {
    %c0_i32 = arith.constant 0 : i32
    %c0_i32_0 = arith.constant 0 : i32
    %c0_i32_1 = arith.constant 0 : i32
    return %c0_i32, %c0_i32_0 : i32, i32
  }
  func.func @transform_6(%arg0: i32, %arg1: i32) -> (i32, i32) {
    %c0_i32 = arith.constant 0 : i32
    %c0_i32_0 = arith.constant 0 : i32
    %c0_i32_1 = arith.constant 0 : i32
    return %c0_i32, %c0_i32_0 : i32, i32
  }
  func.func @transform_7(%arg0: i32, %arg1: i32) -> (i32, i32) {
    %c0_i32 = arith.constant 0 : i32
    %c0_i32_0 = arith.constant 0 : i32
    %c0_i32_1 = arith.constant 0 : i32
    return %c0_i32, %c0_i32_0 : i32, i32
  }
  func.func @transform_8(%arg0: i32, %arg1: i32) -> (i32, i32) {
    %c0_i32 = arith.constant 0 : i32
    %c0_i32_0 = arith.constant 0 : i32
    %c0_i32_1 = arith.constant 0 : i32
    return %c0_i32, %c0_i32_0 : i32, i32
  }
  func.func @transform_9(%arg0: i32, %arg1: i32) -> (i32, i32) {
    %c0_i32 = arith.constant 0 : i32
    %c0_i32_0 = arith.constant 0 : i32
    %c0_i32_1 = arith.constant 0 : i32
    return %c0_i32, %c0_i32_0 : i32, i32
  }
  func.func @transform_10(%arg0: i32, %arg1: i32) -> (i32, i32) {
    %c0_i32 = arith.constant 0 : i32
    %c0_i32_0 = arith.constant 0 : i32
    %c0_i32_1 = arith.constant 0 : i32
    return %c0_i32, %c0_i32_0 : i32, i32
  }
  func.func @transform_11(%arg0: i32, %arg1: i32) -> (i32, i32) {
    %c0_i32 = arith.constant 0 : i32
    %c0_i32_0 = arith.constant 0 : i32
    %c0_i32_1 = arith.constant 0 : i32
    return %c0_i32, %c0_i32_0 : i32, i32
  }
  func.func @transform_12(%arg0: i32, %arg1: i32) -> (i32, i32) {
    %c0_i32 = arith.constant 0 : i32
    %c0_i32_0 = arith.constant 0 : i32
    %c0_i32_1 = arith.constant 0 : i32
    return %c0_i32, %c0_i32_0 : i32, i32
  }
  func.func @transform_13(%arg0: i32, %arg1: i32) -> (i32, i32) {
    %c0_i32 = arith.constant 0 : i32
    %c0_i32_0 = arith.constant 0 : i32
    %c0_i32_1 = arith.constant 0 : i32
    return %c0_i32, %c0_i32_0 : i32, i32
  }
  func.func @transform_14(%arg0: i32, %arg1: i32) -> (i32, i32) {
    %c0_i32 = arith.constant 0 : i32
    %c0_i32_0 = arith.constant 0 : i32
    %c0_i32_1 = arith.constant 0 : i32
    return %c0_i32, %c0_i32_0 : i32, i32
  }
  func.func @transform_15(%arg0: i32, %arg1: i32) -> (i32, i32, i32) {
    %c0_i32 = arith.constant 0 : i32
    %c0_i32_0 = arith.constant 0 : i32
    %c0_i32_1 = arith.constant 0 : i32
    return %arg0, %c0_i32, %c0_i32_0 : i32, i32, i32
  }
}

</mosaic_0001>

<llo_original>
// kernel: infograph_forward.2
$region0: #{infograph_forward.2}
  #allocation0 [shape = 'u32[]', space=smem, size = 0x4, offset = 0x4, fixed_abs, tag = 'smem constant byte address 0x4 - core index']
  #allocation1 [shape = 'u32[144,128]{1,0:T(1,128)}', space=vmem, size = 0x12000, scoped, tag = 'internal scratch']
  #allocation2 [shape = 'f32[256,128]{1,0:T(8,128)}', space=vmem, size = 0x20000, scoped, tag = 'scratch operand']
  #allocation7 [shape = 's32[]', space=sflag, size = 0x4, offset = 0, fixed_abs, tag = 'sflag constant byte address 0x0 - dummy sync flag']
  %s0 = inlined_call_operand.vmem [shape: bf16[256,256], index: 0, kind: input, shape index: {}]
  %s1 = inlined_call_operand.vmem [shape: f32[256,128], index: 1, kind: input, shape index: {}]
  %s2 = inlined_call_operand.vmem [shape: bf16[4,256], index: 2, kind: input, shape index: {}]
  %s3 = inlined_call_operand.vmem [shape: bf16[2,128,128], index: 3, kind: input, shape index: {}]
  %s4 = inlined_call_operand.vmem [shape: f32[2,1,128], index: 4, kind: input, shape index: {}]
  %s5 = inlined_call_operand.hbm [shape: bf16[2,128,128], index: 5, kind: input, shape index: {}]
  %s6 = inlined_call_operand.vmem [shape: f32[2,1,128], index: 6, kind: input, shape index: {}]
  %s7 = inlined_call_operand.vmem [shape: f32[2,1,128], index: 7, kind: input, shape index: {}]
  %s8 = inlined_call_operand.vmem [shape: f32[2,1,128], index: 8, kind: input, shape index: {}]
  %s9 = inlined_call_operand.vmem [shape: f32[256,256], index: 9, kind: output, shape index: {0}]
  %s10 = inlined_call_operand.vmem [shape: f32[4,256], index: 10, kind: output, shape index: {1}]
  %11 = xla_tuple %s9, %s10
  %s12 = sld [smem:[#allocation0]]
  $region150: #{infograph_forward.2} parent=0
    _
  %s14 = ssub.s32 1, %s12
  %s15 = scalar_select 0, %s14, %s12
  $region1: #{infograph_forward.2} parent=0
    #allocation3 [shape = 'u8[65536]{0}', space=vmem, size = 0x10000, scoped, tag = 'input window, operand 5']
    #allocation4 [shape = 's32[2]{0}', space=sflag, size = 0x8, scoped, tag = 'scoped memory for infograph_forward.2']
    #allocation5 [shape = 'u8[262144]{0}', space=vmem, size = 0x40000, scoped, tag = 'output window, operand 0']
    %16 = vsyncpa [#allocation4], 0
    %s17 = scalar_lea.sflag [#allocation4], 1
    %18 = vsyncpa %s17, 0
    loop: start=0, step=1, limit=4
    $region2: #{infograph_forward.2} parent=1 // loop_pre_header
      _
    $region3: #{infograph_forward.2} parent=1 // loop_header
      %s20 = sphi 0, %s24
      %p21 = scmp.ge.s32.totalorder %s20, 4
      %s28 = sphi 0, %s28
      %s30 = sphi 0, %s28
      %s31 = sphi 0, %s30
      %s45 = sphi 0, %s31
      %s49 = sphi 0, %s49
      %s51 = sphi 0, %s49
      %s52 = sphi 0, %s51
      %s66 = sphi 0, %s52
      %s72 = sphi 0, %s74
      %s75 = sphi 0, %s72
      %s76 = sphi 0, %s75
      %s92 = sphi 0, %s76
      %s98 = sphi 0, %s100
      %s101 = sphi 0, %s98
      %s102 = sphi 0, %s101
      %s118 = sphi 0, %s102
      %s124 = sphi 0, %s126
      %s127 = sphi 0, %s124
      %s128 = sphi 0, %s127
      %s144 = sphi 0, %s128
      %s150 = sphi 0, %s152
      %s153 = sphi 0, %s150
      %s154 = sphi 0, %s153
      %s170 = sphi 0, %s154
      %s176 = sphi 0, %s178
      %s179 = sphi 0, %s176
      %s180 = sphi 0, %s179
      %s196 = sphi 0, %s180
      %s202 = sphi 0, %s204
      %s205 = sphi 0, %s202
      %s206 = sphi 0, %s205
      %s222 = sphi 0, %s206
      %s228 = sphi 0, %s230
      %s231 = sphi 0, %s228
      %s232 = sphi 0, %s231
      %s248 = sphi 0, %s232
      %s254 = sphi 0, %s256
      %s257 = sphi 0, %s254
      %s258 = sphi 0, %s257
      %s274 = sphi 0, %s258
    $region4: #{infograph_forward.2} parent=1 // loop_header_branch
      %23 = sbr.rel (%p21) target = $region8
    $region5: #{infograph_forward.2} parent=1 // loop_body
      %s25 = ssub.s32 %s20, 1
      %s26 = ssub.s32 %s20, 2
      %s27 = sadd.s32 %s20, 1
      %s29 = sadd.s32 %s28, 1
      %p32 = scmp.eq.s32.totalorder %s20, 1
      %p33 = scmp.ne.s32.totalorder %s28, %s30
      %p34 = scmp.eq.s32.totalorder %s20, 0
      %p35 = por %p33, %p34
      %p36 = scmp.ne.s32.totalorder %s28, %s30
      %p37 = scmp.eq.s32.totalorder %s25, 1
      %p38 = por %p36, %p37
      %p39 = scmp.ne.s32.totalorder %s30, %s31
      %p40 = scmp.eq.s32.totalorder %s25, 0
      %p41 = por %p39, %p40
      %p42 = scmp.ne.s32.totalorder %s30, %s31
      %p43 = scmp.eq.s32.totalorder %s26, 1
      %p44 = por %p42, %p43
      %p46 = scmp.ne.s32.totalorder %s31, %s45
      %p47 = scmp.eq.s32.totalorder %s26, 0
      %p48 = por %p46, %p47
      %s50 = sadd.s32 %s49, 1
      %p53 = scmp.eq.s32.totalorder %s20, 1
      %p54 = scmp.ne.s32.totalorder %s49, %s51
      %p55 = scmp.eq.s32.totalorder %s20, 0
      %p56 = por %p54, %p55
      %p57 = scmp.ne.s32.totalorder %s49, %s51
      %p58 = scmp.eq.s32.totalorder %s25, 1
      %p59 = por %p57, %p58
      %p60 = scmp.ne.s32.totalorder %s51, %s52
      %p61 = scmp.eq.s32.totalorder %s25, 0
      %p62 = por %p60, %p61
      %p63 = scmp.ne.s32.totalorder %s51, %s52
      %p64 = scmp.eq.s32.totalorder %s26, 1
      %p65 = por %p63, %p64
      %p67 = scmp.ne.s32.totalorder %s52, %s66
      %p68 = scmp.eq.s32.totalorder %s26, 0
      %p69 = por %p67, %p68
      %s70 = ssub.s32 %s20, %s27
      %p71 = scmp.eq.s32.totalorder %s70, 0
      %s73 = sadd.s32 %s72, 1
      %s74 = scalar_select %p71, %s72, %s73
      %p77 = pneg %p71
      %p78 = scmp.eq.s32.totalorder %s20, 1
      %p79 = por %p77, %p78
      %p80 = scmp.ne.s32.totalorder %s72, %s75
      %p81 = scmp.eq.s32.totalorder %s20, 0
      %p82 = por %p80, %p81
      %p83 = scmp.ne.s32.totalorder %s72, %s75
      %p84 = scmp.eq.s32.totalorder %s25, 1
      %p85 = por %p83, %p84
      %p86 = scmp.ne.s32.totalorder %s75, %s76
      %p87 = scmp.eq.s32.totalorder %s25, 0
      %p88 = por %p86, %p87
      %p89 = scmp.ne.s32.totalorder %s75, %s76
      %p90 = scmp.eq.s32.totalorder %s26, 1
      %p91 = por %p89, %p90
      %p93 = scmp.ne.s32.totalorder %s76, %s92
      %p94 = scmp.eq.s32.totalorder %s26, 0
      %p95 = por %p93, %p94
      %s96 = ssub.s32 %s20, %s27
      %p97 = scmp.eq.s32.totalorder %s96, 0
      %s99 = sadd.s32 %s98, 1
      %s100 = scalar_select %p97, %s98, %s99
      %p103 = pneg %p97
      %p104 = scmp.eq.s32.totalorder %s20, 1
      %p105 = por %p103, %p104
      %p106 = scmp.ne.s32.totalorder %s98, %s101
      %p107 = scmp.eq.s32.totalorder %s20, 0
      %p108 = por %p106, %p107
      %p109 = scmp.ne.s32.totalorder %s98, %s101
      %p110 = scmp.eq.s32.totalorder %s25, 1
      %p111 = por %p109, %p110
      %p112 = scmp.ne.s32.totalorder %s101, %s102
      %p113 = scmp.eq.s32.totalorder %s25, 0
      %p114 = por %p112, %p113
      %p115 = scmp.ne.s32.totalorder %s101, %s102
      %p116 = scmp.eq.s32.totalorder %s26, 1
      %p117 = por %p115, %p116
      %p119 = scmp.ne.s32.totalorder %s102, %s118
      %p120 = scmp.eq.s32.totalorder %s26, 0
      %p121 = por %p119, %p120
      %s122 = ssub.s32 %s20, %s27
      %p123 = scmp.eq.s32.totalorder %s122, 0
      %s125 = sadd.s32 %s124, 1
      %s126 = scalar_select %p123, %s124, %s125
      %p129 = pneg %p123
      %p130 = scmp.eq.s32.totalorder %s20, 1
      %p131 = por %p129, %p130
      %p132 = scmp.ne.s32.totalorder %s124, %s127
      %p133 = scmp.eq.s32.totalorder %s20, 0
      %p134 = por %p132, %p133
      %p135 = scmp.ne.s32.totalorder %s124, %s127
      %p136 = scmp.eq.s32.totalorder %s25, 1
      %p137 = por %p135, %p136
      %p138 = scmp.ne.s32.totalorder %s127, %s128
      %p139 = scmp.eq.s32.totalorder %s25, 0
      %p140 = por %p138, %p139
      %p141 = scmp.ne.s32.totalorder %s127, %s128
      %p142 = scmp.eq.s32.totalorder %s26, 1
      %p143 = por %p141, %p142
      %p145 = scmp.ne.s32.totalorder %s128, %s144
      %p146 = scmp.eq.s32.totalorder %s26, 0
      %p147 = por %p145, %p146
      %s148 = ssub.s32 %s20, %s27
      %p149 = scmp.eq.s32.totalorder %s148, 0
      %s151 = sadd.s32 %s150, 1
      %s152 = scalar_select %p149, %s150, %s151
      %p155 = pneg %p149
      %p156 = scmp.eq.s32.totalorder %s20, 1
      %p157 = por %p155, %p156
      %p158 = scmp.ne.s32.totalorder %s150, %s153
      %p159 = scmp.eq.s32.totalorder %s20, 0
      %p160 = por %p158, %p159
      %p161 = scmp.ne.s32.totalorder %s150, %s153
      %p162 = scmp.eq.s32.totalorder %s25, 1
      %p163 = por %p161, %p162
      %p164 = scmp.ne.s32.totalorder %s153, %s154
      %p165 = scmp.eq.s32.totalorder %s25, 0
      %p166 = por %p164, %p165
      %p167 = scmp.ne.s32.totalorder %s153, %s154
      %p168 = scmp.eq.s32.totalorder %s26, 1
      %p169 = por %p167, %p168
      %p171 = scmp.ne.s32.totalorder %s154, %s170
      %p172 = scmp.eq.s32.totalorder %s26, 0
      %p173 = por %p171, %p172
      %s174 = ssub.s32 %s20, %s27
      %p175 = scmp.eq.s32.totalorder %s174, 0
      %s177 = sadd.s32 %s176, 1
      %s178 = scalar_select %p175, %s176, %s177
      %p181 = pneg %p175
      %p182 = scmp.eq.s32.totalorder %s20, 1
      %p183 = por %p181, %p182
      %p184 = scmp.ne.s32.totalorder %s176, %s179
      %p185 = scmp.eq.s32.totalorder %s20, 0
      %p186 = por %p184, %p185
      %p187 = scmp.ne.s32.totalorder %s176, %s179
      %p188 = scmp.eq.s32.totalorder %s25, 1
      %p189 = por %p187, %p188
      %p190 = scmp.ne.s32.totalorder %s179, %s180
      %p191 = scmp.eq.s32.totalorder %s25, 0
      %p192 = por %p190, %p191
      %p193 = scmp.ne.s32.totalorder %s179, %s180
      %p194 = scmp.eq.s32.totalorder %s26, 1
      %p195 = por %p193, %p194
      %p197 = scmp.ne.s32.totalorder %s180, %s196
      %p198 = scmp.eq.s32.totalorder %s26, 0
      %p199 = por %p197, %p198
      %s200 = ssub.s32 %s20, %s27
      %p201 = scmp.eq.s32.totalorder %s200, 0
      %s203 = sadd.s32 %s202, 1
      %s204 = scalar_select %p201, %s202, %s203
      %p207 = pneg %p201
      %p208 = scmp.eq.s32.totalorder %s20, 1
      %p209 = por %p207, %p208
      %p210 = scmp.ne.s32.totalorder %s202, %s205
      %p211 = scmp.eq.s32.totalorder %s20, 0
      %p212 = por %p210, %p211
      %p213 = scmp.ne.s32.totalorder %s202, %s205
      %p214 = scmp.eq.s32.totalorder %s25, 1
      %p215 = por %p213, %p214
      %p216 = scmp.ne.s32.totalorder %s205, %s206
      %p217 = scmp.eq.s32.totalorder %s25, 0
      %p218 = por %p216, %p217
      %p219 = scmp.ne.s32.totalorder %s205, %s206
      %p220 = scmp.eq.s32.totalorder %s26, 1
      %p221 = por %p219, %p220
      %p223 = scmp.ne.s32.totalorder %s206, %s222
      %p224 = scmp.eq.s32.totalorder %s26, 0
      %p225 = por %p223, %p224
      %s226 = ssub.s32 %s20, %s27
      %p227 = scmp.eq.s32.totalorder %s226, 0
      %s229 = sadd.s32 %s228, 1
      %s230 = scalar_select %p227, %s228, %s229
      %p233 = pneg %p227
      %p234 = scmp.eq.s32.totalorder %s20, 1
      %p235 = por %p233, %p234
      %p236 = scmp.ne.s32.totalorder %s228, %s231
      %p237 = scmp.eq.s32.totalorder %s20, 0
      %p238 = por %p236, %p237
      %p239 = scmp.ne.s32.totalorder %s228, %s231
      %p240 = scmp.eq.s32.totalorder %s25, 1
      %p241 = por %p239, %p240
      %p242 = scmp.ne.s32.totalorder %s231, %s232
      %p243 = scmp.eq.s32.totalorder %s25, 0
      %p244 = por %p242, %p243
      %p245 = scmp.ne.s32.totalorder %s231, %s232
      %p246 = scmp.eq.s32.totalorder %s26, 1
      %p247 = por %p245, %p246
      %p249 = scmp.ne.s32.totalorder %s232, %s248
      %p250 = scmp.eq.s32.totalorder %s26, 0
      %p251 = por %p249, %p250
      %s252 = ssub.s32 %s20, %s27
      %p253 = scmp.eq.s32.totalorder %s252, 0
      %s255 = sadd.s32 %s254, 1
      %s256 = scalar_select %p253, %s254, %s255
      %p259 = pneg %p253
      %p260 = scmp.eq.s32.totalorder %s20, 1
      %p261 = por %p259, %p260
      %p262 = scmp.ne.s32.totalorder %s254, %s257
      %p263 = scmp.eq.s32.totalorder %s20, 0
      %p264 = por %p262, %p263
      %p265 = scmp.ne.s32.totalorder %s254, %s257
      %p266 = scmp.eq.s32.totalorder %s25, 1
      %p267 = por %p265, %p266
      %p268 = scmp.ne.s32.totalorder %s257, %s258
      %p269 = scmp.eq.s32.totalorder %s25, 0
      %p270 = por %p268, %p269
      %p271 = scmp.ne.s32.totalorder %s257, %s258
      %p272 = scmp.eq.s32.totalorder %s26, 1
      %p273 = por %p271, %p272
      %p275 = scmp.ne.s32.totalorder %s258, %s274
      %p276 = scmp.eq.s32.totalorder %s26, 0
      %p277 = por %p275, %p276
      %p278 = scmp.le.s32.totalorder 1, %s20
      %p279 = scmp.lt.s32.totalorder %s20, 3
      %p280 = pnand %p278, %p279
      %p281 = pneg %p280
      // Predicated region
      $region9: #{infograph_forward.2} parent=5 // pred_check
        _
      $region10: #{infograph_forward.2} parent=5 // pred_check_branch
        %283 = sbr.rel (%p280) target = $region12
      $region11: #{infograph_forward.2} parent=5 // pred_region
        %s284 = ssub.s32 %s20, 1
        // Predicated region
        $region13: #{infograph_forward.2} parent=11 // pred_check
          %p285 = pneg %p41
        $region14: #{infograph_forward.2} parent=11 // pred_check_branch
          %287 = sbr.rel (%p285) target = $region16
        $region15: #{infograph_forward.2} parent=11 // pred_region
          _
        $region16: #{infograph_forward.2} parent=11 // pred_fallthru
          _
        // Predicated region
        $region17: #{infograph_forward.2} parent=11 // pred_check
          %p288 = pneg %p62
        $region18: #{infograph_forward.2} parent=11 // pred_check_branch
          %290 = sbr.rel (%p288) target = $region20
        $region19: #{infograph_forward.2} parent=11 // pred_region
          _
        $region20: #{infograph_forward.2} parent=11 // pred_fallthru
          _
      $region12: #{infograph_forward.2} parent=5 // pred_fallthru
        _
      %p291 = scmp.lt.s32.totalorder %s20, 2
      // Predicated region
      $region21: #{infograph_forward.2} parent=5 // pred_check
        %p292 = pneg %p291
      $region22: #{infograph_forward.2} parent=5 // pred_check_branch
        %294 = sbr.rel (%p292) target = $region24
      $region23: #{infograph_forward.2} parent=5 // pred_region
        // Predicated region
        $region25: #{infograph_forward.2} parent=23 // pred_check
          %p295 = pneg %p82
        $region26: #{infograph_forward.2} parent=23 // pred_check_branch
          %297 = sbr.rel (%p295) target = $region28
        $region27: #{infograph_forward.2} parent=23 // pred_region
          %p298 = scmp.lt.s32.totalorder %s20, 1
          %s299 = scalar_select %p298, %s20, 1
          %s300 = smul.addr %s299, 16
          %s301 = smul.addr %s300, 4
          %s302 = scalar_lea.vmem %s3, %s301
        $region28: #{infograph_forward.2} parent=23 // pred_fallthru
          _
        // Predicated region
        $region29: #{infograph_forward.2} parent=23 // pred_check
          %p303 = pneg %p108
        $region30: #{infograph_forward.2} parent=23 // pred_check_branch
          %305 = sbr.rel (%p303) target = $region32
        $region31: #{infograph_forward.2} parent=23 // pred_region
          %p306 = scmp.lt.s32.totalorder %s20, 1
          %s307 = scalar_select %p306, %s20, 1
          %s308 = scalar_lea.vmem %s4, %s307
        $region32: #{infograph_forward.2} parent=23 // pred_fallthru
          _
        // Predicated region
        $region33: #{infograph_forward.2} parent=23 // pred_check
          %p309 = pneg %p134
        $region34: #{infograph_forward.2} parent=23 // pred_check_branch
          %311 = sbr.rel (%p309) target = $region36
        $region35: #{infograph_forward.2} parent=23 // pred_region
          %s312 = sand.u32 %s124, 1
          %s313 = scalar_lea.sflag [#allocation4], %s312
          %s314 = sand.u32 %s124, 1
          %s315 = smul.addr %s314, 64
          %s316 = scalar_lea.vmem [#allocation3], %s315
          %s318 = ssub.s32 1024, 1024
          %319 = vsyncadd %s313, %s318
          %s320 = smul.addr %s20, 16
          %s321 = smul.addr %s320, 64
          %s322 = scalar_lea.hbm %s5, %s321
          %s323 = sshll.u32 %s316, 4
          %s324 = int_to_ptr.vmem [resolvable:$true] %s323
          %329 = dma.hbm_to_vmem [thread:$0]  %s322, 1024, %s324, %s313, 64, 64, 4
        $region36: #{infograph_forward.2} parent=23 // pred_fallthru
          _
        // Predicated region
        $region37: #{infograph_forward.2} parent=23 // pred_check
          %p330 = pneg %p160
        $region38: #{infograph_forward.2} parent=23 // pred_check_branch
          %332 = sbr.rel (%p330) target = $region40
        $region39: #{infograph_forward.2} parent=23 // pred_region
          %p333 = scmp.lt.s32.totalorder %s20, 1
          %s334 = scalar_select %p333, %s20, 1
          %s335 = scalar_lea.vmem %s6, %s334
        $region40: #{infograph_forward.2} parent=23 // pred_fallthru
          _
        // Predicated region
        $region41: #{infograph_forward.2} parent=23 // pred_check
          %p336 = pneg %p186
        $region42: #{infograph_forward.2} parent=23 // pred_check_branch
          %338 = sbr.rel (%p336) target = $region44
        $region43: #{infograph_forward.2} parent=23 // pred_region
          %p339 = scmp.lt.s32.totalorder %s20, 1
          %s340 = scalar_select %p339, %s20, 1
          %s341 = scalar_lea.vmem %s7, %s340
        $region44: #{infograph_forward.2} parent=23 // pred_fallthru
          _
        // Predicated region
        $region45: #{infograph_forward.2} parent=23 // pred_check
          %p342 = pneg %p212
        $region46: #{infograph_forward.2} parent=23 // pred_check_branch
          %344 = sbr.rel (%p342) target = $region48
        $region47: #{infograph_forward.2} parent=23 // pred_region
          %p345 = scmp.lt.s32.totalorder %s20, 1
          %s346 = scalar_select %p345, %s20, 1
          %s347 = scalar_lea.vmem %s8, %s346
        $region48: #{infograph_forward.2} parent=23 // pred_fallthru
          _
      $region24: #{infograph_forward.2} parent=5 // pred_fallthru
        _
      %p348 = scmp.le.s32.totalorder 1, %s20
      %p349 = scmp.lt.s32.totalorder %s20, 3
      %p350 = pnand %p348, %p349
      %p351 = pneg %p350
      // Predicated region
      $region49: #{infograph_forward.2} parent=5 // pred_check
        _
      $region50: #{infograph_forward.2} parent=5 // pred_check_branch
        %353 = sbr.rel (%p350) target = $region52
      $region51: #{infograph_forward.2} parent=5 // pred_region
        %s354 = ssub.s32 %s20, 1
        %s355 = sand.u32 %s127, 1
        %s356 = scalar_lea.sflag [#allocation4], %s355
        %s357 = sand.u32 %s127, 1
        %s358 = smul.addr %s357, 64
        %s359 = scalar_lea.vmem [#allocation3], %s358
        // Predicated region
        $region53: #{infograph_forward.2} parent=51 // pred_check
          %p360 = pneg %p140
        $region54: #{infograph_forward.2} parent=51 // pred_check_branch
          %362 = sbr.rel (%p360) target = $region56
        $region55: #{infograph_forward.2} parent=51 // pred_region
          %363 = dma.done %s356, 1024
        $region56: #{infograph_forward.2} parent=51 // pred_fallthru
          _
        %p364 = pneg %p41
        %p365 = pneg %p38
        %p366 = pneg %p62
        %p367 = pneg %p59
        %p368 = scmp.lt.s32.totalorder %s25, 1
        %s369 = scalar_select %p368, %s25, 1
        %s370 = smul.addr %s369, 16
        %s371 = smul.addr %s370, 4
        %s372 = scalar_lea.vmem %s3, %s371
        %p373 = pneg %p88
        %p374 = pneg %p85
        %p375 = scmp.lt.s32.totalorder %s25, 1
        %s376 = scalar_select %p375, %s25, 1
        %s377 = scalar_lea.vmem %s4, %s376
        %p378 = pneg %p114
        %p379 = pneg %p111
        %s380 = sand.u32 %s127, 1
        %s381 = scalar_lea.sflag [#allocation4], %s380
        %s382 = sand.u32 %s127, 1
        %s383 = smul.addr %s382, 64
        %s384 = scalar_lea.vmem [#allocation3], %s383
        %p385 = pneg %p140
        %p386 = pneg %p137
        %p387 = scmp.lt.s32.totalorder %s25, 1
        %s388 = scalar_select %p387, %s25, 1
        %s389 = scalar_lea.vmem %s6, %s388
        %p390 = pneg %p166
        %p391 = pneg %p163
        %p392 = scmp.lt.s32.totalorder %s25, 1
        %s393 = scalar_select %p392, %s25, 1
        %s394 = scalar_lea.vmem %s7, %s393
        %p395 = pneg %p192
        %p396 = pneg %p189
        %p397 = scmp.lt.s32.totalorder %s25, 1
        %s398 = scalar_select %p397, %s25, 1
        %s399 = scalar_lea.vmem %s8, %s398
        %p400 = pneg %p218
        %p401 = pneg %p215
        %p402 = pneg %p244
        %p403 = pneg %p241
        %s404 = sand.u32 %s231, 1
        %s405 = sand.u32 %s231, 1
        %s406 = smul.addr %s405, 256
        %s407 = scalar_lea.vmem [#allocation5], %s406
        %p408 = pneg %p270
        %p409 = pneg %p267
        %p410 = scmp.lt.s32.totalorder %s25, 1
        %s411 = scalar_select %p410, %s25, 1
        %s412 = smul.addr %s411, 4
        %s413 = scalar_lea.vmem %s10, %s412
        %p414 = scmp.lt.s32.totalorder %s25, 1
        %s415 = scalar_select %p414, %s25, 1
        %s416 = smul.addr %s415, 16
        %s417 = smul.addr %s416, 4
        %s418 = scalar_lea.vmem %s3, %s417
        %p419 = scmp.lt.s32.totalorder %s25, 1
        %s420 = scalar_select %p419, %s25, 1
        %s421 = scalar_lea.vmem %s4, %s420
        %p422 = scmp.lt.s32.totalorder %s25, 1
        %s423 = scalar_select %p422, %s25, 1
        %s424 = scalar_lea.vmem %s6, %s423
        %p425 = scmp.lt.s32.totalorder %s25, 1
        %s426 = scalar_select %p425, %s25, 1
        %s427 = scalar_lea.vmem %s7, %s426
        %p428 = scmp.lt.s32.totalorder %s25, 1
        %s429 = scalar_select %p428, %s25, 1
        %s430 = scalar_lea.vmem %s8, %s429
        %p431 = scmp.lt.s32.totalorder %s25, 1
        %s432 = scalar_select %p431, %s25, 1
        %s433 = smul.addr %s432, 4
        %s434 = scalar_lea.vmem %s10, %s433
        %p436 = scmp.eq.s32.totalorder %s25, 0
        // Predicated region
        $region57: #{infograph_forward.2} parent=51 // pred_check
          %p437 = pneg %p436
        $region58: #{infograph_forward.2} parent=51 // pred_check_branch
          %439 = sbr.rel (%p437) target = $region60
        $region59: #{infograph_forward.2} parent=51 // pred_region
          $region61: #{infograph_forward.2} parent=59
            #allocation6 [shape = 's32[1]{0}', space=sflag, size = 0x4, scoped, tag = 'scoped memory for infograph_forward.2']
            %p441 = scmp.lt.u32.totalorder 256, 8
            %p442 = pneg %p441
            // Predicated region
            $region62: #{infograph_forward.2} parent=61 // pred_check
              _
            $region63: #{infograph_forward.2} parent=61 // pred_check_branch
              %444 = sbr.rel (%p441) target = $region65
            $region64: #{infograph_forward.2} parent=61 // pred_region
              %s459 = sand.u32 256, 7
              %p460 = scmp.eq.s32.totalorder %s459, 0
              // Predicated region
              $region77: #{infograph_forward.2} parent=64 // pred_check
                %p461 = pneg %p460
              $region78: #{infograph_forward.2} parent=64 // pred_check_branch
                %463 = sbr.rel (%p461) target = $region80
              $region79: #{infograph_forward.2} parent=64 // pred_region
                loop: start=0, step=1, limit=1
                $region81: #{infograph_forward.2} parent=79 // loop_pre_header
                  _
                $region82: #{infograph_forward.2} parent=79 // loop_header
                  %s465 = sphi 0, %s469
                  %p466 = scmp.ge.s32.totalorder %s465, 1
                  %s470 = sphi %s1, %s1
                  %s471 = sphi [#allocation2], [#allocation2]
                $region83: #{infograph_forward.2} parent=79 // loop_header_branch
                  %468 = sbr.rel (%p466) target = $region87
                $region84: #{infograph_forward.2} parent=79 // loop_body
                  %v472 = vld [vmem:[%s470] sm:$0xff]
                  %473 = vst [vmem:[%s471] sm:$0xff] %v472
                  %v474 = vld [vmem:[%s470 + $0x8] sm:$0xff]
                  %475 = vst [vmem:[%s471 + $0x8] sm:$0xff] %v474
                  %v476 = vld [vmem:[%s470 + $0x10] sm:$0xff]
                  %477 = vst [vmem:[%s471 + $0x10] sm:$0xff] %v476
                  %v478 = vld [vmem:[%s470 + $0x18] sm:$0xff]
                  %479 = vst [vmem:[%s471 + $0x18] sm:$0xff] %v478
                  %v480 = vld [vmem:[%s470 + $0x20] sm:$0xff]
                  %481 = vst [vmem:[%s471 + $0x20] sm:$0xff] %v480
                  %v482 = vld [vmem:[%s470 + $0x28] sm:$0xff]
                  %483 = vst [vmem:[%s471 + $0x28] sm:$0xff] %v482
                  %v484 = vld [vmem:[%s470 + $0x30] sm:$0xff]
                  %485 = vst [vmem:[%s471 + $0x30] sm:$0xff] %v484
                  %v486 = vld [vmem:[%s470 + $0x38] sm:$0xff]
                  %487 = vst [vmem:[%s471 + $0x38] sm:$0xff] %v486
                  %v488 = vld [vmem:[%s470 + $0x40] sm:$0xff]
                  %489 = vst [vmem:[%s471 + $0x40] sm:$0xff] %v488
                  %v490 = vld [vmem:[%s470 + $0x48] sm:$0xff]
                  %491 = vst [vmem:[%s471 + $0x48] sm:$0xff] %v490
                  %v492 = vld [vmem:[%s470 + $0x50] sm:$0xff]
                  %493 = vst [vmem:[%s471 + $0x50] sm:$0xff] %v492
                  %v494 = vld [vmem:[%s470 + $0x58] sm:$0xff]
                  %495 = vst [vmem:[%s471 + $0x58] sm:$0xff] %v494
                  %v496 = vld [vmem:[%s470 + $0x60] sm:$0xff]
                  %497 = vst [vmem:[%s471 + $0x60] sm:$0xff] %v496
                  %v498 = vld [vmem:[%s470 + $0x68] sm:$0xff]
                  %499 = vst [vmem:[%s471 + $0x68] sm:$0xff] %v498
                  %v500 = vld [vmem:[%s470 + $0x70] sm:$0xff]
                  %501 = vst [vmem:[%s471 + $0x70] sm:$0xff] %v500
                  %v502 = vld [vmem:[%s470 + $0x78] sm:$0xff]
                  %503 = vst [vmem:[%s471 + $0x78] sm:$0xff] %v502
                  %v504 = vld [vmem:[%s470 + $0x80] sm:$0xff]
                  %505 = vst [vmem:[%s471 + $0x80] sm:$0xff] %v504
                  %v506 = vld [vmem:[%s470 + $0x88] sm:$0xff]
                  %507 = vst [vmem:[%s471 + $0x88] sm:$0xff] %v506
                  %v508 = vld [vmem:[%s470 + $0x90] sm:$0xff]
                  %509 = vst [vmem:[%s471 + $0x90] sm:$0xff] %v508
                  %v510 = vld [vmem:[%s470 + $0x98] sm:$0xff]
                  %511 = vst [vmem:[%s471 + $0x98] sm:$0xff] %v510
                  %v512 = vld [vmem:[%s470 + $0xa0] sm:$0xff]
                  %513 = vst [vmem:[%s471 + $0xa0] sm:$0xff] %v512
                  %v514 = vld [vmem:[%s470 + $0xa8] sm:$0xff]
                  %515 = vst [vmem:[%s471 + $0xa8] sm:$0xff] %v514
                  %v516 = vld [vmem:[%s470 + $0xb0] sm:$0xff]
                  %517 = vst [vmem:[%s471 + $0xb0] sm:$0xff] %v516
                  %v518 = vld [vmem:[%s470 + $0xb8] sm:$0xff]
                  %519 = vst [vmem:[%s471 + $0xb8] sm:$0xff] %v518
                  %v520 = vld [vmem:[%s470 + $0xc0] sm:$0xff]
                  %521 = vst [vmem:[%s471 + $0xc0] sm:$0xff] %v520
                  %v522 = vld [vmem:[%s470 + $0xc8] sm:$0xff]
                  %523 = vst [vmem:[%s471 + $0xc8] sm:$0xff] %v522
                  %v524 = vld [vmem:[%s470 + $0xd0] sm:$0xff]
                  %525 = vst [vmem:[%s471 + $0xd0] sm:$0xff] %v524
                  %v526 = vld [vmem:[%s470 + $0xd8] sm:$0xff]
                  %527 = vst [vmem:[%s471 + $0xd8] sm:$0xff] %v526
                  %v528 = vld [vmem:[%s470 + $0xe0] sm:$0xff]
                  %529 = vst [vmem:[%s471 + $0xe0] sm:$0xff] %v528
                  %v530 = vld [vmem:[%s470 + $0xe8] sm:$0xff]
                  %531 = vst [vmem:[%s471 + $0xe8] sm:$0xff] %v530
                  %v532 = vld [vmem:[%s470 + $0xf0] sm:$0xff]
                  %533 = vst [vmem:[%s471 + $0xf0] sm:$0xff] %v532
                  %v534 = vld [vmem:[%s470 + $0xf8] sm:$0xff]
                  %535 = vst [vmem:[%s471 + $0xf8] sm:$0xff] %v534
                $region85: #{infograph_forward.2} parent=79 // loop_footer
                  %s469 = sadd.s32 1, %s465
                $region86: #{infograph_forward.2} parent=79 // loop_footer_branch
                  %464 = sbr.rel target = $region82
                $region87: #{infograph_forward.2} parent=79 // loop_exit
                  _
              $region80: #{infograph_forward.2} parent=64 // pred_fallthru
                _
              %p536 = pneg %p460
              // Predicated region
              $region88: #{infograph_forward.2} parent=64 // pred_check
                _
              $region89: #{infograph_forward.2} parent=64 // pred_check_branch
                %538 = sbr.rel (%p460) target = $region91
              $region90: #{infograph_forward.2} parent=64 // pred_region
                %s539 = sand.u32 256, 7
              $region91: #{infograph_forward.2} parent=64 // pred_fallthru
                _
            $region65: #{infograph_forward.2} parent=61 // pred_fallthru
              _
            // Predicated region
            $region66: #{infograph_forward.2} parent=61 // pred_check
              %p445 = pneg %p441
            $region67: #{infograph_forward.2} parent=61 // pred_check_branch
              %447 = sbr.rel (%p445) target = $region69
            $region68: #{infograph_forward.2} parent=61 // pred_region
              %s448 = sshllo.u32 0, 256
              loop: start=0, step=1, limit=1
              $region70: #{infograph_forward.2} parent=68 // loop_pre_header
                _
              $region71: #{infograph_forward.2} parent=68 // loop_header
                %s450 = sphi 0, %s454
                %p451 = scmp.ge.s32.totalorder %s450, 1
                %s455 = sphi %s1, %s1
                %s456 = sphi [#allocation2], [#allocation2]
              $region72: #{infograph_forward.2} parent=68 // loop_header_branch
                %453 = sbr.rel (%p451) target = $region76
              $region73: #{infograph_forward.2} parent=68 // loop_body
                %v457 = vld [vmem:[%s455] sm:%s448]
                %458 = vst [vmem:[%s456] sm:%s448] %v457
              $region74: #{infograph_forward.2} parent=68 // loop_footer
                %s454 = sadd.s32 1, %s450
              $region75: #{infograph_forward.2} parent=68 // loop_footer_branch
                %449 = sbr.rel target = $region71
              $region76: #{infograph_forward.2} parent=68 // loop_exit
                _
            $region69: #{infograph_forward.2} parent=61 // pred_fallthru
              _
            // Predicated region
            $region92: #{infograph_forward.2} parent=61 // pred_check
              _
            $region93: #{infograph_forward.2} parent=61 // pred_check_branch
              %542 = sbr.rel (0) target = $region95
            $region94: #{infograph_forward.2} parent=61 // pred_region
              %543 = vsyncadd [#allocation6], 4096
            $region95: #{infograph_forward.2} parent=61 // pred_fallthru
              _
            %s544 = smul.u32 256, 1
            %s545 = sshll.u32 %s544, 4
            %546 = dma.done [#allocation6], %s545
        $region60: #{infograph_forward.2} parent=51 // pred_fallthru
          _
        %v547 = vld [vmem:[#allocation2] sm:$0xff]
        %v548 = vld [vmem:[#allocation2 + $0x8] sm:$0xff]
        %v549 = vld [vmem:[#allocation2 + $0x10] sm:$0xff]
        %v550 = vld [vmem:[#allocation2 + $0x18] sm:$0xff]
        %v551 = vld [vmem:[#allocation2 + $0x20] sm:$0xff]
        %v552 = vld [vmem:[#allocation2 + $0x28] sm:$0xff]
        %v553 = vld [vmem:[#allocation2 + $0x30] sm:$0xff]
        %v554 = vld [vmem:[#allocation2 + $0x38] sm:$0xff]
        %v555 = vld [vmem:[#allocation2 + $0x40] sm:$0xff]
        %v556 = vld [vmem:[#allocation2 + $0x48] sm:$0xff]
        %v557 = vld [vmem:[#allocation2 + $0x50] sm:$0xff]
        %v558 = vld [vmem:[#allocation2 + $0x58] sm:$0xff]
        %v559 = vld [vmem:[#allocation2 + $0x60] sm:$0xff]
        %v560 = vld [vmem:[#allocation2 + $0x68] sm:$0xff]
        %v561 = vld [vmem:[#allocation2 + $0x70] sm:$0xff]
        %v562 = vld [vmem:[#allocation2 + $0x78] sm:$0xff]
        %v563 = vld [vmem:[#allocation2 + $0x80] sm:$0xff]
        %v564 = vld [vmem:[#allocation2 + $0x88] sm:$0xff]
        %v565 = vld [vmem:[#allocation2 + $0x90] sm:$0xff]
        %v566 = vld [vmem:[#allocation2 + $0x98] sm:$0xff]
        %v567 = vld [vmem:[#allocation2 + $0xa0] sm:$0xff]
        %v568 = vld [vmem:[#allocation2 + $0xa8] sm:$0xff]
        %v569 = vld [vmem:[#allocation2 + $0xb0] sm:$0xff]
        %v570 = vld [vmem:[#allocation2 + $0xb8] sm:$0xff]
        %v571 = vld [vmem:[#allocation2 + $0xc0] sm:$0xff]
        %v572 = vld [vmem:[#allocation2 + $0xc8] sm:$0xff]
        %v573 = vld [vmem:[#allocation2 + $0xd0] sm:$0xff]
        %v574 = vld [vmem:[#allocation2 + $0xd8] sm:$0xff]
        %v575 = vld [vmem:[#allocation2 + $0xe0] sm:$0xff]
        %v576 = vld [vmem:[#allocation2 + $0xe8] sm:$0xff]
        %v577 = vld [vmem:[#allocation2 + $0xf0] sm:$0xff]
        %v578 = vld [vmem:[#allocation2 + $0xf8] sm:$0xff]
        %v579 = vmax.f32 %v547, 0.0
        %v580 = vmax.f32 %v548, 0.0
        %v581 = vmax.f32 %v549, 0.0
        %v582 = vmax.f32 %v550, 0.0
        %v583 = vmax.f32 %v551, 0.0
        %v584 = vmax.f32 %v552, 0.0
        %v585 = vmax.f32 %v553, 0.0
        %v586 = vmax.f32 %v554, 0.0
        %v587 = vmax.f32 %v555, 0.0
        %v588 = vmax.f32 %v556, 0.0
        %v589 = vmax.f32 %v557, 0.0
        %v590 = vmax.f32 %v558, 0.0
        %v591 = vmax.f32 %v559, 0.0
        %v592 = vmax.f32 %v560, 0.0
        %v593 = vmax.f32 %v561, 0.0
        %v594 = vmax.f32 %v562, 0.0
        %v595 = vmax.f32 %v563, 0.0
        %v596 = vmax.f32 %v564, 0.0
        %v597 = vmax.f32 %v565, 0.0
        %v598 = vmax.f32 %v566, 0.0
        %v599 = vmax.f32 %v567, 0.0
        %v600 = vmax.f32 %v568, 0.0
        %v601 = vmax.f32 %v569, 0.0
        %v602 = vmax.f32 %v570, 0.0
        %v603 = vmax.f32 %v571, 0.0
        %v604 = vmax.f32 %v572, 0.0
        %v605 = vmax.f32 %v573, 0.0
        %v606 = vmax.f32 %v574, 0.0
        %v607 = vmax.f32 %v575, 0.0
        %v608 = vmax.f32 %v576, 0.0
        %v609 = vmax.f32 %v577, 0.0
        %v610 = vmax.f32 %v578, 0.0
        %v611 = vpack.c.bf16 %v580, %v579
        %v612 = vpack.c.bf16 %v582, %v581
        %v613 = vpack.c.bf16 %v584, %v583
        %v614 = vpack.c.bf16 %v586, %v585
        %v615 = vpack.c.bf16 %v588, %v587
        %v616 = vpack.c.bf16 %v590, %v589
        %v617 = vpack.c.bf16 %v592, %v591
        %v618 = vpack.c.bf16 %v594, %v593
        %v619 = vpack.c.bf16 %v596, %v595
        %v620 = vpack.c.bf16 %v598, %v597
        %v621 = vpack.c.bf16 %v600, %v599
        %v622 = vpack.c.bf16 %v602, %v601
        %v623 = vpack.c.bf16 %v604, %v603
        %v624 = vpack.c.bf16 %v606, %v605
        %v625 = vpack.c.bf16 %v608, %v607
        %v626 = vpack.c.bf16 %v610, %v609
        %v627 = vld [vmem:[%s0] sm:$0xff]
        %v628 = vld [vmem:[%s0 + $0x8] sm:$0xff]
        %v629 = vld [vmem:[%s0 + $0x10] sm:$0xff]
        %v630 = vld [vmem:[%s0 + $0x18] sm:$0xff]
        %v631 = vld [vmem:[%s0 + $0x20] sm:$0xff]
        %v632 = vld [vmem:[%s0 + $0x28] sm:$0xff]
        %v633 = vld [vmem:[%s0 + $0x30] sm:$0xff]
        %v634 = vld [vmem:[%s0 + $0x38] sm:$0xff]
        %v635 = vld [vmem:[%s0 + $0x40] sm:$0xff]
        %v636 = vld [vmem:[%s0 + $0x48] sm:$0xff]
        %v637 = vld [vmem:[%s0 + $0x50] sm:$0xff]
        %v638 = vld [vmem:[%s0 + $0x58] sm:$0xff]
        %v639 = vld [vmem:[%s0 + $0x60] sm:$0xff]
        %v640 = vld [vmem:[%s0 + $0x68] sm:$0xff]
        %v641 = vld [vmem:[%s0 + $0x70] sm:$0xff]
        %v642 = vld [vmem:[%s0 + $0x78] sm:$0xff]
        %v643 = vld [vmem:[%s0 + $0x80] sm:$0xff]
        %v644 = vld [vmem:[%s0 + $0x88] sm:$0xff]
        %v645 = vld [vmem:[%s0 + $0x90] sm:$0xff]
        %v646 = vld [vmem:[%s0 + $0x98] sm:$0xff]
        %v647 = vld [vmem:[%s0 + $0xa0] sm:$0xff]
        %v648 = vld [vmem:[%s0 + $0xa8] sm:$0xff]
        %v649 = vld [vmem:[%s0 + $0xb0] sm:$0xff]
        %v650 = vld [vmem:[%s0 + $0xb8] sm:$0xff]
        %v651 = vld [vmem:[%s0 + $0xc0] sm:$0xff]
        %v652 = vld [vmem:[%s0 + $0xc8] sm:$0xff]
        %v653 = vld [vmem:[%s0 + $0xd0] sm:$0xff]
        %v654 = vld [vmem:[%s0 + $0xd8] sm:$0xff]
        %v655 = vld [vmem:[%s0 + $0xe0] sm:$0xff]
        %v656 = vld [vmem:[%s0 + $0xe8] sm:$0xff]
        %v657 = vld [vmem:[%s0 + $0xf0] sm:$0xff]
        %v658 = vld [vmem:[%s0 + $0xf8] sm:$0xff]
        %v691 = vunpack.c.l.b16 %v627
        %v692 = vunpack.c.h.b16 %v627
        %v693 = vunpack.c.l.b16 %v628
        %v694 = vunpack.c.h.b16 %v628
        %v695 = vunpack.c.l.b16 %v629
        %v696 = vunpack.c.h.b16 %v629
        %v697 = vunpack.c.l.b16 %v630
        %v698 = vunpack.c.h.b16 %v630
        %v699 = vunpack.c.l.b16 %v631
        %v700 = vunpack.c.h.b16 %v631
        %v701 = vunpack.c.l.b16 %v632
        %v702 = vunpack.c.h.b16 %v632
        %v703 = vunpack.c.l.b16 %v633
        %v704 = vunpack.c.h.b16 %v633
        %v705 = vunpack.c.l.b16 %v634
        %v706 = vunpack.c.h.b16 %v634
        %v707 = vunpack.c.l.b16 %v635
        %v708 = vunpack.c.h.b16 %v635
        %v709 = vunpack.c.l.b16 %v636
        %v710 = vunpack.c.h.b16 %v636
        %v711 = vunpack.c.l.b16 %v637
        %v712 = vunpack.c.h.b16 %v637
        %v713 = vunpack.c.l.b16 %v638
        %v714 = vunpack.c.h.b16 %v638
        %v715 = vunpack.c.l.b16 %v639
        %v716 = vunpack.c.h.b16 %v639
        %v717 = vunpack.c.l.b16 %v640
        %v718 = vunpack.c.h.b16 %v640
        %v719 = vunpack.c.l.b16 %v641
        %v720 = vunpack.c.h.b16 %v641
        %v721 = vunpack.c.l.b16 %v642
        %v722 = vunpack.c.h.b16 %v642
        %v723 = vunpack.c.l.b16 %v643
        %v724 = vunpack.c.h.b16 %v643
        %v725 = vunpack.c.l.b16 %v644
        %v726 = vunpack.c.h.b16 %v644
        %v727 = vunpack.c.l.b16 %v645
        %v728 = vunpack.c.h.b16 %v645
        %v729 = vunpack.c.l.b16 %v646
        %v730 = vunpack.c.h.b16 %v646
        %v731 = vunpack.c.l.b16 %v647
        %v732 = vunpack.c.h.b16 %v647
        %v733 = vunpack.c.l.b16 %v648
        %v734 = vunpack.c.h.b16 %v648
        %v735 = vunpack.c.l.b16 %v649
        %v736 = vunpack.c.h.b16 %v649
        %v737 = vunpack.c.l.b16 %v650
        %v738 = vunpack.c.h.b16 %v650
        %v739 = vunpack.c.l.b16 %v651
        %v740 = vunpack.c.h.b16 %v651
        %v741 = vunpack.c.l.b16 %v652
        %v742 = vunpack.c.h.b16 %v652
        %v743 = vunpack.c.l.b16 %v653
        %v744 = vunpack.c.h.b16 %v653
        %v745 = vunpack.c.l.b16 %v654
        %v746 = vunpack.c.h.b16 %v654
        %v747 = vunpack.c.l.b16 %v655
        %v748 = vunpack.c.h.b16 %v655
        %v749 = vunpack.c.l.b16 %v656
        %v750 = vunpack.c.h.b16 %v656
        %v751 = vunpack.c.l.b16 %v657
        %v752 = vunpack.c.h.b16 %v657
        %v753 = vunpack.c.l.b16 %v658
        %v754 = vunpack.c.h.b16 %v658
        %v755 = vpack.c.b16 %v693, %v691
        %v756 = vpack.c.b16 %v694, %v692
        %v757 = vpack.c.b16 %v697, %v695
        %v758 = vpack.c.b16 %v698, %v696
        %v759 = vpack.c.b16 %v701, %v699
        %v760 = vpack.c.b16 %v702, %v700
        %v761 = vpack.c.b16 %v705, %v703
        %v762 = vpack.c.b16 %v706, %v704
        %v763 = vpack.c.b16 %v709, %v707
        %v764 = vpack.c.b16 %v710, %v708
        %v765 = vpack.c.b16 %v713, %v711
        %v766 = vpack.c.b16 %v714, %v712
        %v767 = vpack.c.b16 %v717, %v715
        %v768 = vpack.c.b16 %v718, %v716
        %v769 = vpack.c.b16 %v721, %v719
        %v770 = vpack.c.b16 %v722, %v720
        %v771 = vpack.c.b16 %v725, %v723
        %v772 = vpack.c.b16 %v726, %v724
        %v773 = vpack.c.b16 %v729, %v727
        %v774 = vpack.c.b16 %v730, %v728
        %v775 = vpack.c.b16 %v733, %v731
        %v776 = vpack.c.b16 %v734, %v732
        %v777 = vpack.c.b16 %v737, %v735
        %v778 = vpack.c.b16 %v738, %v736
        %v779 = vpack.c.b16 %v741, %v739
        %v780 = vpack.c.b16 %v742, %v740
        %v781 = vpack.c.b16 %v745, %v743
        %v782 = vpack.c.b16 %v746, %v744
        %v783 = vpack.c.b16 %v749, %v747
        %v784 = vpack.c.b16 %v750, %v748
        %v785 = vpack.c.b16 %v753, %v751
        %v786 = vpack.c.b16 %v754, %v752
        %819 = vmatprep.subr.bf16.mxu0 0
        %820 = vmatpush1.bf16.msra.mxu0 %v611
        %821 = vmatprep.subr.bf16.mxu0 0
        %822 = vmatpush1.bf16.msra.mxu0 %v612
        %823 = vmatprep.subr.bf16.mxu0 0
        %824 = vmatpush1.bf16.msra.mxu0 %v613
        %825 = vmatprep.subr.bf16.mxu0 0
        %826 = vmatpush1.bf16.msra.mxu0 %v614
        %827 = vmatprep.subr.bf16.mxu0 0
        %828 = vmatpush1.bf16.msra.mxu0 %v615
        %829 = vmatprep.subr.bf16.mxu0 0
        %830 = vmatpush1.bf16.msra.mxu0 %v616
        %831 = vmatprep.subr.bf16.mxu0 0
        %832 = vmatpush1.bf16.msra.mxu0 %v617
        %833 = vmatprep.subr.bf16.mxu0 0
        %834 = vmatpush1.bf16.msra.mxu0 %v618
        %835 = vmatprep.subr.bf16.mxu0 0
        %836 = vmatpush1.bf16.msra.mxu0 %v619
        %837 = vmatprep.subr.bf16.mxu0 0
        %838 = vmatpush1.bf16.msra.mxu0 %v620
        %839 = vmatprep.subr.bf16.mxu0 0
        %840 = vmatpush1.bf16.msra.mxu0 %v621
        %841 = vmatprep.subr.bf16.mxu0 0
        %842 = vmatpush1.bf16.msra.mxu0 %v622
        %843 = vmatprep.subr.bf16.mxu0 0
        %844 = vmatpush1.bf16.msra.mxu0 %v623
        %845 = vmatprep.subr.bf16.mxu0 0
        %846 = vmatpush1.bf16.msra.mxu0 %v624
        %847 = vmatprep.subr.bf16.mxu0 0
        %848 = vmatpush1.bf16.msra.mxu0 %v625
        %849 = vmatprep.subr.bf16.mxu0 0
        %850 = vmatpush1.bf16.msra.mxu0 %v626
        %851 = vmatprep.mubr.bf16.mxu0 %v756
        %852 = vmatmul.mubr.bf16.gmra.mrb[0].mxu0 %v755
        %v853 = vpop.f32.mrb[0].mxu0
        %v854 = vadd.f32 0.0, %v853
        %v855 = vpop.f32.mrb[0].mxu0
        %v856 = vpop.f32.mrb[0].mxu0
        %v857 = vadd.f32 0.0, %v856
        %v858 = vpop.f32.mrb[0].mxu0
        %859 = vmatprep.mubr.bf16.mxu0 %v758
        %860 = vmatmul.mubr.bf16.gmra.mrb[0].mxu0 %v757
        %v861 = vpop.f32.mrb[0].mxu0
        %v862 = vadd.f32 0.0, %v861
        %v863 = vpop.f32.mrb[0].mxu0
        %v864 = vpop.f32.mrb[0].mxu0
        %v865 = vadd.f32 0.0, %v864
        %v866 = vpop.f32.mrb[0].mxu0
        %867 = vmatprep.mubr.bf16.mxu0 %v760
        %868 = vmatmul.mubr.bf16.gmra.mrb[0].mxu0 %v759
        %v869 = vpop.f32.mrb[0].mxu0
        %v870 = vadd.f32 0.0, %v869
        %v871 = vpop.f32.mrb[0].mxu0
        %v872 = vpop.f32.mrb[0].mxu0
        %v873 = vadd.f32 0.0, %v872
        %v874 = vpop.f32.mrb[0].mxu0
        %875 = vmatprep.mubr.bf16.mxu0 %v762
        %876 = vmatmul.mubr.bf16.gmra.mrb[0].mxu0 %v761
        %v877 = vpop.f32.mrb[0].mxu0
        %v878 = vadd.f32 0.0, %v877
        %v879 = vpop.f32.mrb[0].mxu0
        %v880 = vpop.f32.mrb[0].mxu0
        %v881 = vadd.f32 0.0, %v880
        %v882 = vpop.f32.mrb[0].mxu0
        %883 = vmatprep.mubr.bf16.mxu0 %v764
        %884 = vmatmul.mubr.bf16.gmra.mrb[0].mxu0 %v763
        %v885 = vpop.f32.mrb[0].mxu0
        %v886 = vadd.f32 0.0, %v885
        %v887 = vpop.f32.mrb[0].mxu0
        %v888 = vpop.f32.mrb[0].mxu0
        %v889 = vadd.f32 0.0, %v888
        %v890 = vpop.f32.mrb[0].mxu0
        %891 = vmatprep.mubr.bf16.mxu0 %v766
        %892 = vmatmul.mubr.bf16.gmra.mrb[0].mxu0 %v765
        %v893 = vpop.f32.mrb[0].mxu0
        %v894 = vadd.f32 0.0, %v893
        %v895 = vpop.f32.mrb[0].mxu0
        %v896 = vpop.f32.mrb[0].mxu0
        %v897 = vadd.f32 0.0, %v896
        %v898 = vpop.f32.mrb[0].mxu0
        %899 = vmatprep.mubr.bf16.mxu0 %v768
        %900 = vmatmul.mubr.bf16.gmra.mrb[0].mxu0 %v767
        %v901 = vpop.f32.mrb[0].mxu0
        %v902 = vadd.f32 0.0, %v901
        %v903 = vpop.f32.mrb[0].mxu0
        %v904 = vpop.f32.mrb[0].mxu0
        %v905 = vadd.f32 0.0, %v904
        %v906 = vpop.f32.mrb[0].mxu0
        %907 = vmatprep.mubr.bf16.mxu0 %v770
        %908 = vmatmul.mubr.bf16.gmra.mrb[0].mxu0 %v769
        %v909 = vpop.f32.mrb[0].mxu0
        %v910 = vadd.f32 0.0, %v909
        %v911 = vpop.f32.mrb[0].mxu0
        %v912 = vpop.f32.mrb[0].mxu0
        %v913 = vadd.f32 0.0, %v912
        %v914 = vpop.f32.mrb[0].mxu0
        %915 = vmatprep.mubr.bf16.mxu0 %v772
        %916 = vmatmul.mubr.bf16.gmra.mrb[0].mxu0 %v771
        %v917 = vpop.f32.mrb[0].mxu0
        %v918 = vadd.f32 0.0, %v917
        %v919 = vpop.f32.mrb[0].mxu0
        %v920 = vpop.f32.mrb[0].mxu0
        %v921 = vadd.f32 0.0, %v920
        %v922 = vpop.f32.mrb[0].mxu0
        %923 = vmatprep.mubr.bf16.mxu0 %v774
        %924 = vmatmul.mubr.bf16.gmra.mrb[0].mxu0 %v773
        %v925 = vpop.f32.mrb[0].mxu0
        %v926 = vadd.f32 0.0, %v925
        %v927 = vpop.f32.mrb[0].mxu0
        %v928 = vpop.f32.mrb[0].mxu0
        %v929 = vadd.f32 0.0, %v928
        %v930 = vpop.f32.mrb[0].mxu0
        %931 = vmatprep.mubr.bf16.mxu0 %v776
        %932 = vmatmul.mubr.bf16.gmra.mrb[0].mxu0 %v775
        %v933 = vpop.f32.mrb[0].mxu0
        %v934 = vadd.f32 0.0, %v933
        %v935 = vpop.f32.mrb[0].mxu0
        %v936 = vpop.f32.mrb[0].mxu0
        %v937 = vadd.f32 0.0, %v936
        %v938 = vpop.f32.mrb[0].mxu0
        %939 = vmatprep.mubr.bf16.mxu0 %v778
        %940 = vmatmul.mubr.bf16.gmra.mrb[0].mxu0 %v777
        %v941 = vpop.f32.mrb[0].mxu0
        %v942 = vadd.f32 0.0, %v941
        %v943 = vpop.f32.mrb[0].mxu0
        %v944 = vpop.f32.mrb[0].mxu0
        %v945 = vadd.f32 0.0, %v944
        %v946 = vpop.f32.mrb[0].mxu0
        %947 = vmatprep.mubr.bf16.mxu0 %v780
        %948 = vmatmul.mubr.bf16.gmra.mrb[0].mxu0 %v779
        %v949 = vpop.f32.mrb[0].mxu0
        %v950 = vadd.f32 0.0, %v949
        %v951 = vpop.f32.mrb[0].mxu0
        %v952 = vpop.f32.mrb[0].mxu0
        %v953 = vadd.f32 0.0, %v952
        %v954 = vpop.f32.mrb[0].mxu0
        %955 = vmatprep.mubr.bf16.mxu0 %v782
        %956 = vmatmul.mubr.bf16.gmra.mrb[0].mxu0 %v781
        %v957 = vpop.f32.mrb[0].mxu0
        %v958 = vadd.f32 0.0, %v957
        %v959 = vpop.f32.mrb[0].mxu0
        %v960 = vpop.f32.mrb[0].mxu0
        %v961 = vadd.f32 0.0, %v960
        %v962 = vpop.f32.mrb[0].mxu0
        %963 = vmatprep.mubr.bf16.mxu0 %v784
        %964 = vmatmul.mubr.bf16.gmra.mrb[0].mxu0 %v783
        %v965 = vpop.f32.mrb[0].mxu0
        %v966 = vadd.f32 0.0, %v965
        %v967 = vpop.f32.mrb[0].mxu0
        %v968 = vpop.f32.mrb[0].mxu0
        %v969 = vadd.f32 0.0, %v968
        %v970 = vpop.f32.mrb[0].mxu0
        %971 = vmatprep.mubr.bf16.mxu0 %v786
        %972 = vmatmul.mubr.bf16.gmra.mrb[0].mxu0 %v785
        %v973 = vpop.f32.mrb[0].mxu0
        %v974 = vadd.f32 0.0, %v973
        %v975 = vpop.f32.mrb[0].mxu0
        %v976 = vpop.f32.mrb[0].mxu0
        %v977 = vadd.f32 0.0, %v976
        %v978 = vpop.f32.mrb[0].mxu0
        %979 = vdwg.mxu0
        %v980 = vadd.f32 %v547, %v854
        %v981 = vadd.f32 %v548, %v857
        %v982 = vadd.f32 %v549, %v862
        %v983 = vadd.f32 %v550, %v865
        %v984 = vadd.f32 %v551, %v870
        %v985 = vadd.f32 %v552, %v873
        %v986 = vadd.f32 %v553, %v878
        %v987 = vadd.f32 %v554, %v881
        %v988 = vadd.f32 %v555, %v886
        %v989 = vadd.f32 %v556, %v889
        %v990 = vadd.f32 %v557, %v894
        %v991 = vadd.f32 %v558, %v897
        %v992 = vadd.f32 %v559, %v902
        %v993 = vadd.f32 %v560, %v905
        %v994 = vadd.f32 %v561, %v910
        %v995 = vadd.f32 %v562, %v913
        %v996 = vadd.f32 %v563, %v918
        %v997 = vadd.f32 %v564, %v921
        %v998 = vadd.f32 %v565, %v926
        %v999 = vadd.f32 %v566, %v929
        %v1000 = vadd.f32 %v567, %v934
        %v1001 = vadd.f32 %v568, %v937
        %v1002 = vadd.f32 %v569, %v942
        %v1003 = vadd.f32 %v570, %v945
        %v1004 = vadd.f32 %v571, %v950
        %v1005 = vadd.f32 %v572, %v953
        %v1006 = vadd.f32 %v573, %v958
        %v1007 = vadd.f32 %v574, %v961
        %v1008 = vadd.f32 %v575, %v966
        %v1009 = vadd.f32 %v576, %v969
        %v1010 = vadd.f32 %v577, %v974
        %v1011 = vadd.f32 %v578, %v977
        %v1012 = vpack.c.bf16 %v981, %v980
        %v1013 = vpack.c.bf16 %v983, %v982
        %v1014 = vpack.c.bf16 %v985, %v984
        %v1015 = vpack.c.bf16 %v987, %v986
        %v1016 = vpack.c.bf16 %v989, %v988
        %v1017 = vpack.c.bf16 %v991, %v990
        %v1018 = vpack.c.bf16 %v993, %v992
        %v1019 = vpack.c.bf16 %v995, %v994
        %v1020 = vpack.c.bf16 %v997, %v996
        %v1021 = vpack.c.bf16 %v999, %v998
        %v1022 = vpack.c.bf16 %v1001, %v1000
        %v1023 = vpack.c.bf16 %v1003, %v1002
        %v1024 = vpack.c.bf16 %v1005, %v1004
        %v1025 = vpack.c.bf16 %v1007, %v1006
        %v1026 = vpack.c.bf16 %v1009, %v1008
        %v1027 = vpack.c.bf16 %v1011, %v1010
        %v1028 = vld [vmem:[%s418] sm:$0xf]
        %v1029 = vld [vmem:[%s418 + $0x4] sm:$0xf]
        %v1030 = vld [vmem:[%s418 + $0x8] sm:$0xf]
        %v1031 = vld [vmem:[%s418 + $0xc] sm:$0xf]
        %v1032 = vld [vmem:[%s418 + $0x10] sm:$0xf]
        %v1033 = vld [vmem:[%s418 + $0x14] sm:$0xf]
        %v1034 = vld [vmem:[%s418 + $0x18] sm:$0xf]
        %v1035 = vld [vmem:[%s418 + $0x1c] sm:$0xf]
        %v1036 = vld [vmem:[%s418 + $0x20] sm:$0xf]
        %v1037 = vld [vmem:[%s418 + $0x24] sm:$0xf]
        %v1038 = vld [vmem:[%s418 + $0x28] sm:$0xf]
        %v1039 = vld [vmem:[%s418 + $0x2c] sm:$0xf]
        %v1040 = vld [vmem:[%s418 + $0x30] sm:$0xf]
        %v1041 = vld [vmem:[%s418 + $0x34] sm:$0xf]
        %v1042 = vld [vmem:[%s418 + $0x38] sm:$0xf]
        %v1043 = vld [vmem:[%s418 + $0x3c] sm:$0xf]
        %v1044 = vld [vmem:[%s421] sm:$0x1]
        %v1046 = vlaneseq
        %v1047 = vshrl.u32 %v1046, 7
        %v1048 = vsub.s32 0, %v1047
        %v1049 = vrot.slane %v1044, %v1048
        %v1067 = vunpack.c.l.b16 %v1028
        %v1068 = vunpack.c.l.b16 %v1029
        %v1069 = vunpack.c.l.b16 %v1030
        %v1070 = vunpack.c.l.b16 %v1031
        %v1071 = vunpack.c.l.b16 %v1032
        %v1072 = vunpack.c.l.b16 %v1033
        %v1073 = vunpack.c.l.b16 %v1034
        %v1074 = vunpack.c.l.b16 %v1035
        %v1075 = vunpack.c.l.b16 %v1036
        %v1076 = vunpack.c.l.b16 %v1037
        %v1077 = vunpack.c.l.b16 %v1038
        %v1078 = vunpack.c.l.b16 %v1039
        %v1079 = vunpack.c.l.b16 %v1040
        %v1080 = vunpack.c.l.b16 %v1041
        %v1081 = vunpack.c.l.b16 %v1042
        %v1082 = vunpack.c.l.b16 %v1043
        %v1083 = vpack.c.b16 %v1068, %v1067
        %v1084 = vpack.c.b16 %v1070, %v1069
        %v1085 = vpack.c.b16 %v1072, %v1071
        %v1086 = vpack.c.b16 %v1074, %v1073
        %v1087 = vpack.c.b16 %v1076, %v1075
        %v1088 = vpack.c.b16 %v1078, %v1077
        %v1089 = vpack.c.b16 %v1080, %v1079
        %v1090 = vpack.c.b16 %v1082, %v1081
        %1099 = vmatprep.subr.bf16.mxu0 0
        %1100 = vmatpush1.bf16.msra.mxu0 %v1083
        %1101 = vmatprep.subr.bf16.mxu0 0
        %1102 = vmatpush1.bf16.msra.mxu0 %v1084
        %1103 = vmatprep.subr.bf16.mxu0 0
        %1104 = vmatpush1.bf16.msra.mxu0 %v1085
        %1105 = vmatprep.subr.bf16.mxu0 0
        %1106 = vmatpush1.bf16.msra.mxu0 %v1086
        %1107 = vmatprep.subr.bf16.mxu0 0
        %1108 = vmatpush1.bf16.msra.mxu0 %v1087
        %1109 = vmatprep.subr.bf16.mxu0 0
        %1110 = vmatpush1.bf16.msra.mxu0 %v1088
        %1111 = vmatprep.subr.bf16.mxu0 0
        %1112 = vmatpush1.bf16.msra.mxu0 %v1089
        %1113 = vmatprep.subr.bf16.mxu0 0
        %1114 = vmatpush1.bf16.msra.mxu0 %v1090
        %1115 = vmatprep.subr.bf16.mxu0 0
        %1116 = vmatpush1.bf16.msra.mxu0 0
        %1117 = vmatprep.subr.bf16.mxu0 0
        %1118 = vmatpush1.bf16.msra.mxu0 0
        %1119 = vmatprep.subr.bf16.mxu0 0
        %1120 = vmatpush1.bf16.msra.mxu0 0
        %1121 = vmatprep.subr.bf16.mxu0 0
        %1122 = vmatpush1.bf16.msra.mxu0 0
        %1123 = vmatprep.subr.bf16.mxu0 0
        %1124 = vmatpush1.bf16.msra.mxu0 0
        %1125 = vmatprep.subr.bf16.mxu0 0
        %1126 = vmatpush1.bf16.msra.mxu0 0
        %1127 = vmatprep.subr.bf16.mxu0 0
        %1128 = vmatpush1.bf16.msra.mxu0 0
        %1129 = vmatprep.subr.bf16.mxu0 0
        %1130 = vmatpush1.bf16.msra.mxu0 0
        %1131 = vmatprep.mubr.bf16.mxu0 0
        %1132 = vmatmul.mubr.bf16.gmra.mrb[0].mxu0 %v1012
        %v1133 = vpop.f32.mrb[0].mxu0
        %v1134 = vadd.f32 %v1049, %v1133
        %v1135 = vpop.f32.mrb[0].mxu0
        %v1136 = vpop.f32.mrb[0].mxu0
        %v1137 = vadd.f32 %v1049, %v1136
        %v1138 = vpop.f32.mrb[0].mxu0
        %1139 = vmatprep.mubr.bf16.mxu0 0
        %1140 = vmatmul.mubr.bf16.gmra.mrb[0].mxu0 %v1013
        %v1141 = vpop.f32.mrb[0].mxu0
        %v1142 = vadd.f32 %v1049, %v1141
        %v1143 = vpop.f32.mrb[0].mxu0
        %v1144 = vpop.f32.mrb[0].mxu0
        %v1145 = vadd.f32 %v1049, %v1144
        %v1146 = vpop.f32.mrb[0].mxu0
        %1147 = vmatprep.mubr.bf16.mxu0 0
        %1148 = vmatmul.mubr.bf16.gmra.mrb[0].mxu0 %v1014
        %v1149 = vpop.f32.mrb[0].mxu0
        %v1150 = vadd.f32 %v1049, %v1149
        %v1151 = vpop.f32.mrb[0].mxu0
        %v1152 = vpop.f32.mrb[0].mxu0
        %v1153 = vadd.f32 %v1049, %v1152
        %v1154 = vpop.f32.mrb[0].mxu0
        %1155 = vmatprep.mubr.bf16.mxu0 0
        %1156 = vmatmul.mubr.bf16.gmra.mrb[0].mxu0 %v1015
        %v1157 = vpop.f32.mrb[0].mxu0
        %v1158 = vadd.f32 %v1049, %v1157
        %v1159 = vpop.f32.mrb[0].mxu0
        %v1160 = vpop.f32.mrb[0].mxu0
        %v1161 = vadd.f32 %v1049, %v1160
        %v1162 = vpop.f32.mrb[0].mxu0
        %1163 = vmatprep.mubr.bf16.mxu0 0
        %1164 = vmatmul.mubr.bf16.gmra.mrb[0].mxu0 %v1016
        %v1165 = vpop.f32.mrb[0].mxu0
        %v1166 = vadd.f32 %v1049, %v1165
        %v1167 = vpop.f32.mrb[0].mxu0
        %v1168 = vpop.f32.mrb[0].mxu0
        %v1169 = vadd.f32 %v1049, %v1168
        %v1170 = vpop.f32.mrb[0].mxu0
        %1171 = vmatprep.mubr.bf16.mxu0 0
        %1172 = vmatmul.mubr.bf16.gmra.mrb[0].mxu0 %v1017
        %v1173 = vpop.f32.mrb[0].mxu0
        %v1174 = vadd.f32 %v1049, %v1173
        %v1175 = vpop.f32.mrb[0].mxu0
        %v1176 = vpop.f32.mrb[0].mxu0
        %v1177 = vadd.f32 %v1049, %v1176
        %v1178 = vpop.f32.mrb[0].mxu0
        %1179 = vmatprep.mubr.bf16.mxu0 0
        %1180 = vmatmul.mubr.bf16.gmra.mrb[0].mxu0 %v1018
        %v1181 = vpop.f32.mrb[0].mxu0
        %v1182 = vadd.f32 %v1049, %v1181
        %v1183 = vpop.f32.mrb[0].mxu0
        %v1184 = vpop.f32.mrb[0].mxu0
        %v1185 = vadd.f32 %v1049, %v1184
        %v1186 = vpop.f32.mrb[0].mxu0
        %1187 = vmatprep.mubr.bf16.mxu0 0
        %1188 = vmatmul.mubr.bf16.gmra.mrb[0].mxu0 %v1019
        %v1189 = vpop.f32.mrb[0].mxu0
        %v1190 = vadd.f32 %v1049, %v1189
        %v1191 = vpop.f32.mrb[0].mxu0
        %v1192 = vpop.f32.mrb[0].mxu0
        %v1193 = vadd.f32 %v1049, %v1192
        %v1194 = vpop.f32.mrb[0].mxu0
        %1195 = vmatprep.mubr.bf16.mxu0 0
        %1196 = vmatmul.mubr.bf16.gmra.mrb[0].mxu0 %v1020
        %v1197 = vpop.f32.mrb[0].mxu0
        %v1198 = vadd.f32 %v1049, %v1197
        %v1199 = vpop.f32.mrb[0].mxu0
        %v1200 = vpop.f32.mrb[0].mxu0
        %v1201 = vadd.f32 %v1049, %v1200
        %v1202 = vpop.f32.mrb[0].mxu0
        %1203 = vmatprep.mubr.bf16.mxu0 0
        %1204 = vmatmul.mubr.bf16.gmra.mrb[0].mxu0 %v1021
        %v1205 = vpop.f32.mrb[0].mxu0
        %v1206 = vadd.f32 %v1049, %v1205
        %v1207 = vpop.f32.mrb[0].mxu0
        %v1208 = vpop.f32.mrb[0].mxu0
        %v1209 = vadd.f32 %v1049, %v1208
        %v1210 = vpop.f32.mrb[0].mxu0
        %1211 = vmatprep.mubr.bf16.mxu0 0
        %1212 = vmatmul.mubr.bf16.gmra.mrb[0].mxu0 %v1022
        %v1213 = vpop.f32.mrb[0].mxu0
        %v1214 = vadd.f32 %v1049, %v1213
        %v1215 = vpop.f32.mrb[0].mxu0
        %v1216 = vpop.f32.mrb[0].mxu0
        %v1217 = vadd.f32 %v1049, %v1216
        %v1218 = vpop.f32.mrb[0].mxu0
        %1219 = vmatprep.mubr.bf16.mxu0 0
        %1220 = vmatmul.mubr.bf16.gmra.mrb[0].mxu0 %v1023
        %v1221 = vpop.f32.mrb[0].mxu0
        %v1222 = vadd.f32 %v1049, %v1221
        %v1223 = vpop.f32.mrb[0].mxu0
        %v1224 = vpop.f32.mrb[0].mxu0
        %v1225 = vadd.f32 %v1049, %v1224
        %v1226 = vpop.f32.mrb[0].mxu0
        %1227 = vmatprep.mubr.bf16.mxu0 0
        %1228 = vmatmul.mubr.bf16.gmra.mrb[0].mxu0 %v1024
        %v1229 = vpop.f32.mrb[0].mxu0
        %v1230 = vadd.f32 %v1049, %v1229
        %v1231 = vpop.f32.mrb[0].mxu0
        %v1232 = vpop.f32.mrb[0].mxu0
        %v1233 = vadd.f32 %v1049, %v1232
        %v1234 = vpop.f32.mrb[0].mxu0
        %1235 = vmatprep.mubr.bf16.mxu0 0
        %1236 = vmatmul.mubr.bf16.gmra.mrb[0].mxu0 %v1025
        %v1237 = vpop.f32.mrb[0].mxu0
        %v1238 = vadd.f32 %v1049, %v1237
        %v1239 = vpop.f32.mrb[0].mxu0
        %v1240 = vpop.f32.mrb[0].mxu0
        %v1241 = vadd.f32 %v1049, %v1240
        %v1242 = vpop.f32.mrb[0].mxu0
        %1243 = vmatprep.mubr.bf16.mxu0 0
        %1244 = vmatmul.mubr.bf16.gmra.mrb[0].mxu0 %v1026
        %v1245 = vpop.f32.mrb[0].mxu0
        %v1246 = vadd.f32 %v1049, %v1245
        %v1247 = vpop.f32.mrb[0].mxu0
        %v1248 = vpop.f32.mrb[0].mxu0
        %v1249 = vadd.f32 %v1049, %v1248
        %v1250 = vpop.f32.mrb[0].mxu0
        %1251 = vmatprep.mubr.bf16.mxu0 0
        %1252 = vmatmul.mubr.bf16.gmra.mrb[0].mxu0 %v1027
        %v1253 = vpop.f32.mrb[0].mxu0
        %v1254 = vadd.f32 %v1049, %v1253
        %v1255 = vpop.f32.mrb[0].mxu0
        %v1256 = vpop.f32.mrb[0].mxu0
        %v1257 = vadd.f32 %v1049, %v1256
        %v1258 = vpop.f32.mrb[0].mxu0
        %1259 = vdwg.mxu0
        %v1260 = vmax.f32 %v1134, 0.0
        %v1261 = vmax.f32 %v1137, 0.0
        %v1262 = vmax.f32 %v1142, 0.0
        %v1263 = vmax.f32 %v1145, 0.0
        %v1264 = vmax.f32 %v1150, 0.0
        %v1265 = vmax.f32 %v1153, 0.0
        %v1266 = vmax.f32 %v1158, 0.0
        %v1267 = vmax.f32 %v1161, 0.0
        %v1268 = vmax.f32 %v1166, 0.0
        %v1269 = vmax.f32 %v1169, 0.0
        %v1270 = vmax.f32 %v1174, 0.0
        %v1271 = vmax.f32 %v1177, 0.0
        %v1272 = vmax.f32 %v1182, 0.0
        %v1273 = vmax.f32 %v1185, 0.0
        %v1274 = vmax.f32 %v1190, 0.0
        %v1275 = vmax.f32 %v1193, 0.0
        %v1276 = vmax.f32 %v1198, 0.0
        %v1277 = vmax.f32 %v1201, 0.0
        %v1278 = vmax.f32 %v1206, 0.0
        %v1279 = vmax.f32 %v1209, 0.0
        %v1280 = vmax.f32 %v1214, 0.0
        %v1281 = vmax.f32 %v1217, 0.0
        %v1282 = vmax.f32 %v1222, 0.0
        %v1283 = vmax.f32 %v1225, 0.0
        %v1284 = vmax.f32 %v1230, 0.0
        %v1285 = vmax.f32 %v1233, 0.0
        %v1286 = vmax.f32 %v1238, 0.0
        %v1287 = vmax.f32 %v1241, 0.0
        %v1288 = vmax.f32 %v1246, 0.0
        %v1289 = vmax.f32 %v1249, 0.0
        %v1290 = vmax.f32 %v1254, 0.0
        %v1291 = vmax.f32 %v1257, 0.0
        %v1292 = vpack.c.bf16 %v1261, %v1260
        %v1293 = vpack.c.bf16 %v1263, %v1262
        %v1294 = vpack.c.bf16 %v1265, %v1264
        %v1295 = vpack.c.bf16 %v1267, %v1266
        %v1296 = vpack.c.bf16 %v1269, %v1268
        %v1297 = vpack.c.bf16 %v1271, %v1270
        %v1298 = vpack.c.bf16 %v1273, %v1272
        %v1299 = vpack.c.bf16 %v1275, %v1274
        %v1300 = vpack.c.bf16 %v1277, %v1276
        %v1301 = vpack.c.bf16 %v1279, %v1278
        %v1302 = vpack.c.bf16 %v1281, %v1280
        %v1303 = vpack.c.bf16 %v1283, %v1282
        %v1304 = vpack.c.bf16 %v1285, %v1284
        %v1305 = vpack.c.bf16 %v1287, %v1286
        %v1306 = vpack.c.bf16 %v1289, %v1288
        %v1307 = vpack.c.bf16 %v1291, %v1290
        %v1308 = vld [vmem:[%s359] sm:$0xf]
        %v1309 = vld [vmem:[%s359 + $0x4] sm:$0xf]
        %v1310 = vld [vmem:[%s359 + $0x8] sm:$0xf]
        %v1311 = vld [vmem:[%s359 + $0xc] sm:$0xf]
        %v1312 = vld [vmem:[%s359 + $0x10] sm:$0xf]
        %v1313 = vld [vmem:[%s359 + $0x14] sm:$0xf]
        %v1314 = vld [vmem:[%s359 + $0x18] sm:$0xf]
        %v1315 = vld [vmem:[%s359 + $0x1c] sm:$0xf]
        %v1316 = vld [vmem:[%s359 + $0x20] sm:$0xf]
        %v1317 = vld [vmem:[%s359 + $0x24] sm:$0xf]
        %v1318 = vld [vmem:[%s359 + $0x28] sm:$0xf]
        %v1319 = vld [vmem:[%s359 + $0x2c] sm:$0xf]
        %v1320 = vld [vmem:[%s359 + $0x30] sm:$0xf]
        %v1321 = vld [vmem:[%s359 + $0x34] sm:$0xf]
        %v1322 = vld [vmem:[%s359 + $0x38] sm:$0xf]
        %v1323 = vld [vmem:[%s359 + $0x3c] sm:$0xf]
        %v1324 = vld [vmem:[%s424] sm:$0x1]
        %v1326 = vlaneseq
        %v1327 = vshrl.u32 %v1326, 7
        %v1328 = vsub.s32 0, %v1327
        %v1329 = vrot.slane %v1324, %v1328
        %v1347 = vunpack.c.l.b16 %v1308
        %v1348 = vunpack.c.l.b16 %v1309
        %v1349 = vunpack.c.l.b16 %v1310
        %v1350 = vunpack.c.l.b16 %v1311
        %v1351 = vunpack.c.l.b16 %v1312
        %v1352 = vunpack.c.l.b16 %v1313
        %v1353 = vunpack.c.l.b16 %v1314
        %v1354 = vunpack.c.l.b16 %v1315
        %v1355 = vunpack.c.l.b16 %v1316
        %v1356 = vunpack.c.l.b16 %v1317
        %v1357 = vunpack.c.l.b16 %v1318
        %v1358 = vunpack.c.l.b16 %v1319
        %v1359 = vunpack.c.l.b16 %v1320
        %v1360 = vunpack.c.l.b16 %v1321
        %v1361 = vunpack.c.l.b16 %v1322
        %v1362 = vunpack.c.l.b16 %v1323
        %v1363 = vpack.c.b16 %v1348, %v1347
        %v1364 = vpack.c.b16 %v1350, %v1349
        %v1365 = vpack.c.b16 %v1352, %v1351
        %v1366 = vpack.c.b16 %v1354, %v1353
        %v1367 = vpack.c.b16 %v1356, %v1355
        %v1368 = vpack.c.b16 %v1358, %v1357
        %v1369 = vpack.c.b16 %v1360, %v1359
        %v1370 = vpack.c.b16 %v1362, %v1361
        %1379 = vmatprep.subr.bf16.mxu0 0
        %1380 = vmatpush1.bf16.msra.mxu0 %v1363
        %1381 = vmatprep.subr.bf16.mxu0 0
        %1382 = vmatpush1.bf16.msra.mxu0 %v1364
        %1383 = vmatprep.subr.bf16.mxu0 0
        %1384 = vmatpush1.bf16.msra.mxu0 %v1365
        %1385 = vmatprep.subr.bf16.mxu0 0
        %1386 = vmatpush1.bf16.msra.mxu0 %v1366
        %1387 = vmatprep.subr.bf16.mxu0 0
        %1388 = vmatpush1.bf16.msra.mxu0 %v1367
        %1389 = vmatprep.subr.bf16.mxu0 0
        %1390 = vmatpush1.bf16.msra.mxu0 %v1368
        %1391 = vmatprep.subr.bf16.mxu0 0
        %1392 = vmatpush1.bf16.msra.mxu0 %v1369
        %1393 = vmatprep.subr.bf16.mxu0 0
        %1394 = vmatpush1.bf16.msra.mxu0 %v1370
        %1395 = vmatprep.subr.bf16.mxu0 0
        %1396 = vmatpush1.bf16.msra.mxu0 0
        %1397 = vmatprep.subr.bf16.mxu0 0
        %1398 = vmatpush1.bf16.msra.mxu0 0
        %1399 = vmatprep.subr.bf16.mxu0 0
        %1400 = vmatpush1.bf16.msra.mxu0 0
        %1401 = vmatprep.subr.bf16.mxu0 0
        %1402 = vmatpush1.bf16.msra.mxu0 0
        %1403 = vmatprep.subr.bf16.mxu0 0
        %1404 = vmatpush1.bf16.msra.mxu0 0
        %1405 = vmatprep.subr.bf16.mxu0 0
        %1406 = vmatpush1.bf16.msra.mxu0 0
        %1407 = vmatprep.subr.bf16.mxu0 0
        %1408 = vmatpush1.bf16.msra.mxu0 0
        %1409 = vmatprep.subr.bf16.mxu0 0
        %1410 = vmatpush1.bf16.msra.mxu0 0
        %1411 = vmatprep.mubr.bf16.mxu0 0
        %1412 = vmatmul.mubr.bf16.gmra.mrb[0].mxu0 %v1292
        %v1413 = vpop.f32.mrb[0].mxu0
        %v1414 = vadd.f32 %v1329, %v1413
        %v1415 = vpop.f32.mrb[0].mxu0
        %v1416 = vpop.f32.mrb[0].mxu0
        %v1417 = vadd.f32 %v1329, %v1416
        %v1418 = vpop.f32.mrb[0].mxu0
        %1419 = vmatprep.mubr.bf16.mxu0 0
        %1420 = vmatmul.mubr.bf16.gmra.mrb[0].mxu0 %v1293
        %v1421 = vpop.f32.mrb[0].mxu0
        %v1422 = vadd.f32 %v1329, %v1421
        %v1423 = vpop.f32.mrb[0].mxu0
        %v1424 = vpop.f32.mrb[0].mxu0
        %v1425 = vadd.f32 %v1329, %v1424
        %v1426 = vpop.f32.mrb[0].mxu0
        %1427 = vmatprep.mubr.bf16.mxu0 0
        %1428 = vmatmul.mubr.bf16.gmra.mrb[0].mxu0 %v1294
        %v1429 = vpop.f32.mrb[0].mxu0
        %v1430 = vadd.f32 %v1329, %v1429
        %v1431 = vpop.f32.mrb[0].mxu0
        %v1432 = vpop.f32.mrb[0].mxu0
        %v1433 = vadd.f32 %v1329, %v1432
        %v1434 = vpop.f32.mrb[0].mxu0
        %1435 = vmatprep.mubr.bf16.mxu0 0
        %1436 = vmatmul.mubr.bf16.gmra.mrb[0].mxu0 %v1295
        %v1437 = vpop.f32.mrb[0].mxu0
        %v1438 = vadd.f32 %v1329, %v1437
        %v1439 = vpop.f32.mrb[0].mxu0
        %v1440 = vpop.f32.mrb[0].mxu0
        %v1441 = vadd.f32 %v1329, %v1440
        %v1442 = vpop.f32.mrb[0].mxu0
        %1443 = vmatprep.mubr.bf16.mxu0 0
        %1444 = vmatmul.mubr.bf16.gmra.mrb[0].mxu0 %v1296
        %v1445 = vpop.f32.mrb[0].mxu0
        %v1446 = vadd.f32 %v1329, %v1445
        %v1447 = vpop.f32.mrb[0].mxu0
        %v1448 = vpop.f32.mrb[0].mxu0
        %v1449 = vadd.f32 %v1329, %v1448
        %v1450 = vpop.f32.mrb[0].mxu0
        %1451 = vmatprep.mubr.bf16.mxu0 0
        %1452 = vmatmul.mubr.bf16.gmra.mrb[0].mxu0 %v1297
        %v1453 = vpop.f32.mrb[0].mxu0
        %v1454 = vadd.f32 %v1329, %v1453
        %v1455 = vpop.f32.mrb[0].mxu0
        %v1456 = vpop.f32.mrb[0].mxu0
        %v1457 = vadd.f32 %v1329, %v1456
        %v1458 = vpop.f32.mrb[0].mxu0
        %1459 = vmatprep.mubr.bf16.mxu0 0
        %1460 = vmatmul.mubr.bf16.gmra.mrb[0].mxu0 %v1298
        %v1461 = vpop.f32.mrb[0].mxu0
        %v1462 = vadd.f32 %v1329, %v1461
        %v1463 = vpop.f32.mrb[0].mxu0
        %v1464 = vpop.f32.mrb[0].mxu0
        %v1465 = vadd.f32 %v1329, %v1464
        %v1466 = vpop.f32.mrb[0].mxu0
        %1467 = vmatprep.mubr.bf16.mxu0 0
        %1468 = vmatmul.mubr.bf16.gmra.mrb[0].mxu0 %v1299
        %v1469 = vpop.f32.mrb[0].mxu0
        %v1470 = vadd.f32 %v1329, %v1469
        %v1471 = vpop.f32.mrb[0].mxu0
        %v1472 = vpop.f32.mrb[0].mxu0
        %v1473 = vadd.f32 %v1329, %v1472
        %v1474 = vpop.f32.mrb[0].mxu0
        %1475 = vmatprep.mubr.bf16.mxu0 0
        %1476 = vmatmul.mubr.bf16.gmra.mrb[0].mxu0 %v1300
        %v1477 = vpop.f32.mrb[0].mxu0
        %v1478 = vadd.f32 %v1329, %v1477
        %v1479 = vpop.f32.mrb[0].mxu0
        %v1480 = vpop.f32.mrb[0].mxu0
        %v1481 = vadd.f32 %v1329, %v1480
        %v1482 = vpop.f32.mrb[0].mxu0
        %1483 = vmatprep.mubr.bf16.mxu0 0
        %1484 = vmatmul.mubr.bf16.gmra.mrb[0].mxu0 %v1301
        %v1485 = vpop.f32.mrb[0].mxu0
        %v1486 = vadd.f32 %v1329, %v1485
        %v1487 = vpop.f32.mrb[0].mxu0
        %v1488 = vpop.f32.mrb[0].mxu0
        %v1489 = vadd.f32 %v1329, %v1488
        %v1490 = vpop.f32.mrb[0].mxu0
        %1491 = vmatprep.mubr.bf16.mxu0 0
        %1492 = vmatmul.mubr.bf16.gmra.mrb[0].mxu0 %v1302
        %v1493 = vpop.f32.mrb[0].mxu0
        %v1494 = vadd.f32 %v1329, %v1493
        %v1495 = vpop.f32.mrb[0].mxu0
        %v1496 = vpop.f32.mrb[0].mxu0
        %v1497 = vadd.f32 %v1329, %v1496
        %v1498 = vpop.f32.mrb[0].mxu0
        %1499 = vmatprep.mubr.bf16.mxu0 0
        %1500 = vmatmul.mubr.bf16.gmra.mrb[0].mxu0 %v1303
        %v1501 = vpop.f32.mrb[0].mxu0
        %v1502 = vadd.f32 %v1329, %v1501
        %v1503 = vpop.f32.mrb[0].mxu0
        %v1504 = vpop.f32.mrb[0].mxu0
        %v1505 = vadd.f32 %v1329, %v1504
        %v1506 = vpop.f32.mrb[0].mxu0
        %1507 = vmatprep.mubr.bf16.mxu0 0
        %1508 = vmatmul.mubr.bf16.gmra.mrb[0].mxu0 %v1304
        %v1509 = vpop.f32.mrb[0].mxu0
        %v1510 = vadd.f32 %v1329, %v1509
        %v1511 = vpop.f32.mrb[0].mxu0
        %v1512 = vpop.f32.mrb[0].mxu0
        %v1513 = vadd.f32 %v1329, %v1512
        %v1514 = vpop.f32.mrb[0].mxu0
        %1515 = vmatprep.mubr.bf16.mxu0 0
        %1516 = vmatmul.mubr.bf16.gmra.mrb[0].mxu0 %v1305
        %v1517 = vpop.f32.mrb[0].mxu0
        %v1518 = vadd.f32 %v1329, %v1517
        %v1519 = vpop.f32.mrb[0].mxu0
        %v1520 = vpop.f32.mrb[0].mxu0
        %v1521 = vadd.f32 %v1329, %v1520
        %v1522 = vpop.f32.mrb[0].mxu0
        %1523 = vmatprep.mubr.bf16.mxu0 0
        %1524 = vmatmul.mubr.bf16.gmra.mrb[0].mxu0 %v1306
        %v1525 = vpop.f32.mrb[0].mxu0
        %v1526 = vadd.f32 %v1329, %v1525
        %v1527 = vpop.f32.mrb[0].mxu0
        %v1528 = vpop.f32.mrb[0].mxu0
        %v1529 = vadd.f32 %v1329, %v1528
        %v1530 = vpop.f32.mrb[0].mxu0
        %1531 = vmatprep.mubr.bf16.mxu0 0
        %1532 = vmatmul.mubr.bf16.gmra.mrb[0].mxu0 %v1307
        %v1533 = vpop.f32.mrb[0].mxu0
        %v1534 = vadd.f32 %v1329, %v1533
        %v1535 = vpop.f32.mrb[0].mxu0
        %v1536 = vpop.f32.mrb[0].mxu0
        %v1537 = vadd.f32 %v1329, %v1536
        %v1538 = vpop.f32.mrb[0].mxu0
        %1539 = vdwg.mxu0
        %v1540 = vmax.f32 %v1414, 0.0
        %v1541 = vmax.f32 %v1417, 0.0
        %v1542 = vmax.f32 %v1422, 0.0
        %v1543 = vmax.f32 %v1425, 0.0
        %v1544 = vmax.f32 %v1430, 0.0
        %v1545 = vmax.f32 %v1433, 0.0
        %v1546 = vmax.f32 %v1438, 0.0
        %v1547 = vmax.f32 %v1441, 0.0
        %v1548 = vmax.f32 %v1446, 0.0
        %v1549 = vmax.f32 %v1449, 0.0
        %v1550 = vmax.f32 %v1454, 0.0
        %v1551 = vmax.f32 %v1457, 0.0
        %v1552 = vmax.f32 %v1462, 0.0
        %v1553 = vmax.f32 %v1465, 0.0
        %v1554 = vmax.f32 %v1470, 0.0
        %v1555 = vmax.f32 %v1473, 0.0
        %v1556 = vmax.f32 %v1478, 0.0
        %v1557 = vmax.f32 %v1481, 0.0
        %v1558 = vmax.f32 %v1486, 0.0
        %v1559 = vmax.f32 %v1489, 0.0
        %v1560 = vmax.f32 %v1494, 0.0
        %v1561 = vmax.f32 %v1497, 0.0
        %v1562 = vmax.f32 %v1502, 0.0
        %v1563 = vmax.f32 %v1505, 0.0
        %v1564 = vmax.f32 %v1510, 0.0
        %v1565 = vmax.f32 %v1513, 0.0
        %v1566 = vmax.f32 %v1518, 0.0
        %v1567 = vmax.f32 %v1521, 0.0
        %v1568 = vmax.f32 %v1526, 0.0
        %v1569 = vmax.f32 %v1529, 0.0
        %v1570 = vmax.f32 %v1534, 0.0
        %v1571 = vmax.f32 %v1537, 0.0
        %v1572 = vadd.f32 %v1540, %v1541
        %v1573 = vadd.f32 %v1572, %v1542
        %v1574 = vadd.f32 %v1573, %v1543
        %v1575 = vadd.f32 %v1574, %v1544
        %v1576 = vadd.f32 %v1575, %v1545
        %v1577 = vadd.f32 %v1576, %v1546
        %v1578 = vadd.f32 %v1577, %v1547
        %v1579 = vadd.f32 %v1578, %v1548
        %v1580 = vadd.f32 %v1579, %v1549
        %v1581 = vadd.f32 %v1580, %v1550
        %v1582 = vadd.f32 %v1581, %v1551
        %v1583 = vadd.f32 %v1582, %v1552
        %v1584 = vadd.f32 %v1583, %v1553
        %v1585 = vadd.f32 %v1584, %v1554
        %v1586 = vadd.f32 %v1585, %v1555
        %v1587 = vadd.f32 %v1586, %v1556
        %v1588 = vadd.f32 %v1587, %v1557
        %v1589 = vadd.f32 %v1588, %v1558
        %v1590 = vadd.f32 %v1589, %v1559
        %v1591 = vadd.f32 %v1590, %v1560
        %v1592 = vadd.f32 %v1591, %v1561
        %v1593 = vadd.f32 %v1592, %v1562
        %v1594 = vadd.f32 %v1593, %v1563
        %v1595 = vadd.f32 %v1594, %v1564
        %v1596 = vadd.f32 %v1595, %v1565
        %v1597 = vadd.f32 %v1596, %v1566
        %v1598 = vadd.f32 %v1597, %v1567
        %v1599 = vadd.f32 %v1598, %v1568
        %v1600 = vadd.f32 %v1599, %v1569
        %v1601 = vadd.f32 %v1600, %v1570
        %v1602 = vadd.f32 %v1601, %v1571
        %v1603 = vrot.slane %v1602, 4
        %v1604 = vadd.f32 %v1602, %v1603
        %v1605 = vrot.slane %v1604, 2
        %v1606 = vadd.f32 %v1604, %v1605
        %v1607 = vrot.slane %v1606, 1
        %v1608 = vadd.f32 %v1606, %v1607
        %v1609 = vmul.f32 %v1608, 0.00390625
        %v1610 = vsub.f32 %v1540, %v1609
        %v1611 = vsub.f32 %v1541, %v1609
        %v1612 = vsub.f32 %v1542, %v1609
        %v1613 = vsub.f32 %v1543, %v1609
        %v1614 = vsub.f32 %v1544, %v1609
        %v1615 = vsub.f32 %v1545, %v1609
        %v1616 = vsub.f32 %v1546, %v1609
        %v1617 = vsub.f32 %v1547, %v1609
        %v1618 = vsub.f32 %v1548, %v1609
        %v1619 = vsub.f32 %v1549, %v1609
        %v1620 = vsub.f32 %v1550, %v1609
        %v1621 = vsub.f32 %v1551, %v1609
        %v1622 = vsub.f32 %v1552, %v1609
        %v1623 = vsub.f32 %v1553, %v1609
        %v1624 = vsub.f32 %v1554, %v1609
        %v1625 = vsub.f32 %v1555, %v1609
        %v1626 = vsub.f32 %v1556, %v1609
        %v1627 = vsub.f32 %v1557, %v1609
        %v1628 = vsub.f32 %v1558, %v1609
        %v1629 = vsub.f32 %v1559, %v1609
        %v1630 = vsub.f32 %v1560, %v1609
        %v1631 = vsub.f32 %v1561, %v1609
        %v1632 = vsub.f32 %v1562, %v1609
        %v1633 = vsub.f32 %v1563, %v1609
        %v1634 = vsub.f32 %v1564, %v1609
        %v1635 = vsub.f32 %v1565, %v1609
        %v1636 = vsub.f32 %v1566, %v1609
        %v1637 = vsub.f32 %v1567, %v1609
        %v1638 = vsub.f32 %v1568, %v1609
        %v1639 = vsub.f32 %v1569, %v1609
        %v1640 = vsub.f32 %v1570, %v1609
        %v1641 = vsub.f32 %v1571, %v1609
        %v1642 = vmul.f32 %v1610, %v1610
        %v1643 = vmul.f32 %v1611, %v1611
        %v1644 = vmul.f32 %v1612, %v1612
        %v1645 = vmul.f32 %v1613, %v1613
        %v1646 = vmul.f32 %v1614, %v1614
        %v1647 = vmul.f32 %v1615, %v1615
        %v1648 = vmul.f32 %v1616, %v1616
        %v1649 = vmul.f32 %v1617, %v1617
        %v1650 = vmul.f32 %v1618, %v1618
        %v1651 = vmul.f32 %v1619, %v1619
        %v1652 = vmul.f32 %v1620, %v1620
        %v1653 = vmul.f32 %v1621, %v1621
        %v1654 = vmul.f32 %v1622, %v1622
        %v1655 = vmul.f32 %v1623, %v1623
        %v1656 = vmul.f32 %v1624, %v1624
        %v1657 = vmul.f32 %v1625, %v1625
        %v1658 = vmul.f32 %v1626, %v1626
        %v1659 = vmul.f32 %v1627, %v1627
        %v1660 = vmul.f32 %v1628, %v1628
        %v1661 = vmul.f32 %v1629, %v1629
        %v1662 = vmul.f32 %v1630, %v1630
        %v1663 = vmul.f32 %v1631, %v1631
        %v1664 = vmul.f32 %v1632, %v1632
        %v1665 = vmul.f32 %v1633, %v1633
        %v1666 = vmul.f32 %v1634, %v1634
        %v1667 = vmul.f32 %v1635, %v1635
        %v1668 = vmul.f32 %v1636, %v1636
        %v1669 = vmul.f32 %v1637, %v1637
        %v1670 = vmul.f32 %v1638, %v1638
        %v1671 = vmul.f32 %v1639, %v1639
        %v1672 = vmul.f32 %v1640, %v1640
        %v1673 = vmul.f32 %v1641, %v1641
        %v1674 = vadd.f32 %v1642, %v1643
        %v1675 = vadd.f32 %v1674, %v1644
        %v1676 = vadd.f32 %v1675, %v1645
        %v1677 = vadd.f32 %v1676, %v1646
        %v1678 = vadd.f32 %v1677, %v1647
        %v1679 = vadd.f32 %v1678, %v1648
        %v1680 = vadd.f32 %v1679, %v1649
        %v1681 = vadd.f32 %v1680, %v1650
        %v1682 = vadd.f32 %v1681, %v1651
        %v1683 = vadd.f32 %v1682, %v1652
        %v1684 = vadd.f32 %v1683, %v1653
        %v1685 = vadd.f32 %v1684, %v1654
        %v1686 = vadd.f32 %v1685, %v1655
        %v1687 = vadd.f32 %v1686, %v1656
        %v1688 = vadd.f32 %v1687, %v1657
        %v1689 = vadd.f32 %v1688, %v1658
        %v1690 = vadd.f32 %v1689, %v1659
        %v1691 = vadd.f32 %v1690, %v1660
        %v1692 = vadd.f32 %v1691, %v1661
        %v1693 = vadd.f32 %v1692, %v1662
        %v1694 = vadd.f32 %v1693, %v1663
        %v1695 = vadd.f32 %v1694, %v1664
        %v1696 = vadd.f32 %v1695, %v1665
        %v1697 = vadd.f32 %v1696, %v1666
        %v1698 = vadd.f32 %v1697, %v1667
        %v1699 = vadd.f32 %v1698, %v1668
        %v1700 = vadd.f32 %v1699, %v1669
        %v1701 = vadd.f32 %v1700, %v1670
        %v1702 = vadd.f32 %v1701, %v1671
        %v1703 = vadd.f32 %v1702, %v1672
        %v1704 = vadd.f32 %v1703, %v1673
        %v1705 = vrot.slane %v1704, 4
        %v1706 = vadd.f32 %v1704, %v1705
        %v1707 = vrot.slane %v1706, 2
        %v1708 = vadd.f32 %v1706, %v1707
        %v1709 = vrot.slane %v1708, 1
        %v1710 = vadd.f32 %v1708, %v1709
        %v1711 = vmul.f32 %v1710, 0.00390625
        %v1712 = vadd.f32 %v1711, 1e-05
        %v1713 = vrsqrt.pop %v1712
        %v1714 = vmul.f32 %v1610, %v1713
        %v1715 = vmul.f32 %v1611, %v1713
        %v1716 = vmul.f32 %v1612, %v1713
        %v1717 = vmul.f32 %v1613, %v1713
        %v1718 = vmul.f32 %v1614, %v1713
        %v1719 = vmul.f32 %v1615, %v1713
        %v1720 = vmul.f32 %v1616, %v1713
        %v1721 = vmul.f32 %v1617, %v1713
        %v1722 = vmul.f32 %v1618, %v1713
        %v1723 = vmul.f32 %v1619, %v1713
        %v1724 = vmul.f32 %v1620, %v1713
        %v1725 = vmul.f32 %v1621, %v1713
        %v1726 = vmul.f32 %v1622, %v1713
        %v1727 = vmul.f32 %v1623, %v1713
        %v1728 = vmul.f32 %v1624, %v1713
        %v1729 = vmul.f32 %v1625, %v1713
        %v1730 = vmul.f32 %v1626, %v1713
        %v1731 = vmul.f32 %v1627, %v1713
        %v1732 = vmul.f32 %v1628, %v1713
        %v1733 = vmul.f32 %v1629, %v1713
        %v1734 = vmul.f32 %v1630, %v1713
        %v1735 = vmul.f32 %v1631, %v1713
        %v1736 = vmul.f32 %v1632, %v1713
        %v1737 = vmul.f32 %v1633, %v1713
        %v1738 = vmul.f32 %v1634, %v1713
        %v1739 = vmul.f32 %v1635, %v1713
        %v1740 = vmul.f32 %v1636, %v1713
        %v1741 = vmul.f32 %v1637, %v1713
        %v1742 = vmul.f32 %v1638, %v1713
        %v1743 = vmul.f32 %v1639, %v1713
        %v1744 = vmul.f32 %v1640, %v1713
        %v1745 = vmul.f32 %v1641, %v1713
        %v1746 = vld [vmem:[%s427] sm:$0x1]
        %v1748 = vlaneseq
        %v1749 = vshrl.u32 %v1748, 7
        %v1750 = vsub.s32 0, %v1749
        %v1751 = vrot.slane %v1746, %v1750
        %v1753 = vmul.f32 %v1714, %v1751
        %v1754 = vmul.f32 %v1715, %v1751
        %v1755 = vmul.f32 %v1716, %v1751
        %v1756 = vmul.f32 %v1717, %v1751
        %v1757 = vmul.f32 %v1718, %v1751
        %v1758 = vmul.f32 %v1719, %v1751
        %v1759 = vmul.f32 %v1720, %v1751
        %v1760 = vmul.f32 %v1721, %v1751
        %v1761 = vmul.f32 %v1722, %v1751
        %v1762 = vmul.f32 %v1723, %v1751
        %v1763 = vmul.f32 %v1724, %v1751
        %v1764 = vmul.f32 %v1725, %v1751
        %v1765 = vmul.f32 %v1726, %v1751
        %v1766 = vmul.f32 %v1727, %v1751
        %v1767 = vmul.f32 %v1728, %v1751
        %v1768 = vmul.f32 %v1729, %v1751
        %v1769 = vmul.f32 %v1730, %v1751
        %v1770 = vmul.f32 %v1731, %v1751
        %v1771 = vmul.f32 %v1732, %v1751
        %v1772 = vmul.f32 %v1733, %v1751
        %v1773 = vmul.f32 %v1734, %v1751
        %v1774 = vmul.f32 %v1735, %v1751
        %v1775 = vmul.f32 %v1736, %v1751
        %v1776 = vmul.f32 %v1737, %v1751
        %v1777 = vmul.f32 %v1738, %v1751
        %v1778 = vmul.f32 %v1739, %v1751
        %v1779 = vmul.f32 %v1740, %v1751
        %v1780 = vmul.f32 %v1741, %v1751
        %v1781 = vmul.f32 %v1742, %v1751
        %v1782 = vmul.f32 %v1743, %v1751
        %v1783 = vmul.f32 %v1744, %v1751
        %v1784 = vmul.f32 %v1745, %v1751
        %v1785 = vld [vmem:[%s430] sm:$0x1]
        %v1787 = vlaneseq
        %v1788 = vshrl.u32 %v1787, 7
        %v1789 = vsub.s32 0, %v1788
        %v1790 = vrot.slane %v1785, %v1789
        %v1792 = vadd.f32 %v1753, %v1790
        %v1793 = vadd.f32 %v1754, %v1790
        %v1794 = vadd.f32 %v1755, %v1790
        %v1795 = vadd.f32 %v1756, %v1790
        %v1796 = vadd.f32 %v1757, %v1790
        %v1797 = vadd.f32 %v1758, %v1790
        %v1798 = vadd.f32 %v1759, %v1790
        %v1799 = vadd.f32 %v1760, %v1790
        %v1800 = vadd.f32 %v1761, %v1790
        %v1801 = vadd.f32 %v1762, %v1790
        %v1802 = vadd.f32 %v1763, %v1790
        %v1803 = vadd.f32 %v1764, %v1790
        %v1804 = vadd.f32 %v1765, %v1790
        %v1805 = vadd.f32 %v1766, %v1790
        %v1806 = vadd.f32 %v1767, %v1790
        %v1807 = vadd.f32 %v1768, %v1790
        %v1808 = vadd.f32 %v1769, %v1790
        %v1809 = vadd.f32 %v1770, %v1790
        %v1810 = vadd.f32 %v1771, %v1790
        %v1811 = vadd.f32 %v1772, %v1790
        %v1812 = vadd.f32 %v1773, %v1790
        %v1813 = vadd.f32 %v1774, %v1790
        %v1814 = vadd.f32 %v1775, %v1790
        %v1815 = vadd.f32 %v1776, %v1790
        %v1816 = vadd.f32 %v1777, %v1790
        %v1817 = vadd.f32 %v1778, %v1790
        %v1818 = vadd.f32 %v1779, %v1790
        %v1819 = vadd.f32 %v1780, %v1790
        %v1820 = vadd.f32 %v1781, %v1790
        %v1821 = vadd.f32 %v1782, %v1790
        %v1822 = vadd.f32 %v1783, %v1790
        %v1823 = vadd.f32 %v1784, %v1790
        %1824 = vst [vmem:[%s407] sm:$0xff] %v1792
        %1825 = vst [vmem:[%s407 + $0x8] sm:$0xff] %v1793
        %1826 = vst [vmem:[%s407 + $0x10] sm:$0xff] %v1794
        %1827 = vst [vmem:[%s407 + $0x18] sm:$0xff] %v1795
        %1828 = vst [vmem:[%s407 + $0x20] sm:$0xff] %v1796
        %1829 = vst [vmem:[%s407 + $0x28] sm:$0xff] %v1797
        %1830 = vst [vmem:[%s407 + $0x30] sm:$0xff] %v1798
        %1831 = vst [vmem:[%s407 + $0x38] sm:$0xff] %v1799
        %1832 = vst [vmem:[%s407 + $0x40] sm:$0xff] %v1800
        %1833 = vst [vmem:[%s407 + $0x48] sm:$0xff] %v1801
        %1834 = vst [vmem:[%s407 + $0x50] sm:$0xff] %v1802
        %1835 = vst [vmem:[%s407 + $0x58] sm:$0xff] %v1803
        %1836 = vst [vmem:[%s407 + $0x60] sm:$0xff] %v1804
        %1837 = vst [vmem:[%s407 + $0x68] sm:$0xff] %v1805
        %1838 = vst [vmem:[%s407 + $0x70] sm:$0xff] %v1806
        %1839 = vst [vmem:[%s407 + $0x78] sm:$0xff] %v1807
        %1840 = vst [vmem:[%s407 + $0x80] sm:$0xff] %v1808
        %1841 = vst [vmem:[%s407 + $0x88] sm:$0xff] %v1809
        %1842 = vst [vmem:[%s407 + $0x90] sm:$0xff] %v1810
        %1843 = vst [vmem:[%s407 + $0x98] sm:$0xff] %v1811
        %1844 = vst [vmem:[%s407 + $0xa0] sm:$0xff] %v1812
        %1845 = vst [vmem:[%s407 + $0xa8] sm:$0xff] %v1813
        %1846 = vst [vmem:[%s407 + $0xb0] sm:$0xff] %v1814
        %1847 = vst [vmem:[%s407 + $0xb8] sm:$0xff] %v1815
        %1848 = vst [vmem:[%s407 + $0xc0] sm:$0xff] %v1816
        %1849 = vst [vmem:[%s407 + $0xc8] sm:$0xff] %v1817
        %1850 = vst [vmem:[%s407 + $0xd0] sm:$0xff] %v1818
        %1851 = vst [vmem:[%s407 + $0xd8] sm:$0xff] %v1819
        %1852 = vst [vmem:[%s407 + $0xe0] sm:$0xff] %v1820
        %1853 = vst [vmem:[%s407 + $0xe8] sm:$0xff] %v1821
        %1854 = vst [vmem:[%s407 + $0xf0] sm:$0xff] %v1822
        %1855 = vst [vmem:[%s407 + $0xf8] sm:$0xff] %v1823
        %v1856 = vld [vmem:[%s2] sm:$0xf]
        %v1857 = vpack.c.bf16 %v1793, %v1792
        %v1858 = vpack.c.bf16 %v1795, %v1794
        %v1859 = vpack.c.bf16 %v1797, %v1796
        %v1860 = vpack.c.bf16 %v1799, %v1798
        %v1861 = vpack.c.bf16 %v1801, %v1800
        %v1862 = vpack.c.bf16 %v1803, %v1802
        %v1863 = vpack.c.bf16 %v1805, %v1804
        %v1864 = vpack.c.bf16 %v1807, %v1806
        %v1865 = vpack.c.bf16 %v1809, %v1808
        %v1866 = vpack.c.bf16 %v1811, %v1810
        %v1867 = vpack.c.bf16 %v1813, %v1812
        %v1868 = vpack.c.bf16 %v1815, %v1814
        %v1869 = vpack.c.bf16 %v1817, %v1816
        %v1870 = vpack.c.bf16 %v1819, %v1818
        %v1871 = vpack.c.bf16 %v1821, %v1820
        %v1872 = vpack.c.bf16 %v1823, %v1822
        %v1875 = vunpack.c.l.s4 1983009808
        %v1876 = vunpack.c.0.s8 %v1875
        %v1877 = vlaneseq
        %v1878 = vshrl.u32 %v1877, 7
        %v1879 = vsub.s32 %v1876, %v1878
        %v1880 = vrot.slane %v1856, %v1879
        %v1881 = vcombine.high %v1880, %v1880
        %1884 = vmatprep.subr.bf16.mxu0 0
        %1885 = vmatpush1.bf16.msra.mxu0 %v1857
        %1886 = vmatprep.subr.bf16.mxu0 0
        %1887 = vmatpush1.bf16.msra.mxu0 %v1858
        %1888 = vmatprep.subr.bf16.mxu0 0
        %1889 = vmatpush1.bf16.msra.mxu0 %v1859
        %1890 = vmatprep.subr.bf16.mxu0 0
        %1891 = vmatpush1.bf16.msra.mxu0 %v1860
        %1892 = vmatprep.subr.bf16.mxu0 0
        %1893 = vmatpush1.bf16.msra.mxu0 %v1861
        %1894 = vmatprep.subr.bf16.mxu0 0
        %1895 = vmatpush1.bf16.msra.mxu0 %v1862
        %1896 = vmatprep.subr.bf16.mxu0 0
        %1897 = vmatpush1.bf16.msra.mxu0 %v1863
        %1898 = vmatprep.subr.bf16.mxu0 0
        %1899 = vmatpush1.bf16.msra.mxu0 %v1864
        %1900 = vmatprep.subr.bf16.mxu0 0
        %1901 = vmatpush1.bf16.msra.mxu0 %v1865
        %1902 = vmatprep.subr.bf16.mxu0 0
        %1903 = vmatpush1.bf16.msra.mxu0 %v1866
        %1904 = vmatprep.subr.bf16.mxu0 0
        %1905 = vmatpush1.bf16.msra.mxu0 %v1867
        %1906 = vmatprep.subr.bf16.mxu0 0
        %1907 = vmatpush1.bf16.msra.mxu0 %v1868
        %1908 = vmatprep.subr.bf16.mxu0 0
        %1909 = vmatpush1.bf16.msra.mxu0 %v1869
        %1910 = vmatprep.subr.bf16.mxu0 0
        %1911 = vmatpush1.bf16.msra.mxu0 %v1870
        %1912 = vmatprep.subr.bf16.mxu0 0
        %1913 = vmatpush1.bf16.msra.mxu0 %v1871
        %1914 = vmatprep.subr.bf16.mxu0 0
        %1915 = vmatpush1.bf16.msra.mxu0 %v1872
        %1916 = vmatprep.mubr.bf16.mxu0 %v1881
        %1917 = vmatmul.mubr.bf16.gmra.mrb[0].mxu0 %v1880
        %v1918 = vpop.f32.mrb[0].mxu0
        %v1919 = vadd.f32 0.0, %v1918
        %v1920 = vpop.f32.mrb[0].mxu0
        %v1921 = vpop.f32.mrb[0].mxu0
        %v1922 = vpop.f32.mrb[0].mxu0
        %1923 = vdwg.mxu0
        %1924 = vst [vmem:[%s434] sm:$0xf] %v1919
        %1925 = vst [vmem:[#allocation2] sm:$0xff] %v1792
        %1926 = vst [vmem:[#allocation2 + $0x8] sm:$0xff] %v1793
        %1927 = vst [vmem:[#allocation2 + $0x10] sm:$0xff] %v1794
        %1928 = vst [vmem:[#allocation2 + $0x18] sm:$0xff] %v1795
        %1929 = vst [vmem:[#allocation2 + $0x20] sm:$0xff] %v1796
        %1930 = vst [vmem:[#allocation2 + $0x28] sm:$0xff] %v1797
        %1931 = vst [vmem:[#allocation2 + $0x30] sm:$0xff] %v1798
        %1932 = vst [vmem:[#allocation2 + $0x38] sm:$0xff] %v1799
        %1933 = vst [vmem:[#allocation2 + $0x40] sm:$0xff] %v1800
        %1934 = vst [vmem:[#allocation2 + $0x48] sm:$0xff] %v1801
        %1935 = vst [vmem:[#allocation2 + $0x50] sm:$0xff] %v1802
        %1936 = vst [vmem:[#allocation2 + $0x58] sm:$0xff] %v1803
        %1937 = vst [vmem:[#allocation2 + $0x60] sm:$0xff] %v1804
        %1938 = vst [vmem:[#allocation2 + $0x68] sm:$0xff] %v1805
        %1939 = vst [vmem:[#allocation2 + $0x70] sm:$0xff] %v1806
        %1940 = vst [vmem:[#allocation2 + $0x78] sm:$0xff] %v1807
        %1941 = vst [vmem:[#allocation2 + $0x80] sm:$0xff] %v1808
        %1942 = vst [vmem:[#allocation2 + $0x88] sm:$0xff] %v1809
        %1943 = vst [vmem:[#allocation2 + $0x90] sm:$0xff] %v1810
        %1944 = vst [vmem:[#allocation2 + $0x98] sm:$0xff] %v1811
        %1945 = vst [vmem:[#allocation2 + $0xa0] sm:$0xff] %v1812
        %1946 = vst [vmem:[#allocation2 + $0xa8] sm:$0xff] %v1813
        %1947 = vst [vmem:[#allocation2 + $0xb0] sm:$0xff] %v1814
        %1948 = vst [vmem:[#allocation2 + $0xb8] sm:$0xff] %v1815
        %1949 = vst [vmem:[#allocation2 + $0xc0] sm:$0xff] %v1816
        %1950 = vst [vmem:[#allocation2 + $0xc8] sm:$0xff] %v1817
        %1951 = vst [vmem:[#allocation2 + $0xd0] sm:$0xff] %v1818
        %1952 = vst [vmem:[#allocation2 + $0xd8] sm:$0xff] %v1819
        %1953 = vst [vmem:[#allocation2 + $0xe0] sm:$0xff] %v1820
        %1954 = vst [vmem:[#allocation2 + $0xe8] sm:$0xff] %v1821
        %1955 = vst [vmem:[#allocation2 + $0xf0] sm:$0xff] %v1822
        %1956 = vst [vmem:[#allocation2 + $0xf8] sm:$0xff] %v1823
        %s1957 = sand.u32 %s231, 1
        %s1958 = sand.u32 %s231, 1
        %s1959 = smul.addr %s1958, 256
        %s1960 = scalar_lea.vmem [#allocation5], %s1959
        %p1961 = scmp.lt.s32.totalorder %s25, 1
        %s1962 = scalar_select %p1961, %s25, 1
        %s1963 = smul.addr %s1962, 4
        %s1964 = scalar_lea.vmem %s10, %s1963
        // Predicated region
        $region96: #{infograph_forward.2} parent=51 // pred_check
          %p1965 = pneg %p241
        $region97: #{infograph_forward.2} parent=51 // pred_check_branch
          %1967 = sbr.rel (%p1965) target = $region99
        $region98: #{infograph_forward.2} parent=51 // pred_region
          %s1968 = smul.addr %s25, 8
          %s1969 = scalar_lea.vmem %s9, %s1968
          // Predicated region
          $region100: #{infograph_forward.2} parent=98 // pred_check
            _
          $region101: #{infograph_forward.2} parent=98 // pred_check_branch
            %1971 = sbr.rel (0) target = $region103
          $region102: #{infograph_forward.2} parent=98 // pred_region
            // Predicated region
            $region104: #{infograph_forward.2} parent=102 // pred_check
              _
            $region105: #{infograph_forward.2} parent=102 // pred_check_branch
              %1973 = sbr.rel (0) target = $region107
            $region106: #{infograph_forward.2} parent=102 // pred_region
              // Predicated region
              $region119: #{infograph_forward.2} parent=106 // pred_check
                _
              $region120: #{infograph_forward.2} parent=106 // pred_check_branch
                %2050 = sbr.rel (0) target = $region122
              $region121: #{infograph_forward.2} parent=106 // pred_region
                loop: start=0, step=1, limit=1
                $region123: #{infograph_forward.2} parent=121 // loop_pre_header
                  _
                $region124: #{infograph_forward.2} parent=121 // loop_header
                  %s2052 = sphi 0, %s2056
                  %p2053 = scmp.ge.s32.totalorder %s2052, 1
                  %s2057 = sphi %s1960, %s1960
                  %s2058 = sphi %s1969, %s1969
                $region125: #{infograph_forward.2} parent=121 // loop_header_branch
                  %2055 = sbr.rel (%p2053) target = $region129
                $region126: #{infograph_forward.2} parent=121 // loop_body
                  %v2059 = vld [vmem:[%s2057] sm:$0xff]
                  %2060 = vst [vmem:[%s2058] sm:$0xff] %v2059
                  %v2061 = vld [vmem:[%s2057 + $0x8] sm:$0xff]
                  %2062 = vst [vmem:[%s2058 + $0x10] sm:$0xff] %v2061
                  %v2063 = vld [vmem:[%s2057 + $0x10] sm:$0xff]
                  %2064 = vst [vmem:[%s2058 + $0x20] sm:$0xff] %v2063
                  %v2065 = vld [vmem:[%s2057 + $0x18] sm:$0xff]
                  %2066 = vst [vmem:[%s2058 + $0x30] sm:$0xff] %v2065
                  %v2067 = vld [vmem:[%s2057 + $0x20] sm:$0xff]
                  %2068 = vst [vmem:[%s2058 + $0x40] sm:$0xff] %v2067
                  %v2069 = vld [vmem:[%s2057 + $0x28] sm:$0xff]
                  %2070 = vst [vmem:[%s2058 + $0x50] sm:$0xff] %v2069
                  %v2071 = vld [vmem:[%s2057 + $0x30] sm:$0xff]
                  %2072 = vst [vmem:[%s2058 + $0x60] sm:$0xff] %v2071
                  %v2073 = vld [vmem:[%s2057 + $0x38] sm:$0xff]
                  %2074 = vst [vmem:[%s2058 + $0x70] sm:$0xff] %v2073
                  %v2075 = vld [vmem:[%s2057 + $0x40] sm:$0xff]
                  %2076 = vst [vmem:[%s2058 + $0x80] sm:$0xff] %v2075
                  %v2077 = vld [vmem:[%s2057 + $0x48] sm:$0xff]
                  %2078 = vst [vmem:[%s2058 + $0x90] sm:$0xff] %v2077
                  %v2079 = vld [vmem:[%s2057 + $0x50] sm:$0xff]
                  %2080 = vst [vmem:[%s2058 + $0xa0] sm:$0xff] %v2079
                  %v2081 = vld [vmem:[%s2057 + $0x58] sm:$0xff]
                  %2082 = vst [vmem:[%s2058 + $0xb0] sm:$0xff] %v2081
                  %v2083 = vld [vmem:[%s2057 + $0x60] sm:$0xff]
                  %2084 = vst [vmem:[%s2058 + $0xc0] sm:$0xff] %v2083
                  %v2085 = vld [vmem:[%s2057 + $0x68] sm:$0xff]
                  %2086 = vst [vmem:[%s2058 + $0xd0] sm:$0xff] %v2085
                  %v2087 = vld [vmem:[%s2057 + $0x70] sm:$0xff]
                  %2088 = vst [vmem:[%s2058 + $0xe0] sm:$0xff] %v2087
                  %v2089 = vld [vmem:[%s2057 + $0x78] sm:$0xff]
                  %2090 = vst [vmem:[%s2058 + $0xf0] sm:$0xff] %v2089
                  %v2091 = vld [vmem:[%s2057 + $0x80] sm:$0xff]
                  %2092 = vst [vmem:[%s2058 + $0x100] sm:$0xff] %v2091
                  %v2093 = vld [vmem:[%s2057 + $0x88] sm:$0xff]
                  %2094 = vst [vmem:[%s2058 + $0x110] sm:$0xff] %v2093
                  %v2095 = vld [vmem:[%s2057 + $0x90] sm:$0xff]
                  %2096 = vst [vmem:[%s2058 + $0x120] sm:$0xff] %v2095
                  %v2097 = vld [vmem:[%s2057 + $0x98] sm:$0xff]
                  %2098 = vst [vmem:[%s2058 + $0x130] sm:$0xff] %v2097
                  %v2099 = vld [vmem:[%s2057 + $0xa0] sm:$0xff]
                  %2100 = vst [vmem:[%s2058 + $0x140] sm:$0xff] %v2099
                  %v2101 = vld [vmem:[%s2057 + $0xa8] sm:$0xff]
                  %2102 = vst [vmem:[%s2058 + $0x150] sm:$0xff] %v2101
                  %v2103 = vld [vmem:[%s2057 + $0xb0] sm:$0xff]
                  %2104 = vst [vmem:[%s2058 + $0x160] sm:$0xff] %v2103
                  %v2105 = vld [vmem:[%s2057 + $0xb8] sm:$0xff]
                  %2106 = vst [vmem:[%s2058 + $0x170] sm:$0xff] %v2105
                  %v2107 = vld [vmem:[%s2057 + $0xc0] sm:$0xff]
                  %2108 = vst [vmem:[%s2058 + $0x180] sm:$0xff] %v2107
                  %v2109 = vld [vmem:[%s2057 + $0xc8] sm:$0xff]
                  %2110 = vst [vmem:[%s2058 + $0x190] sm:$0xff] %v2109
                  %v2111 = vld [vmem:[%s2057 + $0xd0] sm:$0xff]
                  %2112 = vst [vmem:[%s2058 + $0x1a0] sm:$0xff] %v2111
                  %v2113 = vld [vmem:[%s2057 + $0xd8] sm:$0xff]
                  %2114 = vst [vmem:[%s2058 + $0x1b0] sm:$0xff] %v2113
                  %v2115 = vld [vmem:[%s2057 + $0xe0] sm:$0xff]
                  %2116 = vst [vmem:[%s2058 + $0x1c0] sm:$0xff] %v2115
                  %v2117 = vld [vmem:[%s2057 + $0xe8] sm:$0xff]
                  %2118 = vst [vmem:[%s2058 + $0x1d0] sm:$0xff] %v2117
                  %v2119 = vld [vmem:[%s2057 + $0xf0] sm:$0xff]
                  %2120 = vst [vmem:[%s2058 + $0x1e0] sm:$0xff] %v2119
                  %v2121 = vld [vmem:[%s2057 + $0xf8] sm:$0xff]
                  %2122 = vst [vmem:[%s2058 + $0x1f0] sm:$0xff] %v2121
                $region127: #{infograph_forward.2} parent=121 // loop_footer
                  %s2056 = sadd.s32 1, %s2052
                $region128: #{infograph_forward.2} parent=121 // loop_footer_branch
                  %2051 = sbr.rel target = $region124
                $region129: #{infograph_forward.2} parent=121 // loop_exit
                  _
              $region122: #{infograph_forward.2} parent=106 // pred_fallthru
                _
              // Predicated region
              $region130: #{infograph_forward.2} parent=106 // pred_check
                _
              $region131: #{infograph_forward.2} parent=106 // pred_check_branch
                %2124 = sbr.rel target = $region133
              $region132: #{infograph_forward.2} parent=106 // pred_region
                _
              $region133: #{infograph_forward.2} parent=106 // pred_fallthru
                _
            $region107: #{infograph_forward.2} parent=102 // pred_fallthru
              _
            // Predicated region
            $region108: #{infograph_forward.2} parent=102 // pred_check
              _
            $region109: #{infograph_forward.2} parent=102 // pred_check_branch
              %1975 = sbr.rel target = $region111
            $region110: #{infograph_forward.2} parent=102 // pred_region
              loop: start=0, step=1, limit=1
              $region112: #{infograph_forward.2} parent=110 // loop_pre_header
                _
              $region113: #{infograph_forward.2} parent=110 // loop_header
                %s1978 = sphi 0, %s1982
                %p1979 = scmp.ge.s32.totalorder %s1978, 1
                %s1983 = sphi %s1960, %s1960
                %s1984 = sphi %s1969, %s1969
              $region114: #{infograph_forward.2} parent=110 // loop_header_branch
                %1981 = sbr.rel (%p1979) target = $region118
              $region115: #{infograph_forward.2} parent=110 // loop_body
                %v1985 = vld [vmem:[%s1983] sm:$0xff]
                %1986 = vst [vmem:[%s1984] sm:$0xff] %v1985
                %v1987 = vld [vmem:[%s1983 + $0x8] sm:$0xff]
                %1988 = vst [vmem:[%s1984 + $0x10] sm:$0xff] %v1987
                %v1989 = vld [vmem:[%s1983 + $0x10] sm:$0xff]
                %1990 = vst [vmem:[%s1984 + $0x20] sm:$0xff] %v1989
                %v1991 = vld [vmem:[%s1983 + $0x18] sm:$0xff]
                %1992 = vst [vmem:[%s1984 + $0x30] sm:$0xff] %v1991
                %v1993 = vld [vmem:[%s1983 + $0x20] sm:$0xff]
                %1994 = vst [vmem:[%s1984 + $0x40] sm:$0xff] %v1993
                %v1995 = vld [vmem:[%s1983 + $0x28] sm:$0xff]
                %1996 = vst [vmem:[%s1984 + $0x50] sm:$0xff] %v1995
                %v1997 = vld [vmem:[%s1983 + $0x30] sm:$0xff]
                %1998 = vst [vmem:[%s1984 + $0x60] sm:$0xff] %v1997
                %v1999 = vld [vmem:[%s1983 + $0x38] sm:$0xff]
                %2000 = vst [vmem:[%s1984 + $0x70] sm:$0xff] %v1999
                %v2001 = vld [vmem:[%s1983 + $0x40] sm:$0xff]
                %2002 = vst [vmem:[%s1984 + $0x80] sm:$0xff] %v2001
                %v2003 = vld [vmem:[%s1983 + $0x48] sm:$0xff]
                %2004 = vst [vmem:[%s1984 + $0x90] sm:$0xff] %v2003
                %v2005 = vld [vmem:[%s1983 + $0x50] sm:$0xff]
                %2006 = vst [vmem:[%s1984 + $0xa0] sm:$0xff] %v2005
                %v2007 = vld [vmem:[%s1983 + $0x58] sm:$0xff]
                %2008 = vst [vmem:[%s1984 + $0xb0] sm:$0xff] %v2007
                %v2009 = vld [vmem:[%s1983 + $0x60] sm:$0xff]
                %2010 = vst [vmem:[%s1984 + $0xc0] sm:$0xff] %v2009
                %v2011 = vld [vmem:[%s1983 + $0x68] sm:$0xff]
                %2012 = vst [vmem:[%s1984 + $0xd0] sm:$0xff] %v2011
                %v2013 = vld [vmem:[%s1983 + $0x70] sm:$0xff]
                %2014 = vst [vmem:[%s1984 + $0xe0] sm:$0xff] %v2013
                %v2015 = vld [vmem:[%s1983 + $0x78] sm:$0xff]
                %2016 = vst [vmem:[%s1984 + $0xf0] sm:$0xff] %v2015
                %v2017 = vld [vmem:[%s1983 + $0x80] sm:$0xff]
                %2018 = vst [vmem:[%s1984 + $0x100] sm:$0xff] %v2017
                %v2019 = vld [vmem:[%s1983 + $0x88] sm:$0xff]
                %2020 = vst [vmem:[%s1984 + $0x110] sm:$0xff] %v2019
                %v2021 = vld [vmem:[%s1983 + $0x90] sm:$0xff]
                %2022 = vst [vmem:[%s1984 + $0x120] sm:$0xff] %v2021
                %v2023 = vld [vmem:[%s1983 + $0x98] sm:$0xff]
                %2024 = vst [vmem:[%s1984 + $0x130] sm:$0xff] %v2023
                %v2025 = vld [vmem:[%s1983 + $0xa0] sm:$0xff]
                %2026 = vst [vmem:[%s1984 + $0x140] sm:$0xff] %v2025
                %v2027 = vld [vmem:[%s1983 + $0xa8] sm:$0xff]
                %2028 = vst [vmem:[%s1984 + $0x150] sm:$0xff] %v2027
                %v2029 = vld [vmem:[%s1983 + $0xb0] sm:$0xff]
                %2030 = vst [vmem:[%s1984 + $0x160] sm:$0xff] %v2029
                %v2031 = vld [vmem:[%s1983 + $0xb8] sm:$0xff]
                %2032 = vst [vmem:[%s1984 + $0x170] sm:$0xff] %v2031
                %v2033 = vld [vmem:[%s1983 + $0xc0] sm:$0xff]
                %2034 = vst [vmem:[%s1984 + $0x180] sm:$0xff] %v2033
                %v2035 = vld [vmem:[%s1983 + $0xc8] sm:$0xff]
                %2036 = vst [vmem:[%s1984 + $0x190] sm:$0xff] %v2035
                %v2037 = vld [vmem:[%s1983 + $0xd0] sm:$0xff]
                %2038 = vst [vmem:[%s1984 + $0x1a0] sm:$0xff] %v2037
                %v2039 = vld [vmem:[%s1983 + $0xd8] sm:$0xff]
                %2040 = vst [vmem:[%s1984 + $0x1b0] sm:$0xff] %v2039
                %v2041 = vld [vmem:[%s1983 + $0xe0] sm:$0xff]
                %2042 = vst [vmem:[%s1984 + $0x1c0] sm:$0xff] %v2041
                %v2043 = vld [vmem:[%s1983 + $0xe8] sm:$0xff]
                %2044 = vst [vmem:[%s1984 + $0x1d0] sm:$0xff] %v2043
                %v2045 = vld [vmem:[%s1983 + $0xf0] sm:$0xff]
                %2046 = vst [vmem:[%s1984 + $0x1e0] sm:$0xff] %v2045
                %v2047 = vld [vmem:[%s1983 + $0xf8] sm:$0xff]
                %2048 = vst [vmem:[%s1984 + $0x1f0] sm:$0xff] %v2047
              $region116: #{infograph_forward.2} parent=110 // loop_footer
                %s1982 = sadd.s32 1, %s1978
              $region117: #{infograph_forward.2} parent=110 // loop_footer_branch
                %1977 = sbr.rel target = $region113
              $region118: #{infograph_forward.2} parent=110 // loop_exit
                _
            $region111: #{infograph_forward.2} parent=102 // pred_fallthru
              _
          $region103: #{infograph_forward.2} parent=98 // pred_fallthru
            _
          %2125 = vnop
        $region99: #{infograph_forward.2} parent=51 // pred_fallthru
          _
        // Predicated region
        $region134: #{infograph_forward.2} parent=51 // pred_check
          %p2126 = pneg %p267
        $region135: #{infograph_forward.2} parent=51 // pred_check_branch
          %2128 = sbr.rel (%p2126) target = $region137
        $region136: #{infograph_forward.2} parent=51 // pred_region
          _
        $region137: #{infograph_forward.2} parent=51 // pred_fallthru
          _
      $region52: #{infograph_forward.2} parent=5 // pred_fallthru
        _
      %p2129 = scmp.le.s32.totalorder 2, %s20
      // Predicated region
      $region138: #{infograph_forward.2} parent=5 // pred_check
        %p2130 = pneg %p2129
      $region139: #{infograph_forward.2} parent=5 // pred_check_branch
        %2132 = sbr.rel (%p2130) target = $region141
      $region140: #{infograph_forward.2} parent=5 // pred_region
        %s2133 = ssub.s32 %s20, 2
        // Predicated region
        $region142: #{infograph_forward.2} parent=140 // pred_check
          %p2134 = pneg %p247
        $region143: #{infograph_forward.2} parent=140 // pred_check_branch
          %2136 = sbr.rel (%p2134) target = $region145
        $region144: #{infograph_forward.2} parent=140 // pred_region
          %s2137 = sand.u32 %s232, 1
          %s2138 = sand.u32 %s232, 1
          %s2139 = smul.addr %s2138, 256
          %s2140 = scalar_lea.vmem [#allocation5], %s2139
        $region145: #{infograph_forward.2} parent=140 // pred_fallthru
          _
        // Predicated region
        $region146: #{infograph_forward.2} parent=140 // pred_check
          %p2141 = pneg %p273
        $region147: #{infograph_forward.2} parent=140 // pred_check_branch
          %2143 = sbr.rel (%p2141) target = $region149
        $region148: #{infograph_forward.2} parent=140 // pred_region
          %p2144 = scmp.lt.s32.totalorder %s26, 1
          %s2145 = scalar_select %p2144, %s26, 1
          %s2146 = smul.addr %s2145, 4
          %s2147 = scalar_lea.vmem %s10, %s2146
        $region149: #{infograph_forward.2} parent=140 // pred_fallthru
          _
      $region141: #{infograph_forward.2} parent=5 // pred_fallthru
        _
    $region6: #{infograph_forward.2} parent=1 // loop_footer
      %s24 = sadd.s32 1, %s20
    $region7: #{infograph_forward.2} parent=1 // loop_footer_branch
      %19 = sbr.rel target = $region3
    $region8: #{infograph_forward.2} parent=1 // loop_exit
      _
    %2148 = vsyncpa [#allocation4], 1
    %s2149 = scalar_lea.sflag [#allocation4], 1
    %2150 = vsyncpa %s2149, 1

// kernel: infograph_forward.3
$region0: #{infograph_forward.3}
  #allocation0 [shape = 'u32[]', space=smem, size = 0x4, offset = 0x4, fixed_abs, tag = 'smem constant byte address 0x4 - core index']
  #allocation1 [shape = 'u32[144,128]{1,0:T(1,128)}', space=vmem, size = 0x12000, scoped, tag = 'internal scratch']
  #allocation2 [shape = 'bf16[4,256]{1,0:T(4,128)(2,1)}', space=vmem, size = 0x800, scoped, tag = 'scratch operand']
  #allocation3 [shape = 'f32[128,4]{1,0:T(8,128)}', space=vmem, size = 0x10000, scoped, tag = 'scratch operand']
  #allocation4 [shape = 'f32[128,4]{1,0:T(8,128)}', space=vmem, size = 0x10000, scoped, tag = 'scratch operand']
  %s0 = inlined_call_operand.vmem [shape: s32[256,1], index: 0, kind: input, shape index: {}]
  %s1 = inlined_call_operand.vmem [shape: f32[256,256], index: 1, kind: input, shape index: {}]
  %s2 = inlined_call_operand.vmem [shape: f32[4,256], index: 2, kind: input, shape index: {}]
  %s3 = inlined_call_operand.vmem [shape: bf16[256,512], index: 3, kind: input, shape index: {}]
  %s4 = inlined_call_operand.hbm [shape: f32[1,512], index: 4, kind: input, shape index: {}]
  %s5 = inlined_call_operand.vmem [shape: bf16[256,256], index: 5, kind: input, shape index: {}]
  %s6 = inlined_call_operand.hbm [shape: f32[1,256], index: 6, kind: input, shape index: {}]
  %s7 = inlined_call_operand.vmem [shape: bf16[256,256], index: 7, kind: input, shape index: {}]
  %s8 = inlined_call_operand.hbm [shape: f32[1,256], index: 8, kind: input, shape index: {}]
  %s9 = inlined_call_operand.vmem [shape: bf16[256,512], index: 9, kind: input, shape index: {}]
  %s10 = inlined_call_operand.hbm [shape: f32[1,512], index: 10, kind: input, shape index: {}]
  %s11 = inlined_call_operand.hbm [shape: bf16[256,256], index: 11, kind: input, shape index: {}]
  %s12 = inlined_call_operand.hbm [shape: f32[1,256], index: 12, kind: input, shape index: {}]
  %s13 = inlined_call_operand.hbm [shape: bf16[256,256], index: 13, kind: input, shape index: {}]
  %s14 = inlined_call_operand.hbm [shape: f32[1,256], index: 14, kind: input, shape index: {}]
  %s15 = inlined_call_operand.vmem [shape: f32[2,1,128], index: 15, kind: output, shape index: {}]
  %s16 = sld [smem:[#allocation0]]
  $region133: #{infograph_forward.3} parent=0
    _
  %s18 = ssub.s32 1, %s16
  %s19 = scalar_select 0, %s18, %s16
  $region1: #{infograph_forward.3} parent=0
    #allocation5 [shape = 'u8[2048]{0}', space=vmem, size = 0x800, scoped, tag = 'input window, operand 4, single buffered']
    #allocation6 [shape = 's32[2]{0}', space=sflag, size = 0x8, scoped, tag = 'scoped memory for infograph_forward.3']
    #allocation7 [shape = 'u8[1024]{0}', space=vmem, size = 0x400, scoped, tag = 'input window, operand 6, single buffered']
    #allocation8 [shape = 's32[1]{0}', space=sflag, size = 0x4, scoped, tag = 'scoped memory for infograph_forward.3']
    #allocation9 [shape = 'u8[1024]{0}', space=vmem, size = 0x400, scoped, tag = 'input window, operand 8, single buffered']
    #allocation10 [shape = 'u8[2048]{0}', space=vmem, size = 0x800, scoped, tag = 'input window, operand 10, single buffered']
    #allocation11 [shape = 's32[1]{0}', space=sflag, size = 0x4, scoped, tag = 'scoped memory for infograph_forward.3']
    #allocation12 [shape = 'u8[131072]{0}', space=vmem, size = 0x20000, scoped, tag = 'input window, operand 11, single buffered']
    #allocation13 [shape = 'u8[1024]{0}', space=vmem, size = 0x400, scoped, tag = 'input window, operand 12, single buffered']
    #allocation14 [shape = 's32[1]{0}', space=sflag, size = 0x4, scoped, tag = 'scoped memory for infograph_forward.3']
    #allocation15 [shape = 'u8[131072]{0}', space=vmem, size = 0x20000, scoped, tag = 'input window, operand 13, single buffered']
    #allocation16 [shape = 'u8[1024]{0}', space=vmem, size = 0x400, scoped, tag = 'input window, operand 14, single buffered']
    #allocation17 [shape = 's32[1]{0}', space=sflag, size = 0x4, scoped, tag = 'scoped memory for infograph_forward.3']
    %20 = vsyncpa [#allocation6], 0
    %21 = vsyncpa [#allocation8], 0
    %22 = vsyncpa [#allocation11], 0
    %23 = vsyncpa [#allocation14], 0
    %24 = vsyncpa [#allocation17], 0
    loop: start=0, step=1, limit=4
    $region2: #{infograph_forward.3} parent=1 // loop_pre_header
      _
    $region3: #{infograph_forward.3} parent=1 // loop_header
      %s26 = sphi 0, %s30
      %p27 = scmp.ge.s32.totalorder %s26, 4
      %s33 = sphi 0, %s45
      %s34 = sphi 0, %s41
      %s35 = sphi 0, %s33
      %s36 = sphi 0, %s34
      %s37 = sphi 0, %s35
      %s38 = sphi 0, %s36
      %s50 = sphi 0, %s52
      %s53 = sphi 0, %s50
      %s54 = sphi 0, %s53
      %s70 = sphi 0, %s54
      %s78 = sphi 0, %s80
      %s81 = sphi 0, %s78
      %s82 = sphi 0, %s81
      %s98 = sphi 0, %s82
      %s102 = sphi 0, %s102
      %s104 = sphi 0, %s102
      %s105 = sphi 0, %s104
      %s119 = sphi 0, %s105
      %s123 = sphi 0, %s123
      %s125 = sphi 0, %s123
      %s126 = sphi 0, %s125
      %s140 = sphi 0, %s126
      %s144 = sphi 0, %s144
      %s146 = sphi 0, %s144
      %s147 = sphi 0, %s146
      %s161 = sphi 0, %s147
      %s165 = sphi 0, %s165
      %s167 = sphi 0, %s165
      %s168 = sphi 0, %s167
      %s182 = sphi 0, %s168
      %s186 = sphi 0, %s186
      %s188 = sphi 0, %s186
      %s189 = sphi 0, %s188
      %s203 = sphi 0, %s189
      %s207 = sphi 0, %s207
      %s209 = sphi 0, %s207
      %s210 = sphi 0, %s209
      %s224 = sphi 0, %s210
      %s228 = sphi 0, %s228
      %s230 = sphi 0, %s228
      %s231 = sphi 0, %s230
      %s245 = sphi 0, %s231
      %s249 = sphi 0, %s249
      %s251 = sphi 0, %s249
      %s252 = sphi 0, %s251
      %s266 = sphi 0, %s252
      %s270 = sphi 0, %s270
      %s272 = sphi 0, %s270
      %s273 = sphi 0, %s272
      %s287 = sphi 0, %s273
      %s291 = sphi 0, %s291
      %s293 = sphi 0, %s291
      %s294 = sphi 0, %s293
      %s308 = sphi 0, %s294
      %s312 = sphi 0, %s312
      %s314 = sphi 0, %s312
      %s315 = sphi 0, %s314
      %s329 = sphi 0, %s315
      %s333 = sphi 0, %s333
      %s335 = sphi 0, %s333
      %s336 = sphi 0, %s335
      %s350 = sphi 0, %s336
      %s354 = sphi 0, %s354
      %s356 = sphi 0, %s354
      %s357 = sphi 0, %s356
      %s371 = sphi 0, %s357
      %s377 = sphi 0, %s379
      %s380 = sphi 0, %s377
      %s381 = sphi 0, %s380
      %s397 = sphi 0, %s381
    $region4: #{infograph_forward.3} parent=1 // loop_header_branch
      %29 = sbr.rel (%p27) target = $region8
    $region5: #{infograph_forward.3} parent=1 // loop_body
      %s31 = ssub.s32 %s26, 1
      %s32 = ssub.s32 %s26, 2
      %s39 = sadd.s32 1, %s34
      %p40 = scmp.ge.s32.totalorder %s39, 1
      %s41 = scalar_select %p40, 0, %s39
      %s42 = sadd.s32 1, %s33
      %s43 = scalar_select %p40, %s42, %s33
      %p44 = scmp.ge.s32.totalorder %s43, 2
      %s45 = scalar_select %p44, 0, %s43
      %s46 = sadd.s32 %s33, %s34
      %s47 = sadd.s32 %s45, %s41
      %s48 = ssub.s32 %s46, %s47
      %p49 = scmp.eq.s32.totalorder %s48, 0
      %s51 = sadd.s32 %s50, 1
      %s52 = scalar_select %p49, %s50, %s51
      %p55 = pneg %p49
      %p56 = scmp.eq.s32.totalorder %s26, 1
      %p57 = por %p55, %p56
      %p58 = scmp.ne.s32.totalorder %s50, %s53
      %p59 = scmp.eq.s32.totalorder %s26, 0
      %p60 = por %p58, %p59
      %p61 = scmp.ne.s32.totalorder %s50, %s53
      %p62 = scmp.eq.s32.totalorder %s31, 1
      %p63 = por %p61, %p62
      %p64 = scmp.ne.s32.totalorder %s53, %s54
      %p65 = scmp.eq.s32.totalorder %s31, 0
      %p66 = por %p64, %p65
      %p67 = scmp.ne.s32.totalorder %s53, %s54
      %p68 = scmp.eq.s32.totalorder %s32, 1
      %p69 = por %p67, %p68
      %p71 = scmp.ne.s32.totalorder %s54, %s70
      %p72 = scmp.eq.s32.totalorder %s32, 0
      %p73 = por %p71, %p72
      %s74 = sadd.s32 %s33, %s34
      %s75 = sadd.s32 %s45, %s41
      %s76 = ssub.s32 %s74, %s75
      %p77 = scmp.eq.s32.totalorder %s76, 0
      %s79 = sadd.s32 %s78, 1
      %s80 = scalar_select %p77, %s78, %s79
      %p83 = pneg %p77
      %p84 = scmp.eq.s32.totalorder %s26, 1
      %p85 = por %p83, %p84
      %p86 = scmp.ne.s32.totalorder %s78, %s81
      %p87 = scmp.eq.s32.totalorder %s26, 0
      %p88 = por %p86, %p87
      %p89 = scmp.ne.s32.totalorder %s78, %s81
      %p90 = scmp.eq.s32.totalorder %s31, 1
      %p91 = por %p89, %p90
      %p92 = scmp.ne.s32.totalorder %s81, %s82
      %p93 = scmp.eq.s32.totalorder %s31, 0
      %p94 = por %p92, %p93
      %p95 = scmp.ne.s32.totalorder %s81, %s82
      %p96 = scmp.eq.s32.totalorder %s32, 1
      %p97 = por %p95, %p96
      %p99 = scmp.ne.s32.totalorder %s82, %s98
      %p100 = scmp.eq.s32.totalorder %s32, 0
      %p101 = por %p99, %p100
      %s103 = sadd.s32 %s102, 1
      %p106 = scmp.eq.s32.totalorder %s26, 1
      %p107 = scmp.ne.s32.totalorder %s102, %s104
      %p108 = scmp.eq.s32.totalorder %s26, 0
      %p109 = por %p107, %p108
      %p110 = scmp.ne.s32.totalorder %s102, %s104
      %p111 = scmp.eq.s32.totalorder %s31, 1
      %p112 = por %p110, %p111
      %p113 = scmp.ne.s32.totalorder %s104, %s105
      %p114 = scmp.eq.s32.totalorder %s31, 0
      %p115 = por %p113, %p114
      %p116 = scmp.ne.s32.totalorder %s104, %s105
      %p117 = scmp.eq.s32.totalorder %s32, 1
      %p118 = por %p116, %p117
      %p120 = scmp.ne.s32.totalorder %s105, %s119
      %p121 = scmp.eq.s32.totalorder %s32, 0
      %p122 = por %p120, %p121
      %s124 = sadd.s32 %s123, 1
      %p127 = scmp.eq.s32.totalorder %s26, 1
      %p128 = scmp.ne.s32.totalorder %s123, %s125
      %p129 = scmp.eq.s32.totalorder %s26, 0
      %p130 = por %p128, %p129
      %p131 = scmp.ne.s32.totalorder %s123, %s125
      %p132 = scmp.eq.s32.totalorder %s31, 1
      %p133 = por %p131, %p132
      %p134 = scmp.ne.s32.totalorder %s125, %s126
      %p135 = scmp.eq.s32.totalorder %s31, 0
      %p136 = por %p134, %p135
      %p137 = scmp.ne.s32.totalorder %s125, %s126
      %p138 = scmp.eq.s32.totalorder %s32, 1
      %p139 = por %p137, %p138
      %p141 = scmp.ne.s32.totalorder %s126, %s140
      %p142 = scmp.eq.s32.totalorder %s32, 0
      %p143 = por %p141, %p142
      %s145 = sadd.s32 %s144, 1
      %p148 = scmp.eq.s32.totalorder %s26, 1
      %p149 = scmp.ne.s32.totalorder %s144, %s146
      %p150 = scmp.eq.s32.totalorder %s26, 0
      %p151 = por %p149, %p150
      %p152 = scmp.ne.s32.totalorder %s144, %s146
      %p153 = scmp.eq.s32.totalorder %s31, 1
      %p154 = por %p152, %p153
      %p155 = scmp.ne.s32.totalorder %s146, %s147
      %p156 = scmp.eq.s32.totalorder %s31, 0
      %p157 = por %p155, %p156
      %p158 = scmp.ne.s32.totalorder %s146, %s147
      %p159 = scmp.eq.s32.totalorder %s32, 1
      %p160 = por %p158, %p159
      %p162 = scmp.ne.s32.totalorder %s147, %s161
      %p163 = scmp.eq.s32.totalorder %s32, 0
      %p164 = por %p162, %p163
      %s166 = sadd.s32 %s165, 1
      %p169 = scmp.eq.s32.totalorder %s26, 1
      %p170 = scmp.ne.s32.totalorder %s165, %s167
      %p171 = scmp.eq.s32.totalorder %s26, 0
      %p172 = por %p170, %p171
      %p173 = scmp.ne.s32.totalorder %s165, %s167
      %p174 = scmp.eq.s32.totalorder %s31, 1
      %p175 = por %p173, %p174
      %p176 = scmp.ne.s32.totalorder %s167, %s168
      %p177 = scmp.eq.s32.totalorder %s31, 0
      %p178 = por %p176, %p177
      %p179 = scmp.ne.s32.totalorder %s167, %s168
      %p180 = scmp.eq.s32.totalorder %s32, 1
      %p181 = por %p179, %p180
      %p183 = scmp.ne.s32.totalorder %s168, %s182
      %p184 = scmp.eq.s32.totalorder %s32, 0
      %p185 = por %p183, %p184
      %s187 = sadd.s32 %s186, 1
      %p190 = scmp.eq.s32.totalorder %s26, 1
      %p191 = scmp.ne.s32.totalorder %s186, %s188
      %p192 = scmp.eq.s32.totalorder %s26, 0
      %p193 = por %p191, %p192
      %p194 = scmp.ne.s32.totalorder %s186, %s188
      %p195 = scmp.eq.s32.totalorder %s31, 1
      %p196 = por %p194, %p195
      %p197 = scmp.ne.s32.totalorder %s188, %s189
      %p198 = scmp.eq.s32.totalorder %s31, 0
      %p199 = por %p197, %p198
      %p200 = scmp.ne.s32.totalorder %s188, %s189
      %p201 = scmp.eq.s32.totalorder %s32, 1
      %p202 = por %p200, %p201
      %p204 = scmp.ne.s32.totalorder %s189, %s203
      %p205 = scmp.eq.s32.totalorder %s32, 0
      %p206 = por %p204, %p205
      %s208 = sadd.s32 %s207, 1
      %p211 = scmp.eq.s32.totalorder %s26, 1
      %p212 = scmp.ne.s32.totalorder %s207, %s209
      %p213 = scmp.eq.s32.totalorder %s26, 0
      %p214 = por %p212, %p213
      %p215 = scmp.ne.s32.totalorder %s207, %s209
      %p216 = scmp.eq.s32.totalorder %s31, 1
      %p217 = por %p215, %p216
      %p218 = scmp.ne.s32.totalorder %s209, %s210
      %p219 = scmp.eq.s32.totalorder %s31, 0
      %p220 = por %p218, %p219
      %p221 = scmp.ne.s32.totalorder %s209, %s210
      %p222 = scmp.eq.s32.totalorder %s32, 1
      %p223 = por %p221, %p222
      %p225 = scmp.ne.s32.totalorder %s210, %s224
      %p226 = scmp.eq.s32.totalorder %s32, 0
      %p227 = por %p225, %p226
      %s229 = sadd.s32 %s228, 1
      %p232 = scmp.eq.s32.totalorder %s26, 1
      %p233 = scmp.ne.s32.totalorder %s228, %s230
      %p234 = scmp.eq.s32.totalorder %s26, 0
      %p235 = por %p233, %p234
      %p236 = scmp.ne.s32.totalorder %s228, %s230
      %p237 = scmp.eq.s32.totalorder %s31, 1
      %p238 = por %p236, %p237
      %p239 = scmp.ne.s32.totalorder %s230, %s231
      %p240 = scmp.eq.s32.totalorder %s31, 0
      %p241 = por %p239, %p240
      %p242 = scmp.ne.s32.totalorder %s230, %s231
      %p243 = scmp.eq.s32.totalorder %s32, 1
      %p244 = por %p242, %p243
      %p246 = scmp.ne.s32.totalorder %s231, %s245
      %p247 = scmp.eq.s32.totalorder %s32, 0
      %p248 = por %p246, %p247
      %s250 = sadd.s32 %s249, 1
      %p253 = scmp.eq.s32.totalorder %s26, 1
      %p254 = scmp.ne.s32.totalorder %s249, %s251
      %p255 = scmp.eq.s32.totalorder %s26, 0
      %p256 = por %p254, %p255
      %p257 = scmp.ne.s32.totalorder %s249, %s251
      %p258 = scmp.eq.s32.totalorder %s31, 1
      %p259 = por %p257, %p258
      %p260 = scmp.ne.s32.totalorder %s251, %s252
      %p261 = scmp.eq.s32.totalorder %s31, 0
      %p262 = por %p260, %p261
      %p263 = scmp.ne.s32.totalorder %s251, %s252
      %p264 = scmp.eq.s32.totalorder %s32, 1
      %p265 = por %p263, %p264
      %p267 = scmp.ne.s32.totalorder %s252, %s266
      %p268 = scmp.eq.s32.totalorder %s32, 0
      %p269 = por %p267, %p268
      %s271 = sadd.s32 %s270, 1
      %p274 = scmp.eq.s32.totalorder %s26, 1
      %p275 = scmp.ne.s32.totalorder %s270, %s272
      %p276 = scmp.eq.s32.totalorder %s26, 0
      %p277 = por %p275, %p276
      %p278 = scmp.ne.s32.totalorder %s270, %s272
      %p279 = scmp.eq.s32.totalorder %s31, 1
      %p280 = por %p278, %p279
      %p281 = scmp.ne.s32.totalorder %s272, %s273
      %p282 = scmp.eq.s32.totalorder %s31, 0
      %p283 = por %p281, %p282
      %p284 = scmp.ne.s32.totalorder %s272, %s273
      %p285 = scmp.eq.s32.totalorder %s32, 1
      %p286 = por %p284, %p285
      %p288 = scmp.ne.s32.totalorder %s273, %s287
      %p289 = scmp.eq.s32.totalorder %s32, 0
      %p290 = por %p288, %p289
      %s292 = sadd.s32 %s291, 1
      %p295 = scmp.eq.s32.totalorder %s26, 1
      %p296 = scmp.ne.s32.totalorder %s291, %s293
      %p297 = scmp.eq.s32.totalorder %s26, 0
      %p298 = por %p296, %p297
      %p299 = scmp.ne.s32.totalorder %s291, %s293
      %p300 = scmp.eq.s32.totalorder %s31, 1
      %p301 = por %p299, %p300
      %p302 = scmp.ne.s32.totalorder %s293, %s294
      %p303 = scmp.eq.s32.totalorder %s31, 0
      %p304 = por %p302, %p303
      %p305 = scmp.ne.s32.totalorder %s293, %s294
      %p306 = scmp.eq.s32.totalorder %s32, 1
      %p307 = por %p305, %p306
      %p309 = scmp.ne.s32.totalorder %s294, %s308
      %p310 = scmp.eq.s32.totalorder %s32, 0
      %p311 = por %p309, %p310
      %s313 = sadd.s32 %s312, 1
      %p316 = scmp.eq.s32.totalorder %s26, 1
      %p317 = scmp.ne.s32.totalorder %s312, %s314
      %p318 = scmp.eq.s32.totalorder %s26, 0
      %p319 = por %p317, %p318
      %p320 = scmp.ne.s32.totalorder %s312, %s314
      %p321 = scmp.eq.s32.totalorder %s31, 1
      %p322 = por %p320, %p321
      %p323 = scmp.ne.s32.totalorder %s314, %s315
      %p324 = scmp.eq.s32.totalorder %s31, 0
      %p325 = por %p323, %p324
      %p326 = scmp.ne.s32.totalorder %s314, %s315
      %p327 = scmp.eq.s32.totalorder %s32, 1
      %p328 = por %p326, %p327
      %p330 = scmp.ne.s32.totalorder %s315, %s329
      %p331 = scmp.eq.s32.totalorder %s32, 0
      %p332 = por %p330, %p331
      %s334 = sadd.s32 %s333, 1
      %p337 = scmp.eq.s32.totalorder %s26, 1
      %p338 = scmp.ne.s32.totalorder %s333, %s335
      %p339 = scmp.eq.s32.totalorder %s26, 0
      %p340 = por %p338, %p339
      %p341 = scmp.ne.s32.totalorder %s333, %s335
      %p342 = scmp.eq.s32.totalorder %s31, 1
      %p343 = por %p341, %p342
      %p344 = scmp.ne.s32.totalorder %s335, %s336
      %p345 = scmp.eq.s32.totalorder %s31, 0
      %p346 = por %p344, %p345
      %p347 = scmp.ne.s32.totalorder %s335, %s336
      %p348 = scmp.eq.s32.totalorder %s32, 1
      %p349 = por %p347, %p348
      %p351 = scmp.ne.s32.totalorder %s336, %s350
      %p352 = scmp.eq.s32.totalorder %s32, 0
      %p353 = por %p351, %p352
      %s355 = sadd.s32 %s354, 1
      %p358 = scmp.eq.s32.totalorder %s26, 1
      %p359 = scmp.ne.s32.totalorder %s354, %s356
      %p360 = scmp.eq.s32.totalorder %s26, 0
      %p361 = por %p359, %p360
      %p362 = scmp.ne.s32.totalorder %s354, %s356
      %p363 = scmp.eq.s32.totalorder %s31, 1
      %p364 = por %p362, %p363
      %p365 = scmp.ne.s32.totalorder %s356, %s357
      %p366 = scmp.eq.s32.totalorder %s31, 0
      %p367 = por %p365, %p366
      %p368 = scmp.ne.s32.totalorder %s356, %s357
      %p369 = scmp.eq.s32.totalorder %s32, 1
      %p370 = por %p368, %p369
      %p372 = scmp.ne.s32.totalorder %s357, %s371
      %p373 = scmp.eq.s32.totalorder %s32, 0
      %p374 = por %p372, %p373
      %s375 = ssub.s32 %s33, %s45
      %p376 = scmp.eq.s32.totalorder %s375, 0
      %s378 = sadd.s32 %s377, 1
      %s379 = scalar_select %p376, %s377, %s378
      %p382 = pneg %p376
      %p383 = scmp.eq.s32.totalorder %s26, 1
      %p384 = por %p382, %p383
      %p385 = scmp.ne.s32.totalorder %s377, %s380
      %p386 = scmp.eq.s32.totalorder %s26, 0
      %p387 = por %p385, %p386
      %p388 = scmp.ne.s32.totalorder %s377, %s380
      %p389 = scmp.eq.s32.totalorder %s31, 1
      %p390 = por %p388, %p389
      %p391 = scmp.ne.s32.totalorder %s380, %s381
      %p392 = scmp.eq.s32.totalorder %s31, 0
      %p393 = por %p391, %p392
      %p394 = scmp.ne.s32.totalorder %s380, %s381
      %p395 = scmp.eq.s32.totalorder %s32, 1
      %p396 = por %p394, %p395
      %p398 = scmp.ne.s32.totalorder %s381, %s397
      %p399 = scmp.eq.s32.totalorder %s32, 0
      %p400 = por %p398, %p399
      %p401 = scmp.le.s32.totalorder 1, %s26
      %p402 = scmp.lt.s32.totalorder %s26, 3
      %p403 = pnand %p401, %p402
      %p404 = pneg %p403
      // Predicated region
      $region9: #{infograph_forward.3} parent=5 // pred_check
        _
      $region10: #{infograph_forward.3} parent=5 // pred_check_branch
        %406 = sbr.rel (%p403) target = $region12
      $region11: #{infograph_forward.3} parent=5 // pred_region
        %s407 = ssub.s32 %s26, 1
        // Predicated region
        $region13: #{infograph_forward.3} parent=11 // pred_check
          %p408 = pneg %p115
        $region14: #{infograph_forward.3} parent=11 // pred_check_branch
          %410 = sbr.rel (%p408) target = $region16
        $region15: #{infograph_forward.3} parent=11 // pred_region
          _
        $region16: #{infograph_forward.3} parent=11 // pred_fallthru
          _
        // Predicated region
        $region17: #{infograph_forward.3} parent=11 // pred_check
          %p411 = pneg %p136
        $region18: #{infograph_forward.3} parent=11 // pred_check_branch
          %413 = sbr.rel (%p411) target = $region20
        $region19: #{infograph_forward.3} parent=11 // pred_region
          _
        $region20: #{infograph_forward.3} parent=11 // pred_fallthru
          _
        // Predicated region
        $region21: #{infograph_forward.3} parent=11 // pred_check
          %p414 = pneg %p157
        $region22: #{infograph_forward.3} parent=11 // pred_check_branch
          %416 = sbr.rel (%p414) target = $region24
        $region23: #{infograph_forward.3} parent=11 // pred_region
          %s418 = ssub.s32 64, 64
          %419 = vsyncadd [#allocation6], %s418
          %s421 = sshll.u32 [#allocation5], 4
          %s422 = int_to_ptr.vmem [resolvable:$true] %s421
          %424 = dma.hbm_to_vmem [thread:$0]  %s4, 64, %s422, [#allocation6]
        $region24: #{infograph_forward.3} parent=11 // pred_fallthru
          _
        // Predicated region
        $region25: #{infograph_forward.3} parent=11 // pred_check
          %p425 = pneg %p178
        $region26: #{infograph_forward.3} parent=11 // pred_check_branch
          %427 = sbr.rel (%p425) target = $region28
        $region27: #{infograph_forward.3} parent=11 // pred_region
          _
        $region28: #{infograph_forward.3} parent=11 // pred_fallthru
          _
        // Predicated region
        $region29: #{infograph_forward.3} parent=11 // pred_check
          %p428 = pneg %p199
        $region30: #{infograph_forward.3} parent=11 // pred_check_branch
          %430 = sbr.rel (%p428) target = $region32
        $region31: #{infograph_forward.3} parent=11 // pred_region
          %s432 = ssub.s32 32, 32
          %433 = vsyncadd [#allocation8], %s432
          %s435 = sshll.u32 [#allocation7], 4
          %s436 = int_to_ptr.vmem [resolvable:$true] %s435
          %438 = dma.hbm_to_vmem [thread:$0]  %s6, 32, %s436, [#allocation8]
        $region32: #{infograph_forward.3} parent=11 // pred_fallthru
          _
        // Predicated region
        $region33: #{infograph_forward.3} parent=11 // pred_check
          %p439 = pneg %p220
        $region34: #{infograph_forward.3} parent=11 // pred_check_branch
          %441 = sbr.rel (%p439) target = $region36
        $region35: #{infograph_forward.3} parent=11 // pred_region
          _
        $region36: #{infograph_forward.3} parent=11 // pred_fallthru
          _
        // Predicated region
        $region37: #{infograph_forward.3} parent=11 // pred_check
          %p442 = pneg %p241
        $region38: #{infograph_forward.3} parent=11 // pred_check_branch
          %444 = sbr.rel (%p442) target = $region40
        $region39: #{infograph_forward.3} parent=11 // pred_region
          %s446 = ssub.s32 32, 32
          %447 = vsyncadd [#allocation8], %s446
          %s449 = sshll.u32 [#allocation9], 4
          %s450 = int_to_ptr.vmem [resolvable:$true] %s449
          %452 = dma.hbm_to_vmem [thread:$0]  %s8, 32, %s450, [#allocation8]
        $region40: #{infograph_forward.3} parent=11 // pred_fallthru
          _
        // Predicated region
        $region41: #{infograph_forward.3} parent=11 // pred_check
          %p453 = pneg %p262
        $region42: #{infograph_forward.3} parent=11 // pred_check_branch
          %455 = sbr.rel (%p453) target = $region44
        $region43: #{infograph_forward.3} parent=11 // pred_region
          _
        $region44: #{infograph_forward.3} parent=11 // pred_fallthru
          _
        // Predicated region
        $region45: #{infograph_forward.3} parent=11 // pred_check
          %p456 = pneg %p283
        $region46: #{infograph_forward.3} parent=11 // pred_check_branch
          %458 = sbr.rel (%p456) target = $region48
        $region47: #{infograph_forward.3} parent=11 // pred_region
          %s460 = ssub.s32 64, 64
          %461 = vsyncadd [#allocation11], %s460
          %s463 = sshll.u32 [#allocation10], 4
          %s464 = int_to_ptr.vmem [resolvable:$true] %s463
          %466 = dma.hbm_to_vmem [thread:$0]  %s10, 64, %s464, [#allocation11]
        $region48: #{infograph_forward.3} parent=11 // pred_fallthru
          _
        // Predicated region
        $region49: #{infograph_forward.3} parent=11 // pred_check
          %p467 = pneg %p304
        $region50: #{infograph_forward.3} parent=11 // pred_check_branch
          %469 = sbr.rel (%p467) target = $region52
        $region51: #{infograph_forward.3} parent=11 // pred_region
          %s471 = ssub.s32 4096, 4096
          %472 = vsyncadd [#allocation11], %s471
          %s473 = sshll.u32 [#allocation12], 4
          %s474 = int_to_ptr.vmem [resolvable:$true] %s473
          %479 = dma.hbm_to_vmem [thread:$0]  %s11, 4096, %s474, [#allocation11], 128, 128, 8
        $region52: #{infograph_forward.3} parent=11 // pred_fallthru
          _
        // Predicated region
        $region53: #{infograph_forward.3} parent=11 // pred_check
          %p480 = pneg %p325
        $region54: #{infograph_forward.3} parent=11 // pred_check_branch
          %482 = sbr.rel (%p480) target = $region56
        $region55: #{infograph_forward.3} parent=11 // pred_region
          %s484 = ssub.s32 32, 32
          %485 = vsyncadd [#allocation14], %s484
          %s487 = sshll.u32 [#allocation13], 4
          %s488 = int_to_ptr.vmem [resolvable:$true] %s487
          %490 = dma.hbm_to_vmem [thread:$0]  %s12, 32, %s488, [#allocation14]
        $region56: #{infograph_forward.3} parent=11 // pred_fallthru
          _
        // Predicated region
        $region57: #{infograph_forward.3} parent=11 // pred_check
          %p491 = pneg %p346
        $region58: #{infograph_forward.3} parent=11 // pred_check_branch
          %493 = sbr.rel (%p491) target = $region60
        $region59: #{infograph_forward.3} parent=11 // pred_region
          %s495 = ssub.s32 4096, 4096
          %496 = vsyncadd [#allocation14], %s495
          %s497 = sshll.u32 [#allocation15], 4
          %s498 = int_to_ptr.vmem [resolvable:$true] %s497
          %503 = dma.hbm_to_vmem [thread:$0]  %s13, 4096, %s498, [#allocation14], 128, 128, 8
        $region60: #{infograph_forward.3} parent=11 // pred_fallthru
          _
        // Predicated region
        $region61: #{infograph_forward.3} parent=11 // pred_check
          %p504 = pneg %p367
        $region62: #{infograph_forward.3} parent=11 // pred_check_branch
          %506 = sbr.rel (%p504) target = $region64
        $region63: #{infograph_forward.3} parent=11 // pred_region
          %s508 = ssub.s32 32, 32
          %509 = vsyncadd [#allocation17], %s508
          %s511 = sshll.u32 [#allocation16], 4
          %s512 = int_to_ptr.vmem [resolvable:$true] %s511
          %514 = dma.hbm_to_vmem [thread:$0]  %s14, 32, %s512, [#allocation17]
        $region64: #{infograph_forward.3} parent=11 // pred_fallthru
          _
      $region12: #{infograph_forward.3} parent=5 // pred_fallthru
        _
      %p515 = scmp.lt.s32.totalorder %s26, 2
      // Predicated region
      $region65: #{infograph_forward.3} parent=5 // pred_check
        %p516 = pneg %p515
      $region66: #{infograph_forward.3} parent=5 // pred_check_branch
        %518 = sbr.rel (%p516) target = $region68
      $region67: #{infograph_forward.3} parent=5 // pred_region
        // Predicated region
        $region69: #{infograph_forward.3} parent=67 // pred_check
          %p519 = pneg %p60
        $region70: #{infograph_forward.3} parent=67 // pred_check_branch
          %521 = sbr.rel (%p519) target = $region72
        $region71: #{infograph_forward.3} parent=67 // pred_region
          %s522 = sadd.s32 %s33, %s34
          %s523 = smul.u32 16, %s522
          %p524 = scmp.lt.s32.totalorder %s523, 31
          %s525 = scalar_select %p524, %s523, 31
          %s526 = smul.addr %s525, 8
          %s527 = scalar_lea.vmem %s0, %s526
          %s528 = sadd.s32 %s33, %s34
          %s529 = smul.u32 16, %s528
        $region72: #{infograph_forward.3} parent=67 // pred_fallthru
          _
        // Predicated region
        $region73: #{infograph_forward.3} parent=67 // pred_check
          %p530 = pneg %p88
        $region74: #{infograph_forward.3} parent=67 // pred_check_branch
          %532 = sbr.rel (%p530) target = $region76
        $region75: #{infograph_forward.3} parent=67 // pred_region
          %s533 = sadd.s32 %s33, %s34
          %s534 = smul.u32 16, %s533
          %p535 = scmp.lt.s32.totalorder %s534, 31
          %s536 = scalar_select %p535, %s534, 31
          %s537 = smul.addr %s536, 2
          %s538 = smul.addr %s537, 8
          %s539 = scalar_lea.vmem %s1, %s538
          %s540 = sadd.s32 %s33, %s34
          %s541 = smul.u32 16, %s540
        $region76: #{infograph_forward.3} parent=67 // pred_fallthru
          _
      $region68: #{infograph_forward.3} parent=5 // pred_fallthru
        _
      %p542 = scmp.le.s32.totalorder 1, %s26
      %p543 = scmp.lt.s32.totalorder %s26, 3
      %p544 = pnand %p542, %p543
      %p545 = pneg %p544
      // Predicated region
      $region77: #{infograph_forward.3} parent=5 // pred_check
        _
      $region78: #{infograph_forward.3} parent=5 // pred_check_branch
        %547 = sbr.rel (%p544) target = $region80
      $region79: #{infograph_forward.3} parent=5 // pred_region
        %s548 = ssub.s32 %s26, 1
        // Predicated region
        $region81: #{infograph_forward.3} parent=79 // pred_check
          %p549 = pneg %p157
        $region82: #{infograph_forward.3} parent=79 // pred_check_branch
          %551 = sbr.rel (%p549) target = $region84
        $region83: #{infograph_forward.3} parent=79 // pred_region
          %552 = dma.done [#allocation6], 64
        $region84: #{infograph_forward.3} parent=79 // pred_fallthru
          _
        // Predicated region
        $region85: #{infograph_forward.3} parent=79 // pred_check
          %p553 = pneg %p199
        $region86: #{infograph_forward.3} parent=79 // pred_check_branch
          %555 = sbr.rel (%p553) target = $region88
        $region87: #{infograph_forward.3} parent=79 // pred_region
          %556 = dma.done [#allocation8], 32
        $region88: #{infograph_forward.3} parent=79 // pred_fallthru
          _
        // Predicated region
        $region89: #{infograph_forward.3} parent=79 // pred_check
          %p557 = pneg %p241
        $region90: #{infograph_forward.3} parent=79 // pred_check_branch
          %559 = sbr.rel (%p557) target = $region92
        $region91: #{infograph_forward.3} parent=79 // pred_region
          %560 = dma.done [#allocation8], 32
        $region92: #{infograph_forward.3} parent=79 // pred_fallthru
          _
        // Predicated region
        $region93: #{infograph_forward.3} parent=79 // pred_check
          %p561 = pneg %p283
        $region94: #{infograph_forward.3} parent=79 // pred_check_branch
          %563 = sbr.rel (%p561) target = $region96
        $region95: #{infograph_forward.3} parent=79 // pred_region
          %564 = dma.done [#allocation11], 64
        $region96: #{infograph_forward.3} parent=79 // pred_fallthru
          _
        // Predicated region
        $region97: #{infograph_forward.3} parent=79 // pred_check
          %p565 = pneg %p304
        $region98: #{infograph_forward.3} parent=79 // pred_check_branch
          %567 = sbr.rel (%p565) target = $region100
        $region99: #{infograph_forward.3} parent=79 // pred_region
          %568 = dma.done [#allocation11], 4096
        $region100: #{infograph_forward.3} parent=79 // pred_fallthru
          _
        // Predicated region
        $region101: #{infograph_forward.3} parent=79 // pred_check
          %p569 = pneg %p325
        $region102: #{infograph_forward.3} parent=79 // pred_check_branch
          %571 = sbr.rel (%p569) target = $region104
        $region103: #{infograph_forward.3} parent=79 // pred_region
          %572 = dma.done [#allocation14], 32
        $region104: #{infograph_forward.3} parent=79 // pred_fallthru
          _
        // Predicated region
        $region105: #{infograph_forward.3} parent=79 // pred_check
          %p573 = pneg %p346
        $region106: #{infograph_forward.3} parent=79 // pred_check_branch
          %575 = sbr.rel (%p573) target = $region108
        $region107: #{infograph_forward.3} parent=79 // pred_region
          %576 = dma.done [#allocation14], 4096
        $region108: #{infograph_forward.3} parent=79 // pred_fallthru
          _
        // Predicated region
        $region109: #{infograph_forward.3} parent=79 // pred_check
          %p577 = pneg %p367
        $region110: #{infograph_forward.3} parent=79 // pred_check_branch
          %579 = sbr.rel (%p577) target = $region112
        $region111: #{infograph_forward.3} parent=79 // pred_region
          %580 = dma.done [#allocation17], 32
        $region112: #{infograph_forward.3} parent=79 // pred_fallthru
          _
        %s581 = sadd.s32 %s35, %s36
        %s582 = smul.u32 16, %s581
        %p583 = scmp.lt.s32.totalorder %s582, 31
        %s584 = scalar_select %p583, %s582, 31
        %s585 = smul.addr %s584, 8
        %s586 = scalar_lea.vmem %s0, %s585
        %p587 = pneg %p66
        %p588 = pneg %p63
        %s589 = sadd.s32 %s35, %s36
        %s590 = smul.u32 16, %s589
        %p591 = scmp.lt.s32.totalorder %s590, 31
        %s592 = scalar_select %p591, %s590, 31
        %s593 = smul.addr %s592, 2
        %s594 = smul.addr %s593, 8
        %s595 = scalar_lea.vmem %s1, %s594
        %p596 = pneg %p94
        %p597 = pneg %p91
        %p598 = pneg %p115
        %p599 = pneg %p112
        %p600 = pneg %p136
        %p601 = pneg %p133
        %p602 = pneg %p157
        %p603 = pneg %p154
        %p604 = pneg %p178
        %p605 = pneg %p175
        %p606 = pneg %p199
        %p607 = pneg %p196
        %p608 = pneg %p220
        %p609 = pneg %p217
        %p610 = pneg %p241
        %p611 = pneg %p238
        %p612 = pneg %p262
        %p613 = pneg %p259
        %p614 = pneg %p283
        %p615 = pneg %p280
        %p616 = pneg %p304
        %p617 = pneg %p301
        %p618 = pneg %p325
        %p619 = pneg %p322
        %p620 = pneg %p346
        %p621 = pneg %p343
        %p622 = pneg %p367
        %p623 = pneg %p364
        %p624 = pneg %p393
        %p625 = pneg %p390
        %p626 = scmp.lt.s32.totalorder %s35, 1
        %s627 = scalar_select %p626, %s35, 1
        %s628 = scalar_lea.vmem %s15, %s627
        %s629 = sadd.s32 %s35, %s36
        %s630 = smul.u32 16, %s629
        %p631 = scmp.lt.s32.totalorder %s630, 31
        %s632 = scalar_select %p631, %s630, 31
        %s633 = smul.addr %s632, 8
        %s634 = scalar_lea.vmem %s0, %s633
        %s635 = sadd.s32 %s35, %s36
        %s636 = smul.u32 16, %s635
        %s637 = sadd.s32 %s35, %s36
        %s638 = smul.u32 16, %s637
        %p639 = scmp.lt.s32.totalorder %s638, 31
        %s640 = scalar_select %p639, %s638, 31
        %s641 = smul.addr %s640, 2
        %s642 = smul.addr %s641, 8
        %s643 = scalar_lea.vmem %s1, %s642
        %s644 = sadd.s32 %s35, %s36
        %s645 = smul.u32 16, %s644
        %p646 = scmp.lt.s32.totalorder %s35, 1
        %s647 = scalar_select %p646, %s35, 1
        %s648 = scalar_lea.vmem %s15, %s647
        %p650 = scmp.eq.s32.totalorder %s36, 0
        // Predicated region
        $region113: #{infograph_forward.3} parent=79 // pred_check
          %p651 = pneg %p650
        $region114: #{infograph_forward.3} parent=79 // pred_check_branch
          %653 = sbr.rel (%p651) target = $region116
        $region115: #{infograph_forward.3} parent=79 // pred_region
          %v654 = vld [vmem:[%s2] sm:$0xff]
          %v655 = vld [vmem:[%s3] sm:$0xff]
          %v656 = vld [vmem:[%s3 + $0x8] sm:$0xff]
          %v657 = vld [vmem:[%s3 + $0x10] sm:$0xff]
          %v658 = vld [vmem:[%s3 + $0x18] sm:$0xff]
          %v659 = vld [vmem:[%s3 + $0x20] sm:$0xff]
          %v660 = vld [vmem:[%s3 + $0x28] sm:$0xff]
          %v661 = vld [vmem:[%s3 + $0x30] sm:$0xff]
          %v662 = vld [vmem:[%s3 + $0x38] sm:$0xff]
          %v663 = vld [vmem:[%s3 + $0x40] sm:$0xff]
          %v664 = vld [vmem:[%s3 + $0x48] sm:$0xff]
          %v665 = vld [vmem:[%s3 + $0x50] sm:$0xff]
          %v666 = vld [vmem:[%s3 + $0x58] sm:$0xff]
          %v667 = vld [vmem:[%s3 + $0x60] sm:$0xff]
          %v668 = vld [vmem:[%s3 + $0x68] sm:$0xff]
          %v669 = vld [vmem:[%s3 + $0x70] sm:$0xff]
          %v670 = vld [vmem:[%s3 + $0x78] sm:$0xff]
          %v671 = vld [vmem:[%s3 + $0x80] sm:$0xff]
          %v672 = vld [vmem:[%s3 + $0x88] sm:$0xff]
          %v673 = vld [vmem:[%s3 + $0x90] sm:$0xff]
          %v674 = vld [vmem:[%s3 + $0x98] sm:$0xff]
          %v675 = vld [vmem:[%s3 + $0xa0] sm:$0xff]
          %v676 = vld [vmem:[%s3 + $0xa8] sm:$0xff]
          %v677 = vld [vmem:[%s3 + $0xb0] sm:$0xff]
          %v678 = vld [vmem:[%s3 + $0xb8] sm:$0xff]
          %v679 = vld [vmem:[%s3 + $0xc0] sm:$0xff]
          %v680 = vld [vmem:[%s3 + $0xc8] sm:$0xff]
          %v681 = vld [vmem:[%s3 + $0xd0] sm:$0xff]
          %v682 = vld [vmem:[%s3 + $0xd8] sm:$0xff]
          %v683 = vld [vmem:[%s3 + $0xe0] sm:$0xff]
          %v684 = vld [vmem:[%s3 + $0xe8] sm:$0xff]
          %v685 = vld [vmem:[%s3 + $0xf0] sm:$0xff]
          %v686 = vld [vmem:[%s3 + $0xf8] sm:$0xff]
          %v687 = vld [vmem:[%s3 + $0x100] sm:$0xff]
          %v688 = vld [vmem:[%s3 + $0x108] sm:$0xff]
          %v689 = vld [vmem:[%s3 + $0x110] sm:$0xff]
          %v690 = vld [vmem:[%s3 + $0x118] sm:$0xff]
          %v691 = vld [vmem:[%s3 + $0x120] sm:$0xff]
          %v692 = vld [vmem:[%s3 + $0x128] sm:$0xff]
          %v693 = vld [vmem:[%s3 + $0x130] sm:$0xff]
          %v694 = vld [vmem:[%s3 + $0x138] sm:$0xff]
          %v695 = vld [vmem:[%s3 + $0x140] sm:$0xff]
          %v696 = vld [vmem:[%s3 + $0x148] sm:$0xff]
          %v697 = vld [vmem:[%s3 + $0x150] sm:$0xff]
          %v698 = vld [vmem:[%s3 + $0x158] sm:$0xff]
          %v699 = vld [vmem:[%s3 + $0x160] sm:$0xff]
          %v700 = vld [vmem:[%s3 + $0x168] sm:$0xff]
          %v701 = vld [vmem:[%s3 + $0x170] sm:$0xff]
          %v702 = vld [vmem:[%s3 + $0x178] sm:$0xff]
          %v703 = vld [vmem:[%s3 + $0x180] sm:$0xff]
          %v704 = vld [vmem:[%s3 + $0x188] sm:$0xff]
          %v705 = vld [vmem:[%s3 + $0x190] sm:$0xff]
          %v706 = vld [vmem:[%s3 + $0x198] sm:$0xff]
          %v707 = vld [vmem:[%s3 + $0x1a0] sm:$0xff]
          %v708 = vld [vmem:[%s3 + $0x1a8] sm:$0xff]
          %v709 = vld [vmem:[%s3 + $0x1b0] sm:$0xff]
          %v710 = vld [vmem:[%s3 + $0x1b8] sm:$0xff]
          %v711 = vld [vmem:[%s3 + $0x1c0] sm:$0xff]
          %v712 = vld [vmem:[%s3 + $0x1c8] sm:$0xff]
          %v713 = vld [vmem:[%s3 + $0x1d0] sm:$0xff]
          %v714 = vld [vmem:[%s3 + $0x1d8] sm:$0xff]
          %v715 = vld [vmem:[%s3 + $0x1e0] sm:$0xff]
          %v716 = vld [vmem:[%s3 + $0x1e8] sm:$0xff]
          %v717 = vld [vmem:[%s3 + $0x1f0] sm:$0xff]
          %v718 = vld [vmem:[%s3 + $0x1f8] sm:$0xff]
          %v719 = vld [vmem:[#allocation5] sm:$0xf]
          %v720 = vld [vmem:[%s5] sm:$0xff]
          %v721 = vld [vmem:[%s5 + $0x8] sm:$0xff]
          %v722 = vld [vmem:[%s5 + $0x10] sm:$0xff]
          %v723 = vld [vmem:[%s5 + $0x18] sm:$0xff]
          %v724 = vld [vmem:[%s5 + $0x20] sm:$0xff]
          %v725 = vld [vmem:[%s5 + $0x28] sm:$0xff]
          %v726 = vld [vmem:[%s5 + $0x30] sm:$0xff]
          %v727 = vld [vmem:[%s5 + $0x38] sm:$0xff]
          %v728 = vld [vmem:[%s5 + $0x40] sm:$0xff]
          %v729 = vld [vmem:[%s5 + $0x48] sm:$0xff]
          %v730 = vld [vmem:[%s5 + $0x50] sm:$0xff]
          %v731 = vld [vmem:[%s5 + $0x58] sm:$0xff]
          %v732 = vld [vmem:[%s5 + $0x60] sm:$0xff]
          %v733 = vld [vmem:[%s5 + $0x68] sm:$0xff]
          %v734 = vld [vmem:[%s5 + $0x70] sm:$0xff]
          %v735 = vld [vmem:[%s5 + $0x78] sm:$0xff]
          %v736 = vld [vmem:[%s5 + $0x80] sm:$0xff]
          %v737 = vld [vmem:[%s5 + $0x88] sm:$0xff]
          %v738 = vld [vmem:[%s5 + $0x90] sm:$0xff]
          %v739 = vld [vmem:[%s5 + $0x98] sm:$0xff]
          %v740 = vld [vmem:[%s5 + $0xa0] sm:$0xff]
          %v741 = vld [vmem:[%s5 + $0xa8] sm:$0xff]
          %v742 = vld [vmem:[%s5 + $0xb0] sm:$0xff]
          %v743 = vld [vmem:[%s5 + $0xb8] sm:$0xff]
          %v744 = vld [vmem:[%s5 + $0xc0] sm:$0xff]
          %v745 = vld [vmem:[%s5 + $0xc8] sm:$0xff]
          %v746 = vld [vmem:[%s5 + $0xd0] sm:$0xff]
          %v747 = vld [vmem:[%s5 + $0xd8] sm:$0xff]
          %v748 = vld [vmem:[%s5 + $0xe0] sm:$0xff]
          %v749 = vld [vmem:[%s5 + $0xe8] sm:$0xff]
          %v750 = vld [vmem:[%s5 + $0xf0] sm:$0xff]
          %v751 = vld [vmem:[%s5 + $0xf8] sm:$0xff]
          %v752 = vld [vmem:[#allocation7] sm:$0x3]
          %v753 = vld [vmem:[%s7] sm:$0xff]
          %v754 = vld [vmem:[%s7 + $0x8] sm:$0xff]
          %v755 = vld [vmem:[%s7 + $0x10] sm:$0xff]
          %v756 = vld [vmem:[%s7 + $0x18] sm:$0xff]
          %v757 = vld [vmem:[%s7 + $0x20] sm:$0xff]
          %v758 = vld [vmem:[%s7 + $0x28] sm:$0xff]
          %v759 = vld [vmem:[%s7 + $0x30] sm:$0xff]
          %v760 = vld [vmem:[%s7 + $0x38] sm:$0xff]
          %v761 = vld [vmem:[%s7 + $0x40] sm:$0xff]
          %v762 = vld [vmem:[%s7 + $0x48] sm:$0xff]
          %v763 = vld [vmem:[%s7 + $0x50] sm:$0xff]
          %v764 = vld [vmem:[%s7 + $0x58] sm:$0xff]
          %v765 = vld [vmem:[%s7 + $0x60] sm:$0xff]
          %v766 = vld [vmem:[%s7 + $0x68] sm:$0xff]
          %v767 = vld [vmem:[%s7 + $0x70] sm:$0xff]
          %v768 = vld [vmem:[%s7 + $0x78] sm:$0xff]
          %v769 = vld [vmem:[%s7 + $0x80] sm:$0xff]
          %v770 = vld [vmem:[%s7 + $0x88] sm:$0xff]
          %v771 = vld [vmem:[%s7 + $0x90] sm:$0xff]
          %v772 = vld [vmem:[%s7 + $0x98] sm:$0xff]
          %v773 = vld [vmem:[%s7 + $0xa0] sm:$0xff]
          %v774 = vld [vmem:[%s7 + $0xa8] sm:$0xff]
          %v775 = vld [vmem:[%s7 + $0xb0] sm:$0xff]
          %v776 = vld [vmem:[%s7 + $0xb8] sm:$0xff]
          %v777 = vld [vmem:[%s7 + $0xc0] sm:$0xff]
          %v778 = vld [vmem:[%s7 + $0xc8] sm:$0xff]
          %v779 = vld [vmem:[%s7 + $0xd0] sm:$0xff]
          %v780 = vld [vmem:[%s7 + $0xd8] sm:$0xff]
          %v781 = vld [vmem:[%s7 + $0xe0] sm:$0xff]
          %v782 = vld [vmem:[%s7 + $0xe8] sm:$0xff]
          %v783 = vld [vmem:[%s7 + $0xf0] sm:$0xff]
          %v784 = vld [vmem:[%s7 + $0xf8] sm:$0xff]
          %v785 = vld [vmem:[#allocation9] sm:$0x3]
          %v787 = vcombine.high %v654, %v654
          %v789 = vpack.c.bf16 %v654, %v654
          %v790 = vpack.c.bf16 %v787, %v787
          %v792 = vlaneseq
          %v793 = vshrl.u32 %v792, 7
          %v794 = vsub.s32 0, %v793
          %v795 = vrot.slane %v719, %v794
          %v796 = vlaneseq
          %v797 = vshrl.u32 %v796, 7
          %v798 = vsub.s32 1, %v797
          %v799 = vrot.slane %v719, %v798
          %v800 = vlaneseq
          %v801 = vshrl.u32 %v800, 7
          %v802 = vsub.s32 2, %v801
          %v803 = vrot.slane %v719, %v802
          %v804 = vlaneseq
          %v805 = vshrl.u32 %v804, 7
          %v806 = vsub.s32 3, %v805
          %v807 = vrot.slane %v719, %v806
          %v876 = vunpack.c.l.b16 %v655
          %v877 = vunpack.c.h.b16 %v655
          %v878 = vunpack.c.l.b16 %v656
          %v879 = vunpack.c.h.b16 %v656
          %v880 = vunpack.c.l.b16 %v657
          %v881 = vunpack.c.h.b16 %v657
          %v882 = vunpack.c.l.b16 %v658
          %v883 = vunpack.c.h.b16 %v658
          %v884 = vunpack.c.l.b16 %v659
          %v885 = vunpack.c.h.b16 %v659
          %v886 = vunpack.c.l.b16 %v660
          %v887 = vunpack.c.h.b16 %v660
          %v888 = vunpack.c.l.b16 %v661
          %v889 = vunpack.c.h.b16 %v661
          %v890 = vunpack.c.l.b16 %v662
          %v891 = vunpack.c.h.b16 %v662
          %v892 = vunpack.c.l.b16 %v663
          %v893 = vunpack.c.h.b16 %v663
          %v894 = vunpack.c.l.b16 %v664
          %v895 = vunpack.c.h.b16 %v664
          %v896 = vunpack.c.l.b16 %v665
          %v897 = vunpack.c.h.b16 %v665
          %v898 = vunpack.c.l.b16 %v666
          %v899 = vunpack.c.h.b16 %v666
          %v900 = vunpack.c.l.b16 %v667
          %v901 = vunpack.c.h.b16 %v667
          %v902 = vunpack.c.l.b16 %v668
          %v903 = vunpack.c.h.b16 %v668
          %v904 = vunpack.c.l.b16 %v669
          %v905 = vunpack.c.h.b16 %v669
          %v906 = vunpack.c.l.b16 %v670
          %v907 = vunpack.c.h.b16 %v670
          %v908 = vunpack.c.l.b16 %v671
          %v909 = vunpack.c.h.b16 %v671
          %v910 = vunpack.c.l.b16 %v672
          %v911 = vunpack.c.h.b16 %v672
          %v912 = vunpack.c.l.b16 %v673
          %v913 = vunpack.c.h.b16 %v673
          %v914 = vunpack.c.l.b16 %v674
          %v915 = vunpack.c.h.b16 %v674
          %v916 = vunpack.c.l.b16 %v675
          %v917 = vunpack.c.h.b16 %v675
          %v918 = vunpack.c.l.b16 %v676
          %v919 = vunpack.c.h.b16 %v676
          %v920 = vunpack.c.l.b16 %v677
          %v921 = vunpack.c.h.b16 %v677
          %v922 = vunpack.c.l.b16 %v678
          %v923 = vunpack.c.h.b16 %v678
          %v924 = vunpack.c.l.b16 %v679
          %v925 = vunpack.c.h.b16 %v679
          %v926 = vunpack.c.l.b16 %v680
          %v927 = vunpack.c.h.b16 %v680
          %v928 = vunpack.c.l.b16 %v681
          %v929 = vunpack.c.h.b16 %v681
          %v930 = vunpack.c.l.b16 %v682
          %v931 = vunpack.c.h.b16 %v682
          %v932 = vunpack.c.l.b16 %v683
          %v933 = vunpack.c.h.b16 %v683
          %v934 = vunpack.c.l.b16 %v684
          %v935 = vunpack.c.h.b16 %v684
          %v936 = vunpack.c.l.b16 %v685
          %v937 = vunpack.c.h.b16 %v685
          %v938 = vunpack.c.l.b16 %v686
          %v939 = vunpack.c.h.b16 %v686
          %v940 = vunpack.c.l.b16 %v687
          %v941 = vunpack.c.h.b16 %v687
          %v942 = vunpack.c.l.b16 %v688
          %v943 = vunpack.c.h.b16 %v688
          %v944 = vunpack.c.l.b16 %v689
          %v945 = vunpack.c.h.b16 %v689
          %v946 = vunpack.c.l.b16 %v690
          %v947 = vunpack.c.h.b16 %v690
          %v948 = vunpack.c.l.b16 %v691
          %v949 = vunpack.c.h.b16 %v691
          %v950 = vunpack.c.l.b16 %v692
          %v951 = vunpack.c.h.b16 %v692
          %v952 = vunpack.c.l.b16 %v693
          %v953 = vunpack.c.h.b16 %v693
          %v954 = vunpack.c.l.b16 %v694
          %v955 = vunpack.c.h.b16 %v694
          %v956 = vunpack.c.l.b16 %v695
          %v957 = vunpack.c.h.b16 %v695
          %v958 = vunpack.c.l.b16 %v696
          %v959 = vunpack.c.h.b16 %v696
          %v960 = vunpack.c.l.b16 %v697
          %v961 = vunpack.c.h.b16 %v697
          %v962 = vunpack.c.l.b16 %v698
          %v963 = vunpack.c.h.b16 %v698
          %v964 = vunpack.c.l.b16 %v699
          %v965 = vunpack.c.h.b16 %v699
          %v966 = vunpack.c.l.b16 %v700
          %v967 = vunpack.c.h.b16 %v700
          %v968 = vunpack.c.l.b16 %v701
          %v969 = vunpack.c.h.b16 %v701
          %v970 = vunpack.c.l.b16 %v702
          %v971 = vunpack.c.h.b16 %v702
          %v972 = vunpack.c.l.b16 %v703
          %v973 = vunpack.c.h.b16 %v703
          %v974 = vunpack.c.l.b16 %v704
          %v975 = vunpack.c.h.b16 %v704
          %v976 = vunpack.c.l.b16 %v705
          %v977 = vunpack.c.h.b16 %v705
          %v978 = vunpack.c.l.b16 %v706
          %v979 = vunpack.c.h.b16 %v706
          %v980 = vunpack.c.l.b16 %v707
          %v981 = vunpack.c.h.b16 %v707
          %v982 = vunpack.c.l.b16 %v708
          %v983 = vunpack.c.h.b16 %v708
          %v984 = vunpack.c.l.b16 %v709
          %v985 = vunpack.c.h.b16 %v709
          %v986 = vunpack.c.l.b16 %v710
          %v987 = vunpack.c.h.b16 %v710
          %v988 = vunpack.c.l.b16 %v711
          %v989 = vunpack.c.h.b16 %v711
          %v990 = vunpack.c.l.b16 %v712
          %v991 = vunpack.c.h.b16 %v712
          %v992 = vunpack.c.l.b16 %v713
          %v993 = vunpack.c.h.b16 %v713
          %v994 = vunpack.c.l.b16 %v714
          %v995 = vunpack.c.h.b16 %v714
          %v996 = vunpack.c.l.b16 %v715
          %v997 = vunpack.c.h.b16 %v715
          %v998 = vunpack.c.l.b16 %v716
          %v999 = vunpack.c.h.b16 %v716
          %v1000 = vunpack.c.l.b16 %v717
          %v1001 = vunpack.c.h.b16 %v717
          %v1002 = vunpack.c.l.b16 %v718
          %v1003 = vunpack.c.h.b16 %v718
          %v1004 = vpack.c.b16 %v880, %v876
          %v1005 = vpack.c.b16 %v881, %v877
          %v1006 = vpack.c.b16 %v882, %v878
          %v1007 = vpack.c.b16 %v883, %v879
          %v1008 = vpack.c.b16 %v888, %v884
          %v1009 = vpack.c.b16 %v889, %v885
          %v1010 = vpack.c.b16 %v890, %v886
          %v1011 = vpack.c.b16 %v891, %v887
          %v1012 = vpack.c.b16 %v896, %v892
          %v1013 = vpack.c.b16 %v897, %v893
          %v1014 = vpack.c.b16 %v898, %v894
          %v1015 = vpack.c.b16 %v899, %v895
          %v1016 = vpack.c.b16 %v904, %v900
          %v1017 = vpack.c.b16 %v905, %v901
          %v1018 = vpack.c.b16 %v906, %v902
          %v1019 = vpack.c.b16 %v907, %v903
          %v1020 = vpack.c.b16 %v912, %v908
          %v1021 = vpack.c.b16 %v913, %v909
          %v1022 = vpack.c.b16 %v914, %v910
          %v1023 = vpack.c.b16 %v915, %v911
          %v1024 = vpack.c.b16 %v920, %v916
          %v1025 = vpack.c.b16 %v921, %v917
          %v1026 = vpack.c.b16 %v922, %v918
          %v1027 = vpack.c.b16 %v923, %v919
          %v1028 = vpack.c.b16 %v928, %v924
          %v1029 = vpack.c.b16 %v929, %v925
          %v1030 = vpack.c.b16 %v930, %v926
          %v1031 = vpack.c.b16 %v931, %v927
          %v1032 = vpack.c.b16 %v936, %v932
          %v1033 = vpack.c.b16 %v937, %v933
          %v1034 = vpack.c.b16 %v938, %v934
          %v1035 = vpack.c.b16 %v939, %v935
          %v1036 = vpack.c.b16 %v944, %v940
          %v1037 = vpack.c.b16 %v945, %v941
          %v1038 = vpack.c.b16 %v946, %v942
          %v1039 = vpack.c.b16 %v947, %v943
          %v1040 = vpack.c.b16 %v952, %v948
          %v1041 = vpack.c.b16 %v953, %v949
          %v1042 = vpack.c.b16 %v954, %v950
          %v1043 = vpack.c.b16 %v955, %v951
          %v1044 = vpack.c.b16 %v960, %v956
          %v1045 = vpack.c.b16 %v961, %v957
          %v1046 = vpack.c.b16 %v962, %v958
          %v1047 = vpack.c.b16 %v963, %v959
          %v1048 = vpack.c.b16 %v968, %v964
          %v1049 = vpack.c.b16 %v969, %v965
          %v1050 = vpack.c.b16 %v970, %v966
          %v1051 = vpack.c.b16 %v971, %v967
          %v1052 = vpack.c.b16 %v976, %v972
          %v1053 = vpack.c.b16 %v977, %v973
          %v1054 = vpack.c.b16 %v978, %v974
          %v1055 = vpack.c.b16 %v979, %v975
          %v1056 = vpack.c.b16 %v984, %v980
          %v1057 = vpack.c.b16 %v985, %v981
          %v1058 = vpack.c.b16 %v986, %v982
          %v1059 = vpack.c.b16 %v987, %v983
          %v1060 = vpack.c.b16 %v992, %v988
          %v1061 = vpack.c.b16 %v993, %v989
          %v1062 = vpack.c.b16 %v994, %v990
          %v1063 = vpack.c.b16 %v995, %v991
          %v1064 = vpack.c.b16 %v1000, %v996
          %v1065 = vpack.c.b16 %v1001, %v997
          %v1066 = vpack.c.b16 %v1002, %v998
          %v1067 = vpack.c.b16 %v1003, %v999
          %1132 = vmatprep.subr.bf16.mxu0 %v1005
          %1133 = vmatpush1.bf16.msra.mxu0 %v1004
          %1134 = vmatprep.subr.bf16.mxu0 %v1009
          %1135 = vmatpush1.bf16.msra.mxu0 %v1008
          %1136 = vmatprep.subr.bf16.mxu0 %v1013
          %1137 = vmatpush1.bf16.msra.mxu0 %v1012
          %1138 = vmatprep.subr.bf16.mxu0 %v1017
          %1139 = vmatpush1.bf16.msra.mxu0 %v1016
          %1140 = vmatprep.subr.bf16.mxu0 %v1021
          %1141 = vmatpush1.bf16.msra.mxu0 %v1020
          %1142 = vmatprep.subr.bf16.mxu0 %v1025
          %1143 = vmatpush1.bf16.msra.mxu0 %v1024
          %1144 = vmatprep.subr.bf16.mxu0 %v1029
          %1145 = vmatpush1.bf16.msra.mxu0 %v1028
          %1146 = vmatprep.subr.bf16.mxu0 %v1033
          %1147 = vmatpush1.bf16.msra.mxu0 %v1032
          %1148 = vmatprep.subr.bf16.mxu0 %v1037
          %1149 = vmatpush1.bf16.msra.mxu0 %v1036
          %1150 = vmatprep.subr.bf16.mxu0 %v1041
          %1151 = vmatpush1.bf16.msra.mxu0 %v1040
          %1152 = vmatprep.subr.bf16.mxu0 %v1045
          %1153 = vmatpush1.bf16.msra.mxu0 %v1044
          %1154 = vmatprep.subr.bf16.mxu0 %v1049
          %1155 = vmatpush1.bf16.msra.mxu0 %v1048
          %1156 = vmatprep.subr.bf16.mxu0 %v1053
          %1157 = vmatpush1.bf16.msra.mxu0 %v1052
          %1158 = vmatprep.subr.bf16.mxu0 %v1057
          %1159 = vmatpush1.bf16.msra.mxu0 %v1056
          %1160 = vmatprep.subr.bf16.mxu0 %v1061
          %1161 = vmatpush1.bf16.msra.mxu0 %v1060
          %1162 = vmatprep.subr.bf16.mxu0 %v1065
          %1163 = vmatpush1.bf16.msra.mxu0 %v1064
          %1164 = vmatprep.mubr.bf16.mxu0 %v790
          %1165 = vmatmul.mubr.bf16.gmra.mrb[0].mxu0 %v789
          %v1166 = vpop.f32.mrb[0].mxu0
          %v1167 = vadd.f32 %v795, %v1166
          %v1168 = vpop.f32.mrb[0].mxu0
          %v1169 = vadd.f32 %v799, %v1168
          %v1170 = vpop.f32.mrb[0].mxu0
          %v1171 = vpop.f32.mrb[0].mxu0
          %1172 = vdwg.mxu0
          %1173 = vmatprep.subr.bf16.mxu0 %v1007
          %1174 = vmatpush1.bf16.msra.mxu0 %v1006
          %1175 = vmatprep.subr.bf16.mxu0 %v1011
          %1176 = vmatpush1.bf16.msra.mxu0 %v1010
          %1177 = vmatprep.subr.bf16.mxu0 %v1015
          %1178 = vmatpush1.bf16.msra.mxu0 %v1014
          %1179 = vmatprep.subr.bf16.mxu0 %v1019
          %1180 = vmatpush1.bf16.msra.mxu0 %v1018
          %1181 = vmatprep.subr.bf16.mxu0 %v1023
          %1182 = vmatpush1.bf16.msra.mxu0 %v1022
          %1183 = vmatprep.subr.bf16.mxu0 %v1027
          %1184 = vmatpush1.bf16.msra.mxu0 %v1026
          %1185 = vmatprep.subr.bf16.mxu0 %v1031
          %1186 = vmatpush1.bf16.msra.mxu0 %v1030
          %1187 = vmatprep.subr.bf16.mxu0 %v1035
          %1188 = vmatpush1.bf16.msra.mxu0 %v1034
          %1189 = vmatprep.subr.bf16.mxu0 %v1039
          %1190 = vmatpush1.bf16.msra.mxu0 %v1038
          %1191 = vmatprep.subr.bf16.mxu0 %v1043
          %1192 = vmatpush1.bf16.msra.mxu0 %v1042
          %1193 = vmatprep.subr.bf16.mxu0 %v1047
          %1194 = vmatpush1.bf16.msra.mxu0 %v1046
          %1195 = vmatprep.subr.bf16.mxu0 %v1051
          %1196 = vmatpush1.bf16.msra.mxu0 %v1050
          %1197 = vmatprep.subr.bf16.mxu0 %v1055
          %1198 = vmatpush1.bf16.msra.mxu0 %v1054
          %1199 = vmatprep.subr.bf16.mxu0 %v1059
          %1200 = vmatpush1.bf16.msra.mxu0 %v1058
          %1201 = vmatprep.subr.bf16.mxu0 %v1063
          %1202 = vmatpush1.bf16.msra.mxu0 %v1062
          %1203 = vmatprep.subr.bf16.mxu0 %v1067
          %1204 = vmatpush1.bf16.msra.mxu0 %v1066
          %1205 = vmatprep.mubr.bf16.mxu0 %v790
          %1206 = vmatmul.mubr.bf16.gmra.mrb[0].mxu0 %v789
          %v1207 = vpop.f32.mrb[0].mxu0
          %v1208 = vadd.f32 %v803, %v1207
          %v1209 = vpop.f32.mrb[0].mxu0
          %v1210 = vadd.f32 %v807, %v1209
          %v1211 = vpop.f32.mrb[0].mxu0
          %v1212 = vpop.f32.mrb[0].mxu0
          %1213 = vdwg.mxu0
          %v1214 = vmax.f32 %v1167, 0.0
          %v1215 = vmax.f32 %v1169, 0.0
          %v1216 = vpack.c.bf16 %v1214, %v1214
          %v1217 = vpack.c.bf16 %v1215, %v1215
          %v1219 = vlaneseq
          %v1220 = vshrl.u32 %v1219, 7
          %v1221 = vsub.s32 0, %v1220
          %v1222 = vrot.slane %v752, %v1221
          %v1223 = vlaneseq
          %v1224 = vshrl.u32 %v1223, 7
          %v1225 = vsub.s32 1, %v1224
          %v1226 = vrot.slane %v752, %v1225
          %v1261 = vunpack.c.l.b16 %v720
          %v1262 = vunpack.c.h.b16 %v720
          %v1263 = vunpack.c.l.b16 %v721
          %v1264 = vunpack.c.h.b16 %v721
          %v1265 = vunpack.c.l.b16 %v722
          %v1266 = vunpack.c.h.b16 %v722
          %v1267 = vunpack.c.l.b16 %v723
          %v1268 = vunpack.c.h.b16 %v723
          %v1269 = vunpack.c.l.b16 %v724
          %v1270 = vunpack.c.h.b16 %v724
          %v1271 = vunpack.c.l.b16 %v725
          %v1272 = vunpack.c.h.b16 %v725
          %v1273 = vunpack.c.l.b16 %v726
          %v1274 = vunpack.c.h.b16 %v726
          %v1275 = vunpack.c.l.b16 %v727
          %v1276 = vunpack.c.h.b16 %v727
          %v1277 = vunpack.c.l.b16 %v728
          %v1278 = vunpack.c.h.b16 %v728
          %v1279 = vunpack.c.l.b16 %v729
          %v1280 = vunpack.c.h.b16 %v729
          %v1281 = vunpack.c.l.b16 %v730
          %v1282 = vunpack.c.h.b16 %v730
          %v1283 = vunpack.c.l.b16 %v731
          %v1284 = vunpack.c.h.b16 %v731
          %v1285 = vunpack.c.l.b16 %v732
          %v1286 = vunpack.c.h.b16 %v732
          %v1287 = vunpack.c.l.b16 %v733
          %v1288 = vunpack.c.h.b16 %v733
          %v1289 = vunpack.c.l.b16 %v734
          %v1290 = vunpack.c.h.b16 %v734
          %v1291 = vunpack.c.l.b16 %v735
          %v1292 = vunpack.c.h.b16 %v735
          %v1293 = vunpack.c.l.b16 %v736
          %v1294 = vunpack.c.h.b16 %v736
          %v1295 = vunpack.c.l.b16 %v737
          %v1296 = vunpack.c.h.b16 %v737
          %v1297 = vunpack.c.l.b16 %v738
          %v1298 = vunpack.c.h.b16 %v738
          %v1299 = vunpack.c.l.b16 %v739
          %v1300 = vunpack.c.h.b16 %v739
          %v1301 = vunpack.c.l.b16 %v740
          %v1302 = vunpack.c.h.b16 %v740
          %v1303 = vunpack.c.l.b16 %v741
          %v1304 = vunpack.c.h.b16 %v741
          %v1305 = vunpack.c.l.b16 %v742
          %v1306 = vunpack.c.h.b16 %v742
          %v1307 = vunpack.c.l.b16 %v743
          %v1308 = vunpack.c.h.b16 %v743
          %v1309 = vunpack.c.l.b16 %v744
          %v1310 = vunpack.c.h.b16 %v744
          %v1311 = vunpack.c.l.b16 %v745
          %v1312 = vunpack.c.h.b16 %v745
          %v1313 = vunpack.c.l.b16 %v746
          %v1314 = vunpack.c.h.b16 %v746
          %v1315 = vunpack.c.l.b16 %v747
          %v1316 = vunpack.c.h.b16 %v747
          %v1317 = vunpack.c.l.b16 %v748
          %v1318 = vunpack.c.h.b16 %v748
          %v1319 = vunpack.c.l.b16 %v749
          %v1320 = vunpack.c.h.b16 %v749
          %v1321 = vunpack.c.l.b16 %v750
          %v1322 = vunpack.c.h.b16 %v750
          %v1323 = vunpack.c.l.b16 %v751
          %v1324 = vunpack.c.h.b16 %v751
          %v1325 = vpack.c.b16 %v1263, %v1261
          %v1326 = vpack.c.b16 %v1264, %v1262
          %v1327 = vpack.c.b16 %v1267, %v1265
          %v1328 = vpack.c.b16 %v1268, %v1266
          %v1329 = vpack.c.b16 %v1271, %v1269
          %v1330 = vpack.c.b16 %v1272, %v1270
          %v1331 = vpack.c.b16 %v1275, %v1273
          %v1332 = vpack.c.b16 %v1276, %v1274
          %v1333 = vpack.c.b16 %v1279, %v1277
          %v1334 = vpack.c.b16 %v1280, %v1278
          %v1335 = vpack.c.b16 %v1283, %v1281
          %v1336 = vpack.c.b16 %v1284, %v1282
          %v1337 = vpack.c.b16 %v1287, %v1285
          %v1338 = vpack.c.b16 %v1288, %v1286
          %v1339 = vpack.c.b16 %v1291, %v1289
          %v1340 = vpack.c.b16 %v1292, %v1290
          %v1341 = vpack.c.b16 %v1295, %v1293
          %v1342 = vpack.c.b16 %v1296, %v1294
          %v1343 = vpack.c.b16 %v1299, %v1297
          %v1344 = vpack.c.b16 %v1300, %v1298
          %v1345 = vpack.c.b16 %v1303, %v1301
          %v1346 = vpack.c.b16 %v1304, %v1302
          %v1347 = vpack.c.b16 %v1307, %v1305
          %v1348 = vpack.c.b16 %v1308, %v1306
          %v1349 = vpack.c.b16 %v1311, %v1309
          %v1350 = vpack.c.b16 %v1312, %v1310
          %v1351 = vpack.c.b16 %v1315, %v1313
          %v1352 = vpack.c.b16 %v1316, %v1314
          %v1353 = vpack.c.b16 %v1319, %v1317
          %v1354 = vpack.c.b16 %v1320, %v1318
          %v1355 = vpack.c.b16 %v1323, %v1321
          %v1356 = vpack.c.b16 %v1324, %v1322
          %1389 = vmatprep.subr.bf16.mxu0 %v1326
          %1390 = vmatpush1.bf16.msra.mxu0 %v1325
          %1391 = vmatprep.subr.bf16.mxu0 %v1328
          %1392 = vmatpush1.bf16.msra.mxu0 %v1327
          %1393 = vmatprep.subr.bf16.mxu0 %v1330
          %1394 = vmatpush1.bf16.msra.mxu0 %v1329
          %1395 = vmatprep.subr.bf16.mxu0 %v1332
          %1396 = vmatpush1.bf16.msra.mxu0 %v1331
          %1397 = vmatprep.subr.bf16.mxu0 %v1334
          %1398 = vmatpush1.bf16.msra.mxu0 %v1333
          %1399 = vmatprep.subr.bf16.mxu0 %v1336
          %1400 = vmatpush1.bf16.msra.mxu0 %v1335
          %1401 = vmatprep.subr.bf16.mxu0 %v1338
          %1402 = vmatpush1.bf16.msra.mxu0 %v1337
          %1403 = vmatprep.subr.bf16.mxu0 %v1340
          %1404 = vmatpush1.bf16.msra.mxu0 %v1339
          %1405 = vmatprep.subr.bf16.mxu0 %v1342
          %1406 = vmatpush1.bf16.msra.mxu0 %v1341
          %1407 = vmatprep.subr.bf16.mxu0 %v1344
          %1408 = vmatpush1.bf16.msra.mxu0 %v1343
          %1409 = vmatprep.subr.bf16.mxu0 %v1346
          %1410 = vmatpush1.bf16.msra.mxu0 %v1345
          %1411 = vmatprep.subr.bf16.mxu0 %v1348
          %1412 = vmatpush1.bf16.msra.mxu0 %v1347
          %1413 = vmatprep.subr.bf16.mxu0 %v1350
          %1414 = vmatpush1.bf16.msra.mxu0 %v1349
          %1415 = vmatprep.subr.bf16.mxu0 %v1352
          %1416 = vmatpush1.bf16.msra.mxu0 %v1351
          %1417 = vmatprep.subr.bf16.mxu0 %v1354
          %1418 = vmatpush1.bf16.msra.mxu0 %v1353
          %1419 = vmatprep.subr.bf16.mxu0 %v1356
          %1420 = vmatpush1.bf16.msra.mxu0 %v1355
          %1421 = vmatprep.mubr.bf16.mxu0 %v1217
          %1422 = vmatmul.mubr.bf16.gmra.mrb[0].mxu0 %v1216
          %v1423 = vpop.f32.mrb[0].mxu0
          %v1424 = vadd.f32 %v1222, %v1423
          %v1425 = vpop.f32.mrb[0].mxu0
          %v1426 = vadd.f32 %v1226, %v1425
          %v1427 = vpop.f32.mrb[0].mxu0
          %v1428 = vpop.f32.mrb[0].mxu0
          %1429 = vdwg.mxu0
          %v1430 = vmax.f32 %v1424, 0.0
          %v1431 = vmax.f32 %v1426, 0.0
          %v1432 = vpack.c.bf16 %v1430, %v1430
          %v1433 = vpack.c.bf16 %v1431, %v1431
          %v1435 = vlaneseq
          %v1436 = vshrl.u32 %v1435, 7
          %v1437 = vsub.s32 0, %v1436
          %v1438 = vrot.slane %v785, %v1437
          %v1439 = vlaneseq
          %v1440 = vshrl.u32 %v1439, 7
          %v1441 = vsub.s32 1, %v1440
          %v1442 = vrot.slane %v785, %v1441
          %v1477 = vunpack.c.l.b16 %v753
          %v1478 = vunpack.c.h.b16 %v753
          %v1479 = vunpack.c.l.b16 %v754
          %v1480 = vunpack.c.h.b16 %v754
          %v1481 = vunpack.c.l.b16 %v755
          %v1482 = vunpack.c.h.b16 %v755
          %v1483 = vunpack.c.l.b16 %v756
          %v1484 = vunpack.c.h.b16 %v756
          %v1485 = vunpack.c.l.b16 %v757
          %v1486 = vunpack.c.h.b16 %v757
          %v1487 = vunpack.c.l.b16 %v758
          %v1488 = vunpack.c.h.b16 %v758
          %v1489 = vunpack.c.l.b16 %v759
          %v1490 = vunpack.c.h.b16 %v759
          %v1491 = vunpack.c.l.b16 %v760
          %v1492 = vunpack.c.h.b16 %v760
          %v1493 = vunpack.c.l.b16 %v761
          %v1494 = vunpack.c.h.b16 %v761
          %v1495 = vunpack.c.l.b16 %v762
          %v1496 = vunpack.c.h.b16 %v762
          %v1497 = vunpack.c.l.b16 %v763
          %v1498 = vunpack.c.h.b16 %v763
          %v1499 = vunpack.c.l.b16 %v764
          %v1500 = vunpack.c.h.b16 %v764
          %v1501 = vunpack.c.l.b16 %v765
          %v1502 = vunpack.c.h.b16 %v765
          %v1503 = vunpack.c.l.b16 %v766
          %v1504 = vunpack.c.h.b16 %v766
          %v1505 = vunpack.c.l.b16 %v767
          %v1506 = vunpack.c.h.b16 %v767
          %v1507 = vunpack.c.l.b16 %v768
          %v1508 = vunpack.c.h.b16 %v768
          %v1509 = vunpack.c.l.b16 %v769
          %v1510 = vunpack.c.h.b16 %v769
          %v1511 = vunpack.c.l.b16 %v770
          %v1512 = vunpack.c.h.b16 %v770
          %v1513 = vunpack.c.l.b16 %v771
          %v1514 = vunpack.c.h.b16 %v771
          %v1515 = vunpack.c.l.b16 %v772
          %v1516 = vunpack.c.h.b16 %v772
          %v1517 = vunpack.c.l.b16 %v773
          %v1518 = vunpack.c.h.b16 %v773
          %v1519 = vunpack.c.l.b16 %v774
          %v1520 = vunpack.c.h.b16 %v774
          %v1521 = vunpack.c.l.b16 %v775
          %v1522 = vunpack.c.h.b16 %v775
          %v1523 = vunpack.c.l.b16 %v776
          %v1524 = vunpack.c.h.b16 %v776
          %v1525 = vunpack.c.l.b16 %v777
          %v1526 = vunpack.c.h.b16 %v777
          %v1527 = vunpack.c.l.b16 %v778
          %v1528 = vunpack.c.h.b16 %v778
          %v1529 = vunpack.c.l.b16 %v779
          %v1530 = vunpack.c.h.b16 %v779
          %v1531 = vunpack.c.l.b16 %v780
          %v1532 = vunpack.c.h.b16 %v780
          %v1533 = vunpack.c.l.b16 %v781
          %v1534 = vunpack.c.h.b16 %v781
          %v1535 = vunpack.c.l.b16 %v782
          %v1536 = vunpack.c.h.b16 %v782
          %v1537 = vunpack.c.l.b16 %v783
          %v1538 = vunpack.c.h.b16 %v783
          %v1539 = vunpack.c.l.b16 %v784
          %v1540 = vunpack.c.h.b16 %v784
          %v1541 = vpack.c.b16 %v1479, %v1477
          %v1542 = vpack.c.b16 %v1480, %v1478
          %v1543 = vpack.c.b16 %v1483, %v1481
          %v1544 = vpack.c.b16 %v1484, %v1482
          %v1545 = vpack.c.b16 %v1487, %v1485
          %v1546 = vpack.c.b16 %v1488, %v1486
          %v1547 = vpack.c.b16 %v1491, %v1489
          %v1548 = vpack.c.b16 %v1492, %v1490
          %v1549 = vpack.c.b16 %v1495, %v1493
          %v1550 = vpack.c.b16 %v1496, %v1494
          %v1551 = vpack.c.b16 %v1499, %v1497
          %v1552 = vpack.c.b16 %v1500, %v1498
          %v1553 = vpack.c.b16 %v1503, %v1501
          %v1554 = vpack.c.b16 %v1504, %v1502
          %v1555 = vpack.c.b16 %v1507, %v1505
          %v1556 = vpack.c.b16 %v1508, %v1506
          %v1557 = vpack.c.b16 %v1511, %v1509
          %v1558 = vpack.c.b16 %v1512, %v1510
          %v1559 = vpack.c.b16 %v1515, %v1513
          %v1560 = vpack.c.b16 %v1516, %v1514
          %v1561 = vpack.c.b16 %v1519, %v1517
          %v1562 = vpack.c.b16 %v1520, %v1518
          %v1563 = vpack.c.b16 %v1523, %v1521
          %v1564 = vpack.c.b16 %v1524, %v1522
          %v1565 = vpack.c.b16 %v1527, %v1525
          %v1566 = vpack.c.b16 %v1528, %v1526
          %v1567 = vpack.c.b16 %v1531, %v1529
          %v1568 = vpack.c.b16 %v1532, %v1530
          %v1569 = vpack.c.b16 %v1535, %v1533
          %v1570 = vpack.c.b16 %v1536, %v1534
          %v1571 = vpack.c.b16 %v1539, %v1537
          %v1572 = vpack.c.b16 %v1540, %v1538
          %1605 = vmatprep.subr.bf16.mxu0 %v1542
          %1606 = vmatpush1.bf16.msra.mxu0 %v1541
          %1607 = vmatprep.subr.bf16.mxu0 %v1544
          %1608 = vmatpush1.bf16.msra.mxu0 %v1543
          %1609 = vmatprep.subr.bf16.mxu0 %v1546
          %1610 = vmatpush1.bf16.msra.mxu0 %v1545
          %1611 = vmatprep.subr.bf16.mxu0 %v1548
          %1612 = vmatpush1.bf16.msra.mxu0 %v1547
          %1613 = vmatprep.subr.bf16.mxu0 %v1550
          %1614 = vmatpush1.bf16.msra.mxu0 %v1549
          %1615 = vmatprep.subr.bf16.mxu0 %v1552
          %1616 = vmatpush1.bf16.msra.mxu0 %v1551
          %1617 = vmatprep.subr.bf16.mxu0 %v1554
          %1618 = vmatpush1.bf16.msra.mxu0 %v1553
          %1619 = vmatprep.subr.bf16.mxu0 %v1556
          %1620 = vmatpush1.bf16.msra.mxu0 %v1555
          %1621 = vmatprep.subr.bf16.mxu0 %v1558
          %1622 = vmatpush1.bf16.msra.mxu0 %v1557
          %1623 = vmatprep.subr.bf16.mxu0 %v1560
          %1624 = vmatpush1.bf16.msra.mxu0 %v1559
          %1625 = vmatprep.subr.bf16.mxu0 %v1562
          %1626 = vmatpush1.bf16.msra.mxu0 %v1561
          %1627 = vmatprep.subr.bf16.mxu0 %v1564
          %1628 = vmatpush1.bf16.msra.mxu0 %v1563
          %1629 = vmatprep.subr.bf16.mxu0 %v1566
          %1630 = vmatpush1.bf16.msra.mxu0 %v1565
          %1631 = vmatprep.subr.bf16.mxu0 %v1568
          %1632 = vmatpush1.bf16.msra.mxu0 %v1567
          %1633 = vmatprep.subr.bf16.mxu0 %v1570
          %1634 = vmatpush1.bf16.msra.mxu0 %v1569
          %1635 = vmatprep.subr.bf16.mxu0 %v1572
          %1636 = vmatpush1.bf16.msra.mxu0 %v1571
          %1637 = vmatprep.mubr.bf16.mxu0 %v1433
          %1638 = vmatmul.mubr.bf16.gmra.mrb[0].mxu0 %v1432
          %v1639 = vpop.f32.mrb[0].mxu0
          %v1640 = vadd.f32 %v1438, %v1639
          %v1641 = vpop.f32.mrb[0].mxu0
          %v1642 = vadd.f32 %v1442, %v1641
          %v1643 = vpop.f32.mrb[0].mxu0
          %v1644 = vpop.f32.mrb[0].mxu0
          %1645 = vdwg.mxu0
          %v1646 = vmax.f32 %v1640, 0.0
          %v1647 = vmax.f32 %v1642, 0.0
          %v1648 = vadd.f32 %v1646, %v1208
          %v1649 = vadd.f32 %v1647, %v1210
          %v1650 = vpack.c.bf16 %v1648, %v1648
          %v1651 = vpack.c.bf16 %v1649, %v1649
          %v1654 = vcombine.low %v1650, %v1651
          %v1656 = vunpack.c.l.s4 1983009808
          %v1657 = vunpack.c.0.s8 %v1656
          %v1658 = vlaneseq
          %v1659 = vshrl.u32 %v1658, 7
          %v1660 = vsub.s32 %v1657, %v1659
          %v1661 = vrot.slane %v1654, %v1660
          %1663 = vst [vmem:[#allocation2] sm:$0xf] %v1661
          %vm1664 = vcmask 31744
          %1665 = vst.msk [vmem:[#allocation3] sm:$0xff] %vm1664, 0.0
          %1666 = vst.msk [vmem:[#allocation3 + $0x8] sm:$0xff] %vm1664, 0.0
          %1667 = vst.msk [vmem:[#allocation3 + $0x10] sm:$0xff] %vm1664, 0.0
          %1668 = vst.msk [vmem:[#allocation3 + $0x18] sm:$0xff] %vm1664, 0.0
          %1669 = vst.msk [vmem:[#allocation3 + $0x20] sm:$0xff] %vm1664, 0.0
          %1670 = vst.msk [vmem:[#allocation3 + $0x28] sm:$0xff] %vm1664, 0.0
          %1671 = vst.msk [vmem:[#allocation3 + $0x30] sm:$0xff] %vm1664, 0.0
          %1672 = vst.msk [vmem:[#allocation3 + $0x38] sm:$0xff] %vm1664, 0.0
          %1673 = vst.msk [vmem:[#allocation3 + $0x40] sm:$0xff] %vm1664, 0.0
          %1674 = vst.msk [vmem:[#allocation3 + $0x48] sm:$0xff] %vm1664, 0.0
          %1675 = vst.msk [vmem:[#allocation3 + $0x50] sm:$0xff] %vm1664, 0.0
          %1676 = vst.msk [vmem:[#allocation3 + $0x58] sm:$0xff] %vm1664, 0.0
          %1677 = vst.msk [vmem:[#allocation3 + $0x60] sm:$0xff] %vm1664, 0.0
          %1678 = vst.msk [vmem:[#allocation3 + $0x68] sm:$0xff] %vm1664, 0.0
          %1679 = vst.msk [vmem:[#allocation3 + $0x70] sm:$0xff] %vm1664, 0.0
          %1680 = vst.msk [vmem:[#allocation3 + $0x78] sm:$0xff] %vm1664, 0.0
          %1681 = vst.msk [vmem:[#allocation4] sm:$0xff] %vm1664, 0.0
          %1682 = vst.msk [vmem:[#allocation4 + $0x8] sm:$0xff] %vm1664, 0.0
          %1683 = vst.msk [vmem:[#allocation4 + $0x10] sm:$0xff] %vm1664, 0.0
          %1684 = vst.msk [vmem:[#allocation4 + $0x18] sm:$0xff] %vm1664, 0.0
          %1685 = vst.msk [vmem:[#allocation4 + $0x20] sm:$0xff] %vm1664, 0.0
          %1686 = vst.msk [vmem:[#allocation4 + $0x28] sm:$0xff] %vm1664, 0.0
          %1687 = vst.msk [vmem:[#allocation4 + $0x30] sm:$0xff] %vm1664, 0.0
          %1688 = vst.msk [vmem:[#allocation4 + $0x38] sm:$0xff] %vm1664, 0.0
          %1689 = vst.msk [vmem:[#allocation4 + $0x40] sm:$0xff] %vm1664, 0.0
          %1690 = vst.msk [vmem:[#allocation4 + $0x48] sm:$0xff] %vm1664, 0.0
          %1691 = vst.msk [vmem:[#allocation4 + $0x50] sm:$0xff] %vm1664, 0.0
          %1692 = vst.msk [vmem:[#allocation4 + $0x58] sm:$0xff] %vm1664, 0.0
          %1693 = vst.msk [vmem:[#allocation4 + $0x60] sm:$0xff] %vm1664, 0.0
          %1694 = vst.msk [vmem:[#allocation4 + $0x68] sm:$0xff] %vm1664, 0.0
          %1695 = vst.msk [vmem:[#allocation4 + $0x70] sm:$0xff] %vm1664, 0.0
          %1696 = vst.msk [vmem:[#allocation4 + $0x78] sm:$0xff] %vm1664, 0.0
        $region116: #{infograph_forward.3} parent=79 // pred_fallthru
          _
        %v1697 = vld [vmem:[%s643] sm:$0xff]
        %v1698 = vld [vmem:[%s643 + $0x8] sm:$0xff]
        %v1699 = vld [vmem:[%s643 + $0x10] sm:$0xff]
        %v1700 = vld [vmem:[%s643 + $0x18] sm:$0xff]
        %v1701 = vld [vmem:[%s643 + $0x20] sm:$0xff]
        %v1702 = vld [vmem:[%s643 + $0x28] sm:$0xff]
        %v1703 = vld [vmem:[%s643 + $0x30] sm:$0xff]
        %v1704 = vld [vmem:[%s643 + $0x38] sm:$0xff]
        %v1705 = vld [vmem:[%s643 + $0x40] sm:$0xff]
        %v1706 = vld [vmem:[%s643 + $0x48] sm:$0xff]
        %v1707 = vld [vmem:[%s643 + $0x50] sm:$0xff]
        %v1708 = vld [vmem:[%s643 + $0x58] sm:$0xff]
        %v1709 = vld [vmem:[%s643 + $0x60] sm:$0xff]
        %v1710 = vld [vmem:[%s643 + $0x68] sm:$0xff]
        %v1711 = vld [vmem:[%s643 + $0x70] sm:$0xff]
        %v1712 = vld [vmem:[%s643 + $0x78] sm:$0xff]
        %v1713 = vld [vmem:[%s643 + $0x80] sm:$0xff]
        %v1714 = vld [vmem:[%s643 + $0x88] sm:$0xff]
        %v1715 = vld [vmem:[%s643 + $0x90] sm:$0xff]
        %v1716 = vld [vmem:[%s643 + $0x98] sm:$0xff]
        %v1717 = vld [vmem:[%s643 + $0xa0] sm:$0xff]
        %v1718 = vld [vmem:[%s643 + $0xa8] sm:$0xff]
        %v1719 = vld [vmem:[%s643 + $0xb0] sm:$0xff]
        %v1720 = vld [vmem:[%s643 + $0xb8] sm:$0xff]
        %v1721 = vld [vmem:[%s643 + $0xc0] sm:$0xff]
        %v1722 = vld [vmem:[%s643 + $0xc8] sm:$0xff]
        %v1723 = vld [vmem:[%s643 + $0xd0] sm:$0xff]
        %v1724 = vld [vmem:[%s643 + $0xd8] sm:$0xff]
        %v1725 = vld [vmem:[%s643 + $0xe0] sm:$0xff]
        %v1726 = vld [vmem:[%s643 + $0xe8] sm:$0xff]
        %v1727 = vld [vmem:[%s643 + $0xf0] sm:$0xff]
        %v1728 = vld [vmem:[%s643 + $0xf8] sm:$0xff]
        %v1729 = vld [vmem:[%s9] sm:$0xff]
        %v1730 = vld [vmem:[%s9 + $0x8] sm:$0xff]
        %v1731 = vld [vmem:[%s9 + $0x10] sm:$0xff]
        %v1732 = vld [vmem:[%s9 + $0x18] sm:$0xff]
        %v1733 = vld [vmem:[%s9 + $0x20] sm:$0xff]
        %v1734 = vld [vmem:[%s9 + $0x28] sm:$0xff]
        %v1735 = vld [vmem:[%s9 + $0x30] sm:$0xff]
        %v1736 = vld [vmem:[%s9 + $0x38] sm:$0xff]
        %v1737 = vld [vmem:[%s9 + $0x40] sm:$0xff]
        %v1738 = vld [vmem:[%s9 + $0x48] sm:$0xff]
        %v1739 = vld [vmem:[%s9 + $0x50] sm:$0xff]
        %v1740 = vld [vmem:[%s9 + $0x58] sm:$0xff]
        %v1741 = vld [vmem:[%s9 + $0x60] sm:$0xff]
        %v1742 = vld [vmem:[%s9 + $0x68] sm:$0xff]
        %v1743 = vld [vmem:[%s9 + $0x70] sm:$0xff]
        %v1744 = vld [vmem:[%s9 + $0x78] sm:$0xff]
        %v1745 = vld [vmem:[%s9 + $0x80] sm:$0xff]
        %v1746 = vld [vmem:[%s9 + $0x88] sm:$0xff]
        %v1747 = vld [vmem:[%s9 + $0x90] sm:$0xff]
        %v1748 = vld [vmem:[%s9 + $0x98] sm:$0xff]
        %v1749 = vld [vmem:[%s9 + $0xa0] sm:$0xff]
        %v1750 = vld [vmem:[%s9 + $0xa8] sm:$0xff]
        %v1751 = vld [vmem:[%s9 + $0xb0] sm:$0xff]
        %v1752 = vld [vmem:[%s9 + $0xb8] sm:$0xff]
        %v1753 = vld [vmem:[%s9 + $0xc0] sm:$0xff]
        %v1754 = vld [vmem:[%s9 + $0xc8] sm:$0xff]
        %v1755 = vld [vmem:[%s9 + $0xd0] sm:$0xff]
        %v1756 = vld [vmem:[%s9 + $0xd8] sm:$0xff]
        %v1757 = vld [vmem:[%s9 + $0xe0] sm:$0xff]
        %v1758 = vld [vmem:[%s9 + $0xe8] sm:$0xff]
        %v1759 = vld [vmem:[%s9 + $0xf0] sm:$0xff]
        %v1760 = vld [vmem:[%s9 + $0xf8] sm:$0xff]
        %v1761 = vld [vmem:[%s9 + $0x100] sm:$0xff]
        %v1762 = vld [vmem:[%s9 + $0x108] sm:$0xff]
        %v1763 = vld [vmem:[%s9 + $0x110] sm:$0xff]
        %v1764 = vld [vmem:[%s9 + $0x118] sm:$0xff]
        %v1765 = vld [vmem:[%s9 + $0x120] sm:$0xff]
        %v1766 = vld [vmem:[%s9 + $0x128] sm:$0xff]
        %v1767 = vld [vmem:[%s9 + $0x130] sm:$0xff]
        %v1768 = vld [vmem:[%s9 + $0x138] sm:$0xff]
        %v1769 = vld [vmem:[%s9 + $0x140] sm:$0xff]
        %v1770 = vld [vmem:[%s9 + $0x148] sm:$0xff]
        %v1771 = vld [vmem:[%s9 + $0x150] sm:$0xff]
        %v1772 = vld [vmem:[%s9 + $0x158] sm:$0xff]
        %v1773 = vld [vmem:[%s9 + $0x160] sm:$0xff]
        %v1774 = vld [vmem:[%s9 + $0x168] sm:$0xff]
        %v1775 = vld [vmem:[%s9 + $0x170] sm:$0xff]
        %v1776 = vld [vmem:[%s9 + $0x178] sm:$0xff]
        %v1777 = vld [vmem:[%s9 + $0x180] sm:$0xff]
        %v1778 = vld [vmem:[%s9 + $0x188] sm:$0xff]
        %v1779 = vld [vmem:[%s9 + $0x190] sm:$0xff]
        %v1780 = vld [vmem:[%s9 + $0x198] sm:$0xff]
        %v1781 = vld [vmem:[%s9 + $0x1a0] sm:$0xff]
        %v1782 = vld [vmem:[%s9 + $0x1a8] sm:$0xff]
        %v1783 = vld [vmem:[%s9 + $0x1b0] sm:$0xff]
        %v1784 = vld [vmem:[%s9 + $0x1b8] sm:$0xff]
        %v1785 = vld [vmem:[%s9 + $0x1c0] sm:$0xff]
        %v1786 = vld [vmem:[%s9 + $0x1c8] sm:$0xff]
        %v1787 = vld [vmem:[%s9 + $0x1d0] sm:$0xff]
        %v1788 = vld [vmem:[%s9 + $0x1d8] sm:$0xff]
        %v1789 = vld [vmem:[%s9 + $0x1e0] sm:$0xff]
        %v1790 = vld [vmem:[%s9 + $0x1e8] sm:$0xff]
        %v1791 = vld [vmem:[%s9 + $0x1f0] sm:$0xff]
        %v1792 = vld [vmem:[%s9 + $0x1f8] sm:$0xff]
        %v1793 = vld [vmem:[#allocation10] sm:$0xf]
        %v1794 = vld [vmem:[#allocation12] sm:$0xff]
        %v1795 = vld [vmem:[#allocation12 + $0x8] sm:$0xff]
        %v1796 = vld [vmem:[#allocation12 + $0x10] sm:$0xff]
        %v1797 = vld [vmem:[#allocation12 + $0x18] sm:$0xff]
        %v1798 = vld [vmem:[#allocation12 + $0x20] sm:$0xff]
        %v1799 = vld [vmem:[#allocation12 + $0x28] sm:$0xff]
        %v1800 = vld [vmem:[#allocation12 + $0x30] sm:$0xff]
        %v1801 = vld [vmem:[#allocation12 + $0x38] sm:$0xff]
        %v1802 = vld [vmem:[#allocation12 + $0x40] sm:$0xff]
        %v1803 = vld [vmem:[#allocation12 + $0x48] sm:$0xff]
        %v1804 = vld [vmem:[#allocation12 + $0x50] sm:$0xff]
        %v1805 = vld [vmem:[#allocation12 + $0x58] sm:$0xff]
        %v1806 = vld [vmem:[#allocation12 + $0x60] sm:$0xff]
        %v1807 = vld [vmem:[#allocation12 + $0x68] sm:$0xff]
        %v1808 = vld [vmem:[#allocation12 + $0x70] sm:$0xff]
        %v1809 = vld [vmem:[#allocation12 + $0x78] sm:$0xff]
        %v1810 = vld [vmem:[#allocation12 + $0x80] sm:$0xff]
        %v1811 = vld [vmem:[#allocation12 + $0x88] sm:$0xff]
        %v1812 = vld [vmem:[#allocation12 + $0x90] sm:$0xff]
        %v1813 = vld [vmem:[#allocation12 + $0x98] sm:$0xff]
        %v1814 = vld [vmem:[#allocation12 + $0xa0] sm:$0xff]
        %v1815 = vld [vmem:[#allocation12 + $0xa8] sm:$0xff]
        %v1816 = vld [vmem:[#allocation12 + $0xb0] sm:$0xff]
        %v1817 = vld [vmem:[#allocation12 + $0xb8] sm:$0xff]
        %v1818 = vld [vmem:[#allocation12 + $0xc0] sm:$0xff]
        %v1819 = vld [vmem:[#allocation12 + $0xc8] sm:$0xff]
        %v1820 = vld [vmem:[#allocation12 + $0xd0] sm:$0xff]
        %v1821 = vld [vmem:[#allocation12 + $0xd8] sm:$0xff]
        %v1822 = vld [vmem:[#allocation12 + $0xe0] sm:$0xff]
        %v1823 = vld [vmem:[#allocation12 + $0xe8] sm:$0xff]
        %v1824 = vld [vmem:[#allocation12 + $0xf0] sm:$0xff]
        %v1825 = vld [vmem:[#allocation12 + $0xf8] sm:$0xff]
        %v1826 = vld [vmem:[#allocation13] sm:$0x3]
        %v1827 = vld [vmem:[#allocation15] sm:$0xff]
        %v1828 = vld [vmem:[#allocation15 + $0x8] sm:$0xff]
        %v1829 = vld [vmem:[#allocation15 + $0x10] sm:$0xff]
        %v1830 = vld [vmem:[#allocation15 + $0x18] sm:$0xff]
        %v1831 = vld [vmem:[#allocation15 + $0x20] sm:$0xff]
        %v1832 = vld [vmem:[#allocation15 + $0x28] sm:$0xff]
        %v1833 = vld [vmem:[#allocation15 + $0x30] sm:$0xff]
        %v1834 = vld [vmem:[#allocation15 + $0x38] sm:$0xff]
        %v1835 = vld [vmem:[#allocation15 + $0x40] sm:$0xff]
        %v1836 = vld [vmem:[#allocation15 + $0x48] sm:$0xff]
        %v1837 = vld [vmem:[#allocation15 + $0x50] sm:$0xff]
        %v1838 = vld [vmem:[#allocation15 + $0x58] sm:$0xff]
        %v1839 = vld [vmem:[#allocation15 + $0x60] sm:$0xff]
        %v1840 = vld [vmem:[#allocation15 + $0x68] sm:$0xff]
        %v1841 = vld [vmem:[#allocation15 + $0x70] sm:$0xff]
        %v1842 = vld [vmem:[#allocation15 + $0x78] sm:$0xff]
        %v1843 = vld [vmem:[#allocation15 + $0x80] sm:$0xff]
        %v1844 = vld [vmem:[#allocation15 + $0x88] sm:$0xff]
        %v1845 = vld [vmem:[#allocation15 + $0x90] sm:$0xff]
        %v1846 = vld [vmem:[#allocation15 + $0x98] sm:$0xff]
        %v1847 = vld [vmem:[#allocation15 + $0xa0] sm:$0xff]
        %v1848 = vld [vmem:[#allocation15 + $0xa8] sm:$0xff]
        %v1849 = vld [vmem:[#allocation15 + $0xb0] sm:$0xff]
        %v1850 = vld [vmem:[#allocation15 + $0xb8] sm:$0xff]
        %v1851 = vld [vmem:[#allocation15 + $0xc0] sm:$0xff]
        %v1852 = vld [vmem:[#allocation15 + $0xc8] sm:$0xff]
        %v1853 = vld [vmem:[#allocation15 + $0xd0] sm:$0xff]
        %v1854 = vld [vmem:[#allocation15 + $0xd8] sm:$0xff]
        %v1855 = vld [vmem:[#allocation15 + $0xe0] sm:$0xff]
        %v1856 = vld [vmem:[#allocation15 + $0xe8] sm:$0xff]
        %v1857 = vld [vmem:[#allocation15 + $0xf0] sm:$0xff]
        %v1858 = vld [vmem:[#allocation15 + $0xf8] sm:$0xff]
        %v1859 = vld [vmem:[#allocation16] sm:$0x3]
        %v1860 = vpack.c.bf16 %v1699, %v1697
        %v1861 = vpack.c.bf16 %v1700, %v1698
        %v1862 = vpack.c.bf16 %v1703, %v1701
        %v1863 = vpack.c.bf16 %v1704, %v1702
        %v1864 = vpack.c.bf16 %v1707, %v1705
        %v1865 = vpack.c.bf16 %v1708, %v1706
        %v1866 = vpack.c.bf16 %v1711, %v1709
        %v1867 = vpack.c.bf16 %v1712, %v1710
        %v1868 = vpack.c.bf16 %v1715, %v1713
        %v1869 = vpack.c.bf16 %v1716, %v1714
        %v1870 = vpack.c.bf16 %v1719, %v1717
        %v1871 = vpack.c.bf16 %v1720, %v1718
        %v1872 = vpack.c.bf16 %v1723, %v1721
        %v1873 = vpack.c.bf16 %v1724, %v1722
        %v1874 = vpack.c.bf16 %v1727, %v1725
        %v1875 = vpack.c.bf16 %v1728, %v1726
        %v1877 = vlaneseq
        %v1878 = vshrl.u32 %v1877, 7
        %v1879 = vsub.s32 0, %v1878
        %v1880 = vrot.slane %v1793, %v1879
        %v1881 = vlaneseq
        %v1882 = vshrl.u32 %v1881, 7
        %v1883 = vsub.s32 1, %v1882
        %v1884 = vrot.slane %v1793, %v1883
        %v1885 = vlaneseq
        %v1886 = vshrl.u32 %v1885, 7
        %v1887 = vsub.s32 2, %v1886
        %v1888 = vrot.slane %v1793, %v1887
        %v1889 = vlaneseq
        %v1890 = vshrl.u32 %v1889, 7
        %v1891 = vsub.s32 3, %v1890
        %v1892 = vrot.slane %v1793, %v1891
        %v1961 = vunpack.c.l.b16 %v1729
        %v1962 = vunpack.c.h.b16 %v1729
        %v1963 = vunpack.c.l.b16 %v1730
        %v1964 = vunpack.c.h.b16 %v1730
        %v1965 = vunpack.c.l.b16 %v1731
        %v1966 = vunpack.c.h.b16 %v1731
        %v1967 = vunpack.c.l.b16 %v1732
        %v1968 = vunpack.c.h.b16 %v1732
        %v1969 = vunpack.c.l.b16 %v1733
        %v1970 = vunpack.c.h.b16 %v1733
        %v1971 = vunpack.c.l.b16 %v1734
        %v1972 = vunpack.c.h.b16 %v1734
        %v1973 = vunpack.c.l.b16 %v1735
        %v1974 = vunpack.c.h.b16 %v1735
        %v1975 = vunpack.c.l.b16 %v1736
        %v1976 = vunpack.c.h.b16 %v1736
        %v1977 = vunpack.c.l.b16 %v1737
        %v1978 = vunpack.c.h.b16 %v1737
        %v1979 = vunpack.c.l.b16 %v1738
        %v1980 = vunpack.c.h.b16 %v1738
        %v1981 = vunpack.c.l.b16 %v1739
        %v1982 = vunpack.c.h.b16 %v1739
        %v1983 = vunpack.c.l.b16 %v1740
        %v1984 = vunpack.c.h.b16 %v1740
        %v1985 = vunpack.c.l.b16 %v1741
        %v1986 = vunpack.c.h.b16 %v1741
        %v1987 = vunpack.c.l.b16 %v1742
        %v1988 = vunpack.c.h.b16 %v1742
        %v1989 = vunpack.c.l.b16 %v1743
        %v1990 = vunpack.c.h.b16 %v1743
        %v1991 = vunpack.c.l.b16 %v1744
        %v1992 = vunpack.c.h.b16 %v1744
        %v1993 = vunpack.c.l.b16 %v1745
        %v1994 = vunpack.c.h.b16 %v1745
        %v1995 = vunpack.c.l.b16 %v1746
        %v1996 = vunpack.c.h.b16 %v1746
        %v1997 = vunpack.c.l.b16 %v1747
        %v1998 = vunpack.c.h.b16 %v1747
        %v1999 = vunpack.c.l.b16 %v1748
        %v2000 = vunpack.c.h.b16 %v1748
        %v2001 = vunpack.c.l.b16 %v1749
        %v2002 = vunpack.c.h.b16 %v1749
        %v2003 = vunpack.c.l.b16 %v1750
        %v2004 = vunpack.c.h.b16 %v1750
        %v2005 = vunpack.c.l.b16 %v1751
        %v2006 = vunpack.c.h.b16 %v1751
        %v2007 = vunpack.c.l.b16 %v1752
        %v2008 = vunpack.c.h.b16 %v1752
        %v2009 = vunpack.c.l.b16 %v1753
        %v2010 = vunpack.c.h.b16 %v1753
        %v2011 = vunpack.c.l.b16 %v1754
        %v2012 = vunpack.c.h.b16 %v1754
        %v2013 = vunpack.c.l.b16 %v1755
        %v2014 = vunpack.c.h.b16 %v1755
        %v2015 = vunpack.c.l.b16 %v1756
        %v2016 = vunpack.c.h.b16 %v1756
        %v2017 = vunpack.c.l.b16 %v1757
        %v2018 = vunpack.c.h.b16 %v1757
        %v2019 = vunpack.c.l.b16 %v1758
        %v2020 = vunpack.c.h.b16 %v1758
        %v2021 = vunpack.c.l.b16 %v1759
        %v2022 = vunpack.c.h.b16 %v1759
        %v2023 = vunpack.c.l.b16 %v1760
        %v2024 = vunpack.c.h.b16 %v1760
        %v2025 = vunpack.c.l.b16 %v1761
        %v2026 = vunpack.c.h.b16 %v1761
        %v2027 = vunpack.c.l.b16 %v1762
        %v2028 = vunpack.c.h.b16 %v1762
        %v2029 = vunpack.c.l.b16 %v1763
        %v2030 = vunpack.c.h.b16 %v1763
        %v2031 = vunpack.c.l.b16 %v1764
        %v2032 = vunpack.c.h.b16 %v1764
        %v2033 = vunpack.c.l.b16 %v1765
        %v2034 = vunpack.c.h.b16 %v1765
        %v2035 = vunpack.c.l.b16 %v1766
        %v2036 = vunpack.c.h.b16 %v1766
        %v2037 = vunpack.c.l.b16 %v1767
        %v2038 = vunpack.c.h.b16 %v1767
        %v2039 = vunpack.c.l.b16 %v1768
        %v2040 = vunpack.c.h.b16 %v1768
        %v2041 = vunpack.c.l.b16 %v1769
        %v2042 = vunpack.c.h.b16 %v1769
        %v2043 = vunpack.c.l.b16 %v1770
        %v2044 = vunpack.c.h.b16 %v1770
        %v2045 = vunpack.c.l.b16 %v1771
        %v2046 = vunpack.c.h.b16 %v1771
        %v2047 = vunpack.c.l.b16 %v1772
        %v2048 = vunpack.c.h.b16 %v1772
        %v2049 = vunpack.c.l.b16 %v1773
        %v2050 = vunpack.c.h.b16 %v1773
        %v2051 = vunpack.c.l.b16 %v1774
        %v2052 = vunpack.c.h.b16 %v1774
        %v2053 = vunpack.c.l.b16 %v1775
        %v2054 = vunpack.c.h.b16 %v1775
        %v2055 = vunpack.c.l.b16 %v1776
        %v2056 = vunpack.c.h.b16 %v1776
        %v2057 = vunpack.c.l.b16 %v1777
        %v2058 = vunpack.c.h.b16 %v1777
        %v2059 = vunpack.c.l.b16 %v1778
        %v2060 = vunpack.c.h.b16 %v1778
        %v2061 = vunpack.c.l.b16 %v1779
        %v2062 = vunpack.c.h.b16 %v1779
        %v2063 = vunpack.c.l.b16 %v1780
        %v2064 = vunpack.c.h.b16 %v1780
        %v2065 = vunpack.c.l.b16 %v1781
        %v2066 = vunpack.c.h.b16 %v1781
        %v2067 = vunpack.c.l.b16 %v1782
        %v2068 = vunpack.c.h.b16 %v1782
        %v2069 = vunpack.c.l.b16 %v1783
        %v2070 = vunpack.c.h.b16 %v1783
        %v2071 = vunpack.c.l.b16 %v1784
        %v2072 = vunpack.c.h.b16 %v1784
        %v2073 = vunpack.c.l.b16 %v1785
        %v2074 = vunpack.c.h.b16 %v1785
        %v2075 = vunpack.c.l.b16 %v1786
        %v2076 = vunpack.c.h.b16 %v1786
        %v2077 = vunpack.c.l.b16 %v1787
        %v2078 = vunpack.c.h.b16 %v1787
        %v2079 = vunpack.c.l.b16 %v1788
        %v2080 = vunpack.c.h.b16 %v1788
        %v2081 = vunpack.c.l.b16 %v1789
        %v2082 = vunpack.c.h.b16 %v1789
        %v2083 = vunpack.c.l.b16 %v1790
        %v2084 = vunpack.c.h.b16 %v1790
        %v2085 = vunpack.c.l.b16 %v1791
        %v2086 = vunpack.c.h.b16 %v1791
        %v2087 = vunpack.c.l.b16 %v1792
        %v2088 = vunpack.c.h.b16 %v1792
        %v2089 = vpack.c.b16 %v1965, %v1961
        %v2090 = vpack.c.b16 %v1966, %v1962
        %v2091 = vpack.c.b16 %v1967, %v1963
        %v2092 = vpack.c.b16 %v1968, %v1964
        %v2093 = vpack.c.b16 %v1973, %v1969
        %v2094 = vpack.c.b16 %v1974, %v1970
        %v2095 = vpack.c.b16 %v1975, %v1971
        %v2096 = vpack.c.b16 %v1976, %v1972
        %v2097 = vpack.c.b16 %v1981, %v1977
        %v2098 = vpack.c.b16 %v1982, %v1978
        %v2099 = vpack.c.b16 %v1983, %v1979
        %v2100 = vpack.c.b16 %v1984, %v1980
        %v2101 = vpack.c.b16 %v1989, %v1985
        %v2102 = vpack.c.b16 %v1990, %v1986
        %v2103 = vpack.c.b16 %v1991, %v1987
        %v2104 = vpack.c.b16 %v1992, %v1988
        %v2105 = vpack.c.b16 %v1997, %v1993
        %v2106 = vpack.c.b16 %v1998, %v1994
        %v2107 = vpack.c.b16 %v1999, %v1995
        %v2108 = vpack.c.b16 %v2000, %v1996
        %v2109 = vpack.c.b16 %v2005, %v2001
        %v2110 = vpack.c.b16 %v2006, %v2002
        %v2111 = vpack.c.b16 %v2007, %v2003
        %v2112 = vpack.c.b16 %v2008, %v2004
        %v2113 = vpack.c.b16 %v2013, %v2009
        %v2114 = vpack.c.b16 %v2014, %v2010
        %v2115 = vpack.c.b16 %v2015, %v2011
        %v2116 = vpack.c.b16 %v2016, %v2012
        %v2117 = vpack.c.b16 %v2021, %v2017
        %v2118 = vpack.c.b16 %v2022, %v2018
        %v2119 = vpack.c.b16 %v2023, %v2019
        %v2120 = vpack.c.b16 %v2024, %v2020
        %v2121 = vpack.c.b16 %v2029, %v2025
        %v2122 = vpack.c.b16 %v2030, %v2026
        %v2123 = vpack.c.b16 %v2031, %v2027
        %v2124 = vpack.c.b16 %v2032, %v2028
        %v2125 = vpack.c.b16 %v2037, %v2033
        %v2126 = vpack.c.b16 %v2038, %v2034
        %v2127 = vpack.c.b16 %v2039, %v2035
        %v2128 = vpack.c.b16 %v2040, %v2036
        %v2129 = vpack.c.b16 %v2045, %v2041
        %v2130 = vpack.c.b16 %v2046, %v2042
        %v2131 = vpack.c.b16 %v2047, %v2043
        %v2132 = vpack.c.b16 %v2048, %v2044
        %v2133 = vpack.c.b16 %v2053, %v2049
        %v2134 = vpack.c.b16 %v2054, %v2050
        %v2135 = vpack.c.b16 %v2055, %v2051
        %v2136 = vpack.c.b16 %v2056, %v2052
        %v2137 = vpack.c.b16 %v2061, %v2057
        %v2138 = vpack.c.b16 %v2062, %v2058
        %v2139 = vpack.c.b16 %v2063, %v2059
        %v2140 = vpack.c.b16 %v2064, %v2060
        %v2141 = vpack.c.b16 %v2069, %v2065
        %v2142 = vpack.c.b16 %v2070, %v2066
        %v2143 = vpack.c.b16 %v2071, %v2067
        %v2144 = vpack.c.b16 %v2072, %v2068
        %v2145 = vpack.c.b16 %v2077, %v2073
        %v2146 = vpack.c.b16 %v2078, %v2074
        %v2147 = vpack.c.b16 %v2079, %v2075
        %v2148 = vpack.c.b16 %v2080, %v2076
        %v2149 = vpack.c.b16 %v2085, %v2081
        %v2150 = vpack.c.b16 %v2086, %v2082
        %v2151 = vpack.c.b16 %v2087, %v2083
        %v2152 = vpack.c.b16 %v2088, %v2084
        %2217 = vmatprep.subr.bf16.mxu0 %v2090
        %2218 = vmatpush1.bf16.msra.mxu0 %v2089
        %2219 = vmatprep.subr.bf16.mxu0 %v2094
        %2220 = vmatpush1.bf16.msra.mxu0 %v2093
        %2221 = vmatprep.subr.bf16.mxu0 %v2098
        %2222 = vmatpush1.bf16.msra.mxu0 %v2097
        %2223 = vmatprep.subr.bf16.mxu0 %v2102
        %2224 = vmatpush1.bf16.msra.mxu0 %v2101
        %2225 = vmatprep.subr.bf16.mxu0 %v2106
        %2226 = vmatpush1.bf16.msra.mxu0 %v2105
        %2227 = vmatprep.subr.bf16.mxu0 %v2110
        %2228 = vmatpush1.bf16.msra.mxu0 %v2109
        %2229 = vmatprep.subr.bf16.mxu0 %v2114
        %2230 = vmatpush1.bf16.msra.mxu0 %v2113
        %2231 = vmatprep.subr.bf16.mxu0 %v2118
        %2232 = vmatpush1.bf16.msra.mxu0 %v2117
        %2233 = vmatprep.subr.bf16.mxu0 %v2122
        %2234 = vmatpush1.bf16.msra.mxu0 %v2121
        %2235 = vmatprep.subr.bf16.mxu0 %v2126
        %2236 = vmatpush1.bf16.msra.mxu0 %v2125
        %2237 = vmatprep.subr.bf16.mxu0 %v2130
        %2238 = vmatpush1.bf16.msra.mxu0 %v2129
        %2239 = vmatprep.subr.bf16.mxu0 %v2134
        %2240 = vmatpush1.bf16.msra.mxu0 %v2133
        %2241 = vmatprep.subr.bf16.mxu0 %v2138
        %2242 = vmatpush1.bf16.msra.mxu0 %v2137
        %2243 = vmatprep.subr.bf16.mxu0 %v2142
        %2244 = vmatpush1.bf16.msra.mxu0 %v2141
        %2245 = vmatprep.subr.bf16.mxu0 %v2146
        %2246 = vmatpush1.bf16.msra.mxu0 %v2145
        %2247 = vmatprep.subr.bf16.mxu0 %v2150
        %2248 = vmatpush1.bf16.msra.mxu0 %v2149
        %2249 = vmatprep.mubr.bf16.mxu0 %v1861
        %2250 = vmatmul.mubr.bf16.gmra.mrb[0].mxu0 %v1860
        %v2251 = vpop.f32.mrb[0].mxu0
        %v2252 = vadd.f32 %v1880, %v2251
        %v2253 = vpop.f32.mrb[0].mxu0
        %v2254 = vadd.f32 %v1884, %v2253
        %v2255 = vpop.f32.mrb[0].mxu0
        %v2256 = vadd.f32 %v1880, %v2255
        %v2257 = vpop.f32.mrb[0].mxu0
        %v2258 = vadd.f32 %v1884, %v2257
        %2259 = vmatprep.mubr.bf16.mxu0 %v1863
        %2260 = vmatmul.mubr.bf16.gmra.mrb[0].mxu0 %v1862
        %v2261 = vpop.f32.mrb[0].mxu0
        %v2262 = vadd.f32 %v1880, %v2261
        %v2263 = vpop.f32.mrb[0].mxu0
        %v2264 = vadd.f32 %v1884, %v2263
        %v2265 = vpop.f32.mrb[0].mxu0
        %v2266 = vadd.f32 %v1880, %v2265
        %v2267 = vpop.f32.mrb[0].mxu0
        %v2268 = vadd.f32 %v1884, %v2267
        %2269 = vmatprep.mubr.bf16.mxu0 %v1865
        %2270 = vmatmul.mubr.bf16.gmra.mrb[0].mxu0 %v1864
        %v2271 = vpop.f32.mrb[0].mxu0
        %v2272 = vadd.f32 %v1880, %v2271
        %v2273 = vpop.f32.mrb[0].mxu0
        %v2274 = vadd.f32 %v1884, %v2273
        %v2275 = vpop.f32.mrb[0].mxu0
        %v2276 = vadd.f32 %v1880, %v2275
        %v2277 = vpop.f32.mrb[0].mxu0
        %v2278 = vadd.f32 %v1884, %v2277
        %2279 = vmatprep.mubr.bf16.mxu0 %v1867
        %2280 = vmatmul.mubr.bf16.gmra.mrb[0].mxu0 %v1866
        %v2281 = vpop.f32.mrb[0].mxu0
        %v2282 = vadd.f32 %v1880, %v2281
        %v2283 = vpop.f32.mrb[0].mxu0
        %v2284 = vadd.f32 %v1884, %v2283
        %v2285 = vpop.f32.mrb[0].mxu0
        %v2286 = vadd.f32 %v1880, %v2285
        %v2287 = vpop.f32.mrb[0].mxu0
        %v2288 = vadd.f32 %v1884, %v2287
        %2289 = vmatprep.mubr.bf16.mxu0 %v1869
        %2290 = vmatmul.mubr.bf16.gmra.mrb[0].mxu0 %v1868
        %v2291 = vpop.f32.mrb[0].mxu0
        %v2292 = vadd.f32 %v1880, %v2291
        %v2293 = vpop.f32.mrb[0].mxu0
        %v2294 = vadd.f32 %v1884, %v2293
        %v2295 = vpop.f32.mrb[0].mxu0
        %v2296 = vadd.f32 %v1880, %v2295
        %v2297 = vpop.f32.mrb[0].mxu0
        %v2298 = vadd.f32 %v1884, %v2297
        %2299 = vmatprep.mubr.bf16.mxu0 %v1871
        %2300 = vmatmul.mubr.bf16.gmra.mrb[0].mxu0 %v1870
        %v2301 = vpop.f32.mrb[0].mxu0
        %v2302 = vadd.f32 %v1880, %v2301
        %v2303 = vpop.f32.mrb[0].mxu0
        %v2304 = vadd.f32 %v1884, %v2303
        %v2305 = vpop.f32.mrb[0].mxu0
        %v2306 = vadd.f32 %v1880, %v2305
        %v2307 = vpop.f32.mrb[0].mxu0
        %v2308 = vadd.f32 %v1884, %v2307
        %2309 = vmatprep.mubr.bf16.mxu0 %v1873
        %2310 = vmatmul.mubr.bf16.gmra.mrb[0].mxu0 %v1872
        %v2311 = vpop.f32.mrb[0].mxu0
        %v2312 = vadd.f32 %v1880, %v2311
        %v2313 = vpop.f32.mrb[0].mxu0
        %v2314 = vadd.f32 %v1884, %v2313
        %v2315 = vpop.f32.mrb[0].mxu0
        %v2316 = vadd.f32 %v1880, %v2315
        %v2317 = vpop.f32.mrb[0].mxu0
        %v2318 = vadd.f32 %v1884, %v2317
        %2319 = vmatprep.mubr.bf16.mxu0 %v1875
        %2320 = vmatmul.mubr.bf16.gmra.mrb[0].mxu0 %v1874
        %v2321 = vpop.f32.mrb[0].mxu0
        %v2322 = vadd.f32 %v1880, %v2321
        %v2323 = vpop.f32.mrb[0].mxu0
        %v2324 = vadd.f32 %v1884, %v2323
        %v2325 = vpop.f32.mrb[0].mxu0
        %v2326 = vadd.f32 %v1880, %v2325
        %v2327 = vpop.f32.mrb[0].mxu0
        %v2328 = vadd.f32 %v1884, %v2327
        %2329 = vdwg.mxu0
        %2330 = vmatprep.subr.bf16.mxu0 %v2092
        %2331 = vmatpush1.bf16.msra.mxu0 %v2091
        %2332 = vmatprep.subr.bf16.mxu0 %v2096
        %2333 = vmatpush1.bf16.msra.mxu0 %v2095
        %2334 = vmatprep.subr.bf16.mxu0 %v2100
        %2335 = vmatpush1.bf16.msra.mxu0 %v2099
        %2336 = vmatprep.subr.bf16.mxu0 %v2104
        %2337 = vmatpush1.bf16.msra.mxu0 %v2103
        %2338 = vmatprep.subr.bf16.mxu0 %v2108
        %2339 = vmatpush1.bf16.msra.mxu0 %v2107
        %2340 = vmatprep.subr.bf16.mxu0 %v2112
        %2341 = vmatpush1.bf16.msra.mxu0 %v2111
        %2342 = vmatprep.subr.bf16.mxu0 %v2116
        %2343 = vmatpush1.bf16.msra.mxu0 %v2115
        %2344 = vmatprep.subr.bf16.mxu0 %v2120
        %2345 = vmatpush1.bf16.msra.mxu0 %v2119
        %2346 = vmatprep.subr.bf16.mxu0 %v2124
        %2347 = vmatpush1.bf16.msra.mxu0 %v2123
        %2348 = vmatprep.subr.bf16.mxu0 %v2128
        %2349 = vmatpush1.bf16.msra.mxu0 %v2127
        %2350 = vmatprep.subr.bf16.mxu0 %v2132
        %2351 = vmatpush1.bf16.msra.mxu0 %v2131
        %2352 = vmatprep.subr.bf16.mxu0 %v2136
        %2353 = vmatpush1.bf16.msra.mxu0 %v2135
        %2354 = vmatprep.subr.bf16.mxu0 %v2140
        %2355 = vmatpush1.bf16.msra.mxu0 %v2139
        %2356 = vmatprep.subr.bf16.mxu0 %v2144
        %2357 = vmatpush1.bf16.msra.mxu0 %v2143
        %2358 = vmatprep.subr.bf16.mxu0 %v2148
        %2359 = vmatpush1.bf16.msra.mxu0 %v2147
        %2360 = vmatprep.subr.bf16.mxu0 %v2152
        %2361 = vmatpush1.bf16.msra.mxu0 %v2151
        %2362 = vmatprep.mubr.bf16.mxu0 %v1861
        %2363 = vmatmul.mubr.bf16.gmra.mrb[0].mxu0 %v1860
        %v2364 = vpop.f32.mrb[0].mxu0
        %v2365 = vadd.f32 %v1888, %v2364
        %v2366 = vpop.f32.mrb[0].mxu0
        %v2367 = vadd.f32 %v1892, %v2366
        %v2368 = vpop.f32.mrb[0].mxu0
        %v2369 = vadd.f32 %v1888, %v2368
        %v2370 = vpop.f32.mrb[0].mxu0
        %v2371 = vadd.f32 %v1892, %v2370
        %2372 = vmatprep.mubr.bf16.mxu0 %v1863
        %2373 = vmatmul.mubr.bf16.gmra.mrb[0].mxu0 %v1862
        %v2374 = vpop.f32.mrb[0].mxu0
        %v2375 = vadd.f32 %v1888, %v2374
        %v2376 = vpop.f32.mrb[0].mxu0
        %v2377 = vadd.f32 %v1892, %v2376
        %v2378 = vpop.f32.mrb[0].mxu0
        %v2379 = vadd.f32 %v1888, %v2378
        %v2380 = vpop.f32.mrb[0].mxu0
        %v2381 = vadd.f32 %v1892, %v2380
        %2382 = vmatprep.mubr.bf16.mxu0 %v1865
        %2383 = vmatmul.mubr.bf16.gmra.mrb[0].mxu0 %v1864
        %v2384 = vpop.f32.mrb[0].mxu0
        %v2385 = vadd.f32 %v1888, %v2384
        %v2386 = vpop.f32.mrb[0].mxu0
        %v2387 = vadd.f32 %v1892, %v2386
        %v2388 = vpop.f32.mrb[0].mxu0
        %v2389 = vadd.f32 %v1888, %v2388
        %v2390 = vpop.f32.mrb[0].mxu0
        %v2391 = vadd.f32 %v1892, %v2390
        %2392 = vmatprep.mubr.bf16.mxu0 %v1867
        %2393 = vmatmul.mubr.bf16.gmra.mrb[0].mxu0 %v1866
        %v2394 = vpop.f32.mrb[0].mxu0
        %v2395 = vadd.f32 %v1888, %v2394
        %v2396 = vpop.f32.mrb[0].mxu0
        %v2397 = vadd.f32 %v1892, %v2396
        %v2398 = vpop.f32.mrb[0].mxu0
        %v2399 = vadd.f32 %v1888, %v2398
        %v2400 = vpop.f32.mrb[0].mxu0
        %v2401 = vadd.f32 %v1892, %v2400
        %2402 = vmatprep.mubr.bf16.mxu0 %v1869
        %2403 = vmatmul.mubr.bf16.gmra.mrb[0].mxu0 %v1868
        %v2404 = vpop.f32.mrb[0].mxu0
        %v2405 = vadd.f32 %v1888, %v2404
        %v2406 = vpop.f32.mrb[0].mxu0
        %v2407 = vadd.f32 %v1892, %v2406
        %v2408 = vpop.f32.mrb[0].mxu0
        %v2409 = vadd.f32 %v1888, %v2408
        %v2410 = vpop.f32.mrb[0].mxu0
        %v2411 = vadd.f32 %v1892, %v2410
        %2412 = vmatprep.mubr.bf16.mxu0 %v1871
        %2413 = vmatmul.mubr.bf16.gmra.mrb[0].mxu0 %v1870
        %v2414 = vpop.f32.mrb[0].mxu0
        %v2415 = vadd.f32 %v1888, %v2414
        %v2416 = vpop.f32.mrb[0].mxu0
        %v2417 = vadd.f32 %v1892, %v2416
        %v2418 = vpop.f32.mrb[0].mxu0
        %v2419 = vadd.f32 %v1888, %v2418
        %v2420 = vpop.f32.mrb[0].mxu0
        %v2421 = vadd.f32 %v1892, %v2420
        %2422 = vmatprep.mubr.bf16.mxu0 %v1873
        %2423 = vmatmul.mubr.bf16.gmra.mrb[0].mxu0 %v1872
        %v2424 = vpop.f32.mrb[0].mxu0
        %v2425 = vadd.f32 %v1888, %v2424
        %v2426 = vpop.f32.mrb[0].mxu0
        %v2427 = vadd.f32 %v1892, %v2426
        %v2428 = vpop.f32.mrb[0].mxu0
        %v2429 = vadd.f32 %v1888, %v2428
        %v2430 = vpop.f32.mrb[0].mxu0
        %v2431 = vadd.f32 %v1892, %v2430
        %2432 = vmatprep.mubr.bf16.mxu0 %v1875
        %2433 = vmatmul.mubr.bf16.gmra.mrb[0].mxu0 %v1874
        %v2434 = vpop.f32.mrb[0].mxu0
        %v2435 = vadd.f32 %v1888, %v2434
        %v2436 = vpop.f32.mrb[0].mxu0
        %v2437 = vadd.f32 %v1892, %v2436
        %v2438 = vpop.f32.mrb[0].mxu0
        %v2439 = vadd.f32 %v1888, %v2438
        %v2440 = vpop.f32.mrb[0].mxu0
        %v2441 = vadd.f32 %v1892, %v2440
        %2442 = vdwg.mxu0
        %v2443 = vmax.f32 %v2252, 0.0
        %v2444 = vmax.f32 %v2254, 0.0
        %v2445 = vmax.f32 %v2256, 0.0
        %v2446 = vmax.f32 %v2258, 0.0
        %v2447 = vmax.f32 %v2262, 0.0
        %v2448 = vmax.f32 %v2264, 0.0
        %v2449 = vmax.f32 %v2266, 0.0
        %v2450 = vmax.f32 %v2268, 0.0
        %v2451 = vmax.f32 %v2272, 0.0
        %v2452 = vmax.f32 %v2274, 0.0
        %v2453 = vmax.f32 %v2276, 0.0
        %v2454 = vmax.f32 %v2278, 0.0
        %v2455 = vmax.f32 %v2282, 0.0
        %v2456 = vmax.f32 %v2284, 0.0
        %v2457 = vmax.f32 %v2286, 0.0
        %v2458 = vmax.f32 %v2288, 0.0
        %v2459 = vmax.f32 %v2292, 0.0
        %v2460 = vmax.f32 %v2294, 0.0
        %v2461 = vmax.f32 %v2296, 0.0
        %v2462 = vmax.f32 %v2298, 0.0
        %v2463 = vmax.f32 %v2302, 0.0
        %v2464 = vmax.f32 %v2304, 0.0
        %v2465 = vmax.f32 %v2306, 0.0
        %v2466 = vmax.f32 %v2308, 0.0
        %v2467 = vmax.f32 %v2312, 0.0
        %v2468 = vmax.f32 %v2314, 0.0
        %v2469 = vmax.f32 %v2316, 0.0
        %v2470 = vmax.f32 %v2318, 0.0
        %v2471 = vmax.f32 %v2322, 0.0
        %v2472 = vmax.f32 %v2324, 0.0
        %v2473 = vmax.f32 %v2326, 0.0
        %v2474 = vmax.f32 %v2328, 0.0
        %v2475 = vpack.c.bf16 %v2445, %v2443
        %v2476 = vpack.c.bf16 %v2446, %v2444
        %v2477 = vpack.c.bf16 %v2449, %v2447
        %v2478 = vpack.c.bf16 %v2450, %v2448
        %v2479 = vpack.c.bf16 %v2453, %v2451
        %v2480 = vpack.c.bf16 %v2454, %v2452
        %v2481 = vpack.c.bf16 %v2457, %v2455
        %v2482 = vpack.c.bf16 %v2458, %v2456
        %v2483 = vpack.c.bf16 %v2461, %v2459
        %v2484 = vpack.c.bf16 %v2462, %v2460
        %v2485 = vpack.c.bf16 %v2465, %v2463
        %v2486 = vpack.c.bf16 %v2466, %v2464
        %v2487 = vpack.c.bf16 %v2469, %v2467
        %v2488 = vpack.c.bf16 %v2470, %v2468
        %v2489 = vpack.c.bf16 %v2473, %v2471
        %v2490 = vpack.c.bf16 %v2474, %v2472
        %v2492 = vlaneseq
        %v2493 = vshrl.u32 %v2492, 7
        %v2494 = vsub.s32 0, %v2493
        %v2495 = vrot.slane %v1826, %v2494
        %v2496 = vlaneseq
        %v2497 = vshrl.u32 %v2496, 7
        %v2498 = vsub.s32 1, %v2497
        %v2499 = vrot.slane %v1826, %v2498
        %v2534 = vunpack.c.l.b16 %v1794
        %v2535 = vunpack.c.h.b16 %v1794
        %v2536 = vunpack.c.l.b16 %v1795
        %v2537 = vunpack.c.h.b16 %v1795
        %v2538 = vunpack.c.l.b16 %v1796
        %v2539 = vunpack.c.h.b16 %v1796
        %v2540 = vunpack.c.l.b16 %v1797
        %v2541 = vunpack.c.h.b16 %v1797
        %v2542 = vunpack.c.l.b16 %v1798
        %v2543 = vunpack.c.h.b16 %v1798
        %v2544 = vunpack.c.l.b16 %v1799
        %v2545 = vunpack.c.h.b16 %v1799
        %v2546 = vunpack.c.l.b16 %v1800
        %v2547 = vunpack.c.h.b16 %v1800
        %v2548 = vunpack.c.l.b16 %v1801
        %v2549 = vunpack.c.h.b16 %v1801
        %v2550 = vunpack.c.l.b16 %v1802
        %v2551 = vunpack.c.h.b16 %v1802
        %v2552 = vunpack.c.l.b16 %v1803
        %v2553 = vunpack.c.h.b16 %v1803
        %v2554 = vunpack.c.l.b16 %v1804
        %v2555 = vunpack.c.h.b16 %v1804
        %v2556 = vunpack.c.l.b16 %v1805
        %v2557 = vunpack.c.h.b16 %v1805
        %v2558 = vunpack.c.l.b16 %v1806
        %v2559 = vunpack.c.h.b16 %v1806
        %v2560 = vunpack.c.l.b16 %v1807
        %v2561 = vunpack.c.h.b16 %v1807
        %v2562 = vunpack.c.l.b16 %v1808
        %v2563 = vunpack.c.h.b16 %v1808
        %v2564 = vunpack.c.l.b16 %v1809
        %v2565 = vunpack.c.h.b16 %v1809
        %v2566 = vunpack.c.l.b16 %v1810
        %v2567 = vunpack.c.h.b16 %v1810
        %v2568 = vunpack.c.l.b16 %v1811
        %v2569 = vunpack.c.h.b16 %v1811
        %v2570 = vunpack.c.l.b16 %v1812
        %v2571 = vunpack.c.h.b16 %v1812
        %v2572 = vunpack.c.l.b16 %v1813
        %v2573 = vunpack.c.h.b16 %v1813
        %v2574 = vunpack.c.l.b16 %v1814
        %v2575 = vunpack.c.h.b16 %v1814
        %v2576 = vunpack.c.l.b16 %v1815
        %v2577 = vunpack.c.h.b16 %v1815
        %v2578 = vunpack.c.l.b16 %v1816
        %v2579 = vunpack.c.h.b16 %v1816
        %v2580 = vunpack.c.l.b16 %v1817
        %v2581 = vunpack.c.h.b16 %v1817
        %v2582 = vunpack.c.l.b16 %v1818
        %v2583 = vunpack.c.h.b16 %v1818
        %v2584 = vunpack.c.l.b16 %v1819
        %v2585 = vunpack.c.h.b16 %v1819
        %v2586 = vunpack.c.l.b16 %v1820
        %v2587 = vunpack.c.h.b16 %v1820
        %v2588 = vunpack.c.l.b16 %v1821
        %v2589 = vunpack.c.h.b16 %v1821
        %v2590 = vunpack.c.l.b16 %v1822
        %v2591 = vunpack.c.h.b16 %v1822
        %v2592 = vunpack.c.l.b16 %v1823
        %v2593 = vunpack.c.h.b16 %v1823
        %v2594 = vunpack.c.l.b16 %v1824
        %v2595 = vunpack.c.h.b16 %v1824
        %v2596 = vunpack.c.l.b16 %v1825
        %v2597 = vunpack.c.h.b16 %v1825
        %v2598 = vpack.c.b16 %v2536, %v2534
        %v2599 = vpack.c.b16 %v2537, %v2535
        %v2600 = vpack.c.b16 %v2540, %v2538
        %v2601 = vpack.c.b16 %v2541, %v2539
        %v2602 = vpack.c.b16 %v2544, %v2542
        %v2603 = vpack.c.b16 %v2545, %v2543
        %v2604 = vpack.c.b16 %v2548, %v2546
        %v2605 = vpack.c.b16 %v2549, %v2547
        %v2606 = vpack.c.b16 %v2552, %v2550
        %v2607 = vpack.c.b16 %v2553, %v2551
        %v2608 = vpack.c.b16 %v2556, %v2554
        %v2609 = vpack.c.b16 %v2557, %v2555
        %v2610 = vpack.c.b16 %v2560, %v2558
        %v2611 = vpack.c.b16 %v2561, %v2559
        %v2612 = vpack.c.b16 %v2564, %v2562
        %v2613 = vpack.c.b16 %v2565, %v2563
        %v2614 = vpack.c.b16 %v2568, %v2566
        %v2615 = vpack.c.b16 %v2569, %v2567
        %v2616 = vpack.c.b16 %v2572, %v2570
        %v2617 = vpack.c.b16 %v2573, %v2571
        %v2618 = vpack.c.b16 %v2576, %v2574
        %v2619 = vpack.c.b16 %v2577, %v2575
        %v2620 = vpack.c.b16 %v2580, %v2578
        %v2621 = vpack.c.b16 %v2581, %v2579
        %v2622 = vpack.c.b16 %v2584, %v2582
        %v2623 = vpack.c.b16 %v2585, %v2583
        %v2624 = vpack.c.b16 %v2588, %v2586
        %v2625 = vpack.c.b16 %v2589, %v2587
        %v2626 = vpack.c.b16 %v2592, %v2590
        %v2627 = vpack.c.b16 %v2593, %v2591
        %v2628 = vpack.c.b16 %v2596, %v2594
        %v2629 = vpack.c.b16 %v2597, %v2595
        %2662 = vmatprep.subr.bf16.mxu0 %v2599
        %2663 = vmatpush1.bf16.msra.mxu0 %v2598
        %2664 = vmatprep.subr.bf16.mxu0 %v2601
        %2665 = vmatpush1.bf16.msra.mxu0 %v2600
        %2666 = vmatprep.subr.bf16.mxu0 %v2603
        %2667 = vmatpush1.bf16.msra.mxu0 %v2602
        %2668 = vmatprep.subr.bf16.mxu0 %v2605
        %2669 = vmatpush1.bf16.msra.mxu0 %v2604
        %2670 = vmatprep.subr.bf16.mxu0 %v2607
        %2671 = vmatpush1.bf16.msra.mxu0 %v2606
        %2672 = vmatprep.subr.bf16.mxu0 %v2609
        %2673 = vmatpush1.bf16.msra.mxu0 %v2608
        %2674 = vmatprep.subr.bf16.mxu0 %v2611
        %2675 = vmatpush1.bf16.msra.mxu0 %v2610
        %2676 = vmatprep.subr.bf16.mxu0 %v2613
        %2677 = vmatpush1.bf16.msra.mxu0 %v2612
        %2678 = vmatprep.subr.bf16.mxu0 %v2615
        %2679 = vmatpush1.bf16.msra.mxu0 %v2614
        %2680 = vmatprep.subr.bf16.mxu0 %v2617
        %2681 = vmatpush1.bf16.msra.mxu0 %v2616
        %2682 = vmatprep.subr.bf16.mxu0 %v2619
        %2683 = vmatpush1.bf16.msra.mxu0 %v2618
        %2684 = vmatprep.subr.bf16.mxu0 %v2621
        %2685 = vmatpush1.bf16.msra.mxu0 %v2620
        %2686 = vmatprep.subr.bf16.mxu0 %v2623
        %2687 = vmatpush1.bf16.msra.mxu0 %v2622
        %2688 = vmatprep.subr.bf16.mxu0 %v2625
        %2689 = vmatpush1.bf16.msra.mxu0 %v2624
        %2690 = vmatprep.subr.bf16.mxu0 %v2627
        %2691 = vmatpush1.bf16.msra.mxu0 %v2626
        %2692 = vmatprep.subr.bf16.mxu0 %v2629
        %2693 = vmatpush1.bf16.msra.mxu0 %v2628
        %2694 = vmatprep.mubr.bf16.mxu0 %v2476
        %2695 = vmatmul.mubr.bf16.gmra.mrb[0].mxu0 %v2475
        %v2696 = vpop.f32.mrb[0].mxu0
        %v2697 = vadd.f32 %v2495, %v2696
        %v2698 = vpop.f32.mrb[0].mxu0
        %v2699 = vadd.f32 %v2499, %v2698
        %v2700 = vpop.f32.mrb[0].mxu0
        %v2701 = vadd.f32 %v2495, %v2700
        %v2702 = vpop.f32.mrb[0].mxu0
        %v2703 = vadd.f32 %v2499, %v2702
        %2704 = vmatprep.mubr.bf16.mxu0 %v2478
        %2705 = vmatmul.mubr.bf16.gmra.mrb[0].mxu0 %v2477
        %v2706 = vpop.f32.mrb[0].mxu0
        %v2707 = vadd.f32 %v2495, %v2706
        %v2708 = vpop.f32.mrb[0].mxu0
        %v2709 = vadd.f32 %v2499, %v2708
        %v2710 = vpop.f32.mrb[0].mxu0
        %v2711 = vadd.f32 %v2495, %v2710
        %v2712 = vpop.f32.mrb[0].mxu0
        %v2713 = vadd.f32 %v2499, %v2712
        %2714 = vmatprep.mubr.bf16.mxu0 %v2480
        %2715 = vmatmul.mubr.bf16.gmra.mrb[0].mxu0 %v2479
        %v2716 = vpop.f32.mrb[0].mxu0
        %v2717 = vadd.f32 %v2495, %v2716
        %v2718 = vpop.f32.mrb[0].mxu0
        %v2719 = vadd.f32 %v2499, %v2718
        %v2720 = vpop.f32.mrb[0].mxu0
        %v2721 = vadd.f32 %v2495, %v2720
        %v2722 = vpop.f32.mrb[0].mxu0
        %v2723 = vadd.f32 %v2499, %v2722
        %2724 = vmatprep.mubr.bf16.mxu0 %v2482
        %2725 = vmatmul.mubr.bf16.gmra.mrb[0].mxu0 %v2481
        %v2726 = vpop.f32.mrb[0].mxu0
        %v2727 = vadd.f32 %v2495, %v2726
        %v2728 = vpop.f32.mrb[0].mxu0
        %v2729 = vadd.f32 %v2499, %v2728
        %v2730 = vpop.f32.mrb[0].mxu0
        %v2731 = vadd.f32 %v2495, %v2730
        %v2732 = vpop.f32.mrb[0].mxu0
        %v2733 = vadd.f32 %v2499, %v2732
        %2734 = vmatprep.mubr.bf16.mxu0 %v2484
        %2735 = vmatmul.mubr.bf16.gmra.mrb[0].mxu0 %v2483
        %v2736 = vpop.f32.mrb[0].mxu0
        %v2737 = vadd.f32 %v2495, %v2736
        %v2738 = vpop.f32.mrb[0].mxu0
        %v2739 = vadd.f32 %v2499, %v2738
        %v2740 = vpop.f32.mrb[0].mxu0
        %v2741 = vadd.f32 %v2495, %v2740
        %v2742 = vpop.f32.mrb[0].mxu0
        %v2743 = vadd.f32 %v2499, %v2742
        %2744 = vmatprep.mubr.bf16.mxu0 %v2486
        %2745 = vmatmul.mubr.bf16.gmra.mrb[0].mxu0 %v2485
        %v2746 = vpop.f32.mrb[0].mxu0
        %v2747 = vadd.f32 %v2495, %v2746
        %v2748 = vpop.f32.mrb[0].mxu0
        %v2749 = vadd.f32 %v2499, %v2748
        %v2750 = vpop.f32.mrb[0].mxu0
        %v2751 = vadd.f32 %v2495, %v2750
        %v2752 = vpop.f32.mrb[0].mxu0
        %v2753 = vadd.f32 %v2499, %v2752
        %2754 = vmatprep.mubr.bf16.mxu0 %v2488
        %2755 = vmatmul.mubr.bf16.gmra.mrb[0].mxu0 %v2487
        %v2756 = vpop.f32.mrb[0].mxu0
        %v2757 = vadd.f32 %v2495, %v2756
        %v2758 = vpop.f32.mrb[0].mxu0
        %v2759 = vadd.f32 %v2499, %v2758
        %v2760 = vpop.f32.mrb[0].mxu0
        %v2761 = vadd.f32 %v2495, %v2760
        %v2762 = vpop.f32.mrb[0].mxu0
        %v2763 = vadd.f32 %v2499, %v2762
        %2764 = vmatprep.mubr.bf16.mxu0 %v2490
        %2765 = vmatmul.mubr.bf16.gmra.mrb[0].mxu0 %v2489
        %v2766 = vpop.f32.mrb[0].mxu0
        %v2767 = vadd.f32 %v2495, %v2766
        %v2768 = vpop.f32.mrb[0].mxu0
        %v2769 = vadd.f32 %v2499, %v2768
        %v2770 = vpop.f32.mrb[0].mxu0
        %v2771 = vadd.f32 %v2495, %v2770
        %v2772 = vpop.f32.mrb[0].mxu0
        %v2773 = vadd.f32 %v2499, %v2772
        %2774 = vdwg.mxu0
        %v2775 = vmax.f32 %v2697, 0.0
        %v2776 = vmax.f32 %v2699, 0.0
        %v2777 = vmax.f32 %v2701, 0.0
        %v2778 = vmax.f32 %v2703, 0.0
        %v2779 = vmax.f32 %v2707, 0.0
        %v2780 = vmax.f32 %v2709, 0.0
        %v2781 = vmax.f32 %v2711, 0.0
        %v2782 = vmax.f32 %v2713, 0.0
        %v2783 = vmax.f32 %v2717, 0.0
        %v2784 = vmax.f32 %v2719, 0.0
        %v2785 = vmax.f32 %v2721, 0.0
        %v2786 = vmax.f32 %v2723, 0.0
        %v2787 = vmax.f32 %v2727, 0.0
        %v2788 = vmax.f32 %v2729, 0.0
        %v2789 = vmax.f32 %v2731, 0.0
        %v2790 = vmax.f32 %v2733, 0.0
        %v2791 = vmax.f32 %v2737, 0.0
        %v2792 = vmax.f32 %v2739, 0.0
        %v2793 = vmax.f32 %v2741, 0.0
        %v2794 = vmax.f32 %v2743, 0.0
        %v2795 = vmax.f32 %v2747, 0.0
        %v2796 = vmax.f32 %v2749, 0.0
        %v2797 = vmax.f32 %v2751, 0.0
        %v2798 = vmax.f32 %v2753, 0.0
        %v2799 = vmax.f32 %v2757, 0.0
        %v2800 = vmax.f32 %v2759, 0.0
        %v2801 = vmax.f32 %v2761, 0.0
        %v2802 = vmax.f32 %v2763, 0.0
        %v2803 = vmax.f32 %v2767, 0.0
        %v2804 = vmax.f32 %v2769, 0.0
        %v2805 = vmax.f32 %v2771, 0.0
        %v2806 = vmax.f32 %v2773, 0.0
        %v2807 = vpack.c.bf16 %v2777, %v2775
        %v2808 = vpack.c.bf16 %v2778, %v2776
        %v2809 = vpack.c.bf16 %v2781, %v2779
        %v2810 = vpack.c.bf16 %v2782, %v2780
        %v2811 = vpack.c.bf16 %v2785, %v2783
        %v2812 = vpack.c.bf16 %v2786, %v2784
        %v2813 = vpack.c.bf16 %v2789, %v2787
        %v2814 = vpack.c.bf16 %v2790, %v2788
        %v2815 = vpack.c.bf16 %v2793, %v2791
        %v2816 = vpack.c.bf16 %v2794, %v2792
        %v2817 = vpack.c.bf16 %v2797, %v2795
        %v2818 = vpack.c.bf16 %v2798, %v2796
        %v2819 = vpack.c.bf16 %v2801, %v2799
        %v2820 = vpack.c.bf16 %v2802, %v2800
        %v2821 = vpack.c.bf16 %v2805, %v2803
        %v2822 = vpack.c.bf16 %v2806, %v2804
        %v2824 = vlaneseq
        %v2825 = vshrl.u32 %v2824, 7
        %v2826 = vsub.s32 0, %v2825
        %v2827 = vrot.slane %v1859, %v2826
        %v2828 = vlaneseq
        %v2829 = vshrl.u32 %v2828, 7
        %v2830 = vsub.s32 1, %v2829
        %v2831 = vrot.slane %v1859, %v2830
        %v2866 = vunpack.c.l.b16 %v1827
        %v2867 = vunpack.c.h.b16 %v1827
        %v2868 = vunpack.c.l.b16 %v1828
        %v2869 = vunpack.c.h.b16 %v1828
        %v2870 = vunpack.c.l.b16 %v1829
        %v2871 = vunpack.c.h.b16 %v1829
        %v2872 = vunpack.c.l.b16 %v1830
        %v2873 = vunpack.c.h.b16 %v1830
        %v2874 = vunpack.c.l.b16 %v1831
        %v2875 = vunpack.c.h.b16 %v1831
        %v2876 = vunpack.c.l.b16 %v1832
        %v2877 = vunpack.c.h.b16 %v1832
        %v2878 = vunpack.c.l.b16 %v1833
        %v2879 = vunpack.c.h.b16 %v1833
        %v2880 = vunpack.c.l.b16 %v1834
        %v2881 = vunpack.c.h.b16 %v1834
        %v2882 = vunpack.c.l.b16 %v1835
        %v2883 = vunpack.c.h.b16 %v1835
        %v2884 = vunpack.c.l.b16 %v1836
        %v2885 = vunpack.c.h.b16 %v1836
        %v2886 = vunpack.c.l.b16 %v1837
        %v2887 = vunpack.c.h.b16 %v1837
        %v2888 = vunpack.c.l.b16 %v1838
        %v2889 = vunpack.c.h.b16 %v1838
        %v2890 = vunpack.c.l.b16 %v1839
        %v2891 = vunpack.c.h.b16 %v1839
        %v2892 = vunpack.c.l.b16 %v1840
        %v2893 = vunpack.c.h.b16 %v1840
        %v2894 = vunpack.c.l.b16 %v1841
        %v2895 = vunpack.c.h.b16 %v1841
        %v2896 = vunpack.c.l.b16 %v1842
        %v2897 = vunpack.c.h.b16 %v1842
        %v2898 = vunpack.c.l.b16 %v1843
        %v2899 = vunpack.c.h.b16 %v1843
        %v2900 = vunpack.c.l.b16 %v1844
        %v2901 = vunpack.c.h.b16 %v1844
        %v2902 = vunpack.c.l.b16 %v1845
        %v2903 = vunpack.c.h.b16 %v1845
        %v2904 = vunpack.c.l.b16 %v1846
        %v2905 = vunpack.c.h.b16 %v1846
        %v2906 = vunpack.c.l.b16 %v1847
        %v2907 = vunpack.c.h.b16 %v1847
        %v2908 = vunpack.c.l.b16 %v1848
        %v2909 = vunpack.c.h.b16 %v1848
        %v2910 = vunpack.c.l.b16 %v1849
        %v2911 = vunpack.c.h.b16 %v1849
        %v2912 = vunpack.c.l.b16 %v1850
        %v2913 = vunpack.c.h.b16 %v1850
        %v2914 = vunpack.c.l.b16 %v1851
        %v2915 = vunpack.c.h.b16 %v1851
        %v2916 = vunpack.c.l.b16 %v1852
        %v2917 = vunpack.c.h.b16 %v1852
        %v2918 = vunpack.c.l.b16 %v1853
        %v2919 = vunpack.c.h.b16 %v1853
        %v2920 = vunpack.c.l.b16 %v1854
        %v2921 = vunpack.c.h.b16 %v1854
        %v2922 = vunpack.c.l.b16 %v1855
        %v2923 = vunpack.c.h.b16 %v1855
        %v2924 = vunpack.c.l.b16 %v1856
        %v2925 = vunpack.c.h.b16 %v1856
        %v2926 = vunpack.c.l.b16 %v1857
        %v2927 = vunpack.c.h.b16 %v1857
        %v2928 = vunpack.c.l.b16 %v1858
        %v2929 = vunpack.c.h.b16 %v1858
        %v2930 = vpack.c.b16 %v2868, %v2866
        %v2931 = vpack.c.b16 %v2869, %v2867
        %v2932 = vpack.c.b16 %v2872, %v2870
        %v2933 = vpack.c.b16 %v2873, %v2871
        %v2934 = vpack.c.b16 %v2876, %v2874
        %v2935 = vpack.c.b16 %v2877, %v2875
        %v2936 = vpack.c.b16 %v2880, %v2878
        %v2937 = vpack.c.b16 %v2881, %v2879
        %v2938 = vpack.c.b16 %v2884, %v2882
        %v2939 = vpack.c.b16 %v2885, %v2883
        %v2940 = vpack.c.b16 %v2888, %v2886
        %v2941 = vpack.c.b16 %v2889, %v2887
        %v2942 = vpack.c.b16 %v2892, %v2890
        %v2943 = vpack.c.b16 %v2893, %v2891
        %v2944 = vpack.c.b16 %v2896, %v2894
        %v2945 = vpack.c.b16 %v2897, %v2895
        %v2946 = vpack.c.b16 %v2900, %v2898
        %v2947 = vpack.c.b16 %v2901, %v2899
        %v2948 = vpack.c.b16 %v2904, %v2902
        %v2949 = vpack.c.b16 %v2905, %v2903
        %v2950 = vpack.c.b16 %v2908, %v2906
        %v2951 = vpack.c.b16 %v2909, %v2907
        %v2952 = vpack.c.b16 %v2912, %v2910
        %v2953 = vpack.c.b16 %v2913, %v2911
        %v2954 = vpack.c.b16 %v2916, %v2914
        %v2955 = vpack.c.b16 %v2917, %v2915
        %v2956 = vpack.c.b16 %v2920, %v2918
        %v2957 = vpack.c.b16 %v2921, %v2919
        %v2958 = vpack.c.b16 %v2924, %v2922
        %v2959 = vpack.c.b16 %v2925, %v2923
        %v2960 = vpack.c.b16 %v2928, %v2926
        %v2961 = vpack.c.b16 %v2929, %v2927
        %2994 = vmatprep.subr.bf16.mxu0 %v2931
        %2995 = vmatpush1.bf16.msra.mxu0 %v2930
        %2996 = vmatprep.subr.bf16.mxu0 %v2933
        %2997 = vmatpush1.bf16.msra.mxu0 %v2932
        %2998 = vmatprep.subr.bf16.mxu0 %v2935
        %2999 = vmatpush1.bf16.msra.mxu0 %v2934
        %3000 = vmatprep.subr.bf16.mxu0 %v2937
        %3001 = vmatpush1.bf16.msra.mxu0 %v2936
        %3002 = vmatprep.subr.bf16.mxu0 %v2939
        %3003 = vmatpush1.bf16.msra.mxu0 %v2938
        %3004 = vmatprep.subr.bf16.mxu0 %v2941
        %3005 = vmatpush1.bf16.msra.mxu0 %v2940
        %3006 = vmatprep.subr.bf16.mxu0 %v2943
        %3007 = vmatpush1.bf16.msra.mxu0 %v2942
        %3008 = vmatprep.subr.bf16.mxu0 %v2945
        %3009 = vmatpush1.bf16.msra.mxu0 %v2944
        %3010 = vmatprep.subr.bf16.mxu0 %v2947
        %3011 = vmatpush1.bf16.msra.mxu0 %v2946
        %3012 = vmatprep.subr.bf16.mxu0 %v2949
        %3013 = vmatpush1.bf16.msra.mxu0 %v2948
        %3014 = vmatprep.subr.bf16.mxu0 %v2951
        %3015 = vmatpush1.bf16.msra.mxu0 %v2950
        %3016 = vmatprep.subr.bf16.mxu0 %v2953
        %3017 = vmatpush1.bf16.msra.mxu0 %v2952
        %3018 = vmatprep.subr.bf16.mxu0 %v2955
        %3019 = vmatpush1.bf16.msra.mxu0 %v2954
        %3020 = vmatprep.subr.bf16.mxu0 %v2957
        %3021 = vmatpush1.bf16.msra.mxu0 %v2956
        %3022 = vmatprep.subr.bf16.mxu0 %v2959
        %3023 = vmatpush1.bf16.msra.mxu0 %v2958
        %3024 = vmatprep.subr.bf16.mxu0 %v2961
        %3025 = vmatpush1.bf16.msra.mxu0 %v2960
        %3026 = vmatprep.mubr.bf16.mxu0 %v2808
        %3027 = vmatmul.mubr.bf16.gmra.mrb[0].mxu0 %v2807
        %v3028 = vpop.f32.mrb[0].mxu0
        %v3029 = vadd.f32 %v2827, %v3028
        %v3030 = vpop.f32.mrb[0].mxu0
        %v3031 = vadd.f32 %v2831, %v3030
        %v3032 = vpop.f32.mrb[0].mxu0
        %v3033 = vadd.f32 %v2827, %v3032
        %v3034 = vpop.f32.mrb[0].mxu0
        %v3035 = vadd.f32 %v2831, %v3034
        %3036 = vmatprep.mubr.bf16.mxu0 %v2810
        %3037 = vmatmul.mubr.bf16.gmra.mrb[0].mxu0 %v2809
        %v3038 = vpop.f32.mrb[0].mxu0
        %v3039 = vadd.f32 %v2827, %v3038
        %v3040 = vpop.f32.mrb[0].mxu0
        %v3041 = vadd.f32 %v2831, %v3040
        %v3042 = vpop.f32.mrb[0].mxu0
        %v3043 = vadd.f32 %v2827, %v3042
        %v3044 = vpop.f32.mrb[0].mxu0
        %v3045 = vadd.f32 %v2831, %v3044
        %3046 = vmatprep.mubr.bf16.mxu0 %v2812
        %3047 = vmatmul.mubr.bf16.gmra.mrb[0].mxu0 %v2811
        %v3048 = vpop.f32.mrb[0].mxu0
        %v3049 = vadd.f32 %v2827, %v3048
        %v3050 = vpop.f32.mrb[0].mxu0
        %v3051 = vadd.f32 %v2831, %v3050
        %v3052 = vpop.f32.mrb[0].mxu0
        %v3053 = vadd.f32 %v2827, %v3052
        %v3054 = vpop.f32.mrb[0].mxu0
        %v3055 = vadd.f32 %v2831, %v3054
        %3056 = vmatprep.mubr.bf16.mxu0 %v2814
        %3057 = vmatmul.mubr.bf16.gmra.mrb[0].mxu0 %v2813
        %v3058 = vpop.f32.mrb[0].mxu0
        %v3059 = vadd.f32 %v2827, %v3058
        %v3060 = vpop.f32.mrb[0].mxu0
        %v3061 = vadd.f32 %v2831, %v3060
        %v3062 = vpop.f32.mrb[0].mxu0
        %v3063 = vadd.f32 %v2827, %v3062
        %v3064 = vpop.f32.mrb[0].mxu0
        %v3065 = vadd.f32 %v2831, %v3064
        %3066 = vmatprep.mubr.bf16.mxu0 %v2816
        %3067 = vmatmul.mubr.bf16.gmra.mrb[0].mxu0 %v2815
        %v3068 = vpop.f32.mrb[0].mxu0
        %v3069 = vadd.f32 %v2827, %v3068
        %v3070 = vpop.f32.mrb[0].mxu0
        %v3071 = vadd.f32 %v2831, %v3070
        %v3072 = vpop.f32.mrb[0].mxu0
        %v3073 = vadd.f32 %v2827, %v3072
        %v3074 = vpop.f32.mrb[0].mxu0
        %v3075 = vadd.f32 %v2831, %v3074
        %3076 = vmatprep.mubr.bf16.mxu0 %v2818
        %3077 = vmatmul.mubr.bf16.gmra.mrb[0].mxu0 %v2817
        %v3078 = vpop.f32.mrb[0].mxu0
        %v3079 = vadd.f32 %v2827, %v3078
        %v3080 = vpop.f32.mrb[0].mxu0
        %v3081 = vadd.f32 %v2831, %v3080
        %v3082 = vpop.f32.mrb[0].mxu0
        %v3083 = vadd.f32 %v2827, %v3082
        %v3084 = vpop.f32.mrb[0].mxu0
        %v3085 = vadd.f32 %v2831, %v3084
        %3086 = vmatprep.mubr.bf16.mxu0 %v2820
        %3087 = vmatmul.mubr.bf16.gmra.mrb[0].mxu0 %v2819
        %v3088 = vpop.f32.mrb[0].mxu0
        %v3089 = vadd.f32 %v2827, %v3088
        %v3090 = vpop.f32.mrb[0].mxu0
        %v3091 = vadd.f32 %v2831, %v3090
        %v3092 = vpop.f32.mrb[0].mxu0
        %v3093 = vadd.f32 %v2827, %v3092
        %v3094 = vpop.f32.mrb[0].mxu0
        %v3095 = vadd.f32 %v2831, %v3094
        %3096 = vmatprep.mubr.bf16.mxu0 %v2822
        %3097 = vmatmul.mubr.bf16.gmra.mrb[0].mxu0 %v2821
        %v3098 = vpop.f32.mrb[0].mxu0
        %v3099 = vadd.f32 %v2827, %v3098
        %v3100 = vpop.f32.mrb[0].mxu0
        %v3101 = vadd.f32 %v2831, %v3100
        %v3102 = vpop.f32.mrb[0].mxu0
        %v3103 = vadd.f32 %v2827, %v3102
        %v3104 = vpop.f32.mrb[0].mxu0
        %v3105 = vadd.f32 %v2831, %v3104
        %3106 = vdwg.mxu0
        %v3107 = vmax.f32 %v3029, 0.0
        %v3108 = vmax.f32 %v3031, 0.0
        %v3109 = vmax.f32 %v3033, 0.0
        %v3110 = vmax.f32 %v3035, 0.0
        %v3111 = vmax.f32 %v3039, 0.0
        %v3112 = vmax.f32 %v3041, 0.0
        %v3113 = vmax.f32 %v3043, 0.0
        %v3114 = vmax.f32 %v3045, 0.0
        %v3115 = vmax.f32 %v3049, 0.0
        %v3116 = vmax.f32 %v3051, 0.0
        %v3117 = vmax.f32 %v3053, 0.0
        %v3118 = vmax.f32 %v3055, 0.0
        %v3119 = vmax.f32 %v3059, 0.0
        %v3120 = vmax.f32 %v3061, 0.0
        %v3121 = vmax.f32 %v3063, 0.0
        %v3122 = vmax.f32 %v3065, 0.0
        %v3123 = vmax.f32 %v3069, 0.0
        %v3124 = vmax.f32 %v3071, 0.0
        %v3125 = vmax.f32 %v3073, 0.0
        %v3126 = vmax.f32 %v3075, 0.0
        %v3127 = vmax.f32 %v3079, 0.0
        %v3128 = vmax.f32 %v3081, 0.0
        %v3129 = vmax.f32 %v3083, 0.0
        %v3130 = vmax.f32 %v3085, 0.0
        %v3131 = vmax.f32 %v3089, 0.0
        %v3132 = vmax.f32 %v3091, 0.0
        %v3133 = vmax.f32 %v3093, 0.0
        %v3134 = vmax.f32 %v3095, 0.0
        %v3135 = vmax.f32 %v3099, 0.0
        %v3136 = vmax.f32 %v3101, 0.0
        %v3137 = vmax.f32 %v3103, 0.0
        %v3138 = vmax.f32 %v3105, 0.0
        %v3139 = vadd.f32 %v3107, %v2365
        %v3140 = vadd.f32 %v3108, %v2367
        %v3141 = vadd.f32 %v3109, %v2369
        %v3142 = vadd.f32 %v3110, %v2371
        %v3143 = vadd.f32 %v3111, %v2375
        %v3144 = vadd.f32 %v3112, %v2377
        %v3145 = vadd.f32 %v3113, %v2379
        %v3146 = vadd.f32 %v3114, %v2381
        %v3147 = vadd.f32 %v3115, %v2385
        %v3148 = vadd.f32 %v3116, %v2387
        %v3149 = vadd.f32 %v3117, %v2389
        %v3150 = vadd.f32 %v3118, %v2391
        %v3151 = vadd.f32 %v3119, %v2395
        %v3152 = vadd.f32 %v3120, %v2397
        %v3153 = vadd.f32 %v3121, %v2399
        %v3154 = vadd.f32 %v3122, %v2401
        %v3155 = vadd.f32 %v3123, %v2405
        %v3156 = vadd.f32 %v3124, %v2407
        %v3157 = vadd.f32 %v3125, %v2409
        %v3158 = vadd.f32 %v3126, %v2411
        %v3159 = vadd.f32 %v3127, %v2415
        %v3160 = vadd.f32 %v3128, %v2417
        %v3161 = vadd.f32 %v3129, %v2419
        %v3162 = vadd.f32 %v3130, %v2421
        %v3163 = vadd.f32 %v3131, %v2425
        %v3164 = vadd.f32 %v3132, %v2427
        %v3165 = vadd.f32 %v3133, %v2429
        %v3166 = vadd.f32 %v3134, %v2431
        %v3167 = vadd.f32 %v3135, %v2435
        %v3168 = vadd.f32 %v3136, %v2437
        %v3169 = vadd.f32 %v3137, %v2439
        %v3170 = vadd.f32 %v3138, %v2441
        %v3171 = vpack.c.bf16 %v3141, %v3139
        %v3172 = vpack.c.bf16 %v3142, %v3140
        %v3173 = vpack.c.bf16 %v3145, %v3143
        %v3174 = vpack.c.bf16 %v3146, %v3144
        %v3175 = vpack.c.bf16 %v3149, %v3147
        %v3176 = vpack.c.bf16 %v3150, %v3148
        %v3177 = vpack.c.bf16 %v3153, %v3151
        %v3178 = vpack.c.bf16 %v3154, %v3152
        %v3179 = vpack.c.bf16 %v3157, %v3155
        %v3180 = vpack.c.bf16 %v3158, %v3156
        %v3181 = vpack.c.bf16 %v3161, %v3159
        %v3182 = vpack.c.bf16 %v3162, %v3160
        %v3183 = vpack.c.bf16 %v3165, %v3163
        %v3184 = vpack.c.bf16 %v3166, %v3164
        %v3185 = vpack.c.bf16 %v3169, %v3167
        %v3186 = vpack.c.bf16 %v3170, %v3168
        %v3187 = vld [vmem:[#allocation2] sm:$0xf]
        %v3190 = vunpack.c.l.s4 1983009808
        %v3191 = vunpack.c.0.s8 %v3190
        %v3192 = vlaneseq
        %v3193 = vshrl.u32 %v3192, 7
        %v3194 = vsub.s32 %v3191, %v3193
        %v3195 = vrot.slane %v3187, %v3194
        %v3196 = vcombine.high %v3195, %v3195
        %3199 = vmatprep.subr.bf16.mxu0 %v3196
        %3200 = vmatpush1.bf16.xpose.msra.mxu0 %v3195
        %3201 = vmatprep.subr.bf16.mxu0 0
        %3202 = vmatpush1.bf16.xpose.msra.mxu0 0
        %3203 = vmatprep.subr.bf16.mxu0 0
        %3204 = vmatpush1.bf16.xpose.msra.mxu0 0
        %3205 = vmatprep.subr.bf16.mxu0 0
        %3206 = vmatpush1.bf16.xpose.msra.mxu0 0
        %3207 = vmatprep.subr.bf16.mxu0 0
        %3208 = vmatpush1.bf16.xpose.msra.mxu0 0
        %3209 = vmatprep.subr.bf16.mxu0 0
        %3210 = vmatpush1.bf16.xpose.msra.mxu0 0
        %3211 = vmatprep.subr.bf16.mxu0 0
        %3212 = vmatpush1.bf16.xpose.msra.mxu0 0
        %3213 = vmatprep.subr.bf16.mxu0 0
        %3214 = vmatpush1.bf16.xpose.msra.mxu0 0
        %3215 = vmatprep.subr.bf16.mxu0 0
        %3216 = vmatpush1.bf16.xpose.msra.mxu0 0
        %3217 = vmatprep.subr.bf16.mxu0 0
        %3218 = vmatpush1.bf16.xpose.msra.mxu0 0
        %3219 = vmatprep.subr.bf16.mxu0 0
        %3220 = vmatpush1.bf16.xpose.msra.mxu0 0
        %3221 = vmatprep.subr.bf16.mxu0 0
        %3222 = vmatpush1.bf16.xpose.msra.mxu0 0
        %3223 = vmatprep.subr.bf16.mxu0 0
        %3224 = vmatpush1.bf16.xpose.msra.mxu0 0
        %3225 = vmatprep.subr.bf16.mxu0 0
        %3226 = vmatpush1.bf16.xpose.msra.mxu0 0
        %3227 = vmatprep.subr.bf16.mxu0 0
        %3228 = vmatpush1.bf16.xpose.msra.mxu0 0
        %3229 = vmatprep.subr.bf16.mxu0 0
        %3230 = vmatpush1.bf16.xpose.msra.mxu0 0
        %3231 = vmatprep.mubr.bf16.mxu0 %v3172
        %3232 = vmatmul.mubr.bf16.gmra.mrb[0].mxu0 %v3171
        %v3233 = vpop.f32.mrb[0].mxu0
        %v3234 = vadd.f32 0.0, %v3233
        %v3235 = vpop.f32.mrb[0].mxu0
        %v3236 = vpop.f32.mrb[0].mxu0
        %v3237 = vadd.f32 0.0, %v3236
        %v3238 = vpop.f32.mrb[0].mxu0
        %3239 = vmatprep.mubr.bf16.mxu0 %v3174
        %3240 = vmatmul.mubr.bf16.gmra.mrb[0].mxu0 %v3173
        %v3241 = vpop.f32.mrb[0].mxu0
        %v3242 = vadd.f32 0.0, %v3241
        %v3243 = vpop.f32.mrb[0].mxu0
        %v3244 = vpop.f32.mrb[0].mxu0
        %v3245 = vadd.f32 0.0, %v3244
        %v3246 = vpop.f32.mrb[0].mxu0
        %3247 = vmatprep.mubr.bf16.mxu0 %v3176
        %3248 = vmatmul.mubr.bf16.gmra.mrb[0].mxu0 %v3175
        %v3249 = vpop.f32.mrb[0].mxu0
        %v3250 = vadd.f32 0.0, %v3249
        %v3251 = vpop.f32.mrb[0].mxu0
        %v3252 = vpop.f32.mrb[0].mxu0
        %v3253 = vadd.f32 0.0, %v3252
        %v3254 = vpop.f32.mrb[0].mxu0
        %3255 = vmatprep.mubr.bf16.mxu0 %v3178
        %3256 = vmatmul.mubr.bf16.gmra.mrb[0].mxu0 %v3177
        %v3257 = vpop.f32.mrb[0].mxu0
        %v3258 = vadd.f32 0.0, %v3257
        %v3259 = vpop.f32.mrb[0].mxu0
        %v3260 = vpop.f32.mrb[0].mxu0
        %v3261 = vadd.f32 0.0, %v3260
        %v3262 = vpop.f32.mrb[0].mxu0
        %3263 = vmatprep.mubr.bf16.mxu0 %v3180
        %3264 = vmatmul.mubr.bf16.gmra.mrb[0].mxu0 %v3179
        %v3265 = vpop.f32.mrb[0].mxu0
        %v3266 = vadd.f32 0.0, %v3265
        %v3267 = vpop.f32.mrb[0].mxu0
        %v3268 = vpop.f32.mrb[0].mxu0
        %v3269 = vadd.f32 0.0, %v3268
        %v3270 = vpop.f32.mrb[0].mxu0
        %3271 = vmatprep.mubr.bf16.mxu0 %v3182
        %3272 = vmatmul.mubr.bf16.gmra.mrb[0].mxu0 %v3181
        %v3273 = vpop.f32.mrb[0].mxu0
        %v3274 = vadd.f32 0.0, %v3273
        %v3275 = vpop.f32.mrb[0].mxu0
        %v3276 = vpop.f32.mrb[0].mxu0
        %v3277 = vadd.f32 0.0, %v3276
        %v3278 = vpop.f32.mrb[0].mxu0
        %3279 = vmatprep.mubr.bf16.mxu0 %v3184
        %3280 = vmatmul.mubr.bf16.gmra.mrb[0].mxu0 %v3183
        %v3281 = vpop.f32.mrb[0].mxu0
        %v3282 = vadd.f32 0.0, %v3281
        %v3283 = vpop.f32.mrb[0].mxu0
        %v3284 = vpop.f32.mrb[0].mxu0
        %v3285 = vadd.f32 0.0, %v3284
        %v3286 = vpop.f32.mrb[0].mxu0
        %3287 = vmatprep.mubr.bf16.mxu0 %v3186
        %3288 = vmatmul.mubr.bf16.gmra.mrb[0].mxu0 %v3185
        %v3289 = vpop.f32.mrb[0].mxu0
        %v3290 = vadd.f32 0.0, %v3289
        %v3291 = vpop.f32.mrb[0].mxu0
        %v3292 = vpop.f32.mrb[0].mxu0
        %v3293 = vadd.f32 0.0, %v3292
        %v3294 = vpop.f32.mrb[0].mxu0
        %3295 = vdwg.mxu0
        %v3296 = vlaneseq
        %v3297 = vand.u32 %v3296, 127
        %v3298 = vld [vmem:[%s634] sm:$0xff]
        %v3299 = vld [vmem:[%s634 + $0x8] sm:$0xff]
        %v3300 = vld [vmem:[%s634 + $0x10] sm:$0xff]
        %v3301 = vld [vmem:[%s634 + $0x18] sm:$0xff]
        %v3302 = vld [vmem:[%s634 + $0x20] sm:$0xff]
        %v3303 = vld [vmem:[%s634 + $0x28] sm:$0xff]
        %v3304 = vld [vmem:[%s634 + $0x30] sm:$0xff]
        %v3305 = vld [vmem:[%s634 + $0x38] sm:$0xff]
        %v3306 = vld [vmem:[%s634 + $0x40] sm:$0xff]
        %v3307 = vld [vmem:[%s634 + $0x48] sm:$0xff]
        %v3308 = vld [vmem:[%s634 + $0x50] sm:$0xff]
        %v3309 = vld [vmem:[%s634 + $0x58] sm:$0xff]
        %v3310 = vld [vmem:[%s634 + $0x60] sm:$0xff]
        %v3311 = vld [vmem:[%s634 + $0x68] sm:$0xff]
        %v3312 = vld [vmem:[%s634 + $0x70] sm:$0xff]
        %v3313 = vld [vmem:[%s634 + $0x78] sm:$0xff]
        %3314 = vset.pattern.permute.xlu0 0
        %3315 = vperm.xlu0 %3314, %v3298
        %v3316 = vpop.permute.xlu0 %3315
        %3317 = vset.pattern.permute.xlu0 0
        %3318 = vperm.xlu0 %3317, %v3299
        %v3319 = vpop.permute.xlu0 %3318
        %3320 = vset.pattern.permute.xlu0 0
        %3321 = vperm.xlu0 %3320, %v3300
        %v3322 = vpop.permute.xlu0 %3321
        %3323 = vset.pattern.permute.xlu0 0
        %3324 = vperm.xlu0 %3323, %v3301
        %v3325 = vpop.permute.xlu0 %3324
        %3326 = vset.pattern.permute.xlu0 0
        %3327 = vperm.xlu0 %3326, %v3302
        %v3328 = vpop.permute.xlu0 %3327
        %3329 = vset.pattern.permute.xlu0 0
        %3330 = vperm.xlu0 %3329, %v3303
        %v3331 = vpop.permute.xlu0 %3330
        %3332 = vset.pattern.permute.xlu0 0
        %3333 = vperm.xlu0 %3332, %v3304
        %v3334 = vpop.permute.xlu0 %3333
        %3335 = vset.pattern.permute.xlu0 0
        %3336 = vperm.xlu0 %3335, %v3305
        %v3337 = vpop.permute.xlu0 %3336
        %3338 = vset.pattern.permute.xlu0 0
        %3339 = vperm.xlu0 %3338, %v3306
        %v3340 = vpop.permute.xlu0 %3339
        %3341 = vset.pattern.permute.xlu0 0
        %3342 = vperm.xlu0 %3341, %v3307
        %v3343 = vpop.permute.xlu0 %3342
        %3344 = vset.pattern.permute.xlu0 0
        %3345 = vperm.xlu0 %3344, %v3308
        %v3346 = vpop.permute.xlu0 %3345
        %3347 = vset.pattern.permute.xlu0 0
        %3348 = vperm.xlu0 %3347, %v3309
        %v3349 = vpop.permute.xlu0 %3348
        %3350 = vset.pattern.permute.xlu0 0
        %3351 = vperm.xlu0 %3350, %v3310
        %v3352 = vpop.permute.xlu0 %3351
        %3353 = vset.pattern.permute.xlu0 0
        %3354 = vperm.xlu0 %3353, %v3311
        %v3355 = vpop.permute.xlu0 %3354
        %3356 = vset.pattern.permute.xlu0 0
        %3357 = vperm.xlu0 %3356, %v3312
        %v3358 = vpop.permute.xlu0 %3357
        %3359 = vset.pattern.permute.xlu0 0
        %3360 = vperm.xlu0 %3359, %v3313
        %v3361 = vpop.permute.xlu0 %3360
        %vm3362 = vcmp.eq.s32.totalorder %v3297, %v3316
        %vm3363 = vcmp.eq.s32.totalorder %v3297, %v3319
        %vm3364 = vcmp.eq.s32.totalorder %v3297, %v3322
        %vm3365 = vcmp.eq.s32.totalorder %v3297, %v3325
        %vm3366 = vcmp.eq.s32.totalorder %v3297, %v3328
        %vm3367 = vcmp.eq.s32.totalorder %v3297, %v3331
        %vm3368 = vcmp.eq.s32.totalorder %v3297, %v3334
        %vm3369 = vcmp.eq.s32.totalorder %v3297, %v3337
        %vm3370 = vcmp.eq.s32.totalorder %v3297, %v3340
        %vm3371 = vcmp.eq.s32.totalorder %v3297, %v3343
        %vm3372 = vcmp.eq.s32.totalorder %v3297, %v3346
        %vm3373 = vcmp.eq.s32.totalorder %v3297, %v3349
        %vm3374 = vcmp.eq.s32.totalorder %v3297, %v3352
        %vm3375 = vcmp.eq.s32.totalorder %v3297, %v3355
        %vm3376 = vcmp.eq.s32.totalorder %v3297, %v3358
        %vm3377 = vcmp.eq.s32.totalorder %v3297, %v3361
        %v3378 = vsub.f32 0.0, %v3234
        %v3379 = vsub.f32 0.0, %v3237
        %v3380 = vsub.f32 0.0, %v3242
        %v3381 = vsub.f32 0.0, %v3245
        %v3382 = vsub.f32 0.0, %v3250
        %v3383 = vsub.f32 0.0, %v3253
        %v3384 = vsub.f32 0.0, %v3258
        %v3385 = vsub.f32 0.0, %v3261
        %v3386 = vsub.f32 0.0, %v3266
        %v3387 = vsub.f32 0.0, %v3269
        %v3388 = vsub.f32 0.0, %v3274
        %v3389 = vsub.f32 0.0, %v3277
        %v3390 = vsub.f32 0.0, %v3282
        %v3391 = vsub.f32 0.0, %v3285
        %v3392 = vsub.f32 0.0, %v3290
        %v3393 = vsub.f32 0.0, %v3293
        %v3394 = vmax.f32 %v3378, 0.0
        %v3395 = vmax.f32 %v3379, 0.0
        %v3396 = vmax.f32 %v3380, 0.0
        %v3397 = vmax.f32 %v3381, 0.0
        %v3398 = vmax.f32 %v3382, 0.0
        %v3399 = vmax.f32 %v3383, 0.0
        %v3400 = vmax.f32 %v3384, 0.0
        %v3401 = vmax.f32 %v3385, 0.0
        %v3402 = vmax.f32 %v3386, 0.0
        %v3403 = vmax.f32 %v3387, 0.0
        %v3404 = vmax.f32 %v3388, 0.0
        %v3405 = vmax.f32 %v3389, 0.0
        %v3406 = vmax.f32 %v3390, 0.0
        %v3407 = vmax.f32 %v3391, 0.0
        %v3408 = vmax.f32 %v3392, 0.0
        %v3409 = vmax.f32 %v3393, 0.0
        %v3410 = vand.u32 2147483647, %v3234
        %v3411 = vand.u32 2147483647, %v3237
        %v3412 = vand.u32 2147483647, %v3242
        %v3413 = vand.u32 2147483647, %v3245
        %v3414 = vand.u32 2147483647, %v3250
        %v3415 = vand.u32 2147483647, %v3253
        %v3416 = vand.u32 2147483647, %v3258
        %v3417 = vand.u32 2147483647, %v3261
        %v3418 = vand.u32 2147483647, %v3266
        %v3419 = vand.u32 2147483647, %v3269
        %v3420 = vand.u32 2147483647, %v3274
        %v3421 = vand.u32 2147483647, %v3277
        %v3422 = vand.u32 2147483647, %v3282
        %v3423 = vand.u32 2147483647, %v3285
        %v3424 = vand.u32 2147483647, %v3290
        %v3425 = vand.u32 2147483647, %v3293
        %v3426 = vsub.f32 0.0, %v3410
        %v3427 = vsub.f32 0.0, %v3411
        %v3428 = vsub.f32 0.0, %v3412
        %v3429 = vsub.f32 0.0, %v3413
        %v3430 = vsub.f32 0.0, %v3414
        %v3431 = vsub.f32 0.0, %v3415
        %v3432 = vsub.f32 0.0, %v3416
        %v3433 = vsub.f32 0.0, %v3417
        %v3434 = vsub.f32 0.0, %v3418
        %v3435 = vsub.f32 0.0, %v3419
        %v3436 = vsub.f32 0.0, %v3420
        %v3437 = vsub.f32 0.0, %v3421
        %v3438 = vsub.f32 0.0, %v3422
        %v3439 = vsub.f32 0.0, %v3423
        %v3440 = vsub.f32 0.0, %v3424
        %v3441 = vsub.f32 0.0, %v3425
        %v3442 = vmul.f32 %v3426, 1.442695
        %v3443 = vpow.pop %v3442
        %v3444 = vmul.f32 %v3427, 1.442695
        %v3445 = vpow.pop %v3444
        %v3446 = vmul.f32 %v3428, 1.442695
        %v3447 = vpow.pop %v3446
        %v3448 = vmul.f32 %v3429, 1.442695
        %v3449 = vpow.pop %v3448
        %v3450 = vmul.f32 %v3430, 1.442695
        %v3451 = vpow.pop %v3450
        %v3452 = vmul.f32 %v3431, 1.442695
        %v3453 = vpow.pop %v3452
        %v3454 = vmul.f32 %v3432, 1.442695
        %v3455 = vpow.pop %v3454
        %v3456 = vmul.f32 %v3433, 1.442695
        %v3457 = vpow.pop %v3456
        %v3458 = vmul.f32 %v3434, 1.442695
        %v3459 = vpow.pop %v3458
        %v3460 = vmul.f32 %v3435, 1.442695
        %v3461 = vpow.pop %v3460
        %v3462 = vmul.f32 %v3436, 1.442695
        %v3463 = vpow.pop %v3462
        %v3464 = vmul.f32 %v3437, 1.442695
        %v3465 = vpow.pop %v3464
        %v3466 = vmul.f32 %v3438, 1.442695
        %v3467 = vpow.pop %v3466
        %v3468 = vmul.f32 %v3439, 1.442695
        %v3469 = vpow.pop %v3468
        %v3470 = vmul.f32 %v3440, 1.442695
        %v3471 = vpow.pop %v3470
        %v3472 = vmul.f32 %v3441, 1.442695
        %v3473 = vpow.pop %v3472
        %v3474 = vadd.f32 %v3443, 1.0
        %v3475 = vadd.f32 %v3445, 1.0
        %v3476 = vadd.f32 %v3447, 1.0
        %v3477 = vadd.f32 %v3449, 1.0
        %v3478 = vadd.f32 %v3451, 1.0
        %v3479 = vadd.f32 %v3453, 1.0
        %v3480 = vadd.f32 %v3455, 1.0
        %v3481 = vadd.f32 %v3457, 1.0
        %v3482 = vadd.f32 %v3459, 1.0
        %v3483 = vadd.f32 %v3461, 1.0
        %v3484 = vadd.f32 %v3463, 1.0
        %v3485 = vadd.f32 %v3465, 1.0
        %v3486 = vadd.f32 %v3467, 1.0
        %v3487 = vadd.f32 %v3469, 1.0
        %v3488 = vadd.f32 %v3471, 1.0
        %v3489 = vadd.f32 %v3473, 1.0
        %v3490 = vlog2.pop %v3474
        %v3491 = vmul.f32 %v3490, 0.6931472
        %v3492 = vlog2.pop %v3475
        %v3493 = vmul.f32 %v3492, 0.6931472
        %v3494 = vlog2.pop %v3476
        %v3495 = vmul.f32 %v3494, 0.6931472
        %v3496 = vlog2.pop %v3477
        %v3497 = vmul.f32 %v3496, 0.6931472
        %v3498 = vlog2.pop %v3478
        %v3499 = vmul.f32 %v3498, 0.6931472
        %v3500 = vlog2.pop %v3479
        %v3501 = vmul.f32 %v3500, 0.6931472
        %v3502 = vlog2.pop %v3480
        %v3503 = vmul.f32 %v3502, 0.6931472
        %v3504 = vlog2.pop %v3481
        %v3505 = vmul.f32 %v3504, 0.6931472
        %v3506 = vlog2.pop %v3482
        %v3507 = vmul.f32 %v3506, 0.6931472
        %v3508 = vlog2.pop %v3483
        %v3509 = vmul.f32 %v3508, 0.6931472
        %v3510 = vlog2.pop %v3484
        %v3511 = vmul.f32 %v3510, 0.6931472
        %v3512 = vlog2.pop %v3485
        %v3513 = vmul.f32 %v3512, 0.6931472
        %v3514 = vlog2.pop %v3486
        %v3515 = vmul.f32 %v3514, 0.6931472
        %v3516 = vlog2.pop %v3487
        %v3517 = vmul.f32 %v3516, 0.6931472
        %v3518 = vlog2.pop %v3488
        %v3519 = vmul.f32 %v3518, 0.6931472
        %v3520 = vlog2.pop %v3489
        %v3521 = vmul.f32 %v3520, 0.6931472
        %v3522 = vadd.f32 %v3394, %v3491
        %v3523 = vadd.f32 %v3395, %v3493
        %v3524 = vadd.f32 %v3396, %v3495
        %v3525 = vadd.f32 %v3397, %v3497
        %v3526 = vadd.f32 %v3398, %v3499
        %v3527 = vadd.f32 %v3399, %v3501
        %v3528 = vadd.f32 %v3400, %v3503
        %v3529 = vadd.f32 %v3401, %v3505
        %v3530 = vadd.f32 %v3402, %v3507
        %v3531 = vadd.f32 %v3403, %v3509
        %v3532 = vadd.f32 %v3404, %v3511
        %v3533 = vadd.f32 %v3405, %v3513
        %v3534 = vadd.f32 %v3406, %v3515
        %v3535 = vadd.f32 %v3407, %v3517
        %v3536 = vadd.f32 %v3408, %v3519
        %v3537 = vadd.f32 %v3409, %v3521
        %v3538 = vsub.f32 0.6931472, %v3522
        %v3539 = vsub.f32 0.6931472, %v3523
        %v3540 = vsub.f32 0.6931472, %v3524
        %v3541 = vsub.f32 0.6931472, %v3525
        %v3542 = vsub.f32 0.6931472, %v3526
        %v3543 = vsub.f32 0.6931472, %v3527
        %v3544 = vsub.f32 0.6931472, %v3528
        %v3545 = vsub.f32 0.6931472, %v3529
        %v3546 = vsub.f32 0.6931472, %v3530
        %v3547 = vsub.f32 0.6931472, %v3531
        %v3548 = vsub.f32 0.6931472, %v3532
        %v3549 = vsub.f32 0.6931472, %v3533
        %v3550 = vsub.f32 0.6931472, %v3534
        %v3551 = vsub.f32 0.6931472, %v3535
        %v3552 = vsub.f32 0.6931472, %v3536
        %v3553 = vsub.f32 0.6931472, %v3537
        %v3554 = vadd.f32 %v3522, %v3234
        %v3555 = vadd.f32 %v3523, %v3237
        %v3556 = vadd.f32 %v3524, %v3242
        %v3557 = vadd.f32 %v3525, %v3245
        %v3558 = vadd.f32 %v3526, %v3250
        %v3559 = vadd.f32 %v3527, %v3253
        %v3560 = vadd.f32 %v3528, %v3258
        %v3561 = vadd.f32 %v3529, %v3261
        %v3562 = vadd.f32 %v3530, %v3266
        %v3563 = vadd.f32 %v3531, %v3269
        %v3564 = vadd.f32 %v3532, %v3274
        %v3565 = vadd.f32 %v3533, %v3277
        %v3566 = vadd.f32 %v3534, %v3282
        %v3567 = vadd.f32 %v3535, %v3285
        %v3568 = vadd.f32 %v3536, %v3290
        %v3569 = vadd.f32 %v3537, %v3293
        %v3570 = vsub.f32 %v3554, 0.6931472
        %v3571 = vsub.f32 %v3555, 0.6931472
        %v3572 = vsub.f32 %v3556, 0.6931472
        %v3573 = vsub.f32 %v3557, 0.6931472
        %v3574 = vsub.f32 %v3558, 0.6931472
        %v3575 = vsub.f32 %v3559, 0.6931472
        %v3576 = vsub.f32 %v3560, 0.6931472
        %v3577 = vsub.f32 %v3561, 0.6931472
        %v3578 = vsub.f32 %v3562, 0.6931472
        %v3579 = vsub.f32 %v3563, 0.6931472
        %v3580 = vsub.f32 %v3564, 0.6931472
        %v3581 = vsub.f32 %v3565, 0.6931472
        %v3582 = vsub.f32 %v3566, 0.6931472
        %v3583 = vsub.f32 %v3567, 0.6931472
        %v3584 = vsub.f32 %v3568, 0.6931472
        %v3585 = vsub.f32 %v3569, 0.6931472
        %v3586 = vld [vmem:[#allocation3] sm:$0xff]
        %v3587 = vld [vmem:[#allocation3 + $0x8] sm:$0xff]
        %v3588 = vld [vmem:[#allocation3 + $0x10] sm:$0xff]
        %v3589 = vld [vmem:[#allocation3 + $0x18] sm:$0xff]
        %v3590 = vld [vmem:[#allocation3 + $0x20] sm:$0xff]
        %v3591 = vld [vmem:[#allocation3 + $0x28] sm:$0xff]
        %v3592 = vld [vmem:[#allocation3 + $0x30] sm:$0xff]
        %v3593 = vld [vmem:[#allocation3 + $0x38] sm:$0xff]
        %v3594 = vld [vmem:[#allocation3 + $0x40] sm:$0xff]
        %v3595 = vld [vmem:[#allocation3 + $0x48] sm:$0xff]
        %v3596 = vld [vmem:[#allocation3 + $0x50] sm:$0xff]
        %v3597 = vld [vmem:[#allocation3 + $0x58] sm:$0xff]
        %v3598 = vld [vmem:[#allocation3 + $0x60] sm:$0xff]
        %v3599 = vld [vmem:[#allocation3 + $0x68] sm:$0xff]
        %v3600 = vld [vmem:[#allocation3 + $0x70] sm:$0xff]
        %v3601 = vld [vmem:[#allocation3 + $0x78] sm:$0xff]
        %v3602 = vsel %vm3362, %v3538, 0.0
        %v3603 = vsel %vm3363, %v3539, 0.0
        %v3604 = vsel %vm3364, %v3540, 0.0
        %v3605 = vsel %vm3365, %v3541, 0.0
        %v3606 = vsel %vm3366, %v3542, 0.0
        %v3607 = vsel %vm3367, %v3543, 0.0
        %v3608 = vsel %vm3368, %v3544, 0.0
        %v3609 = vsel %vm3369, %v3545, 0.0
        %v3610 = vsel %vm3370, %v3546, 0.0
        %v3611 = vsel %vm3371, %v3547, 0.0
        %v3612 = vsel %vm3372, %v3548, 0.0
        %v3613 = vsel %vm3373, %v3549, 0.0
        %v3614 = vsel %vm3374, %v3550, 0.0
        %v3615 = vsel %vm3375, %v3551, 0.0
        %v3616 = vsel %vm3376, %v3552, 0.0
        %v3617 = vsel %vm3377, %v3553, 0.0
        %v3618 = vadd.f32 %v3586, %v3602
        %v3619 = vadd.f32 %v3587, %v3603
        %v3620 = vadd.f32 %v3588, %v3604
        %v3621 = vadd.f32 %v3589, %v3605
        %v3622 = vadd.f32 %v3590, %v3606
        %v3623 = vadd.f32 %v3591, %v3607
        %v3624 = vadd.f32 %v3592, %v3608
        %v3625 = vadd.f32 %v3593, %v3609
        %v3626 = vadd.f32 %v3594, %v3610
        %v3627 = vadd.f32 %v3595, %v3611
        %v3628 = vadd.f32 %v3596, %v3612
        %v3629 = vadd.f32 %v3597, %v3613
        %v3630 = vadd.f32 %v3598, %v3614
        %v3631 = vadd.f32 %v3599, %v3615
        %v3632 = vadd.f32 %v3600, %v3616
        %v3633 = vadd.f32 %v3601, %v3617
        %vm3634 = vcmask 31744
        %3635 = vst.msk [vmem:[#allocation3] sm:$0xff] %vm3634, %v3618
        %3636 = vst.msk [vmem:[#allocation3 + $0x8] sm:$0xff] %vm3634, %v3619
        %3637 = vst.msk [vmem:[#allocation3 + $0x10] sm:$0xff] %vm3634, %v3620
        %3638 = vst.msk [vmem:[#allocation3 + $0x18] sm:$0xff] %vm3634, %v3621
        %3639 = vst.msk [vmem:[#allocation3 + $0x20] sm:$0xff] %vm3634, %v3622
        %3640 = vst.msk [vmem:[#allocation3 + $0x28] sm:$0xff] %vm3634, %v3623
        %3641 = vst.msk [vmem:[#allocation3 + $0x30] sm:$0xff] %vm3634, %v3624
        %3642 = vst.msk [vmem:[#allocation3 + $0x38] sm:$0xff] %vm3634, %v3625
        %3643 = vst.msk [vmem:[#allocation3 + $0x40] sm:$0xff] %vm3634, %v3626
        %3644 = vst.msk [vmem:[#allocation3 + $0x48] sm:$0xff] %vm3634, %v3627
        %3645 = vst.msk [vmem:[#allocation3 + $0x50] sm:$0xff] %vm3634, %v3628
        %3646 = vst.msk [vmem:[#allocation3 + $0x58] sm:$0xff] %vm3634, %v3629
        %3647 = vst.msk [vmem:[#allocation3 + $0x60] sm:$0xff] %vm3634, %v3630
        %3648 = vst.msk [vmem:[#allocation3 + $0x68] sm:$0xff] %vm3634, %v3631
        %3649 = vst.msk [vmem:[#allocation3 + $0x70] sm:$0xff] %vm3634, %v3632
        %3650 = vst.msk [vmem:[#allocation3 + $0x78] sm:$0xff] %vm3634, %v3633
        %v3651 = vld [vmem:[#allocation4] sm:$0xff]
        %v3652 = vld [vmem:[#allocation4 + $0x8] sm:$0xff]
        %v3653 = vld [vmem:[#allocation4 + $0x10] sm:$0xff]
        %v3654 = vld [vmem:[#allocation4 + $0x18] sm:$0xff]
        %v3655 = vld [vmem:[#allocation4 + $0x20] sm:$0xff]
        %v3656 = vld [vmem:[#allocation4 + $0x28] sm:$0xff]
        %v3657 = vld [vmem:[#allocation4 + $0x30] sm:$0xff]
        %v3658 = vld [vmem:[#allocation4 + $0x38] sm:$0xff]
        %v3659 = vld [vmem:[#allocation4 + $0x40] sm:$0xff]
        %v3660 = vld [vmem:[#allocation4 + $0x48] sm:$0xff]
        %v3661 = vld [vmem:[#allocation4 + $0x50] sm:$0xff]
        %v3662 = vld [vmem:[#allocation4 + $0x58] sm:$0xff]
        %v3663 = vld [vmem:[#allocation4 + $0x60] sm:$0xff]
        %v3664 = vld [vmem:[#allocation4 + $0x68] sm:$0xff]
        %v3665 = vld [vmem:[#allocation4 + $0x70] sm:$0xff]
        %v3666 = vld [vmem:[#allocation4 + $0x78] sm:$0xff]
        %v3667 = vsel %vm3362, 0.0, %v3570
        %v3668 = vsel %vm3363, 0.0, %v3571
        %v3669 = vsel %vm3364, 0.0, %v3572
        %v3670 = vsel %vm3365, 0.0, %v3573
        %v3671 = vsel %vm3366, 0.0, %v3574
        %v3672 = vsel %vm3367, 0.0, %v3575
        %v3673 = vsel %vm3368, 0.0, %v3576
        %v3674 = vsel %vm3369, 0.0, %v3577
        %v3675 = vsel %vm3370, 0.0, %v3578
        %v3676 = vsel %vm3371, 0.0, %v3579
        %v3677 = vsel %vm3372, 0.0, %v3580
        %v3678 = vsel %vm3373, 0.0, %v3581
        %v3679 = vsel %vm3374, 0.0, %v3582
        %v3680 = vsel %vm3375, 0.0, %v3583
        %v3681 = vsel %vm3376, 0.0, %v3584
        %v3682 = vsel %vm3377, 0.0, %v3585
        %v3683 = vadd.f32 %v3651, %v3667
        %v3684 = vadd.f32 %v3652, %v3668
        %v3685 = vadd.f32 %v3653, %v3669
        %v3686 = vadd.f32 %v3654, %v3670
        %v3687 = vadd.f32 %v3655, %v3671
        %v3688 = vadd.f32 %v3656, %v3672
        %v3689 = vadd.f32 %v3657, %v3673
        %v3690 = vadd.f32 %v3658, %v3674
        %v3691 = vadd.f32 %v3659, %v3675
        %v3692 = vadd.f32 %v3660, %v3676
        %v3693 = vadd.f32 %v3661, %v3677
        %v3694 = vadd.f32 %v3662, %v3678
        %v3695 = vadd.f32 %v3663, %v3679
        %v3696 = vadd.f32 %v3664, %v3680
        %v3697 = vadd.f32 %v3665, %v3681
        %v3698 = vadd.f32 %v3666, %v3682
        %3699 = vst.msk [vmem:[#allocation4] sm:$0xff] %vm3634, %v3683
        %3700 = vst.msk [vmem:[#allocation4 + $0x8] sm:$0xff] %vm3634, %v3684
        %3701 = vst.msk [vmem:[#allocation4 + $0x10] sm:$0xff] %vm3634, %v3685
        %3702 = vst.msk [vmem:[#allocation4 + $0x18] sm:$0xff] %vm3634, %v3686
        %3703 = vst.msk [vmem:[#allocation4 + $0x20] sm:$0xff] %vm3634, %v3687
        %3704 = vst.msk [vmem:[#allocation4 + $0x28] sm:$0xff] %vm3634, %v3688
        %3705 = vst.msk [vmem:[#allocation4 + $0x30] sm:$0xff] %vm3634, %v3689
        %3706 = vst.msk [vmem:[#allocation4 + $0x38] sm:$0xff] %vm3634, %v3690
        %3707 = vst.msk [vmem:[#allocation4 + $0x40] sm:$0xff] %vm3634, %v3691
        %3708 = vst.msk [vmem:[#allocation4 + $0x48] sm:$0xff] %vm3634, %v3692
        %3709 = vst.msk [vmem:[#allocation4 + $0x50] sm:$0xff] %vm3634, %v3693
        %3710 = vst.msk [vmem:[#allocation4 + $0x58] sm:$0xff] %vm3634, %v3694
        %3711 = vst.msk [vmem:[#allocation4 + $0x60] sm:$0xff] %vm3634, %v3695
        %3712 = vst.msk [vmem:[#allocation4 + $0x68] sm:$0xff] %vm3634, %v3696
        %3713 = vst.msk [vmem:[#allocation4 + $0x70] sm:$0xff] %vm3634, %v3697
        %3714 = vst.msk [vmem:[#allocation4 + $0x78] sm:$0xff] %vm3634, %v3698
        // Predicated region
        $region117: #{infograph_forward.3} parent=79 // pred_check
          %p3715 = pneg %p650
        $region118: #{infograph_forward.3} parent=79 // pred_check_branch
          %3717 = sbr.rel (%p3715) target = $region120
        $region119: #{infograph_forward.3} parent=79 // pred_region
          %vm3718 = vcmp.eq.s32.totalorder %v3297, 0
          %v3719 = vld [vmem:[#allocation3] sm:$0xff]
          %v3720 = vld [vmem:[#allocation3 + $0x8] sm:$0xff]
          %v3721 = vld [vmem:[#allocation3 + $0x10] sm:$0xff]
          %v3722 = vld [vmem:[#allocation3 + $0x18] sm:$0xff]
          %v3723 = vld [vmem:[#allocation3 + $0x20] sm:$0xff]
          %v3724 = vld [vmem:[#allocation3 + $0x28] sm:$0xff]
          %v3725 = vld [vmem:[#allocation3 + $0x30] sm:$0xff]
          %v3726 = vld [vmem:[#allocation3 + $0x38] sm:$0xff]
          %v3727 = vld [vmem:[#allocation3 + $0x40] sm:$0xff]
          %v3728 = vld [vmem:[#allocation3 + $0x48] sm:$0xff]
          %v3729 = vld [vmem:[#allocation3 + $0x50] sm:$0xff]
          %v3730 = vld [vmem:[#allocation3 + $0x58] sm:$0xff]
          %v3731 = vld [vmem:[#allocation3 + $0x60] sm:$0xff]
          %v3732 = vld [vmem:[#allocation3 + $0x68] sm:$0xff]
          %v3733 = vld [vmem:[#allocation3 + $0x70] sm:$0xff]
          %v3734 = vld [vmem:[#allocation3 + $0x78] sm:$0xff]
          %v3735 = vsel %vm3634, %v3719, 0.0
          %v3736 = vsel %vm3634, %v3720, 0.0
          %v3737 = vadd.f32 %v3735, %v3736
          %v3738 = vsel %vm3634, %v3721, 0.0
          %v3739 = vadd.f32 %v3737, %v3738
          %v3740 = vsel %vm3634, %v3722, 0.0
          %v3741 = vadd.f32 %v3739, %v3740
          %v3742 = vsel %vm3634, %v3723, 0.0
          %v3743 = vadd.f32 %v3741, %v3742
          %v3744 = vsel %vm3634, %v3724, 0.0
          %v3745 = vadd.f32 %v3743, %v3744
          %v3746 = vsel %vm3634, %v3725, 0.0
          %v3747 = vadd.f32 %v3745, %v3746
          %v3748 = vsel %vm3634, %v3726, 0.0
          %v3749 = vadd.f32 %v3747, %v3748
          %v3750 = vsel %vm3634, %v3727, 0.0
          %v3751 = vadd.f32 %v3749, %v3750
          %v3752 = vsel %vm3634, %v3728, 0.0
          %v3753 = vadd.f32 %v3751, %v3752
          %v3754 = vsel %vm3634, %v3729, 0.0
          %v3755 = vadd.f32 %v3753, %v3754
          %v3756 = vsel %vm3634, %v3730, 0.0
          %v3757 = vadd.f32 %v3755, %v3756
          %v3758 = vsel %vm3634, %v3731, 0.0
          %v3759 = vadd.f32 %v3757, %v3758
          %v3760 = vsel %vm3634, %v3732, 0.0
          %v3761 = vadd.f32 %v3759, %v3760
          %v3762 = vsel %vm3634, %v3733, 0.0
          %v3763 = vadd.f32 %v3761, %v3762
          %v3764 = vsel %vm3634, %v3734, 0.0
          %v3765 = vadd.f32 %v3763, %v3764
          %3766 = vadd.xlane.f32.xlu0 %v3765
          %v3767 = vpop.xlane.xlu0 %3766
          %v3768 = vrot.slane %v3767, 4
          %v3769 = vadd.f32 %v3767, %v3768
          %v3770 = vrot.slane %v3769, 2
          %v3771 = vadd.f32 %v3769, %v3770
          %v3772 = vrot.slane %v3771, 1
          %v3773 = vadd.f32 %v3771, %v3772
          %s3774 = vtos %v3773
          %vm3775 = vcmp.eq.s32.totalorder %v3297, 1
          %v3776 = vld [vmem:[#allocation4] sm:$0xff]
          %v3777 = vld [vmem:[#allocation4 + $0x8] sm:$0xff]
          %v3778 = vld [vmem:[#allocation4 + $0x10] sm:$0xff]
          %v3779 = vld [vmem:[#allocation4 + $0x18] sm:$0xff]
          %v3780 = vld [vmem:[#allocation4 + $0x20] sm:$0xff]
          %v3781 = vld [vmem:[#allocation4 + $0x28] sm:$0xff]
          %v3782 = vld [vmem:[#allocation4 + $0x30] sm:$0xff]
          %v3783 = vld [vmem:[#allocation4 + $0x38] sm:$0xff]
          %v3784 = vld [vmem:[#allocation4 + $0x40] sm:$0xff]
          %v3785 = vld [vmem:[#allocation4 + $0x48] sm:$0xff]
          %v3786 = vld [vmem:[#allocation4 + $0x50] sm:$0xff]
          %v3787 = vld [vmem:[#allocation4 + $0x58] sm:$0xff]
          %v3788 = vld [vmem:[#allocation4 + $0x60] sm:$0xff]
          %v3789 = vld [vmem:[#allocation4 + $0x68] sm:$0xff]
          %v3790 = vld [vmem:[#allocation4 + $0x70] sm:$0xff]
          %v3791 = vld [vmem:[#allocation4 + $0x78] sm:$0xff]
          %v3792 = vsel %vm3634, %v3776, 0.0
          %v3793 = vsel %vm3634, %v3777, 0.0
          %v3794 = vadd.f32 %v3792, %v3793
          %v3795 = vsel %vm3634, %v3778, 0.0
          %v3796 = vadd.f32 %v3794, %v3795
          %v3797 = vsel %vm3634, %v3779, 0.0
          %v3798 = vadd.f32 %v3796, %v3797
          %v3799 = vsel %vm3634, %v3780, 0.0
          %v3800 = vadd.f32 %v3798, %v3799
          %v3801 = vsel %vm3634, %v3781, 0.0
          %v3802 = vadd.f32 %v3800, %v3801
          %v3803 = vsel %vm3634, %v3782, 0.0
          %v3804 = vadd.f32 %v3802, %v3803
          %v3805 = vsel %vm3634, %v3783, 0.0
          %v3806 = vadd.f32 %v3804, %v3805
          %v3807 = vsel %vm3634, %v3784, 0.0
          %v3808 = vadd.f32 %v3806, %v3807
          %v3809 = vsel %vm3634, %v3785, 0.0
          %v3810 = vadd.f32 %v3808, %v3809
          %v3811 = vsel %vm3634, %v3786, 0.0
          %v3812 = vadd.f32 %v3810, %v3811
          %v3813 = vsel %vm3634, %v3787, 0.0
          %v3814 = vadd.f32 %v3812, %v3813
          %v3815 = vsel %vm3634, %v3788, 0.0
          %v3816 = vadd.f32 %v3814, %v3815
          %v3817 = vsel %vm3634, %v3789, 0.0
          %v3818 = vadd.f32 %v3816, %v3817
          %v3819 = vsel %vm3634, %v3790, 0.0
          %v3820 = vadd.f32 %v3818, %v3819
          %v3821 = vsel %vm3634, %v3791, 0.0
          %v3822 = vadd.f32 %v3820, %v3821
          %3823 = vadd.xlane.f32.xlu0 %v3822
          %v3824 = vpop.xlane.xlu0 %3823
          %v3825 = vrot.slane %v3824, 4
          %v3826 = vadd.f32 %v3824, %v3825
          %v3827 = vrot.slane %v3826, 2
          %v3828 = vadd.f32 %v3826, %v3827
          %v3829 = vrot.slane %v3828, 1
          %v3830 = vadd.f32 %v3828, %v3829
          %s3831 = vtos %v3830
          %v3832 = vstv %s3831
          %v3833 = vsel %vm3775, %v3832, 0.0
          %v3834 = vstv %s3774
          %v3835 = vsel %vm3718, %v3834, %v3833
          %3836 = vst [vmem:[%s648] sm:$0x1] %v3835
        $region120: #{infograph_forward.3} parent=79 // pred_fallthru
          _
        %p3837 = scmp.lt.s32.totalorder %s35, 1
        %s3838 = scalar_select %p3837, %s35, 1
        %s3839 = scalar_lea.vmem %s15, %s3838
        // Predicated region
        $region121: #{infograph_forward.3} parent=79 // pred_check
          %p3840 = pneg %p390
        $region122: #{infograph_forward.3} parent=79 // pred_check_branch
          %3842 = sbr.rel (%p3840) target = $region124
        $region123: #{infograph_forward.3} parent=79 // pred_region
          _
        $region124: #{infograph_forward.3} parent=79 // pred_fallthru
          _
      $region80: #{infograph_forward.3} parent=5 // pred_fallthru
        _
      %p3843 = scmp.le.s32.totalorder 2, %s26
      // Predicated region
      $region125: #{infograph_forward.3} parent=5 // pred_check
        %p3844 = pneg %p3843
      $region126: #{infograph_forward.3} parent=5 // pred_check_branch
        %3846 = sbr.rel (%p3844) target = $region128
      $region127: #{infograph_forward.3} parent=5 // pred_region
        %s3847 = ssub.s32 %s26, 2
        // Predicated region
        $region129: #{infograph_forward.3} parent=127 // pred_check
          %p3848 = pneg %p396
        $region130: #{infograph_forward.3} parent=127 // pred_check_branch
          %3850 = sbr.rel (%p3848) target = $region132
        $region131: #{infograph_forward.3} parent=127 // pred_region
          %p3851 = scmp.lt.s32.totalorder %s37, 1
          %s3852 = scalar_select %p3851, %s37, 1
          %s3853 = scalar_lea.vmem %s15, %s3852
        $region132: #{infograph_forward.3} parent=127 // pred_fallthru
          _
      $region128: #{infograph_forward.3} parent=5 // pred_fallthru
        _
    $region6: #{infograph_forward.3} parent=1 // loop_footer
      %s30 = sadd.s32 1, %s26
    $region7: #{infograph_forward.3} parent=1 // loop_footer_branch
      %25 = sbr.rel target = $region3
    $region8: #{infograph_forward.3} parent=1 // loop_exit
      _
    %3854 = vsyncpa [#allocation6], 1
    %s3855 = scalar_lea.sflag [#allocation6], 1
    %3856 = vsyncpa %s3855, 1
    %3857 = vsyncpa [#allocation8], 1
    %3858 = vsyncpa [#allocation11], 1
    %3859 = vsyncpa [#allocation14], 1
    %3860 = vsyncpa [#allocation17], 1

</llo_original>
